<compile_context>
chip_gen: v7x
topology: tpu7x:2x2x1
jax: 0.10.0
libtpu: 0.0.40
codegen_flags: <defaults>
</compile_context>

<pallas_src>
import jax
import jax.numpy as jnp
from jax.experimental import pallas as pl
from jax.experimental.pallas import tpu as pltpu

BN_EPS = 1e-5
KSIZE = 4
COMPUTE_DTYPE = jnp.bfloat16       # MXU operand dtype; epilogue is f32
VMEM_LIMIT = 32 * 1024 * 1024      # < 64 MiB physical VMEM per TC on v7x

# (output phase d, 3x3-patch offset u) -> transposed-conv kernel tap kh.
# Derived from oh = 2*ih - 1 + kh for k=4, s=2, p=1:
#   even rows: o[2t]   = x[t-1]*w[3] + x[t]*w[1]
#   odd rows : o[2t+1] = x[t]  *w[2] + x[t+1]*w[0]
_PHASE_TAPS = ((0, 0, 3), (0, 1, 1), (1, 1, 2), (1, 2, 0))


def _round_up(x, m):
    return (x + m - 1) // m * m


# ---------------------------------------------------------------------------
# Pallas kernels
# ---------------------------------------------------------------------------
def _make_matmul_bn_relu_kernel(num_groups):
    """A @ W fused with BatchNorm (training-mode batch stats) + ReLU.

    Matmul output columns are `num_groups` groups of `c_pad` channels
    (16 spatial taps for layer 1, the 4 output phases for stride-2 layers).
    BN statistics for one channel are pooled over all rows and all groups,
    which is exactly the (N, H_out, W_out) reduction of BatchNorm2d.
    """
    def kernel(a_ref, w_ref, gamma_ref, beta_ref, o_ref):
        acc = jnp.dot(a_ref[...], w_ref[...], preferred_element_type=jnp.float32)
        c = gamma_ref.shape[1]
        count = acc.shape[0] * num_groups
        grp = [acc[:, g * c:(g + 1) * c] for g in range(num_groups)]

        ssum = grp[0].sum(axis=0, keepdims=True)
        for g in range(1, num_groups):
            ssum = ssum + grp[g].sum(axis=0, keepdims=True)
        mean = ssum * (1.0 / count)

        ssq = jnp.zeros_like(mean)
        for g in range(num_groups):
            d = grp[g] - mean
            ssq = ssq + (d * d).sum(axis=0, keepdims=True)
        var = ssq * (1.0 / count)          # biased variance (PyTorch BN normalization)

        scale = gamma_ref[...] * jax.lax.rsqrt(var + BN_EPS)
        shift = beta_ref[...] - mean * scale
        y = jnp.concatenate(
            [jnp.maximum(grp[g] * scale + shift, 0.0) for g in range(num_groups)],
            axis=1)
        o_ref[...] = y.astype(o_ref.dtype)      # single full-width (lane-dense) store
    return kernel


def _matmul_bias_tanh_kernel(a_ref, w_ref, b_ref, o_ref):
    acc = jnp.dot(a_ref[...], w_ref[...], preferred_element_type=jnp.float32)
    o_ref[...] = jnp.tanh(acc + b_ref[...]).astype(o_ref.dtype)


# ---------------------------------------------------------------------------
# pallas_call wrappers
# ---------------------------------------------------------------------------
def _fused_bn_relu(a, w, gamma, beta, *, num_groups, out_dtype):
    m = a.shape[0]
    width = w.shape[1]
    c_pad = width // num_groups
    g2 = jnp.zeros((1, c_pad), jnp.float32).at[0, :gamma.shape[0]].set(gamma)
    b2 = jnp.zeros((1, c_pad), jnp.float32).at[0, :beta.shape[0]].set(beta)
    # Single block: BN batch stats need every row resident (M <= 512 here).
    # TODO(synk): switch to a tiled two-pass reduction for large batch sizes.
    return pl.pallas_call(
        _make_matmul_bn_relu_kernel(num_groups),
        out_shape=jax.ShapeDtypeStruct((m, width), out_dtype),
        compiler_params=pltpu.CompilerParams(vmem_limit_bytes=VMEM_LIMIT),
    )(a, w, g2, b2)


def _fused_bias_tanh(a, w, bias, *, block_m=256):
    m, k = a.shape
    width = w.shape[1]
    c_pad = width // 4
    b2 = jnp.zeros((4, c_pad), jnp.float32).at[:, :bias.shape[0]].set(bias)
    b2 = b2.reshape(1, width)
    bm = min(block_m, m)
    if m % bm:
        bm = m
    return pl.pallas_call(
        _matmul_bias_tanh_kernel,
        out_shape=jax.ShapeDtypeStruct((m, width), jnp.float32),
        grid=(m // bm,),
        in_specs=[pl.BlockSpec((bm, k), lambda i: (i, 0)),
                  pl.BlockSpec((k, width), lambda i: (0, 0)),
                  pl.BlockSpec((1, width), lambda i: (0, 0))],
        out_specs=pl.BlockSpec((bm, width), lambda i: (i, 0)),
        compiler_params=pltpu.CompilerParams(
            dimension_semantics=("parallel",),
            vmem_limit_bytes=VMEM_LIMIT),
    )(a, w, b2)


# ---------------------------------------------------------------------------
# NHWC glue (XLA): 3x3 im2col and phase -> space reassembly
# ---------------------------------------------------------------------------
def _im2col_3x3(y):
    """NHWC (N,H,W,C) -> (N*H*W, 9*C): 3x3 patches of the 1-padded input.
    Column order (u, v, c) matches the packed weight row order."""
    n, h, w, c = y.shape
    yp = jnp.pad(y, ((0, 0), (1, 1), (1, 1), (0, 0)))
    cols = [yp[:, u:u + h, v:v + w, :] for u in range(3) for v in range(3)]
    return jnp.concatenate(cols, axis=-1).reshape(n * h * w, 9 * c)


def _phase_to_space(out, n, h, w, c_out):
    """(N*H*W, 4*c_pad) phase-packed output -> NHWC (N, 2H, 2W, c_out)."""
    c_pad = out.shape[1] // 4
    o = out.reshape(n, h, w, 2, 2, c_pad)[..., :c_out]
    return o.transpose(0, 1, 3, 2, 4, 5).reshape(n, 2 * h, 2 * w, c_out)


# ---------------------------------------------------------------------------
# Weight packing (PyTorch ConvTranspose2d layout -> matmul-ready bf16 matrices)
# ---------------------------------------------------------------------------
def _pack_deconv_s2(w_pt):
    """ConvTranspose2d(k=4, s=2, p=1) weight (C_in, C_out, 4, 4) ->
    phase-packed matmul weight (9*C_in, 4*c_pad), zero-padded lane-dense."""
    c_in, c_out = w_pt.shape[:2]
    c_pad = _round_up(c_out, 32)              # 4 * c_pad is a multiple of 128
    w = jnp.zeros((9 * c_in, 4 * c_pad), jnp.float32)
    for dh, u, kh in _PHASE_TAPS:
        for dw, v, kw in _PHASE_TAPS:
            r0 = (u * 3 + v) * c_in
            c0 = (dh * 2 + dw) * c_pad
            w = w.at[r0:r0 + c_in, c0:c0 + c_out].set(w_pt[:, :, kh, kw])
    return w.astype(COMPUTE_DTYPE)


def _pack_deconv_first(w_pt):
    """ConvTranspose2d(k=4, s=1, p=0) on a 1x1 input:
    (C_in, C_out, 4, 4) -> (C_in, 16*c_pad), columns ordered (kh, kw, c)."""
    c_in, c_out = w_pt.shape[:2]
    c_pad = _round_up(c_out, 8)               # 16 * c_pad is a multiple of 128
    w = jnp.transpose(w_pt, (0, 2, 3, 1))
    w = jnp.pad(w, ((0, 0), (0, 0), (0, 0), (0, c_pad - c_out)))
    return w.reshape(c_in, 16 * c_pad).astype(COMPUTE_DTYPE)


# ---------------------------------------------------------------------------
# Generator: params + forward
# ---------------------------------------------------------------------------
def init_generator_params(key, z_dim, img_channels, num_features=8):
    """Parameters in PyTorch ConvTranspose2d layout (C_in, C_out, k, k)."""
    f = num_features
    cfg = [(z_dim, f * 16), (f * 16, f * 8), (f * 8, f * 4), (f * 4, f * 2)]
    keys = jax.random.split(key, 3 * len(cfg) + 2)
    ki = 0
    blocks = []
    for cin, cout in cfg:
        w = 0.05 * jax.random.normal(keys[ki], (cin, cout, KSIZE, KSIZE), jnp.float32); ki += 1
        gamma = 1.0 + 0.1 * jax.random.normal(keys[ki], (cout,), jnp.float32); ki += 1
        beta = 0.1 * jax.random.normal(keys[ki], (cout,), jnp.float32); ki += 1
        blocks.append((w, gamma, beta))
    w_fin = 0.05 * jax.random.normal(keys[ki], (f * 2, img_channels, KSIZE, KSIZE), jnp.float32); ki += 1
    b_fin = 0.1 * jax.random.normal(keys[ki], (img_channels,), jnp.float32)
    return {"blocks": blocks, "final": (w_fin, b_fin)}


def pack_generator_params(params):
    """One-time re-layout of PyTorch weights into matmul-ready bf16 matrices."""
    w1, g1, b1 = params["blocks"][0]
    w_fin, b_fin = params["final"]
    return {
        "first": (_pack_deconv_first(w1), g1, b1),
        "blocks": [(_pack_deconv_s2(w), g, b) for (w, g, b) in params["blocks"][1:]],
        "final": (_pack_deconv_s2(w_fin), b_fin),
    }


def generator_forward(packed, z):
    """z: (N, z_dim, 1, 1) noise (NCHW) -> (N, img_channels, 64, 64) image (NCHW)."""
    n = z.shape[0]

    # Block 1: ConvTranspose2d(z_dim, f*16, 4, 1, 0) + BN + ReLU -> (N,4,4,f*16) NHWC.
    w1, g1, b1 = packed["first"]
    c_pad = w1.shape[1] // 16
    a = z.reshape(n, -1).astype(COMPUTE_DTYPE)
    out = _fused_bn_relu(a, w1, g1, b1, num_groups=16, out_dtype=COMPUTE_DTYPE)
    h = out.reshape(n, KSIZE, KSIZE, c_pad)[..., :g1.shape[0]]

    # Blocks 2-4: ConvTranspose2d(k=4, s=2, p=1) + BN + ReLU via 4-phase lowering.
    for w, g, b in packed["blocks"]:
        hin, win = h.shape[1], h.shape[2]
        a = _im2col_3x3(h).astype(COMPUTE_DTYPE)
        out = _fused_bn_relu(a, w, g, b, num_groups=4, out_dtype=COMPUTE_DTYPE)
        h = _phase_to_space(out, n, hin, win, g.shape[0])

    # Final: ConvTranspose2d(f*2, img_channels, 4, 2, 1) + bias + Tanh.
    wf, bf = packed["final"]
    hin, win = h.shape[1], h.shape[2]
    a = _im2col_3x3(h).astype(COMPUTE_DTYPE)
    out = _fused_bias_tanh(a, wf, bf)
    img = _phase_to_space(out, n, hin, win, bf.shape[0])    # NHWC, f32
    return img.transpose(0, 3, 1, 2)                        # single NCHW transpose


if __name__ == "__main__":
    key = jax.random.PRNGKey(0)
    k_params, k_noise = jax.random.split(key)

    batch, z_dim, img_channels, num_features = 2, 8, 3, 8
    params = init_generator_params(k_params, z_dim, img_channels, num_features)
    packed = pack_generator_params(params)

    # noise: N x z_dim x 1 x 1  ->  image: N x img_channels x 64 x 64
    z = jax.random.normal(k_noise, (batch, z_dim, 1, 1), jnp.float32)

    fwd = jax.jit(generator_forward)
    img = jax.block_until_ready(fwd(packed, z))

    assert img.shape == (batch, img_channels, 64, 64), img.shape
    assert bool(jnp.all(jnp.isfinite(img)))
    assert bool(jnp.all(jnp.abs(img) <= 1.0))  # tanh range
    print("KERNEL_OK")
</pallas_src>

<mosaic_0001>
module attributes {stable_mosaic.version = 11 : i64} {
  func.func @kernel(%arg0: memref<2x8xbf16, #tpu.memory_space<vmem>>, %arg1: memref<8x2048xbf16, #tpu.memory_space<vmem>>, %arg2: memref<1x128xf32, #tpu.memory_space<vmem>>, %arg3: memref<1x128xf32, #tpu.memory_space<vmem>>, %arg4: memref<2x2048xbf16, #tpu.memory_space<vmem>>) attributes {dimension_semantics = [], scalar_prefetch = 0 : i64, scratch_operands = 0 : i64, tpu.core_type = #tpu.core_type<tc>} {
    %c0 = arith.constant 0 : index
    %c0_0 = arith.constant 0 : index
    %0 = vector.load %arg0[%c0, %c0_0] : memref<2x8xbf16, #tpu.memory_space<vmem>>, vector<2x8xbf16>
    %c0_1 = arith.constant 0 : index
    %c0_2 = arith.constant 0 : index
    %1 = vector.load %arg1[%c0_1, %c0_2] : memref<8x2048xbf16, #tpu.memory_space<vmem>>, vector<8x2048xbf16>
    %cst = arith.constant dense<0.000000e+00> : vector<2x2048xf32>
    %2 = tpu.matmul %0, %1, %cst {dimension_numbers = #tpu.dot_dimension_numbers<[1], [0], [0], [1], [0, 0, 1, 1], [], []>} : vector<2x8xbf16>, vector<8x2048xbf16>, vector<2x2048xf32> -> vector<2x2048xf32>
    %3 = vector.extract_strided_slice %2 {offsets = [0, 0], sizes = [2, 128], strides = [1, 1]} : vector<2x2048xf32> to vector<2x128xf32>
    %4 = vector.extract_strided_slice %2 {offsets = [0, 128], sizes = [2, 128], strides = [1, 1]} : vector<2x2048xf32> to vector<2x128xf32>
    %5 = vector.extract_strided_slice %2 {offsets = [0, 256], sizes = [2, 128], strides = [1, 1]} : vector<2x2048xf32> to vector<2x128xf32>
    %6 = vector.extract_strided_slice %2 {offsets = [0, 384], sizes = [2, 128], strides = [1, 1]} : vector<2x2048xf32> to vector<2x128xf32>
    %7 = vector.extract_strided_slice %2 {offsets = [0, 512], sizes = [2, 128], strides = [1, 1]} : vector<2x2048xf32> to vector<2x128xf32>
    %8 = vector.extract_strided_slice %2 {offsets = [0, 640], sizes = [2, 128], strides = [1, 1]} : vector<2x2048xf32> to vector<2x128xf32>
    %9 = vector.extract_strided_slice %2 {offsets = [0, 768], sizes = [2, 128], strides = [1, 1]} : vector<2x2048xf32> to vector<2x128xf32>
    %10 = vector.extract_strided_slice %2 {offsets = [0, 896], sizes = [2, 128], strides = [1, 1]} : vector<2x2048xf32> to vector<2x128xf32>
    %11 = vector.extract_strided_slice %2 {offsets = [0, 1024], sizes = [2, 128], strides = [1, 1]} : vector<2x2048xf32> to vector<2x128xf32>
    %12 = vector.extract_strided_slice %2 {offsets = [0, 1152], sizes = [2, 128], strides = [1, 1]} : vector<2x2048xf32> to vector<2x128xf32>
    %13 = vector.extract_strided_slice %2 {offsets = [0, 1280], sizes = [2, 128], strides = [1, 1]} : vector<2x2048xf32> to vector<2x128xf32>
    %14 = vector.extract_strided_slice %2 {offsets = [0, 1408], sizes = [2, 128], strides = [1, 1]} : vector<2x2048xf32> to vector<2x128xf32>
    %15 = vector.extract_strided_slice %2 {offsets = [0, 1536], sizes = [2, 128], strides = [1, 1]} : vector<2x2048xf32> to vector<2x128xf32>
    %16 = vector.extract_strided_slice %2 {offsets = [0, 1664], sizes = [2, 128], strides = [1, 1]} : vector<2x2048xf32> to vector<2x128xf32>
    %17 = vector.extract_strided_slice %2 {offsets = [0, 1792], sizes = [2, 128], strides = [1, 1]} : vector<2x2048xf32> to vector<2x128xf32>
    %18 = vector.extract_strided_slice %2 {offsets = [0, 1920], sizes = [2, 128], strides = [1, 1]} : vector<2x2048xf32> to vector<2x128xf32>
    %cst_3 = arith.constant dense<0.000000e+00> : vector<128xf32>
    %19 = vector.multi_reduction <add>, %3, %cst_3 [0] : vector<2x128xf32> to vector<128xf32>
    %20 = vector.shape_cast %19 : vector<128xf32> to vector<1x128xf32>
    %cst_4 = arith.constant dense<0.000000e+00> : vector<128xf32>
    %21 = vector.multi_reduction <add>, %4, %cst_4 [0] : vector<2x128xf32> to vector<128xf32>
    %22 = vector.shape_cast %21 : vector<128xf32> to vector<1x128xf32>
    %23 = arith.addf %20, %22 : vector<1x128xf32>
    %cst_5 = arith.constant dense<0.000000e+00> : vector<128xf32>
    %24 = vector.multi_reduction <add>, %5, %cst_5 [0] : vector<2x128xf32> to vector<128xf32>
    %25 = vector.shape_cast %24 : vector<128xf32> to vector<1x128xf32>
    %26 = arith.addf %23, %25 : vector<1x128xf32>
    %cst_6 = arith.constant dense<0.000000e+00> : vector<128xf32>
    %27 = vector.multi_reduction <add>, %6, %cst_6 [0] : vector<2x128xf32> to vector<128xf32>
    %28 = vector.shape_cast %27 : vector<128xf32> to vector<1x128xf32>
    %29 = arith.addf %26, %28 : vector<1x128xf32>
    %cst_7 = arith.constant dense<0.000000e+00> : vector<128xf32>
    %30 = vector.multi_reduction <add>, %7, %cst_7 [0] : vector<2x128xf32> to vector<128xf32>
    %31 = vector.shape_cast %30 : vector<128xf32> to vector<1x128xf32>
    %32 = arith.addf %29, %31 : vector<1x128xf32>
    %cst_8 = arith.constant dense<0.000000e+00> : vector<128xf32>
    %33 = vector.multi_reduction <add>, %8, %cst_8 [0] : vector<2x128xf32> to vector<128xf32>
    %34 = vector.shape_cast %33 : vector<128xf32> to vector<1x128xf32>
    %35 = arith.addf %32, %34 : vector<1x128xf32>
    %cst_9 = arith.constant dense<0.000000e+00> : vector<128xf32>
    %36 = vector.multi_reduction <add>, %9, %cst_9 [0] : vector<2x128xf32> to vector<128xf32>
    %37 = vector.shape_cast %36 : vector<128xf32> to vector<1x128xf32>
    %38 = arith.addf %35, %37 : vector<1x128xf32>
    %cst_10 = arith.constant dense<0.000000e+00> : vector<128xf32>
    %39 = vector.multi_reduction <add>, %10, %cst_10 [0] : vector<2x128xf32> to vector<128xf32>
    %40 = vector.shape_cast %39 : vector<128xf32> to vector<1x128xf32>
    %41 = arith.addf %38, %40 : vector<1x128xf32>
    %cst_11 = arith.constant dense<0.000000e+00> : vector<128xf32>
    %42 = vector.multi_reduction <add>, %11, %cst_11 [0] : vector<2x128xf32> to vector<128xf32>
    %43 = vector.shape_cast %42 : vector<128xf32> to vector<1x128xf32>
    %44 = arith.addf %41, %43 : vector<1x128xf32>
    %cst_12 = arith.constant dense<0.000000e+00> : vector<128xf32>
    %45 = vector.multi_reduction <add>, %12, %cst_12 [0] : vector<2x128xf32> to vector<128xf32>
    %46 = vector.shape_cast %45 : vector<128xf32> to vector<1x128xf32>
    %47 = arith.addf %44, %46 : vector<1x128xf32>
    %cst_13 = arith.constant dense<0.000000e+00> : vector<128xf32>
    %48 = vector.multi_reduction <add>, %13, %cst_13 [0] : vector<2x128xf32> to vector<128xf32>
    %49 = vector.shape_cast %48 : vector<128xf32> to vector<1x128xf32>
    %50 = arith.addf %47, %49 : vector<1x128xf32>
    %cst_14 = arith.constant dense<0.000000e+00> : vector<128xf32>
    %51 = vector.multi_reduction <add>, %14, %cst_14 [0] : vector<2x128xf32> to vector<128xf32>
    %52 = vector.shape_cast %51 : vector<128xf32> to vector<1x128xf32>
    %53 = arith.addf %50, %52 : vector<1x128xf32>
    %cst_15 = arith.constant dense<0.000000e+00> : vector<128xf32>
    %54 = vector.multi_reduction <add>, %15, %cst_15 [0] : vector<2x128xf32> to vector<128xf32>
    %55 = vector.shape_cast %54 : vector<128xf32> to vector<1x128xf32>
    %56 = arith.addf %53, %55 : vector<1x128xf32>
    %cst_16 = arith.constant dense<0.000000e+00> : vector<128xf32>
    %57 = vector.multi_reduction <add>, %16, %cst_16 [0] : vector<2x128xf32> to vector<128xf32>
    %58 = vector.shape_cast %57 : vector<128xf32> to vector<1x128xf32>
    %59 = arith.addf %56, %58 : vector<1x128xf32>
    %cst_17 = arith.constant dense<0.000000e+00> : vector<128xf32>
    %60 = vector.multi_reduction <add>, %17, %cst_17 [0] : vector<2x128xf32> to vector<128xf32>
    %61 = vector.shape_cast %60 : vector<128xf32> to vector<1x128xf32>
    %62 = arith.addf %59, %61 : vector<1x128xf32>
    %cst_18 = arith.constant dense<0.000000e+00> : vector<128xf32>
    %63 = vector.multi_reduction <add>, %18, %cst_18 [0] : vector<2x128xf32> to vector<128xf32>
    %64 = vector.shape_cast %63 : vector<128xf32> to vector<1x128xf32>
    %65 = arith.addf %62, %64 : vector<1x128xf32>
    %cst_19 = arith.constant 3.125000e-02 : f32
    %66 = vector.broadcast %cst_19 : f32 to vector<1x128xf32>
    %67 = arith.mulf %65, %66 : vector<1x128xf32>
    %cst_20 = arith.constant 0.000000e+00 : f32
    %68 = vector.broadcast %cst_20 : f32 to vector<1x128xf32>
    %69 = vector.broadcast %67 : vector<1x128xf32> to vector<2x128xf32>
    %70 = arith.subf %3, %69 : vector<2x128xf32>
    %71 = arith.mulf %70, %70 : vector<2x128xf32>
    %cst_21 = arith.constant dense<0.000000e+00> : vector<128xf32>
    %72 = vector.multi_reduction <add>, %71, %cst_21 [0] : vector<2x128xf32> to vector<128xf32>
    %73 = vector.shape_cast %72 : vector<128xf32> to vector<1x128xf32>
    %74 = arith.addf %68, %73 : vector<1x128xf32>
    %75 = vector.broadcast %67 : vector<1x128xf32> to vector<2x128xf32>
    %76 = arith.subf %4, %75 : vector<2x128xf32>
    %77 = arith.mulf %76, %76 : vector<2x128xf32>
    %cst_22 = arith.constant dense<0.000000e+00> : vector<128xf32>
    %78 = vector.multi_reduction <add>, %77, %cst_22 [0] : vector<2x128xf32> to vector<128xf32>
    %79 = vector.shape_cast %78 : vector<128xf32> to vector<1x128xf32>
    %80 = arith.addf %74, %79 : vector<1x128xf32>
    %81 = vector.broadcast %67 : vector<1x128xf32> to vector<2x128xf32>
    %82 = arith.subf %5, %81 : vector<2x128xf32>
    %83 = arith.mulf %82, %82 : vector<2x128xf32>
    %cst_23 = arith.constant dense<0.000000e+00> : vector<128xf32>
    %84 = vector.multi_reduction <add>, %83, %cst_23 [0] : vector<2x128xf32> to vector<128xf32>
    %85 = vector.shape_cast %84 : vector<128xf32> to vector<1x128xf32>
    %86 = arith.addf %80, %85 : vector<1x128xf32>
    %87 = vector.broadcast %67 : vector<1x128xf32> to vector<2x128xf32>
    %88 = arith.subf %6, %87 : vector<2x128xf32>
    %89 = arith.mulf %88, %88 : vector<2x128xf32>
    %cst_24 = arith.constant dense<0.000000e+00> : vector<128xf32>
    %90 = vector.multi_reduction <add>, %89, %cst_24 [0] : vector<2x128xf32> to vector<128xf32>
    %91 = vector.shape_cast %90 : vector<128xf32> to vector<1x128xf32>
    %92 = arith.addf %86, %91 : vector<1x128xf32>
    %93 = vector.broadcast %67 : vector<1x128xf32> to vector<2x128xf32>
    %94 = arith.subf %7, %93 : vector<2x128xf32>
    %95 = arith.mulf %94, %94 : vector<2x128xf32>
    %cst_25 = arith.constant dense<0.000000e+00> : vector<128xf32>
    %96 = vector.multi_reduction <add>, %95, %cst_25 [0] : vector<2x128xf32> to vector<128xf32>
    %97 = vector.shape_cast %96 : vector<128xf32> to vector<1x128xf32>
    %98 = arith.addf %92, %97 : vector<1x128xf32>
    %99 = vector.broadcast %67 : vector<1x128xf32> to vector<2x128xf32>
    %100 = arith.subf %8, %99 : vector<2x128xf32>
    %101 = arith.mulf %100, %100 : vector<2x128xf32>
    %cst_26 = arith.constant dense<0.000000e+00> : vector<128xf32>
    %102 = vector.multi_reduction <add>, %101, %cst_26 [0] : vector<2x128xf32> to vector<128xf32>
    %103 = vector.shape_cast %102 : vector<128xf32> to vector<1x128xf32>
    %104 = arith.addf %98, %103 : vector<1x128xf32>
    %105 = vector.broadcast %67 : vector<1x128xf32> to vector<2x128xf32>
    %106 = arith.subf %9, %105 : vector<2x128xf32>
    %107 = arith.mulf %106, %106 : vector<2x128xf32>
    %cst_27 = arith.constant dense<0.000000e+00> : vector<128xf32>
    %108 = vector.multi_reduction <add>, %107, %cst_27 [0] : vector<2x128xf32> to vector<128xf32>
    %109 = vector.shape_cast %108 : vector<128xf32> to vector<1x128xf32>
    %110 = arith.addf %104, %109 : vector<1x128xf32>
    %111 = vector.broadcast %67 : vector<1x128xf32> to vector<2x128xf32>
    %112 = arith.subf %10, %111 : vector<2x128xf32>
    %113 = arith.mulf %112, %112 : vector<2x128xf32>
    %cst_28 = arith.constant dense<0.000000e+00> : vector<128xf32>
    %114 = vector.multi_reduction <add>, %113, %cst_28 [0] : vector<2x128xf32> to vector<128xf32>
    %115 = vector.shape_cast %114 : vector<128xf32> to vector<1x128xf32>
    %116 = arith.addf %110, %115 : vector<1x128xf32>
    %117 = vector.broadcast %67 : vector<1x128xf32> to vector<2x128xf32>
    %118 = arith.subf %11, %117 : vector<2x128xf32>
    %119 = arith.mulf %118, %118 : vector<2x128xf32>
    %cst_29 = arith.constant dense<0.000000e+00> : vector<128xf32>
    %120 = vector.multi_reduction <add>, %119, %cst_29 [0] : vector<2x128xf32> to vector<128xf32>
    %121 = vector.shape_cast %120 : vector<128xf32> to vector<1x128xf32>
    %122 = arith.addf %116, %121 : vector<1x128xf32>
    %123 = vector.broadcast %67 : vector<1x128xf32> to vector<2x128xf32>
    %124 = arith.subf %12, %123 : vector<2x128xf32>
    %125 = arith.mulf %124, %124 : vector<2x128xf32>
    %cst_30 = arith.constant dense<0.000000e+00> : vector<128xf32>
    %126 = vector.multi_reduction <add>, %125, %cst_30 [0] : vector<2x128xf32> to vector<128xf32>
    %127 = vector.shape_cast %126 : vector<128xf32> to vector<1x128xf32>
    %128 = arith.addf %122, %127 : vector<1x128xf32>
    %129 = vector.broadcast %67 : vector<1x128xf32> to vector<2x128xf32>
    %130 = arith.subf %13, %129 : vector<2x128xf32>
    %131 = arith.mulf %130, %130 : vector<2x128xf32>
    %cst_31 = arith.constant dense<0.000000e+00> : vector<128xf32>
    %132 = vector.multi_reduction <add>, %131, %cst_31 [0] : vector<2x128xf32> to vector<128xf32>
    %133 = vector.shape_cast %132 : vector<128xf32> to vector<1x128xf32>
    %134 = arith.addf %128, %133 : vector<1x128xf32>
    %135 = vector.broadcast %67 : vector<1x128xf32> to vector<2x128xf32>
    %136 = arith.subf %14, %135 : vector<2x128xf32>
    %137 = arith.mulf %136, %136 : vector<2x128xf32>
    %cst_32 = arith.constant dense<0.000000e+00> : vector<128xf32>
    %138 = vector.multi_reduction <add>, %137, %cst_32 [0] : vector<2x128xf32> to vector<128xf32>
    %139 = vector.shape_cast %138 : vector<128xf32> to vector<1x128xf32>
    %140 = arith.addf %134, %139 : vector<1x128xf32>
    %141 = vector.broadcast %67 : vector<1x128xf32> to vector<2x128xf32>
    %142 = arith.subf %15, %141 : vector<2x128xf32>
    %143 = arith.mulf %142, %142 : vector<2x128xf32>
    %cst_33 = arith.constant dense<0.000000e+00> : vector<128xf32>
    %144 = vector.multi_reduction <add>, %143, %cst_33 [0] : vector<2x128xf32> to vector<128xf32>
    %145 = vector.shape_cast %144 : vector<128xf32> to vector<1x128xf32>
    %146 = arith.addf %140, %145 : vector<1x128xf32>
    %147 = vector.broadcast %67 : vector<1x128xf32> to vector<2x128xf32>
    %148 = arith.subf %16, %147 : vector<2x128xf32>
    %149 = arith.mulf %148, %148 : vector<2x128xf32>
    %cst_34 = arith.constant dense<0.000000e+00> : vector<128xf32>
    %150 = vector.multi_reduction <add>, %149, %cst_34 [0] : vector<2x128xf32> to vector<128xf32>
    %151 = vector.shape_cast %150 : vector<128xf32> to vector<1x128xf32>
    %152 = arith.addf %146, %151 : vector<1x128xf32>
    %153 = vector.broadcast %67 : vector<1x128xf32> to vector<2x128xf32>
    %154 = arith.subf %17, %153 : vector<2x128xf32>
    %155 = arith.mulf %154, %154 : vector<2x128xf32>
    %cst_35 = arith.constant dense<0.000000e+00> : vector<128xf32>
    %156 = vector.multi_reduction <add>, %155, %cst_35 [0] : vector<2x128xf32> to vector<128xf32>
    %157 = vector.shape_cast %156 : vector<128xf32> to vector<1x128xf32>
    %158 = arith.addf %152, %157 : vector<1x128xf32>
    %159 = vector.broadcast %67 : vector<1x128xf32> to vector<2x128xf32>
    %160 = arith.subf %18, %159 : vector<2x128xf32>
    %161 = arith.mulf %160, %160 : vector<2x128xf32>
    %cst_36 = arith.constant dense<0.000000e+00> : vector<128xf32>
    %162 = vector.multi_reduction <add>, %161, %cst_36 [0] : vector<2x128xf32> to vector<128xf32>
    %163 = vector.shape_cast %162 : vector<128xf32> to vector<1x128xf32>
    %164 = arith.addf %158, %163 : vector<1x128xf32>
    %cst_37 = arith.constant 3.125000e-02 : f32
    %165 = vector.broadcast %cst_37 : f32 to vector<1x128xf32>
    %166 = arith.mulf %164, %165 : vector<1x128xf32>
    %c0_38 = arith.constant 0 : index
    %c0_39 = arith.constant 0 : index
    %167 = vector.load %arg2[%c0_38, %c0_39] : memref<1x128xf32, #tpu.memory_space<vmem>>, vector<1x128xf32>
    %cst_40 = arith.constant 9.99999974E-6 : f32
    %168 = vector.broadcast %cst_40 : f32 to vector<1x128xf32>
    %169 = arith.addf %166, %168 : vector<1x128xf32>
    %170 = math.rsqrt %169 : vector<1x128xf32>
    %171 = arith.mulf %167, %170 : vector<1x128xf32>
    %c0_41 = arith.constant 0 : index
    %c0_42 = arith.constant 0 : index
    %172 = vector.load %arg3[%c0_41, %c0_42] : memref<1x128xf32, #tpu.memory_space<vmem>>, vector<1x128xf32>
    %173 = arith.mulf %67, %171 : vector<1x128xf32>
    %174 = arith.subf %172, %173 : vector<1x128xf32>
    %175 = vector.broadcast %171 : vector<1x128xf32> to vector<2x128xf32>
    %176 = arith.mulf %3, %175 : vector<2x128xf32>
    %177 = vector.broadcast %174 : vector<1x128xf32> to vector<2x128xf32>
    %178 = arith.addf %176, %177 : vector<2x128xf32>
    %cst_43 = arith.constant 0.000000e+00 : f32
    %179 = vector.broadcast %cst_43 : f32 to vector<2x128xf32>
    %180 = arith.maximumf %178, %179 : vector<2x128xf32>
    %181 = vector.broadcast %171 : vector<1x128xf32> to vector<2x128xf32>
    %182 = arith.mulf %4, %181 : vector<2x128xf32>
    %183 = vector.broadcast %174 : vector<1x128xf32> to vector<2x128xf32>
    %184 = arith.addf %182, %183 : vector<2x128xf32>
    %cst_44 = arith.constant 0.000000e+00 : f32
    %185 = vector.broadcast %cst_44 : f32 to vector<2x128xf32>
    %186 = arith.maximumf %184, %185 : vector<2x128xf32>
    %187 = vector.broadcast %171 : vector<1x128xf32> to vector<2x128xf32>
    %188 = arith.mulf %5, %187 : vector<2x128xf32>
    %189 = vector.broadcast %174 : vector<1x128xf32> to vector<2x128xf32>
    %190 = arith.addf %188, %189 : vector<2x128xf32>
    %cst_45 = arith.constant 0.000000e+00 : f32
    %191 = vector.broadcast %cst_45 : f32 to vector<2x128xf32>
    %192 = arith.maximumf %190, %191 : vector<2x128xf32>
    %193 = vector.broadcast %171 : vector<1x128xf32> to vector<2x128xf32>
    %194 = arith.mulf %6, %193 : vector<2x128xf32>
    %195 = vector.broadcast %174 : vector<1x128xf32> to vector<2x128xf32>
    %196 = arith.addf %194, %195 : vector<2x128xf32>
    %cst_46 = arith.constant 0.000000e+00 : f32
    %197 = vector.broadcast %cst_46 : f32 to vector<2x128xf32>
    %198 = arith.maximumf %196, %197 : vector<2x128xf32>
    %199 = vector.broadcast %171 : vector<1x128xf32> to vector<2x128xf32>
    %200 = arith.mulf %7, %199 : vector<2x128xf32>
    %201 = vector.broadcast %174 : vector<1x128xf32> to vector<2x128xf32>
    %202 = arith.addf %200, %201 : vector<2x128xf32>
    %cst_47 = arith.constant 0.000000e+00 : f32
    %203 = vector.broadcast %cst_47 : f32 to vector<2x128xf32>
    %204 = arith.maximumf %202, %203 : vector<2x128xf32>
    %205 = vector.broadcast %171 : vector<1x128xf32> to vector<2x128xf32>
    %206 = arith.mulf %8, %205 : vector<2x128xf32>
    %207 = vector.broadcast %174 : vector<1x128xf32> to vector<2x128xf32>
    %208 = arith.addf %206, %207 : vector<2x128xf32>
    %cst_48 = arith.constant 0.000000e+00 : f32
    %209 = vector.broadcast %cst_48 : f32 to vector<2x128xf32>
    %210 = arith.maximumf %208, %209 : vector<2x128xf32>
    %211 = vector.broadcast %171 : vector<1x128xf32> to vector<2x128xf32>
    %212 = arith.mulf %9, %211 : vector<2x128xf32>
    %213 = vector.broadcast %174 : vector<1x128xf32> to vector<2x128xf32>
    %214 = arith.addf %212, %213 : vector<2x128xf32>
    %cst_49 = arith.constant 0.000000e+00 : f32
    %215 = vector.broadcast %cst_49 : f32 to vector<2x128xf32>
    %216 = arith.maximumf %214, %215 : vector<2x128xf32>
    %217 = vector.broadcast %171 : vector<1x128xf32> to vector<2x128xf32>
    %218 = arith.mulf %10, %217 : vector<2x128xf32>
    %219 = vector.broadcast %174 : vector<1x128xf32> to vector<2x128xf32>
    %220 = arith.addf %218, %219 : vector<2x128xf32>
    %cst_50 = arith.constant 0.000000e+00 : f32
    %221 = vector.broadcast %cst_50 : f32 to vector<2x128xf32>
    %222 = arith.maximumf %220, %221 : vector<2x128xf32>
    %223 = vector.broadcast %171 : vector<1x128xf32> to vector<2x128xf32>
    %224 = arith.mulf %11, %223 : vector<2x128xf32>
    %225 = vector.broadcast %174 : vector<1x128xf32> to vector<2x128xf32>
    %226 = arith.addf %224, %225 : vector<2x128xf32>
    %cst_51 = arith.constant 0.000000e+00 : f32
    %227 = vector.broadcast %cst_51 : f32 to vector<2x128xf32>
    %228 = arith.maximumf %226, %227 : vector<2x128xf32>
    %229 = vector.broadcast %171 : vector<1x128xf32> to vector<2x128xf32>
    %230 = arith.mulf %12, %229 : vector<2x128xf32>
    %231 = vector.broadcast %174 : vector<1x128xf32> to vector<2x128xf32>
    %232 = arith.addf %230, %231 : vector<2x128xf32>
    %cst_52 = arith.constant 0.000000e+00 : f32
    %233 = vector.broadcast %cst_52 : f32 to vector<2x128xf32>
    %234 = arith.maximumf %232, %233 : vector<2x128xf32>
    %235 = vector.broadcast %171 : vector<1x128xf32> to vector<2x128xf32>
    %236 = arith.mulf %13, %235 : vector<2x128xf32>
    %237 = vector.broadcast %174 : vector<1x128xf32> to vector<2x128xf32>
    %238 = arith.addf %236, %237 : vector<2x128xf32>
    %cst_53 = arith.constant 0.000000e+00 : f32
    %239 = vector.broadcast %cst_53 : f32 to vector<2x128xf32>
    %240 = arith.maximumf %238, %239 : vector<2x128xf32>
    %241 = vector.broadcast %171 : vector<1x128xf32> to vector<2x128xf32>
    %242 = arith.mulf %14, %241 : vector<2x128xf32>
    %243 = vector.broadcast %174 : vector<1x128xf32> to vector<2x128xf32>
    %244 = arith.addf %242, %243 : vector<2x128xf32>
    %cst_54 = arith.constant 0.000000e+00 : f32
    %245 = vector.broadcast %cst_54 : f32 to vector<2x128xf32>
    %246 = arith.maximumf %244, %245 : vector<2x128xf32>
    %247 = vector.broadcast %171 : vector<1x128xf32> to vector<2x128xf32>
    %248 = arith.mulf %15, %247 : vector<2x128xf32>
    %249 = vector.broadcast %174 : vector<1x128xf32> to vector<2x128xf32>
    %250 = arith.addf %248, %249 : vector<2x128xf32>
    %cst_55 = arith.constant 0.000000e+00 : f32
    %251 = vector.broadcast %cst_55 : f32 to vector<2x128xf32>
    %252 = arith.maximumf %250, %251 : vector<2x128xf32>
    %253 = vector.broadcast %171 : vector<1x128xf32> to vector<2x128xf32>
    %254 = arith.mulf %16, %253 : vector<2x128xf32>
    %255 = vector.broadcast %174 : vector<1x128xf32> to vector<2x128xf32>
    %256 = arith.addf %254, %255 : vector<2x128xf32>
    %cst_56 = arith.constant 0.000000e+00 : f32
    %257 = vector.broadcast %cst_56 : f32 to vector<2x128xf32>
    %258 = arith.maximumf %256, %257 : vector<2x128xf32>
    %259 = vector.broadcast %171 : vector<1x128xf32> to vector<2x128xf32>
    %260 = arith.mulf %17, %259 : vector<2x128xf32>
    %261 = vector.broadcast %174 : vector<1x128xf32> to vector<2x128xf32>
    %262 = arith.addf %260, %261 : vector<2x128xf32>
    %cst_57 = arith.constant 0.000000e+00 : f32
    %263 = vector.broadcast %cst_57 : f32 to vector<2x128xf32>
    %264 = arith.maximumf %262, %263 : vector<2x128xf32>
    %265 = vector.broadcast %171 : vector<1x128xf32> to vector<2x128xf32>
    %266 = arith.mulf %18, %265 : vector<2x128xf32>
    %267 = vector.broadcast %174 : vector<1x128xf32> to vector<2x128xf32>
    %268 = arith.addf %266, %267 : vector<2x128xf32>
    %cst_58 = arith.constant 0.000000e+00 : f32
    %269 = vector.broadcast %cst_58 : f32 to vector<2x128xf32>
    %270 = arith.maximumf %268, %269 : vector<2x128xf32>
    %271 = tpu.concatenate %180, %186, %192, %198, %204, %210, %216, %222, %228, %234, %240, %246, %252, %258, %264, %270 in 1 : vector<2x128xf32>, vector<2x128xf32>, vector<2x128xf32>, vector<2x128xf32>, vector<2x128xf32>, vector<2x128xf32>, vector<2x128xf32>, vector<2x128xf32>, vector<2x128xf32>, vector<2x128xf32>, vector<2x128xf32>, vector<2x128xf32>, vector<2x128xf32>, vector<2x128xf32>, vector<2x128xf32>, vector<2x128xf32> -> vector<2x2048xf32>
    %272 = arith.truncf %271 : vector<2x2048xf32> to vector<2x2048xbf16>
    %c0_59 = arith.constant 0 : index
    %c0_60 = arith.constant 0 : index
    %273 = vector.load %arg4[%c0_59, %c0_60] : memref<2x2048xbf16, #tpu.memory_space<vmem>>, vector<2x2048xbf16>
    tpu.vector_store %arg4[%c0_59, %c0_60], %272 {strides = array<i32>} : memref<2x2048xbf16, #tpu.memory_space<vmem>>, vector<2x2048xbf16>,
    return
  }
}

module attributes {stable_mosaic.version = 11 : i64} {
  func.func @kernel(%arg0: memref<32x1152xbf16, #tpu.memory_space<vmem>>, %arg1: memref<1152x256xbf16, #tpu.memory_space<vmem>>, %arg2: memref<1x64xf32, #tpu.memory_space<vmem>>, %arg3: memref<1x64xf32, #tpu.memory_space<vmem>>, %arg4: memref<32x256xbf16, #tpu.memory_space<vmem>>) attributes {dimension_semantics = [], scalar_prefetch = 0 : i64, scratch_operands = 0 : i64, tpu.core_type = #tpu.core_type<tc>} {
    %c0 = arith.constant 0 : index
    %c0_0 = arith.constant 0 : index
    %0 = vector.load %arg0[%c0, %c0_0] : memref<32x1152xbf16, #tpu.memory_space<vmem>>, vector<32x1152xbf16>
    %c0_1 = arith.constant 0 : index
    %c0_2 = arith.constant 0 : index
    %1 = vector.load %arg1[%c0_1, %c0_2] : memref<1152x256xbf16, #tpu.memory_space<vmem>>, vector<1152x256xbf16>
    %cst = arith.constant dense<0.000000e+00> : vector<32x256xf32>
    %2 = tpu.matmul %0, %1, %cst {dimension_numbers = #tpu.dot_dimension_numbers<[1], [0], [0], [1], [0, 0, 1, 1], [], []>} : vector<32x1152xbf16>, vector<1152x256xbf16>, vector<32x256xf32> -> vector<32x256xf32>
    %3 = vector.extract_strided_slice %2 {offsets = [0, 0], sizes = [32, 64], strides = [1, 1]} : vector<32x256xf32> to vector<32x64xf32>
    %4 = vector.extract_strided_slice %2 {offsets = [0, 64], sizes = [32, 64], strides = [1, 1]} : vector<32x256xf32> to vector<32x64xf32>
    %5 = vector.extract_strided_slice %2 {offsets = [0, 128], sizes = [32, 64], strides = [1, 1]} : vector<32x256xf32> to vector<32x64xf32>
    %6 = vector.extract_strided_slice %2 {offsets = [0, 192], sizes = [32, 64], strides = [1, 1]} : vector<32x256xf32> to vector<32x64xf32>
    %cst_3 = arith.constant dense<0.000000e+00> : vector<64xf32>
    %7 = vector.multi_reduction <add>, %3, %cst_3 [0] : vector<32x64xf32> to vector<64xf32>
    %8 = vector.shape_cast %7 : vector<64xf32> to vector<1x64xf32>
    %cst_4 = arith.constant dense<0.000000e+00> : vector<64xf32>
    %9 = vector.multi_reduction <add>, %4, %cst_4 [0] : vector<32x64xf32> to vector<64xf32>
    %10 = vector.shape_cast %9 : vector<64xf32> to vector<1x64xf32>
    %11 = arith.addf %8, %10 : vector<1x64xf32>
    %cst_5 = arith.constant dense<0.000000e+00> : vector<64xf32>
    %12 = vector.multi_reduction <add>, %5, %cst_5 [0] : vector<32x64xf32> to vector<64xf32>
    %13 = vector.shape_cast %12 : vector<64xf32> to vector<1x64xf32>
    %14 = arith.addf %11, %13 : vector<1x64xf32>
    %cst_6 = arith.constant dense<0.000000e+00> : vector<64xf32>
    %15 = vector.multi_reduction <add>, %6, %cst_6 [0] : vector<32x64xf32> to vector<64xf32>
    %16 = vector.shape_cast %15 : vector<64xf32> to vector<1x64xf32>
    %17 = arith.addf %14, %16 : vector<1x64xf32>
    %cst_7 = arith.constant 7.812500e-03 : f32
    %18 = vector.broadcast %cst_7 : f32 to vector<1x64xf32>
    %19 = arith.mulf %17, %18 : vector<1x64xf32>
    %cst_8 = arith.constant 0.000000e+00 : f32
    %20 = vector.broadcast %cst_8 : f32 to vector<1x64xf32>
    %21 = vector.broadcast %19 : vector<1x64xf32> to vector<32x64xf32>
    %22 = arith.subf %3, %21 : vector<32x64xf32>
    %23 = arith.mulf %22, %22 : vector<32x64xf32>
    %cst_9 = arith.constant dense<0.000000e+00> : vector<64xf32>
    %24 = vector.multi_reduction <add>, %23, %cst_9 [0] : vector<32x64xf32> to vector<64xf32>
    %25 = vector.shape_cast %24 : vector<64xf32> to vector<1x64xf32>
    %26 = arith.addf %20, %25 : vector<1x64xf32>
    %27 = vector.broadcast %19 : vector<1x64xf32> to vector<32x64xf32>
    %28 = arith.subf %4, %27 : vector<32x64xf32>
    %29 = arith.mulf %28, %28 : vector<32x64xf32>
    %cst_10 = arith.constant dense<0.000000e+00> : vector<64xf32>
    %30 = vector.multi_reduction <add>, %29, %cst_10 [0] : vector<32x64xf32> to vector<64xf32>
    %31 = vector.shape_cast %30 : vector<64xf32> to vector<1x64xf32>
    %32 = arith.addf %26, %31 : vector<1x64xf32>
    %33 = vector.broadcast %19 : vector<1x64xf32> to vector<32x64xf32>
    %34 = arith.subf %5, %33 : vector<32x64xf32>
    %35 = arith.mulf %34, %34 : vector<32x64xf32>
    %cst_11 = arith.constant dense<0.000000e+00> : vector<64xf32>
    %36 = vector.multi_reduction <add>, %35, %cst_11 [0] : vector<32x64xf32> to vector<64xf32>
    %37 = vector.shape_cast %36 : vector<64xf32> to vector<1x64xf32>
    %38 = arith.addf %32, %37 : vector<1x64xf32>
    %39 = vector.broadcast %19 : vector<1x64xf32> to vector<32x64xf32>
    %40 = arith.subf %6, %39 : vector<32x64xf32>
    %41 = arith.mulf %40, %40 : vector<32x64xf32>
    %cst_12 = arith.constant dense<0.000000e+00> : vector<64xf32>
    %42 = vector.multi_reduction <add>, %41, %cst_12 [0] : vector<32x64xf32> to vector<64xf32>
    %43 = vector.shape_cast %42 : vector<64xf32> to vector<1x64xf32>
    %44 = arith.addf %38, %43 : vector<1x64xf32>
    %cst_13 = arith.constant 7.812500e-03 : f32
    %45 = vector.broadcast %cst_13 : f32 to vector<1x64xf32>
    %46 = arith.mulf %44, %45 : vector<1x64xf32>
    %c0_14 = arith.constant 0 : index
    %c0_15 = arith.constant 0 : index
    %47 = vector.load %arg2[%c0_14, %c0_15] : memref<1x64xf32, #tpu.memory_space<vmem>>, vector<1x64xf32>
    %cst_16 = arith.constant 9.99999974E-6 : f32
    %48 = vector.broadcast %cst_16 : f32 to vector<1x64xf32>
    %49 = arith.addf %46, %48 : vector<1x64xf32>
    %50 = math.rsqrt %49 : vector<1x64xf32>
    %51 = arith.mulf %47, %50 : vector<1x64xf32>
    %c0_17 = arith.constant 0 : index
    %c0_18 = arith.constant 0 : index
    %52 = vector.load %arg3[%c0_17, %c0_18] : memref<1x64xf32, #tpu.memory_space<vmem>>, vector<1x64xf32>
    %53 = arith.mulf %19, %51 : vector<1x64xf32>
    %54 = arith.subf %52, %53 : vector<1x64xf32>
    %55 = vector.broadcast %51 : vector<1x64xf32> to vector<32x64xf32>
    %56 = arith.mulf %3, %55 : vector<32x64xf32>
    %57 = vector.broadcast %54 : vector<1x64xf32> to vector<32x64xf32>
    %58 = arith.addf %56, %57 : vector<32x64xf32>
    %cst_19 = arith.constant 0.000000e+00 : f32
    %59 = vector.broadcast %cst_19 : f32 to vector<32x64xf32>
    %60 = arith.maximumf %58, %59 : vector<32x64xf32>
    %61 = vector.broadcast %51 : vector<1x64xf32> to vector<32x64xf32>
    %62 = arith.mulf %4, %61 : vector<32x64xf32>
    %63 = vector.broadcast %54 : vector<1x64xf32> to vector<32x64xf32>
    %64 = arith.addf %62, %63 : vector<32x64xf32>
    %cst_20 = arith.constant 0.000000e+00 : f32
    %65 = vector.broadcast %cst_20 : f32 to vector<32x64xf32>
    %66 = arith.maximumf %64, %65 : vector<32x64xf32>
    %67 = vector.broadcast %51 : vector<1x64xf32> to vector<32x64xf32>
    %68 = arith.mulf %5, %67 : vector<32x64xf32>
    %69 = vector.broadcast %54 : vector<1x64xf32> to vector<32x64xf32>
    %70 = arith.addf %68, %69 : vector<32x64xf32>
    %cst_21 = arith.constant 0.000000e+00 : f32
    %71 = vector.broadcast %cst_21 : f32 to vector<32x64xf32>
    %72 = arith.maximumf %70, %71 : vector<32x64xf32>
    %73 = vector.broadcast %51 : vector<1x64xf32> to vector<32x64xf32>
    %74 = arith.mulf %6, %73 : vector<32x64xf32>
    %75 = vector.broadcast %54 : vector<1x64xf32> to vector<32x64xf32>
    %76 = arith.addf %74, %75 : vector<32x64xf32>
    %cst_22 = arith.constant 0.000000e+00 : f32
    %77 = vector.broadcast %cst_22 : f32 to vector<32x64xf32>
    %78 = arith.maximumf %76, %77 : vector<32x64xf32>
    %79 = tpu.concatenate %60, %66, %72, %78 in 1 : vector<32x64xf32>, vector<32x64xf32>, vector<32x64xf32>, vector<32x64xf32> -> vector<32x256xf32>
    %80 = arith.truncf %79 : vector<32x256xf32> to vector<32x256xbf16>
    %c0_23 = arith.constant 0 : index
    %c0_24 = arith.constant 0 : index
    %81 = vector.load %arg4[%c0_23, %c0_24] : memref<32x256xbf16, #tpu.memory_space<vmem>>, vector<32x256xbf16>
    tpu.vector_store %arg4[%c0_23, %c0_24], %80 {strides = array<i32>} : memref<32x256xbf16, #tpu.memory_space<vmem>>, vector<32x256xbf16>,
    return
  }
}

module attributes {stable_mosaic.version = 11 : i64} {
  func.func @kernel(%arg0: memref<128x576xbf16, #tpu.memory_space<vmem>>, %arg1: memref<576x128xbf16, #tpu.memory_space<vmem>>, %arg2: memref<1x32xf32, #tpu.memory_space<vmem>>, %arg3: memref<1x32xf32, #tpu.memory_space<vmem>>, %arg4: memref<128x128xbf16, #tpu.memory_space<vmem>>) attributes {dimension_semantics = [], scalar_prefetch = 0 : i64, scratch_operands = 0 : i64, tpu.core_type = #tpu.core_type<tc>} {
    %c0 = arith.constant 0 : index
    %c0_0 = arith.constant 0 : index
    %0 = vector.load %arg0[%c0, %c0_0] : memref<128x576xbf16, #tpu.memory_space<vmem>>, vector<128x576xbf16>
    %c0_1 = arith.constant 0 : index
    %c0_2 = arith.constant 0 : index
    %1 = vector.load %arg1[%c0_1, %c0_2] : memref<576x128xbf16, #tpu.memory_space<vmem>>, vector<576x128xbf16>
    %cst = arith.constant dense<0.000000e+00> : vector<128x128xf32>
    %2 = tpu.matmul %0, %1, %cst {dimension_numbers = #tpu.dot_dimension_numbers<[1], [0], [0], [1], [0, 0, 1, 1], [], []>} : vector<128x576xbf16>, vector<576x128xbf16>, vector<128x128xf32> -> vector<128x128xf32>
    %3 = vector.extract_strided_slice %2 {offsets = [0, 0], sizes = [128, 32], strides = [1, 1]} : vector<128x128xf32> to vector<128x32xf32>
    %4 = vector.extract_strided_slice %2 {offsets = [0, 32], sizes = [128, 32], strides = [1, 1]} : vector<128x128xf32> to vector<128x32xf32>
    %5 = vector.extract_strided_slice %2 {offsets = [0, 64], sizes = [128, 32], strides = [1, 1]} : vector<128x128xf32> to vector<128x32xf32>
    %6 = vector.extract_strided_slice %2 {offsets = [0, 96], sizes = [128, 32], strides = [1, 1]} : vector<128x128xf32> to vector<128x32xf32>
    %cst_3 = arith.constant dense<0.000000e+00> : vector<32xf32>
    %7 = vector.multi_reduction <add>, %3, %cst_3 [0] : vector<128x32xf32> to vector<32xf32>
    %8 = vector.shape_cast %7 : vector<32xf32> to vector<1x32xf32>
    %cst_4 = arith.constant dense<0.000000e+00> : vector<32xf32>
    %9 = vector.multi_reduction <add>, %4, %cst_4 [0] : vector<128x32xf32> to vector<32xf32>
    %10 = vector.shape_cast %9 : vector<32xf32> to vector<1x32xf32>
    %11 = arith.addf %8, %10 : vector<1x32xf32>
    %cst_5 = arith.constant dense<0.000000e+00> : vector<32xf32>
    %12 = vector.multi_reduction <add>, %5, %cst_5 [0] : vector<128x32xf32> to vector<32xf32>
    %13 = vector.shape_cast %12 : vector<32xf32> to vector<1x32xf32>
    %14 = arith.addf %11, %13 : vector<1x32xf32>
    %cst_6 = arith.constant dense<0.000000e+00> : vector<32xf32>
    %15 = vector.multi_reduction <add>, %6, %cst_6 [0] : vector<128x32xf32> to vector<32xf32>
    %16 = vector.shape_cast %15 : vector<32xf32> to vector<1x32xf32>
    %17 = arith.addf %14, %16 : vector<1x32xf32>
    %cst_7 = arith.constant 0.001953125 : f32
    %18 = vector.broadcast %cst_7 : f32 to vector<1x32xf32>
    %19 = arith.mulf %17, %18 : vector<1x32xf32>
    %cst_8 = arith.constant 0.000000e+00 : f32
    %20 = vector.broadcast %cst_8 : f32 to vector<1x32xf32>
    %21 = vector.broadcast %19 : vector<1x32xf32> to vector<128x32xf32>
    %22 = arith.subf %3, %21 : vector<128x32xf32>
    %23 = arith.mulf %22, %22 : vector<128x32xf32>
    %cst_9 = arith.constant dense<0.000000e+00> : vector<32xf32>
    %24 = vector.multi_reduction <add>, %23, %cst_9 [0] : vector<128x32xf32> to vector<32xf32>
    %25 = vector.shape_cast %24 : vector<32xf32> to vector<1x32xf32>
    %26 = arith.addf %20, %25 : vector<1x32xf32>
    %27 = vector.broadcast %19 : vector<1x32xf32> to vector<128x32xf32>
    %28 = arith.subf %4, %27 : vector<128x32xf32>
    %29 = arith.mulf %28, %28 : vector<128x32xf32>
    %cst_10 = arith.constant dense<0.000000e+00> : vector<32xf32>
    %30 = vector.multi_reduction <add>, %29, %cst_10 [0] : vector<128x32xf32> to vector<32xf32>
    %31 = vector.shape_cast %30 : vector<32xf32> to vector<1x32xf32>
    %32 = arith.addf %26, %31 : vector<1x32xf32>
    %33 = vector.broadcast %19 : vector<1x32xf32> to vector<128x32xf32>
    %34 = arith.subf %5, %33 : vector<128x32xf32>
    %35 = arith.mulf %34, %34 : vector<128x32xf32>
    %cst_11 = arith.constant dense<0.000000e+00> : vector<32xf32>
    %36 = vector.multi_reduction <add>, %35, %cst_11 [0] : vector<128x32xf32> to vector<32xf32>
    %37 = vector.shape_cast %36 : vector<32xf32> to vector<1x32xf32>
    %38 = arith.addf %32, %37 : vector<1x32xf32>
    %39 = vector.broadcast %19 : vector<1x32xf32> to vector<128x32xf32>
    %40 = arith.subf %6, %39 : vector<128x32xf32>
    %41 = arith.mulf %40, %40 : vector<128x32xf32>
    %cst_12 = arith.constant dense<0.000000e+00> : vector<32xf32>
    %42 = vector.multi_reduction <add>, %41, %cst_12 [0] : vector<128x32xf32> to vector<32xf32>
    %43 = vector.shape_cast %42 : vector<32xf32> to vector<1x32xf32>
    %44 = arith.addf %38, %43 : vector<1x32xf32>
    %cst_13 = arith.constant 0.001953125 : f32
    %45 = vector.broadcast %cst_13 : f32 to vector<1x32xf32>
    %46 = arith.mulf %44, %45 : vector<1x32xf32>
    %c0_14 = arith.constant 0 : index
    %c0_15 = arith.constant 0 : index
    %47 = vector.load %arg2[%c0_14, %c0_15] : memref<1x32xf32, #tpu.memory_space<vmem>>, vector<1x32xf32>
    %cst_16 = arith.constant 9.99999974E-6 : f32
    %48 = vector.broadcast %cst_16 : f32 to vector<1x32xf32>
    %49 = arith.addf %46, %48 : vector<1x32xf32>
    %50 = math.rsqrt %49 : vector<1x32xf32>
    %51 = arith.mulf %47, %50 : vector<1x32xf32>
    %c0_17 = arith.constant 0 : index
    %c0_18 = arith.constant 0 : index
    %52 = vector.load %arg3[%c0_17, %c0_18] : memref<1x32xf32, #tpu.memory_space<vmem>>, vector<1x32xf32>
    %53 = arith.mulf %19, %51 : vector<1x32xf32>
    %54 = arith.subf %52, %53 : vector<1x32xf32>
    %55 = vector.broadcast %51 : vector<1x32xf32> to vector<128x32xf32>
    %56 = arith.mulf %3, %55 : vector<128x32xf32>
    %57 = vector.broadcast %54 : vector<1x32xf32> to vector<128x32xf32>
    %58 = arith.addf %56, %57 : vector<128x32xf32>
    %cst_19 = arith.constant 0.000000e+00 : f32
    %59 = vector.broadcast %cst_19 : f32 to vector<128x32xf32>
    %60 = arith.maximumf %58, %59 : vector<128x32xf32>
    %61 = vector.broadcast %51 : vector<1x32xf32> to vector<128x32xf32>
    %62 = arith.mulf %4, %61 : vector<128x32xf32>
    %63 = vector.broadcast %54 : vector<1x32xf32> to vector<128x32xf32>
    %64 = arith.addf %62, %63 : vector<128x32xf32>
    %cst_20 = arith.constant 0.000000e+00 : f32
    %65 = vector.broadcast %cst_20 : f32 to vector<128x32xf32>
    %66 = arith.maximumf %64, %65 : vector<128x32xf32>
    %67 = vector.broadcast %51 : vector<1x32xf32> to vector<128x32xf32>
    %68 = arith.mulf %5, %67 : vector<128x32xf32>
    %69 = vector.broadcast %54 : vector<1x32xf32> to vector<128x32xf32>
    %70 = arith.addf %68, %69 : vector<128x32xf32>
    %cst_21 = arith.constant 0.000000e+00 : f32
    %71 = vector.broadcast %cst_21 : f32 to vector<128x32xf32>
    %72 = arith.maximumf %70, %71 : vector<128x32xf32>
    %73 = vector.broadcast %51 : vector<1x32xf32> to vector<128x32xf32>
    %74 = arith.mulf %6, %73 : vector<128x32xf32>
    %75 = vector.broadcast %54 : vector<1x32xf32> to vector<128x32xf32>
    %76 = arith.addf %74, %75 : vector<128x32xf32>
    %cst_22 = arith.constant 0.000000e+00 : f32
    %77 = vector.broadcast %cst_22 : f32 to vector<128x32xf32>
    %78 = arith.maximumf %76, %77 : vector<128x32xf32>
    %79 = tpu.concatenate %60, %66, %72, %78 in 1 : vector<128x32xf32>, vector<128x32xf32>, vector<128x32xf32>, vector<128x32xf32> -> vector<128x128xf32>
    %80 = arith.truncf %79 : vector<128x128xf32> to vector<128x128xbf16>
    %c0_23 = arith.constant 0 : index
    %c0_24 = arith.constant 0 : index
    %81 = vector.load %arg4[%c0_23, %c0_24] : memref<128x128xbf16, #tpu.memory_space<vmem>>, vector<128x128xbf16>
    tpu.vector_store %arg4[%c0_23, %c0_24], %80 {strides = array<i32>} : memref<128x128xbf16, #tpu.memory_space<vmem>>, vector<128x128xbf16>,
    return
  }
}

module attributes {stable_mosaic.version = 11 : i64} {
  func.func @kernel(%arg0: memref<512x288xbf16, #tpu.memory_space<vmem>>, %arg1: memref<288x128xbf16, #tpu.memory_space<vmem>>, %arg2: memref<1x32xf32, #tpu.memory_space<vmem>>, %arg3: memref<1x32xf32, #tpu.memory_space<vmem>>, %arg4: memref<512x128xbf16, #tpu.memory_space<vmem>>) attributes {dimension_semantics = [], scalar_prefetch = 0 : i64, scratch_operands = 0 : i64, tpu.core_type = #tpu.core_type<tc>} {
    %c0 = arith.constant 0 : index
    %c0_0 = arith.constant 0 : index
    %0 = vector.load %arg0[%c0, %c0_0] : memref<512x288xbf16, #tpu.memory_space<vmem>>, vector<512x288xbf16>
    %c0_1 = arith.constant 0 : index
    %c0_2 = arith.constant 0 : index
    %1 = vector.load %arg1[%c0_1, %c0_2] : memref<288x128xbf16, #tpu.memory_space<vmem>>, vector<288x128xbf16>
    %cst = arith.constant dense<0.000000e+00> : vector<512x128xf32>
    %2 = tpu.matmul %0, %1, %cst {dimension_numbers = #tpu.dot_dimension_numbers<[1], [0], [0], [1], [0, 0, 1, 1], [], []>} : vector<512x288xbf16>, vector<288x128xbf16>, vector<512x128xf32> -> vector<512x128xf32>
    %3 = vector.extract_strided_slice %2 {offsets = [0, 0], sizes = [512, 32], strides = [1, 1]} : vector<512x128xf32> to vector<512x32xf32>
    %4 = vector.extract_strided_slice %2 {offsets = [0, 32], sizes = [512, 32], strides = [1, 1]} : vector<512x128xf32> to vector<512x32xf32>
    %5 = vector.extract_strided_slice %2 {offsets = [0, 64], sizes = [512, 32], strides = [1, 1]} : vector<512x128xf32> to vector<512x32xf32>
    %6 = vector.extract_strided_slice %2 {offsets = [0, 96], sizes = [512, 32], strides = [1, 1]} : vector<512x128xf32> to vector<512x32xf32>
    %cst_3 = arith.constant dense<0.000000e+00> : vector<32xf32>
    %7 = vector.multi_reduction <add>, %3, %cst_3 [0] : vector<512x32xf32> to vector<32xf32>
    %8 = vector.shape_cast %7 : vector<32xf32> to vector<1x32xf32>
    %cst_4 = arith.constant dense<0.000000e+00> : vector<32xf32>
    %9 = vector.multi_reduction <add>, %4, %cst_4 [0] : vector<512x32xf32> to vector<32xf32>
    %10 = vector.shape_cast %9 : vector<32xf32> to vector<1x32xf32>
    %11 = arith.addf %8, %10 : vector<1x32xf32>
    %cst_5 = arith.constant dense<0.000000e+00> : vector<32xf32>
    %12 = vector.multi_reduction <add>, %5, %cst_5 [0] : vector<512x32xf32> to vector<32xf32>
    %13 = vector.shape_cast %12 : vector<32xf32> to vector<1x32xf32>
    %14 = arith.addf %11, %13 : vector<1x32xf32>
    %cst_6 = arith.constant dense<0.000000e+00> : vector<32xf32>
    %15 = vector.multi_reduction <add>, %6, %cst_6 [0] : vector<512x32xf32> to vector<32xf32>
    %16 = vector.shape_cast %15 : vector<32xf32> to vector<1x32xf32>
    %17 = arith.addf %14, %16 : vector<1x32xf32>
    %cst_7 = arith.constant 4.8828125E-4 : f32
    %18 = vector.broadcast %cst_7 : f32 to vector<1x32xf32>
    %19 = arith.mulf %17, %18 : vector<1x32xf32>
    %cst_8 = arith.constant 0.000000e+00 : f32
    %20 = vector.broadcast %cst_8 : f32 to vector<1x32xf32>
    %21 = vector.broadcast %19 : vector<1x32xf32> to vector<512x32xf32>
    %22 = arith.subf %3, %21 : vector<512x32xf32>
    %23 = arith.mulf %22, %22 : vector<512x32xf32>
    %cst_9 = arith.constant dense<0.000000e+00> : vector<32xf32>
    %24 = vector.multi_reduction <add>, %23, %cst_9 [0] : vector<512x32xf32> to vector<32xf32>
    %25 = vector.shape_cast %24 : vector<32xf32> to vector<1x32xf32>
    %26 = arith.addf %20, %25 : vector<1x32xf32>
    %27 = vector.broadcast %19 : vector<1x32xf32> to vector<512x32xf32>
    %28 = arith.subf %4, %27 : vector<512x32xf32>
    %29 = arith.mulf %28, %28 : vector<512x32xf32>
    %cst_10 = arith.constant dense<0.000000e+00> : vector<32xf32>
    %30 = vector.multi_reduction <add>, %29, %cst_10 [0] : vector<512x32xf32> to vector<32xf32>
    %31 = vector.shape_cast %30 : vector<32xf32> to vector<1x32xf32>
    %32 = arith.addf %26, %31 : vector<1x32xf32>
    %33 = vector.broadcast %19 : vector<1x32xf32> to vector<512x32xf32>
    %34 = arith.subf %5, %33 : vector<512x32xf32>
    %35 = arith.mulf %34, %34 : vector<512x32xf32>
    %cst_11 = arith.constant dense<0.000000e+00> : vector<32xf32>
    %36 = vector.multi_reduction <add>, %35, %cst_11 [0] : vector<512x32xf32> to vector<32xf32>
    %37 = vector.shape_cast %36 : vector<32xf32> to vector<1x32xf32>
    %38 = arith.addf %32, %37 : vector<1x32xf32>
    %39 = vector.broadcast %19 : vector<1x32xf32> to vector<512x32xf32>
    %40 = arith.subf %6, %39 : vector<512x32xf32>
    %41 = arith.mulf %40, %40 : vector<512x32xf32>
    %cst_12 = arith.constant dense<0.000000e+00> : vector<32xf32>
    %42 = vector.multi_reduction <add>, %41, %cst_12 [0] : vector<512x32xf32> to vector<32xf32>
    %43 = vector.shape_cast %42 : vector<32xf32> to vector<1x32xf32>
    %44 = arith.addf %38, %43 : vector<1x32xf32>
    %cst_13 = arith.constant 4.8828125E-4 : f32
    %45 = vector.broadcast %cst_13 : f32 to vector<1x32xf32>
    %46 = arith.mulf %44, %45 : vector<1x32xf32>
    %c0_14 = arith.constant 0 : index
    %c0_15 = arith.constant 0 : index
    %47 = vector.load %arg2[%c0_14, %c0_15] : memref<1x32xf32, #tpu.memory_space<vmem>>, vector<1x32xf32>
    %cst_16 = arith.constant 9.99999974E-6 : f32
    %48 = vector.broadcast %cst_16 : f32 to vector<1x32xf32>
    %49 = arith.addf %46, %48 : vector<1x32xf32>
    %50 = math.rsqrt %49 : vector<1x32xf32>
    %51 = arith.mulf %47, %50 : vector<1x32xf32>
    %c0_17 = arith.constant 0 : index
    %c0_18 = arith.constant 0 : index
    %52 = vector.load %arg3[%c0_17, %c0_18] : memref<1x32xf32, #tpu.memory_space<vmem>>, vector<1x32xf32>
    %53 = arith.mulf %19, %51 : vector<1x32xf32>
    %54 = arith.subf %52, %53 : vector<1x32xf32>
    %55 = vector.broadcast %51 : vector<1x32xf32> to vector<512x32xf32>
    %56 = arith.mulf %3, %55 : vector<512x32xf32>
    %57 = vector.broadcast %54 : vector<1x32xf32> to vector<512x32xf32>
    %58 = arith.addf %56, %57 : vector<512x32xf32>
    %cst_19 = arith.constant 0.000000e+00 : f32
    %59 = vector.broadcast %cst_19 : f32 to vector<512x32xf32>
    %60 = arith.maximumf %58, %59 : vector<512x32xf32>
    %61 = vector.broadcast %51 : vector<1x32xf32> to vector<512x32xf32>
    %62 = arith.mulf %4, %61 : vector<512x32xf32>
    %63 = vector.broadcast %54 : vector<1x32xf32> to vector<512x32xf32>
    %64 = arith.addf %62, %63 : vector<512x32xf32>
    %cst_20 = arith.constant 0.000000e+00 : f32
    %65 = vector.broadcast %cst_20 : f32 to vector<512x32xf32>
    %66 = arith.maximumf %64, %65 : vector<512x32xf32>
    %67 = vector.broadcast %51 : vector<1x32xf32> to vector<512x32xf32>
    %68 = arith.mulf %5, %67 : vector<512x32xf32>
    %69 = vector.broadcast %54 : vector<1x32xf32> to vector<512x32xf32>
    %70 = arith.addf %68, %69 : vector<512x32xf32>
    %cst_21 = arith.constant 0.000000e+00 : f32
    %71 = vector.broadcast %cst_21 : f32 to vector<512x32xf32>
    %72 = arith.maximumf %70, %71 : vector<512x32xf32>
    %73 = vector.broadcast %51 : vector<1x32xf32> to vector<512x32xf32>
    %74 = arith.mulf %6, %73 : vector<512x32xf32>
    %75 = vector.broadcast %54 : vector<1x32xf32> to vector<512x32xf32>
    %76 = arith.addf %74, %75 : vector<512x32xf32>
    %cst_22 = arith.constant 0.000000e+00 : f32
    %77 = vector.broadcast %cst_22 : f32 to vector<512x32xf32>
    %78 = arith.maximumf %76, %77 : vector<512x32xf32>
    %79 = tpu.concatenate %60, %66, %72, %78 in 1 : vector<512x32xf32>, vector<512x32xf32>, vector<512x32xf32>, vector<512x32xf32> -> vector<512x128xf32>
    %80 = arith.truncf %79 : vector<512x128xf32> to vector<512x128xbf16>
    %c0_23 = arith.constant 0 : index
    %c0_24 = arith.constant 0 : index
    %81 = vector.load %arg4[%c0_23, %c0_24] : memref<512x128xbf16, #tpu.memory_space<vmem>>, vector<512x128xbf16>
    tpu.vector_store %arg4[%c0_23, %c0_24], %80 {strides = array<i32>} : memref<512x128xbf16, #tpu.memory_space<vmem>>, vector<512x128xbf16>,
    return
  }
}

module attributes {stable_mosaic.version = 11 : i64} {
  func.func @_matmul_bias_tanh_kernel(%arg0: i32, %arg1: memref<256x144xbf16, #tpu.memory_space<vmem>>, %arg2: memref<144x128xbf16, #tpu.memory_space<vmem>>, %arg3: memref<1x128xf32, #tpu.memory_space<vmem>>, %arg4: memref<256x128xf32, #tpu.memory_space<vmem>>) attributes {dimension_semantics = [#tpu.dimension_semantics<parallel>], iteration_bounds = array<i64: 8>, scalar_prefetch = 0 : i64, scratch_operands = 0 : i64, tpu.core_type = #tpu.core_type<tc>, window_params = [{transform_indices = @transform_0, window_bounds = array<i64: 256, 144>}, {pipeline_mode = #tpu.pipeline_mode<synchronous>, transform_indices = @transform_1, window_bounds = array<i64: 144, 128>}, {pipeline_mode = #tpu.pipeline_mode<synchronous>, transform_indices = @transform_2, window_bounds = array<i64: 1, 128>}, {transform_indices = @transform_3, window_bounds = array<i64: 256, 128>}]} {
    %c0 = arith.constant 0 : index
    %c0_0 = arith.constant 0 : index
    %0 = vector.load %arg1[%c0, %c0_0] : memref<256x144xbf16, #tpu.memory_space<vmem>>, vector<256x144xbf16>
    %c0_1 = arith.constant 0 : index
    %c0_2 = arith.constant 0 : index
    %1 = vector.load %arg2[%c0_1, %c0_2] : memref<144x128xbf16, #tpu.memory_space<vmem>>, vector<144x128xbf16>
    %cst = arith.constant dense<0.000000e+00> : vector<256x128xf32>
    %2 = tpu.matmul %0, %1, %cst {dimension_numbers = #tpu.dot_dimension_numbers<[1], [0], [0], [1], [0, 0, 1, 1], [], []>} : vector<256x144xbf16>, vector<144x128xbf16>, vector<256x128xf32> -> vector<256x128xf32>
    %c0_3 = arith.constant 0 : index
    %c0_4 = arith.constant 0 : index
    %3 = vector.load %arg3[%c0_3, %c0_4] : memref<1x128xf32, #tpu.memory_space<vmem>>, vector<1x128xf32>
    %4 = vector.broadcast %3 : vector<1x128xf32> to vector<256x128xf32>
    %5 = arith.addf %2, %4 : vector<256x128xf32>
    %6 = math.tanh %5 : vector<256x128xf32>
    %c0_5 = arith.constant 0 : index
    %c0_6 = arith.constant 0 : index
    %7 = vector.load %arg4[%c0_5, %c0_6] : memref<256x128xf32, #tpu.memory_space<vmem>>, vector<256x128xf32>
    tpu.vector_store %arg4[%c0_5, %c0_6], %6 {strides = array<i32>} : memref<256x128xf32, #tpu.memory_space<vmem>>, vector<256x128xf32>,
    return
  }
  func.func @transform_0(%arg0: i32) -> (i32, i32) {
    %c0_i32 = arith.constant 0 : i32
    %c0_i32_0 = arith.constant 0 : i32
    return %arg0, %c0_i32 : i32, i32
  }
  func.func @transform_1(%arg0: i32) -> (i32, i32) {
    %c0_i32 = arith.constant 0 : i32
    %c0_i32_0 = arith.constant 0 : i32
    %c0_i32_1 = arith.constant 0 : i32
    return %c0_i32, %c0_i32_0 : i32, i32
  }
  func.func @transform_2(%arg0: i32) -> (i32, i32) {
    %c0_i32 = arith.constant 0 : i32
    %c0_i32_0 = arith.constant 0 : i32
    %c0_i32_1 = arith.constant 0 : i32
    return %c0_i32, %c0_i32_0 : i32, i32
  }
  func.func @transform_3(%arg0: i32) -> (i32, i32) {
    %c0_i32 = arith.constant 0 : i32
    %c0_i32_0 = arith.constant 0 : i32
    return %arg0, %c0_i32 : i32, i32
  }
}

</mosaic_0001>

<llo_original>
// kernel: generator_forward.5
$region0: #{generator_forward.5}
  #allocation0 [shape = 'u32[]', space=smem, size = 0x4, offset = 0x4, fixed_abs, tag = 'smem constant byte address 0x4 - core index']
  #allocation1 [shape = 'u32[144,128]{1,0:T(1,128)}', space=vmem, size = 0x12000, scoped, tag = 'internal scratch']
  %s0 = inlined_call_operand.vmem [shape: bf16[2,8], index: 0, kind: input, shape index: {}]
  %s1 = inlined_call_operand.hbm [shape: bf16[8,2048], index: 1, kind: input, shape index: {}]
  %s2 = inlined_call_operand.hbm [shape: f32[1,128], index: 2, kind: input, shape index: {}]
  %s3 = inlined_call_operand.hbm [shape: f32[1,128], index: 3, kind: input, shape index: {}]
  %s4 = inlined_call_operand.vmem [shape: bf16[2,2048], index: 4, kind: output, shape index: {}]
  %s5 = sld [smem:[#allocation0]]
  $region38: #{generator_forward.5} parent=0
    _
  %s7 = ssub.s32 1, %s5
  %s8 = scalar_select 0, %s7, %s5
  $region1: #{generator_forward.5} parent=0
    #allocation2 [shape = 'u8[32768]{0}', space=vmem, size = 0x8000, scoped, tag = 'input window, operand 1, single buffered']
    #allocation3 [shape = 's32[1]{0}', space=sflag, size = 0x4, scoped, tag = 'scoped memory for generator_forward.5']
    #allocation4 [shape = 'u8[512]{0}', space=vmem, size = 0x400, scoped, tag = 'input window, operand 2, single buffered']
    #allocation5 [shape = 's32[1]{0}', space=sflag, size = 0x4, scoped, tag = 'scoped memory for generator_forward.5']
    #allocation6 [shape = 'u8[512]{0}', space=vmem, size = 0x400, scoped, tag = 'input window, operand 3, single buffered']
    %9 = vsyncpa [#allocation3], 0
    %10 = vsyncpa [#allocation5], 0
    // Predicated region
    $region2: #{generator_forward.5} parent=1 // pred_check
      _
    $region3: #{generator_forward.5} parent=1 // pred_check_branch
      %12 = sbr.rel (0) target = $region5
    $region4: #{generator_forward.5} parent=1 // pred_region
      _
    $region5: #{generator_forward.5} parent=1 // pred_fallthru
      _
    // Predicated region
    $region6: #{generator_forward.5} parent=1 // pred_check
      _
    $region7: #{generator_forward.5} parent=1 // pred_check_branch
      %14 = sbr.rel (0) target = $region9
    $region8: #{generator_forward.5} parent=1 // pred_region
      %s16 = ssub.s32 1024, 1024
      %17 = vsyncadd [#allocation3], %s16
      %s19 = sshll.u32 [#allocation2], 4
      %s20 = int_to_ptr.vmem [resolvable:$true] %s19
      %22 = dma.hbm_to_vmem [thread:$0]  %s1, 1024, %s20, [#allocation3]
    $region9: #{generator_forward.5} parent=1 // pred_fallthru
      _
    // Predicated region
    $region10: #{generator_forward.5} parent=1 // pred_check
      _
    $region11: #{generator_forward.5} parent=1 // pred_check_branch
      %24 = sbr.rel (0) target = $region13
    $region12: #{generator_forward.5} parent=1 // pred_region
      %s26 = ssub.s32 16, 16
      %27 = vsyncadd [#allocation5], %s26
      %s29 = sshll.u32 [#allocation4], 4
      %s30 = int_to_ptr.vmem [resolvable:$true] %s29
      %32 = dma.hbm_to_vmem [thread:$0]  %s2, 16, %s30, [#allocation5]
    $region13: #{generator_forward.5} parent=1 // pred_fallthru
      _
    // Predicated region
    $region14: #{generator_forward.5} parent=1 // pred_check
      _
    $region15: #{generator_forward.5} parent=1 // pred_check_branch
      %34 = sbr.rel (0) target = $region17
    $region16: #{generator_forward.5} parent=1 // pred_region
      %s36 = ssub.s32 16, 16
      %37 = vsyncadd [#allocation5], %s36
      %s39 = sshll.u32 [#allocation6], 4
      %s40 = int_to_ptr.vmem [resolvable:$true] %s39
      %42 = dma.hbm_to_vmem [thread:$0]  %s3, 16, %s40, [#allocation5]
    $region17: #{generator_forward.5} parent=1 // pred_fallthru
      _
    // Predicated region
    $region18: #{generator_forward.5} parent=1 // pred_check
      _
    $region19: #{generator_forward.5} parent=1 // pred_check_branch
      %44 = sbr.rel (0) target = $region21
    $region20: #{generator_forward.5} parent=1 // pred_region
      %45 = dma.done [#allocation3], 1024
    $region21: #{generator_forward.5} parent=1 // pred_fallthru
      _
    // Predicated region
    $region22: #{generator_forward.5} parent=1 // pred_check
      _
    $region23: #{generator_forward.5} parent=1 // pred_check_branch
      %47 = sbr.rel (0) target = $region25
    $region24: #{generator_forward.5} parent=1 // pred_region
      %48 = dma.done [#allocation5], 16
    $region25: #{generator_forward.5} parent=1 // pred_fallthru
      _
    // Predicated region
    $region26: #{generator_forward.5} parent=1 // pred_check
      _
    $region27: #{generator_forward.5} parent=1 // pred_check_branch
      %50 = sbr.rel (0) target = $region29
    $region28: #{generator_forward.5} parent=1 // pred_region
      %51 = dma.done [#allocation5], 16
    $region29: #{generator_forward.5} parent=1 // pred_fallthru
      _
    %v53 = vld [vmem:[%s0] sm:$0x1]
    %v54 = vld [vmem:[#allocation2] sm:$0xff]
    %v55 = vld [vmem:[#allocation2 + $0x8] sm:$0xff]
    %v56 = vld [vmem:[#allocation2 + $0x10] sm:$0xff]
    %v57 = vld [vmem:[#allocation2 + $0x18] sm:$0xff]
    %v58 = vld [vmem:[#allocation2 + $0x20] sm:$0xff]
    %v59 = vld [vmem:[#allocation2 + $0x28] sm:$0xff]
    %v60 = vld [vmem:[#allocation2 + $0x30] sm:$0xff]
    %v61 = vld [vmem:[#allocation2 + $0x38] sm:$0xff]
    %v70 = vunpack.c.l.b16 %v54
    %v71 = vunpack.c.h.b16 %v54
    %v72 = vunpack.c.l.b16 %v55
    %v73 = vunpack.c.h.b16 %v55
    %v74 = vunpack.c.l.b16 %v56
    %v75 = vunpack.c.h.b16 %v56
    %v76 = vunpack.c.l.b16 %v57
    %v77 = vunpack.c.h.b16 %v57
    %v78 = vunpack.c.l.b16 %v58
    %v79 = vunpack.c.h.b16 %v58
    %v80 = vunpack.c.l.b16 %v59
    %v81 = vunpack.c.h.b16 %v59
    %v82 = vunpack.c.l.b16 %v60
    %v83 = vunpack.c.h.b16 %v60
    %v84 = vunpack.c.l.b16 %v61
    %v85 = vunpack.c.h.b16 %v61
    %v86 = vpack.c.b16 %v70, %v70
    %v87 = vpack.c.b16 %v71, %v71
    %v88 = vpack.c.b16 %v72, %v72
    %v89 = vpack.c.b16 %v73, %v73
    %v90 = vpack.c.b16 %v74, %v74
    %v91 = vpack.c.b16 %v75, %v75
    %v92 = vpack.c.b16 %v76, %v76
    %v93 = vpack.c.b16 %v77, %v77
    %v94 = vpack.c.b16 %v78, %v78
    %v95 = vpack.c.b16 %v79, %v79
    %v96 = vpack.c.b16 %v80, %v80
    %v97 = vpack.c.b16 %v81, %v81
    %v98 = vpack.c.b16 %v82, %v82
    %v99 = vpack.c.b16 %v83, %v83
    %v100 = vpack.c.b16 %v84, %v84
    %v101 = vpack.c.b16 %v85, %v85
    %vm102 = vcmask 64512
    %v104 = vsel %vm102, %v53, 0
    %vm106 = vcmask 1043456
    %v108 = vsel %vm106, %v86, 0
    %v111 = vsel %vm106, %v87, 0
    %v114 = vsel %vm106, %v88, 0
    %v117 = vsel %vm106, %v89, 0
    %v120 = vsel %vm106, %v90, 0
    %v123 = vsel %vm106, %v91, 0
    %v126 = vsel %vm106, %v92, 0
    %v129 = vsel %vm106, %v93, 0
    %v132 = vsel %vm106, %v94, 0
    %v135 = vsel %vm106, %v95, 0
    %v138 = vsel %vm106, %v96, 0
    %v141 = vsel %vm106, %v97, 0
    %v144 = vsel %vm106, %v98, 0
    %v147 = vsel %vm106, %v99, 0
    %v150 = vsel %vm106, %v100, 0
    %v153 = vsel %vm106, %v101, 0
    %155 = vmatprep.subr.bf16.mxu0 %v111
    %156 = vmatpush1.bf16.msra.mxu0 %v108
    %157 = vmatprep.subr.bf16.mxu0 0
    %158 = vmatpush1.bf16.msra.mxu0 0
    %159 = vmatprep.subr.bf16.mxu0 0
    %160 = vmatpush1.bf16.msra.mxu0 0
    %161 = vmatprep.subr.bf16.mxu0 0
    %162 = vmatpush1.bf16.msra.mxu0 0
    %163 = vmatprep.subr.bf16.mxu0 0
    %164 = vmatpush1.bf16.msra.mxu0 0
    %165 = vmatprep.subr.bf16.mxu0 0
    %166 = vmatpush1.bf16.msra.mxu0 0
    %167 = vmatprep.subr.bf16.mxu0 0
    %168 = vmatpush1.bf16.msra.mxu0 0
    %169 = vmatprep.subr.bf16.mxu0 0
    %170 = vmatpush1.bf16.msra.mxu0 0
    %171 = vmatprep.subr.bf16.mxu0 0
    %172 = vmatpush1.bf16.msra.mxu0 0
    %173 = vmatprep.subr.bf16.mxu0 0
    %174 = vmatpush1.bf16.msra.mxu0 0
    %175 = vmatprep.subr.bf16.mxu0 0
    %176 = vmatpush1.bf16.msra.mxu0 0
    %177 = vmatprep.subr.bf16.mxu0 0
    %178 = vmatpush1.bf16.msra.mxu0 0
    %179 = vmatprep.subr.bf16.mxu0 0
    %180 = vmatpush1.bf16.msra.mxu0 0
    %181 = vmatprep.subr.bf16.mxu0 0
    %182 = vmatpush1.bf16.msra.mxu0 0
    %183 = vmatprep.subr.bf16.mxu0 0
    %184 = vmatpush1.bf16.msra.mxu0 0
    %185 = vmatprep.subr.bf16.mxu0 0
    %186 = vmatpush1.bf16.msra.mxu0 0
    %187 = vmatprep.mubr.bf16.mxu0 0
    %188 = vmatmul.mubr.bf16.gmra.mrb[0].mxu0 %v104
    %v189 = vpop.f32.mrb[0].mxu0
    %v190 = vadd.f32 0.0, %v189
    %v191 = vpop.f32.mrb[0].mxu0
    %v192 = vadd.f32 0.0, %v191
    %v193 = vpop.f32.mrb[0].mxu0
    %v194 = vpop.f32.mrb[0].mxu0
    %195 = vdwg.mxu0
    %196 = vmatprep.subr.bf16.mxu0 %v117
    %197 = vmatpush1.bf16.msra.mxu0 %v114
    %198 = vmatprep.subr.bf16.mxu0 0
    %199 = vmatpush1.bf16.msra.mxu0 0
    %200 = vmatprep.subr.bf16.mxu0 0
    %201 = vmatpush1.bf16.msra.mxu0 0
    %202 = vmatprep.subr.bf16.mxu0 0
    %203 = vmatpush1.bf16.msra.mxu0 0
    %204 = vmatprep.subr.bf16.mxu0 0
    %205 = vmatpush1.bf16.msra.mxu0 0
    %206 = vmatprep.subr.bf16.mxu0 0
    %207 = vmatpush1.bf16.msra.mxu0 0
    %208 = vmatprep.subr.bf16.mxu0 0
    %209 = vmatpush1.bf16.msra.mxu0 0
    %210 = vmatprep.subr.bf16.mxu0 0
    %211 = vmatpush1.bf16.msra.mxu0 0
    %212 = vmatprep.subr.bf16.mxu0 0
    %213 = vmatpush1.bf16.msra.mxu0 0
    %214 = vmatprep.subr.bf16.mxu0 0
    %215 = vmatpush1.bf16.msra.mxu0 0
    %216 = vmatprep.subr.bf16.mxu0 0
    %217 = vmatpush1.bf16.msra.mxu0 0
    %218 = vmatprep.subr.bf16.mxu0 0
    %219 = vmatpush1.bf16.msra.mxu0 0
    %220 = vmatprep.subr.bf16.mxu0 0
    %221 = vmatpush1.bf16.msra.mxu0 0
    %222 = vmatprep.subr.bf16.mxu0 0
    %223 = vmatpush1.bf16.msra.mxu0 0
    %224 = vmatprep.subr.bf16.mxu0 0
    %225 = vmatpush1.bf16.msra.mxu0 0
    %226 = vmatprep.subr.bf16.mxu0 0
    %227 = vmatpush1.bf16.msra.mxu0 0
    %228 = vmatprep.mubr.bf16.mxu0 0
    %229 = vmatmul.mubr.bf16.gmra.mrb[0].mxu0 %v104
    %v230 = vpop.f32.mrb[0].mxu0
    %v231 = vadd.f32 0.0, %v230
    %v232 = vpop.f32.mrb[0].mxu0
    %v233 = vadd.f32 0.0, %v232
    %v234 = vpop.f32.mrb[0].mxu0
    %v235 = vpop.f32.mrb[0].mxu0
    %236 = vdwg.mxu0
    %237 = vmatprep.subr.bf16.mxu0 %v123
    %238 = vmatpush1.bf16.msra.mxu0 %v120
    %239 = vmatprep.subr.bf16.mxu0 0
    %240 = vmatpush1.bf16.msra.mxu0 0
    %241 = vmatprep.subr.bf16.mxu0 0
    %242 = vmatpush1.bf16.msra.mxu0 0
    %243 = vmatprep.subr.bf16.mxu0 0
    %244 = vmatpush1.bf16.msra.mxu0 0
    %245 = vmatprep.subr.bf16.mxu0 0
    %246 = vmatpush1.bf16.msra.mxu0 0
    %247 = vmatprep.subr.bf16.mxu0 0
    %248 = vmatpush1.bf16.msra.mxu0 0
    %249 = vmatprep.subr.bf16.mxu0 0
    %250 = vmatpush1.bf16.msra.mxu0 0
    %251 = vmatprep.subr.bf16.mxu0 0
    %252 = vmatpush1.bf16.msra.mxu0 0
    %253 = vmatprep.subr.bf16.mxu0 0
    %254 = vmatpush1.bf16.msra.mxu0 0
    %255 = vmatprep.subr.bf16.mxu0 0
    %256 = vmatpush1.bf16.msra.mxu0 0
    %257 = vmatprep.subr.bf16.mxu0 0
    %258 = vmatpush1.bf16.msra.mxu0 0
    %259 = vmatprep.subr.bf16.mxu0 0
    %260 = vmatpush1.bf16.msra.mxu0 0
    %261 = vmatprep.subr.bf16.mxu0 0
    %262 = vmatpush1.bf16.msra.mxu0 0
    %263 = vmatprep.subr.bf16.mxu0 0
    %264 = vmatpush1.bf16.msra.mxu0 0
    %265 = vmatprep.subr.bf16.mxu0 0
    %266 = vmatpush1.bf16.msra.mxu0 0
    %267 = vmatprep.subr.bf16.mxu0 0
    %268 = vmatpush1.bf16.msra.mxu0 0
    %269 = vmatprep.mubr.bf16.mxu0 0
    %270 = vmatmul.mubr.bf16.gmra.mrb[0].mxu0 %v104
    %v271 = vpop.f32.mrb[0].mxu0
    %v272 = vadd.f32 0.0, %v271
    %v273 = vpop.f32.mrb[0].mxu0
    %v274 = vadd.f32 0.0, %v273
    %v275 = vpop.f32.mrb[0].mxu0
    %v276 = vpop.f32.mrb[0].mxu0
    %277 = vdwg.mxu0
    %278 = vmatprep.subr.bf16.mxu0 %v129
    %279 = vmatpush1.bf16.msra.mxu0 %v126
    %280 = vmatprep.subr.bf16.mxu0 0
    %281 = vmatpush1.bf16.msra.mxu0 0
    %282 = vmatprep.subr.bf16.mxu0 0
    %283 = vmatpush1.bf16.msra.mxu0 0
    %284 = vmatprep.subr.bf16.mxu0 0
    %285 = vmatpush1.bf16.msra.mxu0 0
    %286 = vmatprep.subr.bf16.mxu0 0
    %287 = vmatpush1.bf16.msra.mxu0 0
    %288 = vmatprep.subr.bf16.mxu0 0
    %289 = vmatpush1.bf16.msra.mxu0 0
    %290 = vmatprep.subr.bf16.mxu0 0
    %291 = vmatpush1.bf16.msra.mxu0 0
    %292 = vmatprep.subr.bf16.mxu0 0
    %293 = vmatpush1.bf16.msra.mxu0 0
    %294 = vmatprep.subr.bf16.mxu0 0
    %295 = vmatpush1.bf16.msra.mxu0 0
    %296 = vmatprep.subr.bf16.mxu0 0
    %297 = vmatpush1.bf16.msra.mxu0 0
    %298 = vmatprep.subr.bf16.mxu0 0
    %299 = vmatpush1.bf16.msra.mxu0 0
    %300 = vmatprep.subr.bf16.mxu0 0
    %301 = vmatpush1.bf16.msra.mxu0 0
    %302 = vmatprep.subr.bf16.mxu0 0
    %303 = vmatpush1.bf16.msra.mxu0 0
    %304 = vmatprep.subr.bf16.mxu0 0
    %305 = vmatpush1.bf16.msra.mxu0 0
    %306 = vmatprep.subr.bf16.mxu0 0
    %307 = vmatpush1.bf16.msra.mxu0 0
    %308 = vmatprep.subr.bf16.mxu0 0
    %309 = vmatpush1.bf16.msra.mxu0 0
    %310 = vmatprep.mubr.bf16.mxu0 0
    %311 = vmatmul.mubr.bf16.gmra.mrb[0].mxu0 %v104
    %v312 = vpop.f32.mrb[0].mxu0
    %v313 = vadd.f32 0.0, %v312
    %v314 = vpop.f32.mrb[0].mxu0
    %v315 = vadd.f32 0.0, %v314
    %v316 = vpop.f32.mrb[0].mxu0
    %v317 = vpop.f32.mrb[0].mxu0
    %318 = vdwg.mxu0
    %319 = vmatprep.subr.bf16.mxu0 %v135
    %320 = vmatpush1.bf16.msra.mxu0 %v132
    %321 = vmatprep.subr.bf16.mxu0 0
    %322 = vmatpush1.bf16.msra.mxu0 0
    %323 = vmatprep.subr.bf16.mxu0 0
    %324 = vmatpush1.bf16.msra.mxu0 0
    %325 = vmatprep.subr.bf16.mxu0 0
    %326 = vmatpush1.bf16.msra.mxu0 0
    %327 = vmatprep.subr.bf16.mxu0 0
    %328 = vmatpush1.bf16.msra.mxu0 0
    %329 = vmatprep.subr.bf16.mxu0 0
    %330 = vmatpush1.bf16.msra.mxu0 0
    %331 = vmatprep.subr.bf16.mxu0 0
    %332 = vmatpush1.bf16.msra.mxu0 0
    %333 = vmatprep.subr.bf16.mxu0 0
    %334 = vmatpush1.bf16.msra.mxu0 0
    %335 = vmatprep.subr.bf16.mxu0 0
    %336 = vmatpush1.bf16.msra.mxu0 0
    %337 = vmatprep.subr.bf16.mxu0 0
    %338 = vmatpush1.bf16.msra.mxu0 0
    %339 = vmatprep.subr.bf16.mxu0 0
    %340 = vmatpush1.bf16.msra.mxu0 0
    %341 = vmatprep.subr.bf16.mxu0 0
    %342 = vmatpush1.bf16.msra.mxu0 0
    %343 = vmatprep.subr.bf16.mxu0 0
    %344 = vmatpush1.bf16.msra.mxu0 0
    %345 = vmatprep.subr.bf16.mxu0 0
    %346 = vmatpush1.bf16.msra.mxu0 0
    %347 = vmatprep.subr.bf16.mxu0 0
    %348 = vmatpush1.bf16.msra.mxu0 0
    %349 = vmatprep.subr.bf16.mxu0 0
    %350 = vmatpush1.bf16.msra.mxu0 0
    %351 = vmatprep.mubr.bf16.mxu0 0
    %352 = vmatmul.mubr.bf16.gmra.mrb[0].mxu0 %v104
    %v353 = vpop.f32.mrb[0].mxu0
    %v354 = vadd.f32 0.0, %v353
    %v355 = vpop.f32.mrb[0].mxu0
    %v356 = vadd.f32 0.0, %v355
    %v357 = vpop.f32.mrb[0].mxu0
    %v358 = vpop.f32.mrb[0].mxu0
    %359 = vdwg.mxu0
    %360 = vmatprep.subr.bf16.mxu0 %v141
    %361 = vmatpush1.bf16.msra.mxu0 %v138
    %362 = vmatprep.subr.bf16.mxu0 0
    %363 = vmatpush1.bf16.msra.mxu0 0
    %364 = vmatprep.subr.bf16.mxu0 0
    %365 = vmatpush1.bf16.msra.mxu0 0
    %366 = vmatprep.subr.bf16.mxu0 0
    %367 = vmatpush1.bf16.msra.mxu0 0
    %368 = vmatprep.subr.bf16.mxu0 0
    %369 = vmatpush1.bf16.msra.mxu0 0
    %370 = vmatprep.subr.bf16.mxu0 0
    %371 = vmatpush1.bf16.msra.mxu0 0
    %372 = vmatprep.subr.bf16.mxu0 0
    %373 = vmatpush1.bf16.msra.mxu0 0
    %374 = vmatprep.subr.bf16.mxu0 0
    %375 = vmatpush1.bf16.msra.mxu0 0
    %376 = vmatprep.subr.bf16.mxu0 0
    %377 = vmatpush1.bf16.msra.mxu0 0
    %378 = vmatprep.subr.bf16.mxu0 0
    %379 = vmatpush1.bf16.msra.mxu0 0
    %380 = vmatprep.subr.bf16.mxu0 0
    %381 = vmatpush1.bf16.msra.mxu0 0
    %382 = vmatprep.subr.bf16.mxu0 0
    %383 = vmatpush1.bf16.msra.mxu0 0
    %384 = vmatprep.subr.bf16.mxu0 0
    %385 = vmatpush1.bf16.msra.mxu0 0
    %386 = vmatprep.subr.bf16.mxu0 0
    %387 = vmatpush1.bf16.msra.mxu0 0
    %388 = vmatprep.subr.bf16.mxu0 0
    %389 = vmatpush1.bf16.msra.mxu0 0
    %390 = vmatprep.subr.bf16.mxu0 0
    %391 = vmatpush1.bf16.msra.mxu0 0
    %392 = vmatprep.mubr.bf16.mxu0 0
    %393 = vmatmul.mubr.bf16.gmra.mrb[0].mxu0 %v104
    %v394 = vpop.f32.mrb[0].mxu0
    %v395 = vadd.f32 0.0, %v394
    %v396 = vpop.f32.mrb[0].mxu0
    %v397 = vadd.f32 0.0, %v396
    %v398 = vpop.f32.mrb[0].mxu0
    %v399 = vpop.f32.mrb[0].mxu0
    %400 = vdwg.mxu0
    %401 = vmatprep.subr.bf16.mxu0 %v147
    %402 = vmatpush1.bf16.msra.mxu0 %v144
    %403 = vmatprep.subr.bf16.mxu0 0
    %404 = vmatpush1.bf16.msra.mxu0 0
    %405 = vmatprep.subr.bf16.mxu0 0
    %406 = vmatpush1.bf16.msra.mxu0 0
    %407 = vmatprep.subr.bf16.mxu0 0
    %408 = vmatpush1.bf16.msra.mxu0 0
    %409 = vmatprep.subr.bf16.mxu0 0
    %410 = vmatpush1.bf16.msra.mxu0 0
    %411 = vmatprep.subr.bf16.mxu0 0
    %412 = vmatpush1.bf16.msra.mxu0 0
    %413 = vmatprep.subr.bf16.mxu0 0
    %414 = vmatpush1.bf16.msra.mxu0 0
    %415 = vmatprep.subr.bf16.mxu0 0
    %416 = vmatpush1.bf16.msra.mxu0 0
    %417 = vmatprep.subr.bf16.mxu0 0
    %418 = vmatpush1.bf16.msra.mxu0 0
    %419 = vmatprep.subr.bf16.mxu0 0
    %420 = vmatpush1.bf16.msra.mxu0 0
    %421 = vmatprep.subr.bf16.mxu0 0
    %422 = vmatpush1.bf16.msra.mxu0 0
    %423 = vmatprep.subr.bf16.mxu0 0
    %424 = vmatpush1.bf16.msra.mxu0 0
    %425 = vmatprep.subr.bf16.mxu0 0
    %426 = vmatpush1.bf16.msra.mxu0 0
    %427 = vmatprep.subr.bf16.mxu0 0
    %428 = vmatpush1.bf16.msra.mxu0 0
    %429 = vmatprep.subr.bf16.mxu0 0
    %430 = vmatpush1.bf16.msra.mxu0 0
    %431 = vmatprep.subr.bf16.mxu0 0
    %432 = vmatpush1.bf16.msra.mxu0 0
    %433 = vmatprep.mubr.bf16.mxu0 0
    %434 = vmatmul.mubr.bf16.gmra.mrb[0].mxu0 %v104
    %v435 = vpop.f32.mrb[0].mxu0
    %v436 = vadd.f32 0.0, %v435
    %v437 = vpop.f32.mrb[0].mxu0
    %v438 = vadd.f32 0.0, %v437
    %v439 = vpop.f32.mrb[0].mxu0
    %v440 = vpop.f32.mrb[0].mxu0
    %441 = vdwg.mxu0
    %442 = vmatprep.subr.bf16.mxu0 %v153
    %443 = vmatpush1.bf16.msra.mxu0 %v150
    %444 = vmatprep.subr.bf16.mxu0 0
    %445 = vmatpush1.bf16.msra.mxu0 0
    %446 = vmatprep.subr.bf16.mxu0 0
    %447 = vmatpush1.bf16.msra.mxu0 0
    %448 = vmatprep.subr.bf16.mxu0 0
    %449 = vmatpush1.bf16.msra.mxu0 0
    %450 = vmatprep.subr.bf16.mxu0 0
    %451 = vmatpush1.bf16.msra.mxu0 0
    %452 = vmatprep.subr.bf16.mxu0 0
    %453 = vmatpush1.bf16.msra.mxu0 0
    %454 = vmatprep.subr.bf16.mxu0 0
    %455 = vmatpush1.bf16.msra.mxu0 0
    %456 = vmatprep.subr.bf16.mxu0 0
    %457 = vmatpush1.bf16.msra.mxu0 0
    %458 = vmatprep.subr.bf16.mxu0 0
    %459 = vmatpush1.bf16.msra.mxu0 0
    %460 = vmatprep.subr.bf16.mxu0 0
    %461 = vmatpush1.bf16.msra.mxu0 0
    %462 = vmatprep.subr.bf16.mxu0 0
    %463 = vmatpush1.bf16.msra.mxu0 0
    %464 = vmatprep.subr.bf16.mxu0 0
    %465 = vmatpush1.bf16.msra.mxu0 0
    %466 = vmatprep.subr.bf16.mxu0 0
    %467 = vmatpush1.bf16.msra.mxu0 0
    %468 = vmatprep.subr.bf16.mxu0 0
    %469 = vmatpush1.bf16.msra.mxu0 0
    %470 = vmatprep.subr.bf16.mxu0 0
    %471 = vmatpush1.bf16.msra.mxu0 0
    %472 = vmatprep.subr.bf16.mxu0 0
    %473 = vmatpush1.bf16.msra.mxu0 0
    %474 = vmatprep.mubr.bf16.mxu0 0
    %475 = vmatmul.mubr.bf16.gmra.mrb[0].mxu0 %v104
    %v476 = vpop.f32.mrb[0].mxu0
    %v477 = vadd.f32 0.0, %v476
    %v478 = vpop.f32.mrb[0].mxu0
    %v479 = vadd.f32 0.0, %v478
    %v480 = vpop.f32.mrb[0].mxu0
    %v481 = vpop.f32.mrb[0].mxu0
    %482 = vdwg.mxu0
    %vm483 = vcmask 1041408
    %v484 = vsel %vm483, %v190, 0.0
    %v485 = vrot.slane %v484, 4
    %v486 = vadd.f32 %v484, %v485
    %v487 = vrot.slane %v486, 2
    %v488 = vadd.f32 %v486, %v487
    %v489 = vrot.slane %v488, 1
    %v490 = vadd.f32 %v488, %v489
    %v491 = vsel %vm483, %v192, 0.0
    %v492 = vrot.slane %v491, 4
    %v493 = vadd.f32 %v491, %v492
    %v494 = vrot.slane %v493, 2
    %v495 = vadd.f32 %v493, %v494
    %v496 = vrot.slane %v495, 1
    %v497 = vadd.f32 %v495, %v496
    %v498 = vadd.f32 %v490, %v497
    %v499 = vsel %vm483, %v231, 0.0
    %v500 = vrot.slane %v499, 4
    %v501 = vadd.f32 %v499, %v500
    %v502 = vrot.slane %v501, 2
    %v503 = vadd.f32 %v501, %v502
    %v504 = vrot.slane %v503, 1
    %v505 = vadd.f32 %v503, %v504
    %v506 = vadd.f32 %v498, %v505
    %v507 = vsel %vm483, %v233, 0.0
    %v508 = vrot.slane %v507, 4
    %v509 = vadd.f32 %v507, %v508
    %v510 = vrot.slane %v509, 2
    %v511 = vadd.f32 %v509, %v510
    %v512 = vrot.slane %v511, 1
    %v513 = vadd.f32 %v511, %v512
    %v514 = vadd.f32 %v506, %v513
    %v515 = vsel %vm483, %v272, 0.0
    %v516 = vrot.slane %v515, 4
    %v517 = vadd.f32 %v515, %v516
    %v518 = vrot.slane %v517, 2
    %v519 = vadd.f32 %v517, %v518
    %v520 = vrot.slane %v519, 1
    %v521 = vadd.f32 %v519, %v520
    %v522 = vadd.f32 %v514, %v521
    %v523 = vsel %vm483, %v274, 0.0
    %v524 = vrot.slane %v523, 4
    %v525 = vadd.f32 %v523, %v524
    %v526 = vrot.slane %v525, 2
    %v527 = vadd.f32 %v525, %v526
    %v528 = vrot.slane %v527, 1
    %v529 = vadd.f32 %v527, %v528
    %v530 = vadd.f32 %v522, %v529
    %v531 = vsel %vm483, %v313, 0.0
    %v532 = vrot.slane %v531, 4
    %v533 = vadd.f32 %v531, %v532
    %v534 = vrot.slane %v533, 2
    %v535 = vadd.f32 %v533, %v534
    %v536 = vrot.slane %v535, 1
    %v537 = vadd.f32 %v535, %v536
    %v538 = vadd.f32 %v530, %v537
    %v539 = vsel %vm483, %v315, 0.0
    %v540 = vrot.slane %v539, 4
    %v541 = vadd.f32 %v539, %v540
    %v542 = vrot.slane %v541, 2
    %v543 = vadd.f32 %v541, %v542
    %v544 = vrot.slane %v543, 1
    %v545 = vadd.f32 %v543, %v544
    %v546 = vadd.f32 %v538, %v545
    %v547 = vsel %vm483, %v354, 0.0
    %v548 = vrot.slane %v547, 4
    %v549 = vadd.f32 %v547, %v548
    %v550 = vrot.slane %v549, 2
    %v551 = vadd.f32 %v549, %v550
    %v552 = vrot.slane %v551, 1
    %v553 = vadd.f32 %v551, %v552
    %v554 = vadd.f32 %v546, %v553
    %v555 = vsel %vm483, %v356, 0.0
    %v556 = vrot.slane %v555, 4
    %v557 = vadd.f32 %v555, %v556
    %v558 = vrot.slane %v557, 2
    %v559 = vadd.f32 %v557, %v558
    %v560 = vrot.slane %v559, 1
    %v561 = vadd.f32 %v559, %v560
    %v562 = vadd.f32 %v554, %v561
    %v563 = vsel %vm483, %v395, 0.0
    %v564 = vrot.slane %v563, 4
    %v565 = vadd.f32 %v563, %v564
    %v566 = vrot.slane %v565, 2
    %v567 = vadd.f32 %v565, %v566
    %v568 = vrot.slane %v567, 1
    %v569 = vadd.f32 %v567, %v568
    %v570 = vadd.f32 %v562, %v569
    %v571 = vsel %vm483, %v397, 0.0
    %v572 = vrot.slane %v571, 4
    %v573 = vadd.f32 %v571, %v572
    %v574 = vrot.slane %v573, 2
    %v575 = vadd.f32 %v573, %v574
    %v576 = vrot.slane %v575, 1
    %v577 = vadd.f32 %v575, %v576
    %v578 = vadd.f32 %v570, %v577
    %v579 = vsel %vm483, %v436, 0.0
    %v580 = vrot.slane %v579, 4
    %v581 = vadd.f32 %v579, %v580
    %v582 = vrot.slane %v581, 2
    %v583 = vadd.f32 %v581, %v582
    %v584 = vrot.slane %v583, 1
    %v585 = vadd.f32 %v583, %v584
    %v586 = vadd.f32 %v578, %v585
    %v587 = vsel %vm483, %v438, 0.0
    %v588 = vrot.slane %v587, 4
    %v589 = vadd.f32 %v587, %v588
    %v590 = vrot.slane %v589, 2
    %v591 = vadd.f32 %v589, %v590
    %v592 = vrot.slane %v591, 1
    %v593 = vadd.f32 %v591, %v592
    %v594 = vadd.f32 %v586, %v593
    %v595 = vsel %vm483, %v477, 0.0
    %v596 = vrot.slane %v595, 4
    %v597 = vadd.f32 %v595, %v596
    %v598 = vrot.slane %v597, 2
    %v599 = vadd.f32 %v597, %v598
    %v600 = vrot.slane %v599, 1
    %v601 = vadd.f32 %v599, %v600
    %v602 = vadd.f32 %v594, %v601
    %v603 = vsel %vm483, %v479, 0.0
    %v604 = vrot.slane %v603, 4
    %v605 = vadd.f32 %v603, %v604
    %v606 = vrot.slane %v605, 2
    %v607 = vadd.f32 %v605, %v606
    %v608 = vrot.slane %v607, 1
    %v609 = vadd.f32 %v607, %v608
    %v610 = vadd.f32 %v602, %v609
    %v611 = vmul.f32 %v610, 0.03125
    %v612 = vsub.f32 %v190, %v611
    %v613 = vmul.f32 %v612, %v612
    %v614 = vsel %vm483, %v613, 0.0
    %v615 = vrot.slane %v614, 4
    %v616 = vadd.f32 %v614, %v615
    %v617 = vrot.slane %v616, 2
    %v618 = vadd.f32 %v616, %v617
    %v619 = vrot.slane %v618, 1
    %v620 = vadd.f32 %v618, %v619
    %v621 = vadd.f32 %v620, 0.0
    %v622 = vsub.f32 %v192, %v611
    %v623 = vmul.f32 %v622, %v622
    %v624 = vsel %vm483, %v623, 0.0
    %v625 = vrot.slane %v624, 4
    %v626 = vadd.f32 %v624, %v625
    %v627 = vrot.slane %v626, 2
    %v628 = vadd.f32 %v626, %v627
    %v629 = vrot.slane %v628, 1
    %v630 = vadd.f32 %v628, %v629
    %v631 = vadd.f32 %v621, %v630
    %v632 = vsub.f32 %v231, %v611
    %v633 = vmul.f32 %v632, %v632
    %v634 = vsel %vm483, %v633, 0.0
    %v635 = vrot.slane %v634, 4
    %v636 = vadd.f32 %v634, %v635
    %v637 = vrot.slane %v636, 2
    %v638 = vadd.f32 %v636, %v637
    %v639 = vrot.slane %v638, 1
    %v640 = vadd.f32 %v638, %v639
    %v641 = vadd.f32 %v631, %v640
    %v642 = vsub.f32 %v233, %v611
    %v643 = vmul.f32 %v642, %v642
    %v644 = vsel %vm483, %v643, 0.0
    %v645 = vrot.slane %v644, 4
    %v646 = vadd.f32 %v644, %v645
    %v647 = vrot.slane %v646, 2
    %v648 = vadd.f32 %v646, %v647
    %v649 = vrot.slane %v648, 1
    %v650 = vadd.f32 %v648, %v649
    %v651 = vadd.f32 %v641, %v650
    %v652 = vsub.f32 %v272, %v611
    %v653 = vmul.f32 %v652, %v652
    %v654 = vsel %vm483, %v653, 0.0
    %v655 = vrot.slane %v654, 4
    %v656 = vadd.f32 %v654, %v655
    %v657 = vrot.slane %v656, 2
    %v658 = vadd.f32 %v656, %v657
    %v659 = vrot.slane %v658, 1
    %v660 = vadd.f32 %v658, %v659
    %v661 = vadd.f32 %v651, %v660
    %v662 = vsub.f32 %v274, %v611
    %v663 = vmul.f32 %v662, %v662
    %v664 = vsel %vm483, %v663, 0.0
    %v665 = vrot.slane %v664, 4
    %v666 = vadd.f32 %v664, %v665
    %v667 = vrot.slane %v666, 2
    %v668 = vadd.f32 %v666, %v667
    %v669 = vrot.slane %v668, 1
    %v670 = vadd.f32 %v668, %v669
    %v671 = vadd.f32 %v661, %v670
    %v672 = vsub.f32 %v313, %v611
    %v673 = vmul.f32 %v672, %v672
    %v674 = vsel %vm483, %v673, 0.0
    %v675 = vrot.slane %v674, 4
    %v676 = vadd.f32 %v674, %v675
    %v677 = vrot.slane %v676, 2
    %v678 = vadd.f32 %v676, %v677
    %v679 = vrot.slane %v678, 1
    %v680 = vadd.f32 %v678, %v679
    %v681 = vadd.f32 %v671, %v680
    %v682 = vsub.f32 %v315, %v611
    %v683 = vmul.f32 %v682, %v682
    %v684 = vsel %vm483, %v683, 0.0
    %v685 = vrot.slane %v684, 4
    %v686 = vadd.f32 %v684, %v685
    %v687 = vrot.slane %v686, 2
    %v688 = vadd.f32 %v686, %v687
    %v689 = vrot.slane %v688, 1
    %v690 = vadd.f32 %v688, %v689
    %v691 = vadd.f32 %v681, %v690
    %v692 = vsub.f32 %v354, %v611
    %v693 = vmul.f32 %v692, %v692
    %v694 = vsel %vm483, %v693, 0.0
    %v695 = vrot.slane %v694, 4
    %v696 = vadd.f32 %v694, %v695
    %v697 = vrot.slane %v696, 2
    %v698 = vadd.f32 %v696, %v697
    %v699 = vrot.slane %v698, 1
    %v700 = vadd.f32 %v698, %v699
    %v701 = vadd.f32 %v691, %v700
    %v702 = vsub.f32 %v356, %v611
    %v703 = vmul.f32 %v702, %v702
    %v704 = vsel %vm483, %v703, 0.0
    %v705 = vrot.slane %v704, 4
    %v706 = vadd.f32 %v704, %v705
    %v707 = vrot.slane %v706, 2
    %v708 = vadd.f32 %v706, %v707
    %v709 = vrot.slane %v708, 1
    %v710 = vadd.f32 %v708, %v709
    %v711 = vadd.f32 %v701, %v710
    %v712 = vsub.f32 %v395, %v611
    %v713 = vmul.f32 %v712, %v712
    %v714 = vsel %vm483, %v713, 0.0
    %v715 = vrot.slane %v714, 4
    %v716 = vadd.f32 %v714, %v715
    %v717 = vrot.slane %v716, 2
    %v718 = vadd.f32 %v716, %v717
    %v719 = vrot.slane %v718, 1
    %v720 = vadd.f32 %v718, %v719
    %v721 = vadd.f32 %v711, %v720
    %v722 = vsub.f32 %v397, %v611
    %v723 = vmul.f32 %v722, %v722
    %v724 = vsel %vm483, %v723, 0.0
    %v725 = vrot.slane %v724, 4
    %v726 = vadd.f32 %v724, %v725
    %v727 = vrot.slane %v726, 2
    %v728 = vadd.f32 %v726, %v727
    %v729 = vrot.slane %v728, 1
    %v730 = vadd.f32 %v728, %v729
    %v731 = vadd.f32 %v721, %v730
    %v732 = vsub.f32 %v436, %v611
    %v733 = vmul.f32 %v732, %v732
    %v734 = vsel %vm483, %v733, 0.0
    %v735 = vrot.slane %v734, 4
    %v736 = vadd.f32 %v734, %v735
    %v737 = vrot.slane %v736, 2
    %v738 = vadd.f32 %v736, %v737
    %v739 = vrot.slane %v738, 1
    %v740 = vadd.f32 %v738, %v739
    %v741 = vadd.f32 %v731, %v740
    %v742 = vsub.f32 %v438, %v611
    %v743 = vmul.f32 %v742, %v742
    %v744 = vsel %vm483, %v743, 0.0
    %v745 = vrot.slane %v744, 4
    %v746 = vadd.f32 %v744, %v745
    %v747 = vrot.slane %v746, 2
    %v748 = vadd.f32 %v746, %v747
    %v749 = vrot.slane %v748, 1
    %v750 = vadd.f32 %v748, %v749
    %v751 = vadd.f32 %v741, %v750
    %v752 = vsub.f32 %v477, %v611
    %v753 = vmul.f32 %v752, %v752
    %v754 = vsel %vm483, %v753, 0.0
    %v755 = vrot.slane %v754, 4
    %v756 = vadd.f32 %v754, %v755
    %v757 = vrot.slane %v756, 2
    %v758 = vadd.f32 %v756, %v757
    %v759 = vrot.slane %v758, 1
    %v760 = vadd.f32 %v758, %v759
    %v761 = vadd.f32 %v751, %v760
    %v762 = vsub.f32 %v479, %v611
    %v763 = vmul.f32 %v762, %v762
    %v764 = vsel %vm483, %v763, 0.0
    %v765 = vrot.slane %v764, 4
    %v766 = vadd.f32 %v764, %v765
    %v767 = vrot.slane %v766, 2
    %v768 = vadd.f32 %v766, %v767
    %v769 = vrot.slane %v768, 1
    %v770 = vadd.f32 %v768, %v769
    %v771 = vadd.f32 %v761, %v770
    %v772 = vmul.f32 %v771, 0.03125
    %v773 = vld [vmem:[#allocation4] sm:$0x1]
    %v774 = vadd.f32 %v772, 1e-05
    %v775 = vrsqrt.pop %v774
    %v776 = vmul.f32 %v773, %v775
    %v777 = vld [vmem:[#allocation6] sm:$0x1]
    %v778 = vmul.f32 %v611, %v776
    %v779 = vsub.f32 %v777, %v778
    %v781 = vlaneseq
    %v782 = vshrl.u32 %v781, 7
    %v783 = vsub.s32 0, %v782
    %v784 = vrot.slane %v776, %v783
    %v786 = vmul.f32 %v190, %v784
    %v788 = vlaneseq
    %v789 = vshrl.u32 %v788, 7
    %v790 = vsub.s32 0, %v789
    %v791 = vrot.slane %v779, %v790
    %v793 = vadd.f32 %v786, %v791
    %v794 = vmax.f32 %v793, 0.0
    %v795 = vmul.f32 %v192, %v784
    %v796 = vadd.f32 %v795, %v791
    %v797 = vmax.f32 %v796, 0.0
    %v798 = vmul.f32 %v231, %v784
    %v799 = vadd.f32 %v798, %v791
    %v800 = vmax.f32 %v799, 0.0
    %v801 = vmul.f32 %v233, %v784
    %v802 = vadd.f32 %v801, %v791
    %v803 = vmax.f32 %v802, 0.0
    %v804 = vmul.f32 %v272, %v784
    %v805 = vadd.f32 %v804, %v791
    %v806 = vmax.f32 %v805, 0.0
    %v807 = vmul.f32 %v274, %v784
    %v808 = vadd.f32 %v807, %v791
    %v809 = vmax.f32 %v808, 0.0
    %v810 = vmul.f32 %v313, %v784
    %v811 = vadd.f32 %v810, %v791
    %v812 = vmax.f32 %v811, 0.0
    %v813 = vmul.f32 %v315, %v784
    %v814 = vadd.f32 %v813, %v791
    %v815 = vmax.f32 %v814, 0.0
    %v816 = vmul.f32 %v354, %v784
    %v817 = vadd.f32 %v816, %v791
    %v818 = vmax.f32 %v817, 0.0
    %v819 = vmul.f32 %v356, %v784
    %v820 = vadd.f32 %v819, %v791
    %v821 = vmax.f32 %v820, 0.0
    %v822 = vmul.f32 %v395, %v784
    %v823 = vadd.f32 %v822, %v791
    %v824 = vmax.f32 %v823, 0.0
    %v825 = vmul.f32 %v397, %v784
    %v826 = vadd.f32 %v825, %v791
    %v827 = vmax.f32 %v826, 0.0
    %v828 = vmul.f32 %v436, %v784
    %v829 = vadd.f32 %v828, %v791
    %v830 = vmax.f32 %v829, 0.0
    %v831 = vmul.f32 %v438, %v784
    %v832 = vadd.f32 %v831, %v791
    %v833 = vmax.f32 %v832, 0.0
    %v834 = vmul.f32 %v477, %v784
    %v835 = vadd.f32 %v834, %v791
    %v836 = vmax.f32 %v835, 0.0
    %v837 = vmul.f32 %v479, %v784
    %v838 = vadd.f32 %v837, %v791
    %v839 = vmax.f32 %v838, 0.0
    %v840 = vpack.c.bf16 %v794, %v794
    %v841 = vpack.c.bf16 %v797, %v797
    %v842 = vpack.c.bf16 %v800, %v800
    %v843 = vpack.c.bf16 %v803, %v803
    %v844 = vpack.c.bf16 %v806, %v806
    %v845 = vpack.c.bf16 %v809, %v809
    %v846 = vpack.c.bf16 %v812, %v812
    %v847 = vpack.c.bf16 %v815, %v815
    %v848 = vpack.c.bf16 %v818, %v818
    %v849 = vpack.c.bf16 %v821, %v821
    %v850 = vpack.c.bf16 %v824, %v824
    %v851 = vpack.c.bf16 %v827, %v827
    %v852 = vpack.c.bf16 %v830, %v830
    %v853 = vpack.c.bf16 %v833, %v833
    %v854 = vpack.c.bf16 %v836, %v836
    %v855 = vpack.c.bf16 %v839, %v839
    %v872 = vcombine.low %v840, %v841
    %v873 = vcombine.low %v842, %v843
    %v874 = vcombine.low %v844, %v845
    %v875 = vcombine.low %v846, %v847
    %v877 = vunpack.c.l.s4 1966171168
    %v878 = vunpack.c.0.s8 %v877
    %v879 = vlaneseq
    %v880 = vshrl.u32 %v879, 7
    %v881 = vsub.s32 %v878, %v880
    %v882 = vrot.slane %v872, %v881
    %v884 = vunpack.c.l.s4 1966171168
    %v885 = vunpack.c.0.s8 %v884
    %v886 = vlaneseq
    %v887 = vshrl.u32 %v886, 7
    %v888 = vsub.s32 %v885, %v887
    %v889 = vrot.slane %v873, %v888
    %v891 = vunpack.c.l.s4 1966171168
    %v892 = vunpack.c.0.s8 %v891
    %v893 = vlaneseq
    %v894 = vshrl.u32 %v893, 7
    %v895 = vsub.s32 %v892, %v894
    %v896 = vrot.slane %v874, %v895
    %v898 = vunpack.c.l.s4 1966171168
    %v899 = vunpack.c.0.s8 %v898
    %v900 = vlaneseq
    %v901 = vshrl.u32 %v900, 7
    %v902 = vsub.s32 %v899, %v901
    %v903 = vrot.slane %v875, %v902
    %v904 = vcombine.low %v882, %v889
    %v905 = vcombine.low %v896, %v903
    %v907 = vunpack.c.l.s4 1966171168
    %v908 = vunpack.c.0.s8 %v907
    %v909 = vlaneseq
    %v910 = vshrl.u32 %v909, 7
    %v911 = vsub.s32 %v908, %v910
    %v912 = vrot.slane %v904, %v911
    %v914 = vunpack.c.l.s4 1966171168
    %v915 = vunpack.c.0.s8 %v914
    %v916 = vlaneseq
    %v917 = vshrl.u32 %v916, 7
    %v918 = vsub.s32 %v915, %v917
    %v919 = vrot.slane %v905, %v918
    %v920 = vcombine.low %v912, %v919
    %v921 = vcombine.low %v848, %v849
    %v922 = vcombine.low %v850, %v851
    %v923 = vcombine.low %v852, %v853
    %v924 = vcombine.low %v854, %v855
    %v926 = vunpack.c.l.s4 1966171168
    %v927 = vunpack.c.0.s8 %v926
    %v928 = vlaneseq
    %v929 = vshrl.u32 %v928, 7
    %v930 = vsub.s32 %v927, %v929
    %v931 = vrot.slane %v921, %v930
    %v933 = vunpack.c.l.s4 1966171168
    %v934 = vunpack.c.0.s8 %v933
    %v935 = vlaneseq
    %v936 = vshrl.u32 %v935, 7
    %v937 = vsub.s32 %v934, %v936
    %v938 = vrot.slane %v922, %v937
    %v940 = vunpack.c.l.s4 1966171168
    %v941 = vunpack.c.0.s8 %v940
    %v942 = vlaneseq
    %v943 = vshrl.u32 %v942, 7
    %v944 = vsub.s32 %v941, %v943
    %v945 = vrot.slane %v923, %v944
    %v947 = vunpack.c.l.s4 1966171168
    %v948 = vunpack.c.0.s8 %v947
    %v949 = vlaneseq
    %v950 = vshrl.u32 %v949, 7
    %v951 = vsub.s32 %v948, %v950
    %v952 = vrot.slane %v924, %v951
    %v953 = vcombine.low %v931, %v938
    %v954 = vcombine.low %v945, %v952
    %v956 = vunpack.c.l.s4 1966171168
    %v957 = vunpack.c.0.s8 %v956
    %v958 = vlaneseq
    %v959 = vshrl.u32 %v958, 7
    %v960 = vsub.s32 %v957, %v959
    %v961 = vrot.slane %v953, %v960
    %v963 = vunpack.c.l.s4 1966171168
    %v964 = vunpack.c.0.s8 %v963
    %v965 = vlaneseq
    %v966 = vshrl.u32 %v965, 7
    %v967 = vsub.s32 %v964, %v966
    %v968 = vrot.slane %v954, %v967
    %v969 = vcombine.low %v961, %v968
    %972 = vst [vmem:[%s4] sm:$0xff] %v920
    %973 = vst [vmem:[%s4 + $0x8] sm:$0xff] %v969
    // Predicated region
    $region30: #{generator_forward.5} parent=1 // pred_check
      _
    $region31: #{generator_forward.5} parent=1 // pred_check_branch
      %975 = sbr.rel (0) target = $region33
    $region32: #{generator_forward.5} parent=1 // pred_region
      _
    $region33: #{generator_forward.5} parent=1 // pred_fallthru
      _
    // Predicated region
    $region34: #{generator_forward.5} parent=1 // pred_check
      _
    $region35: #{generator_forward.5} parent=1 // pred_check_branch
      %977 = sbr.rel (0) target = $region37
    $region36: #{generator_forward.5} parent=1 // pred_region
      _
    $region37: #{generator_forward.5} parent=1 // pred_fallthru
      _
    %978 = vsyncpa [#allocation3], 1
    %979 = vsyncpa [#allocation5], 1

// kernel: generator_forward.6
$region0: #{generator_forward.6}
  #allocation0 [shape = 'u32[]', space=smem, size = 0x4, offset = 0x4, fixed_abs, tag = 'smem constant byte address 0x4 - core index']
  #allocation1 [shape = 'u32[144,128]{1,0:T(1,128)}', space=vmem, size = 0x12000, scoped, tag = 'internal scratch']
  %s0 = inlined_call_operand.vmem [shape: bf16[32,1152], index: 0, kind: input, shape index: {}]
  %s1 = inlined_call_operand.hbm [shape: bf16[1152,256], index: 1, kind: input, shape index: {}]
  %s2 = inlined_call_operand.hbm [shape: f32[1,64], index: 2, kind: input, shape index: {}]
  %s3 = inlined_call_operand.hbm [shape: f32[1,64], index: 3, kind: input, shape index: {}]
  %s4 = inlined_call_operand.vmem [shape: bf16[32,256], index: 4, kind: output, shape index: {}]
  %s5 = sld [smem:[#allocation0]]
  $region38: #{generator_forward.6} parent=0
    _
  %s7 = ssub.s32 1, %s5
  %s8 = scalar_select 0, %s7, %s5
  $region1: #{generator_forward.6} parent=0
    #allocation2 [shape = 'u8[589824]{0}', space=vmem, size = 0x90000, scoped, tag = 'input window, operand 1, single buffered']
    #allocation3 [shape = 's32[1]{0}', space=sflag, size = 0x4, scoped, tag = 'scoped memory for generator_forward.6']
    #allocation4 [shape = 'u8[512]{0}', space=vmem, size = 0x400, scoped, tag = 'input window, operand 2, single buffered']
    #allocation5 [shape = 's32[1]{0}', space=sflag, size = 0x4, scoped, tag = 'scoped memory for generator_forward.6']
    #allocation6 [shape = 'u8[512]{0}', space=vmem, size = 0x400, scoped, tag = 'input window, operand 3, single buffered']
    %9 = vsyncpa [#allocation3], 0
    %10 = vsyncpa [#allocation5], 0
    // Predicated region
    $region2: #{generator_forward.6} parent=1 // pred_check
      _
    $region3: #{generator_forward.6} parent=1 // pred_check_branch
      %12 = sbr.rel (0) target = $region5
    $region4: #{generator_forward.6} parent=1 // pred_region
      _
    $region5: #{generator_forward.6} parent=1 // pred_fallthru
      _
    // Predicated region
    $region6: #{generator_forward.6} parent=1 // pred_check
      _
    $region7: #{generator_forward.6} parent=1 // pred_check_branch
      %14 = sbr.rel (0) target = $region9
    $region8: #{generator_forward.6} parent=1 // pred_region
      %s16 = ssub.s32 18432, 18432
      %17 = vsyncadd [#allocation3], %s16
      %s18 = sshll.u32 [#allocation2], 4
      %s19 = int_to_ptr.vmem [resolvable:$true] %s18
      %24 = dma.hbm_to_vmem [thread:$0]  %s1, 18432, %s19, [#allocation3], 128, 128, 8
    $region9: #{generator_forward.6} parent=1 // pred_fallthru
      _
    // Predicated region
    $region10: #{generator_forward.6} parent=1 // pred_check
      _
    $region11: #{generator_forward.6} parent=1 // pred_check_branch
      %26 = sbr.rel (0) target = $region13
    $region12: #{generator_forward.6} parent=1 // pred_region
      %s28 = ssub.s32 16, 16
      %29 = vsyncadd [#allocation5], %s28
      %s31 = sshll.u32 [#allocation4], 4
      %s32 = int_to_ptr.vmem [resolvable:$true] %s31
      %34 = dma.hbm_to_vmem [thread:$0]  %s2, 16, %s32, [#allocation5]
    $region13: #{generator_forward.6} parent=1 // pred_fallthru
      _
    // Predicated region
    $region14: #{generator_forward.6} parent=1 // pred_check
      _
    $region15: #{generator_forward.6} parent=1 // pred_check_branch
      %36 = sbr.rel (0) target = $region17
    $region16: #{generator_forward.6} parent=1 // pred_region
      %s38 = ssub.s32 16, 16
      %39 = vsyncadd [#allocation5], %s38
      %s41 = sshll.u32 [#allocation6], 4
      %s42 = int_to_ptr.vmem [resolvable:$true] %s41
      %44 = dma.hbm_to_vmem [thread:$0]  %s3, 16, %s42, [#allocation5]
    $region17: #{generator_forward.6} parent=1 // pred_fallthru
      _
    // Predicated region
    $region18: #{generator_forward.6} parent=1 // pred_check
      _
    $region19: #{generator_forward.6} parent=1 // pred_check_branch
      %46 = sbr.rel (0) target = $region21
    $region20: #{generator_forward.6} parent=1 // pred_region
      %47 = dma.done [#allocation3], 18432
    $region21: #{generator_forward.6} parent=1 // pred_fallthru
      _
    // Predicated region
    $region22: #{generator_forward.6} parent=1 // pred_check
      _
    $region23: #{generator_forward.6} parent=1 // pred_check_branch
      %49 = sbr.rel (0) target = $region25
    $region24: #{generator_forward.6} parent=1 // pred_region
      %50 = dma.done [#allocation5], 16
    $region25: #{generator_forward.6} parent=1 // pred_fallthru
      _
    // Predicated region
    $region26: #{generator_forward.6} parent=1 // pred_check
      _
    $region27: #{generator_forward.6} parent=1 // pred_check_branch
      %52 = sbr.rel (0) target = $region29
    $region28: #{generator_forward.6} parent=1 // pred_region
      %53 = dma.done [#allocation5], 16
    $region29: #{generator_forward.6} parent=1 // pred_fallthru
      _
    %v55 = vld [vmem:[%s0] sm:$0xff]
    %v56 = vld [vmem:[%s0 + $0x8] sm:$0xff]
    %v57 = vld [vmem:[%s0 + $0x10] sm:$0xff]
    %v58 = vld [vmem:[%s0 + $0x18] sm:$0xff]
    %v59 = vld [vmem:[%s0 + $0x20] sm:$0xf]
    %v60 = vld [vmem:[%s0 + $0x24] sm:$0xff]
    %v61 = vld [vmem:[%s0 + $0x2c] sm:$0xff]
    %v62 = vld [vmem:[%s0 + $0x34] sm:$0xff]
    %v63 = vld [vmem:[%s0 + $0x3c] sm:$0xff]
    %v64 = vld [vmem:[%s0 + $0x44] sm:$0xf]
    %v65 = vld [vmem:[%s0 + $0x48] sm:$0xff]
    %v66 = vld [vmem:[%s0 + $0x50] sm:$0xff]
    %v67 = vld [vmem:[%s0 + $0x58] sm:$0xff]
    %v68 = vld [vmem:[%s0 + $0x60] sm:$0xff]
    %v69 = vld [vmem:[%s0 + $0x68] sm:$0xf]
    %v70 = vld [vmem:[%s0 + $0x6c] sm:$0xff]
    %v71 = vld [vmem:[%s0 + $0x74] sm:$0xff]
    %v72 = vld [vmem:[%s0 + $0x7c] sm:$0xff]
    %v73 = vld [vmem:[%s0 + $0x84] sm:$0xff]
    %v74 = vld [vmem:[%s0 + $0x8c] sm:$0xf]
    %v75 = vld [vmem:[#allocation2] sm:$0xff]
    %v76 = vld [vmem:[#allocation2 + $0x8] sm:$0xff]
    %v77 = vld [vmem:[#allocation2 + $0x10] sm:$0xff]
    %v78 = vld [vmem:[#allocation2 + $0x18] sm:$0xff]
    %v79 = vld [vmem:[#allocation2 + $0x20] sm:$0xff]
    %v80 = vld [vmem:[#allocation2 + $0x28] sm:$0xff]
    %v81 = vld [vmem:[#allocation2 + $0x30] sm:$0xff]
    %v82 = vld [vmem:[#allocation2 + $0x38] sm:$0xff]
    %v83 = vld [vmem:[#allocation2 + $0x40] sm:$0xff]
    %v84 = vld [vmem:[#allocation2 + $0x48] sm:$0xff]
    %v85 = vld [vmem:[#allocation2 + $0x50] sm:$0xff]
    %v86 = vld [vmem:[#allocation2 + $0x58] sm:$0xff]
    %v87 = vld [vmem:[#allocation2 + $0x60] sm:$0xff]
    %v88 = vld [vmem:[#allocation2 + $0x68] sm:$0xff]
    %v89 = vld [vmem:[#allocation2 + $0x70] sm:$0xff]
    %v90 = vld [vmem:[#allocation2 + $0x78] sm:$0xff]
    %v91 = vld [vmem:[#allocation2 + $0x80] sm:$0xff]
    %v92 = vld [vmem:[#allocation2 + $0x88] sm:$0xff]
    %v93 = vld [vmem:[#allocation2 + $0x90] sm:$0xff]
    %v94 = vld [vmem:[#allocation2 + $0x98] sm:$0xff]
    %v95 = vld [vmem:[#allocation2 + $0xa0] sm:$0xff]
    %v96 = vld [vmem:[#allocation2 + $0xa8] sm:$0xff]
    %v97 = vld [vmem:[#allocation2 + $0xb0] sm:$0xff]
    %v98 = vld [vmem:[#allocation2 + $0xb8] sm:$0xff]
    %v99 = vld [vmem:[#allocation2 + $0xc0] sm:$0xff]
    %v100 = vld [vmem:[#allocation2 + $0xc8] sm:$0xff]
    %v101 = vld [vmem:[#allocation2 + $0xd0] sm:$0xff]
    %v102 = vld [vmem:[#allocation2 + $0xd8] sm:$0xff]
    %v103 = vld [vmem:[#allocation2 + $0xe0] sm:$0xff]
    %v104 = vld [vmem:[#allocation2 + $0xe8] sm:$0xff]
    %v105 = vld [vmem:[#allocation2 + $0xf0] sm:$0xff]
    %v106 = vld [vmem:[#allocation2 + $0xf8] sm:$0xff]
    %v107 = vld [vmem:[#allocation2 + $0x100] sm:$0xff]
    %v108 = vld [vmem:[#allocation2 + $0x108] sm:$0xff]
    %v109 = vld [vmem:[#allocation2 + $0x110] sm:$0xff]
    %v110 = vld [vmem:[#allocation2 + $0x118] sm:$0xff]
    %v111 = vld [vmem:[#allocation2 + $0x120] sm:$0xff]
    %v112 = vld [vmem:[#allocation2 + $0x128] sm:$0xff]
    %v113 = vld [vmem:[#allocation2 + $0x130] sm:$0xff]
    %v114 = vld [vmem:[#allocation2 + $0x138] sm:$0xff]
    %v115 = vld [vmem:[#allocation2 + $0x140] sm:$0xff]
    %v116 = vld [vmem:[#allocation2 + $0x148] sm:$0xff]
    %v117 = vld [vmem:[#allocation2 + $0x150] sm:$0xff]
    %v118 = vld [vmem:[#allocation2 + $0x158] sm:$0xff]
    %v119 = vld [vmem:[#allocation2 + $0x160] sm:$0xff]
    %v120 = vld [vmem:[#allocation2 + $0x168] sm:$0xff]
    %v121 = vld [vmem:[#allocation2 + $0x170] sm:$0xff]
    %v122 = vld [vmem:[#allocation2 + $0x178] sm:$0xff]
    %v123 = vld [vmem:[#allocation2 + $0x180] sm:$0xff]
    %v124 = vld [vmem:[#allocation2 + $0x188] sm:$0xff]
    %v125 = vld [vmem:[#allocation2 + $0x190] sm:$0xff]
    %v126 = vld [vmem:[#allocation2 + $0x198] sm:$0xff]
    %v127 = vld [vmem:[#allocation2 + $0x1a0] sm:$0xff]
    %v128 = vld [vmem:[#allocation2 + $0x1a8] sm:$0xff]
    %v129 = vld [vmem:[#allocation2 + $0x1b0] sm:$0xff]
    %v130 = vld [vmem:[#allocation2 + $0x1b8] sm:$0xff]
    %v131 = vld [vmem:[#allocation2 + $0x1c0] sm:$0xff]
    %v132 = vld [vmem:[#allocation2 + $0x1c8] sm:$0xff]
    %v133 = vld [vmem:[#allocation2 + $0x1d0] sm:$0xff]
    %v134 = vld [vmem:[#allocation2 + $0x1d8] sm:$0xff]
    %v135 = vld [vmem:[#allocation2 + $0x1e0] sm:$0xff]
    %v136 = vld [vmem:[#allocation2 + $0x1e8] sm:$0xff]
    %v137 = vld [vmem:[#allocation2 + $0x1f0] sm:$0xff]
    %v138 = vld [vmem:[#allocation2 + $0x1f8] sm:$0xff]
    %v139 = vld [vmem:[#allocation2 + $0x200] sm:$0xff]
    %v140 = vld [vmem:[#allocation2 + $0x208] sm:$0xff]
    %v141 = vld [vmem:[#allocation2 + $0x210] sm:$0xff]
    %v142 = vld [vmem:[#allocation2 + $0x218] sm:$0xff]
    %v143 = vld [vmem:[#allocation2 + $0x220] sm:$0xff]
    %v144 = vld [vmem:[#allocation2 + $0x228] sm:$0xff]
    %v145 = vld [vmem:[#allocation2 + $0x230] sm:$0xff]
    %v146 = vld [vmem:[#allocation2 + $0x238] sm:$0xff]
    %v147 = vld [vmem:[#allocation2 + $0x240] sm:$0xff]
    %v148 = vld [vmem:[#allocation2 + $0x248] sm:$0xff]
    %v149 = vld [vmem:[#allocation2 + $0x250] sm:$0xff]
    %v150 = vld [vmem:[#allocation2 + $0x258] sm:$0xff]
    %v151 = vld [vmem:[#allocation2 + $0x260] sm:$0xff]
    %v152 = vld [vmem:[#allocation2 + $0x268] sm:$0xff]
    %v153 = vld [vmem:[#allocation2 + $0x270] sm:$0xff]
    %v154 = vld [vmem:[#allocation2 + $0x278] sm:$0xff]
    %v155 = vld [vmem:[#allocation2 + $0x280] sm:$0xff]
    %v156 = vld [vmem:[#allocation2 + $0x288] sm:$0xff]
    %v157 = vld [vmem:[#allocation2 + $0x290] sm:$0xff]
    %v158 = vld [vmem:[#allocation2 + $0x298] sm:$0xff]
    %v159 = vld [vmem:[#allocation2 + $0x2a0] sm:$0xff]
    %v160 = vld [vmem:[#allocation2 + $0x2a8] sm:$0xff]
    %v161 = vld [vmem:[#allocation2 + $0x2b0] sm:$0xff]
    %v162 = vld [vmem:[#allocation2 + $0x2b8] sm:$0xff]
    %v163 = vld [vmem:[#allocation2 + $0x2c0] sm:$0xff]
    %v164 = vld [vmem:[#allocation2 + $0x2c8] sm:$0xff]
    %v165 = vld [vmem:[#allocation2 + $0x2d0] sm:$0xff]
    %v166 = vld [vmem:[#allocation2 + $0x2d8] sm:$0xff]
    %v167 = vld [vmem:[#allocation2 + $0x2e0] sm:$0xff]
    %v168 = vld [vmem:[#allocation2 + $0x2e8] sm:$0xff]
    %v169 = vld [vmem:[#allocation2 + $0x2f0] sm:$0xff]
    %v170 = vld [vmem:[#allocation2 + $0x2f8] sm:$0xff]
    %v171 = vld [vmem:[#allocation2 + $0x300] sm:$0xff]
    %v172 = vld [vmem:[#allocation2 + $0x308] sm:$0xff]
    %v173 = vld [vmem:[#allocation2 + $0x310] sm:$0xff]
    %v174 = vld [vmem:[#allocation2 + $0x318] sm:$0xff]
    %v175 = vld [vmem:[#allocation2 + $0x320] sm:$0xff]
    %v176 = vld [vmem:[#allocation2 + $0x328] sm:$0xff]
    %v177 = vld [vmem:[#allocation2 + $0x330] sm:$0xff]
    %v178 = vld [vmem:[#allocation2 + $0x338] sm:$0xff]
    %v179 = vld [vmem:[#allocation2 + $0x340] sm:$0xff]
    %v180 = vld [vmem:[#allocation2 + $0x348] sm:$0xff]
    %v181 = vld [vmem:[#allocation2 + $0x350] sm:$0xff]
    %v182 = vld [vmem:[#allocation2 + $0x358] sm:$0xff]
    %v183 = vld [vmem:[#allocation2 + $0x360] sm:$0xff]
    %v184 = vld [vmem:[#allocation2 + $0x368] sm:$0xff]
    %v185 = vld [vmem:[#allocation2 + $0x370] sm:$0xff]
    %v186 = vld [vmem:[#allocation2 + $0x378] sm:$0xff]
    %v187 = vld [vmem:[#allocation2 + $0x380] sm:$0xff]
    %v188 = vld [vmem:[#allocation2 + $0x388] sm:$0xff]
    %v189 = vld [vmem:[#allocation2 + $0x390] sm:$0xff]
    %v190 = vld [vmem:[#allocation2 + $0x398] sm:$0xff]
    %v191 = vld [vmem:[#allocation2 + $0x3a0] sm:$0xff]
    %v192 = vld [vmem:[#allocation2 + $0x3a8] sm:$0xff]
    %v193 = vld [vmem:[#allocation2 + $0x3b0] sm:$0xff]
    %v194 = vld [vmem:[#allocation2 + $0x3b8] sm:$0xff]
    %v195 = vld [vmem:[#allocation2 + $0x3c0] sm:$0xff]
    %v196 = vld [vmem:[#allocation2 + $0x3c8] sm:$0xff]
    %v197 = vld [vmem:[#allocation2 + $0x3d0] sm:$0xff]
    %v198 = vld [vmem:[#allocation2 + $0x3d8] sm:$0xff]
    %v199 = vld [vmem:[#allocation2 + $0x3e0] sm:$0xff]
    %v200 = vld [vmem:[#allocation2 + $0x3e8] sm:$0xff]
    %v201 = vld [vmem:[#allocation2 + $0x3f0] sm:$0xff]
    %v202 = vld [vmem:[#allocation2 + $0x3f8] sm:$0xff]
    %v203 = vld [vmem:[#allocation2 + $0x400] sm:$0xff]
    %v204 = vld [vmem:[#allocation2 + $0x408] sm:$0xff]
    %v205 = vld [vmem:[#allocation2 + $0x410] sm:$0xff]
    %v206 = vld [vmem:[#allocation2 + $0x418] sm:$0xff]
    %v207 = vld [vmem:[#allocation2 + $0x420] sm:$0xff]
    %v208 = vld [vmem:[#allocation2 + $0x428] sm:$0xff]
    %v209 = vld [vmem:[#allocation2 + $0x430] sm:$0xff]
    %v210 = vld [vmem:[#allocation2 + $0x438] sm:$0xff]
    %v211 = vld [vmem:[#allocation2 + $0x440] sm:$0xff]
    %v212 = vld [vmem:[#allocation2 + $0x448] sm:$0xff]
    %v213 = vld [vmem:[#allocation2 + $0x450] sm:$0xff]
    %v214 = vld [vmem:[#allocation2 + $0x458] sm:$0xff]
    %v215 = vld [vmem:[#allocation2 + $0x460] sm:$0xff]
    %v216 = vld [vmem:[#allocation2 + $0x468] sm:$0xff]
    %v217 = vld [vmem:[#allocation2 + $0x470] sm:$0xff]
    %v218 = vld [vmem:[#allocation2 + $0x478] sm:$0xff]
    %v239 = vunpack.c.l.b16 %v55
    %v240 = vunpack.c.h.b16 %v55
    %v241 = vunpack.c.l.b16 %v56
    %v242 = vunpack.c.h.b16 %v56
    %v243 = vunpack.c.l.b16 %v57
    %v244 = vunpack.c.h.b16 %v57
    %v245 = vunpack.c.l.b16 %v58
    %v246 = vunpack.c.h.b16 %v58
    %v247 = vunpack.c.l.b16 %v59
    %v248 = vunpack.c.l.b16 %v60
    %v249 = vunpack.c.h.b16 %v60
    %v250 = vunpack.c.l.b16 %v61
    %v251 = vunpack.c.h.b16 %v61
    %v252 = vunpack.c.l.b16 %v62
    %v253 = vunpack.c.h.b16 %v62
    %v254 = vunpack.c.l.b16 %v63
    %v255 = vunpack.c.h.b16 %v63
    %v256 = vunpack.c.l.b16 %v64
    %v257 = vunpack.c.l.b16 %v65
    %v258 = vunpack.c.h.b16 %v65
    %v259 = vunpack.c.l.b16 %v66
    %v260 = vunpack.c.h.b16 %v66
    %v261 = vunpack.c.l.b16 %v67
    %v262 = vunpack.c.h.b16 %v67
    %v263 = vunpack.c.l.b16 %v68
    %v264 = vunpack.c.h.b16 %v68
    %v265 = vunpack.c.l.b16 %v69
    %v266 = vunpack.c.l.b16 %v70
    %v267 = vunpack.c.h.b16 %v70
    %v268 = vunpack.c.l.b16 %v71
    %v269 = vunpack.c.h.b16 %v71
    %v270 = vunpack.c.l.b16 %v72
    %v271 = vunpack.c.h.b16 %v72
    %v272 = vunpack.c.l.b16 %v73
    %v273 = vunpack.c.h.b16 %v73
    %v274 = vunpack.c.l.b16 %v74
    %v275 = vpack.c.b16 %v248, %v239
    %v276 = vpack.c.b16 %v249, %v240
    %v277 = vpack.c.b16 %v250, %v241
    %v278 = vpack.c.b16 %v251, %v242
    %v279 = vpack.c.b16 %v252, %v243
    %v280 = vpack.c.b16 %v253, %v244
    %v281 = vpack.c.b16 %v254, %v245
    %v282 = vpack.c.b16 %v255, %v246
    %v283 = vpack.c.b16 %v256, %v247
    %v284 = vpack.c.b16 %v266, %v257
    %v285 = vpack.c.b16 %v267, %v258
    %v286 = vpack.c.b16 %v268, %v259
    %v287 = vpack.c.b16 %v269, %v260
    %v288 = vpack.c.b16 %v270, %v261
    %v289 = vpack.c.b16 %v271, %v262
    %v290 = vpack.c.b16 %v272, %v263
    %v291 = vpack.c.b16 %v273, %v264
    %v292 = vpack.c.b16 %v274, %v265
    %v455 = vunpack.c.l.b16 %v75
    %v456 = vunpack.c.h.b16 %v75
    %v457 = vunpack.c.l.b16 %v76
    %v458 = vunpack.c.h.b16 %v76
    %v459 = vunpack.c.l.b16 %v77
    %v460 = vunpack.c.h.b16 %v77
    %v461 = vunpack.c.l.b16 %v78
    %v462 = vunpack.c.h.b16 %v78
    %v463 = vunpack.c.l.b16 %v79
    %v464 = vunpack.c.h.b16 %v79
    %v465 = vunpack.c.l.b16 %v80
    %v466 = vunpack.c.h.b16 %v80
    %v467 = vunpack.c.l.b16 %v81
    %v468 = vunpack.c.h.b16 %v81
    %v469 = vunpack.c.l.b16 %v82
    %v470 = vunpack.c.h.b16 %v82
    %v471 = vunpack.c.l.b16 %v83
    %v472 = vunpack.c.h.b16 %v83
    %v473 = vunpack.c.l.b16 %v84
    %v474 = vunpack.c.h.b16 %v84
    %v475 = vunpack.c.l.b16 %v85
    %v476 = vunpack.c.h.b16 %v85
    %v477 = vunpack.c.l.b16 %v86
    %v478 = vunpack.c.h.b16 %v86
    %v479 = vunpack.c.l.b16 %v87
    %v480 = vunpack.c.h.b16 %v87
    %v481 = vunpack.c.l.b16 %v88
    %v482 = vunpack.c.h.b16 %v88
    %v483 = vunpack.c.l.b16 %v89
    %v484 = vunpack.c.h.b16 %v89
    %v485 = vunpack.c.l.b16 %v90
    %v486 = vunpack.c.h.b16 %v90
    %v487 = vunpack.c.l.b16 %v91
    %v488 = vunpack.c.h.b16 %v91
    %v489 = vunpack.c.l.b16 %v92
    %v490 = vunpack.c.h.b16 %v92
    %v491 = vunpack.c.l.b16 %v93
    %v492 = vunpack.c.h.b16 %v93
    %v493 = vunpack.c.l.b16 %v94
    %v494 = vunpack.c.h.b16 %v94
    %v495 = vunpack.c.l.b16 %v95
    %v496 = vunpack.c.h.b16 %v95
    %v497 = vunpack.c.l.b16 %v96
    %v498 = vunpack.c.h.b16 %v96
    %v499 = vunpack.c.l.b16 %v97
    %v500 = vunpack.c.h.b16 %v97
    %v501 = vunpack.c.l.b16 %v98
    %v502 = vunpack.c.h.b16 %v98
    %v503 = vunpack.c.l.b16 %v99
    %v504 = vunpack.c.h.b16 %v99
    %v505 = vunpack.c.l.b16 %v100
    %v506 = vunpack.c.h.b16 %v100
    %v507 = vunpack.c.l.b16 %v101
    %v508 = vunpack.c.h.b16 %v101
    %v509 = vunpack.c.l.b16 %v102
    %v510 = vunpack.c.h.b16 %v102
    %v511 = vunpack.c.l.b16 %v103
    %v512 = vunpack.c.h.b16 %v103
    %v513 = vunpack.c.l.b16 %v104
    %v514 = vunpack.c.h.b16 %v104
    %v515 = vunpack.c.l.b16 %v105
    %v516 = vunpack.c.h.b16 %v105
    %v517 = vunpack.c.l.b16 %v106
    %v518 = vunpack.c.h.b16 %v106
    %v519 = vunpack.c.l.b16 %v107
    %v520 = vunpack.c.h.b16 %v107
    %v521 = vunpack.c.l.b16 %v108
    %v522 = vunpack.c.h.b16 %v108
    %v523 = vunpack.c.l.b16 %v109
    %v524 = vunpack.c.h.b16 %v109
    %v525 = vunpack.c.l.b16 %v110
    %v526 = vunpack.c.h.b16 %v110
    %v527 = vunpack.c.l.b16 %v111
    %v528 = vunpack.c.h.b16 %v111
    %v529 = vunpack.c.l.b16 %v112
    %v530 = vunpack.c.h.b16 %v112
    %v531 = vunpack.c.l.b16 %v113
    %v532 = vunpack.c.h.b16 %v113
    %v533 = vunpack.c.l.b16 %v114
    %v534 = vunpack.c.h.b16 %v114
    %v535 = vunpack.c.l.b16 %v115
    %v536 = vunpack.c.h.b16 %v115
    %v537 = vunpack.c.l.b16 %v116
    %v538 = vunpack.c.h.b16 %v116
    %v539 = vunpack.c.l.b16 %v117
    %v540 = vunpack.c.h.b16 %v117
    %v541 = vunpack.c.l.b16 %v118
    %v542 = vunpack.c.h.b16 %v118
    %v543 = vunpack.c.l.b16 %v119
    %v544 = vunpack.c.h.b16 %v119
    %v545 = vunpack.c.l.b16 %v120
    %v546 = vunpack.c.h.b16 %v120
    %v547 = vunpack.c.l.b16 %v121
    %v548 = vunpack.c.h.b16 %v121
    %v549 = vunpack.c.l.b16 %v122
    %v550 = vunpack.c.h.b16 %v122
    %v551 = vunpack.c.l.b16 %v123
    %v552 = vunpack.c.h.b16 %v123
    %v553 = vunpack.c.l.b16 %v124
    %v554 = vunpack.c.h.b16 %v124
    %v555 = vunpack.c.l.b16 %v125
    %v556 = vunpack.c.h.b16 %v125
    %v557 = vunpack.c.l.b16 %v126
    %v558 = vunpack.c.h.b16 %v126
    %v559 = vunpack.c.l.b16 %v127
    %v560 = vunpack.c.h.b16 %v127
    %v561 = vunpack.c.l.b16 %v128
    %v562 = vunpack.c.h.b16 %v128
    %v563 = vunpack.c.l.b16 %v129
    %v564 = vunpack.c.h.b16 %v129
    %v565 = vunpack.c.l.b16 %v130
    %v566 = vunpack.c.h.b16 %v130
    %v567 = vunpack.c.l.b16 %v131
    %v568 = vunpack.c.h.b16 %v131
    %v569 = vunpack.c.l.b16 %v132
    %v570 = vunpack.c.h.b16 %v132
    %v571 = vunpack.c.l.b16 %v133
    %v572 = vunpack.c.h.b16 %v133
    %v573 = vunpack.c.l.b16 %v134
    %v574 = vunpack.c.h.b16 %v134
    %v575 = vunpack.c.l.b16 %v135
    %v576 = vunpack.c.h.b16 %v135
    %v577 = vunpack.c.l.b16 %v136
    %v578 = vunpack.c.h.b16 %v136
    %v579 = vunpack.c.l.b16 %v137
    %v580 = vunpack.c.h.b16 %v137
    %v581 = vunpack.c.l.b16 %v138
    %v582 = vunpack.c.h.b16 %v138
    %v583 = vunpack.c.l.b16 %v139
    %v584 = vunpack.c.h.b16 %v139
    %v585 = vunpack.c.l.b16 %v140
    %v586 = vunpack.c.h.b16 %v140
    %v587 = vunpack.c.l.b16 %v141
    %v588 = vunpack.c.h.b16 %v141
    %v589 = vunpack.c.l.b16 %v142
    %v590 = vunpack.c.h.b16 %v142
    %v591 = vunpack.c.l.b16 %v143
    %v592 = vunpack.c.h.b16 %v143
    %v593 = vunpack.c.l.b16 %v144
    %v594 = vunpack.c.h.b16 %v144
    %v595 = vunpack.c.l.b16 %v145
    %v596 = vunpack.c.h.b16 %v145
    %v597 = vunpack.c.l.b16 %v146
    %v598 = vunpack.c.h.b16 %v146
    %v599 = vunpack.c.l.b16 %v147
    %v600 = vunpack.c.h.b16 %v147
    %v601 = vunpack.c.l.b16 %v148
    %v602 = vunpack.c.h.b16 %v148
    %v603 = vunpack.c.l.b16 %v149
    %v604 = vunpack.c.h.b16 %v149
    %v605 = vunpack.c.l.b16 %v150
    %v606 = vunpack.c.h.b16 %v150
    %v607 = vunpack.c.l.b16 %v151
    %v608 = vunpack.c.h.b16 %v151
    %v609 = vunpack.c.l.b16 %v152
    %v610 = vunpack.c.h.b16 %v152
    %v611 = vunpack.c.l.b16 %v153
    %v612 = vunpack.c.h.b16 %v153
    %v613 = vunpack.c.l.b16 %v154
    %v614 = vunpack.c.h.b16 %v154
    %v615 = vunpack.c.l.b16 %v155
    %v616 = vunpack.c.h.b16 %v155
    %v617 = vunpack.c.l.b16 %v156
    %v618 = vunpack.c.h.b16 %v156
    %v619 = vunpack.c.l.b16 %v157
    %v620 = vunpack.c.h.b16 %v157
    %v621 = vunpack.c.l.b16 %v158
    %v622 = vunpack.c.h.b16 %v158
    %v623 = vunpack.c.l.b16 %v159
    %v624 = vunpack.c.h.b16 %v159
    %v625 = vunpack.c.l.b16 %v160
    %v626 = vunpack.c.h.b16 %v160
    %v627 = vunpack.c.l.b16 %v161
    %v628 = vunpack.c.h.b16 %v161
    %v629 = vunpack.c.l.b16 %v162
    %v630 = vunpack.c.h.b16 %v162
    %v631 = vunpack.c.l.b16 %v163
    %v632 = vunpack.c.h.b16 %v163
    %v633 = vunpack.c.l.b16 %v164
    %v634 = vunpack.c.h.b16 %v164
    %v635 = vunpack.c.l.b16 %v165
    %v636 = vunpack.c.h.b16 %v165
    %v637 = vunpack.c.l.b16 %v166
    %v638 = vunpack.c.h.b16 %v166
    %v639 = vunpack.c.l.b16 %v167
    %v640 = vunpack.c.h.b16 %v167
    %v641 = vunpack.c.l.b16 %v168
    %v642 = vunpack.c.h.b16 %v168
    %v643 = vunpack.c.l.b16 %v169
    %v644 = vunpack.c.h.b16 %v169
    %v645 = vunpack.c.l.b16 %v170
    %v646 = vunpack.c.h.b16 %v170
    %v647 = vunpack.c.l.b16 %v171
    %v648 = vunpack.c.h.b16 %v171
    %v649 = vunpack.c.l.b16 %v172
    %v650 = vunpack.c.h.b16 %v172
    %v651 = vunpack.c.l.b16 %v173
    %v652 = vunpack.c.h.b16 %v173
    %v653 = vunpack.c.l.b16 %v174
    %v654 = vunpack.c.h.b16 %v174
    %v655 = vunpack.c.l.b16 %v175
    %v656 = vunpack.c.h.b16 %v175
    %v657 = vunpack.c.l.b16 %v176
    %v658 = vunpack.c.h.b16 %v176
    %v659 = vunpack.c.l.b16 %v177
    %v660 = vunpack.c.h.b16 %v177
    %v661 = vunpack.c.l.b16 %v178
    %v662 = vunpack.c.h.b16 %v178
    %v663 = vunpack.c.l.b16 %v179
    %v664 = vunpack.c.h.b16 %v179
    %v665 = vunpack.c.l.b16 %v180
    %v666 = vunpack.c.h.b16 %v180
    %v667 = vunpack.c.l.b16 %v181
    %v668 = vunpack.c.h.b16 %v181
    %v669 = vunpack.c.l.b16 %v182
    %v670 = vunpack.c.h.b16 %v182
    %v671 = vunpack.c.l.b16 %v183
    %v672 = vunpack.c.h.b16 %v183
    %v673 = vunpack.c.l.b16 %v184
    %v674 = vunpack.c.h.b16 %v184
    %v675 = vunpack.c.l.b16 %v185
    %v676 = vunpack.c.h.b16 %v185
    %v677 = vunpack.c.l.b16 %v186
    %v678 = vunpack.c.h.b16 %v186
    %v679 = vunpack.c.l.b16 %v187
    %v680 = vunpack.c.h.b16 %v187
    %v681 = vunpack.c.l.b16 %v188
    %v682 = vunpack.c.h.b16 %v188
    %v683 = vunpack.c.l.b16 %v189
    %v684 = vunpack.c.h.b16 %v189
    %v685 = vunpack.c.l.b16 %v190
    %v686 = vunpack.c.h.b16 %v190
    %v687 = vunpack.c.l.b16 %v191
    %v688 = vunpack.c.h.b16 %v191
    %v689 = vunpack.c.l.b16 %v192
    %v690 = vunpack.c.h.b16 %v192
    %v691 = vunpack.c.l.b16 %v193
    %v692 = vunpack.c.h.b16 %v193
    %v693 = vunpack.c.l.b16 %v194
    %v694 = vunpack.c.h.b16 %v194
    %v695 = vunpack.c.l.b16 %v195
    %v696 = vunpack.c.h.b16 %v195
    %v697 = vunpack.c.l.b16 %v196
    %v698 = vunpack.c.h.b16 %v196
    %v699 = vunpack.c.l.b16 %v197
    %v700 = vunpack.c.h.b16 %v197
    %v701 = vunpack.c.l.b16 %v198
    %v702 = vunpack.c.h.b16 %v198
    %v703 = vunpack.c.l.b16 %v199
    %v704 = vunpack.c.h.b16 %v199
    %v705 = vunpack.c.l.b16 %v200
    %v706 = vunpack.c.h.b16 %v200
    %v707 = vunpack.c.l.b16 %v201
    %v708 = vunpack.c.h.b16 %v201
    %v709 = vunpack.c.l.b16 %v202
    %v710 = vunpack.c.h.b16 %v202
    %v711 = vunpack.c.l.b16 %v203
    %v712 = vunpack.c.h.b16 %v203
    %v713 = vunpack.c.l.b16 %v204
    %v714 = vunpack.c.h.b16 %v204
    %v715 = vunpack.c.l.b16 %v205
    %v716 = vunpack.c.h.b16 %v205
    %v717 = vunpack.c.l.b16 %v206
    %v718 = vunpack.c.h.b16 %v206
    %v719 = vunpack.c.l.b16 %v207
    %v720 = vunpack.c.h.b16 %v207
    %v721 = vunpack.c.l.b16 %v208
    %v722 = vunpack.c.h.b16 %v208
    %v723 = vunpack.c.l.b16 %v209
    %v724 = vunpack.c.h.b16 %v209
    %v725 = vunpack.c.l.b16 %v210
    %v726 = vunpack.c.h.b16 %v210
    %v727 = vunpack.c.l.b16 %v211
    %v728 = vunpack.c.h.b16 %v211
    %v729 = vunpack.c.l.b16 %v212
    %v730 = vunpack.c.h.b16 %v212
    %v731 = vunpack.c.l.b16 %v213
    %v732 = vunpack.c.h.b16 %v213
    %v733 = vunpack.c.l.b16 %v214
    %v734 = vunpack.c.h.b16 %v214
    %v735 = vunpack.c.l.b16 %v215
    %v736 = vunpack.c.h.b16 %v215
    %v737 = vunpack.c.l.b16 %v216
    %v738 = vunpack.c.h.b16 %v216
    %v739 = vunpack.c.l.b16 %v217
    %v740 = vunpack.c.h.b16 %v217
    %v741 = vunpack.c.l.b16 %v218
    %v742 = vunpack.c.h.b16 %v218
    %v743 = vpack.c.b16 %v457, %v455
    %v744 = vpack.c.b16 %v458, %v456
    %v745 = vpack.c.b16 %v461, %v459
    %v746 = vpack.c.b16 %v462, %v460
    %v747 = vpack.c.b16 %v465, %v463
    %v748 = vpack.c.b16 %v466, %v464
    %v749 = vpack.c.b16 %v469, %v467
    %v750 = vpack.c.b16 %v470, %v468
    %v751 = vpack.c.b16 %v473, %v471
    %v752 = vpack.c.b16 %v474, %v472
    %v753 = vpack.c.b16 %v477, %v475
    %v754 = vpack.c.b16 %v478, %v476
    %v755 = vpack.c.b16 %v481, %v479
    %v756 = vpack.c.b16 %v482, %v480
    %v757 = vpack.c.b16 %v485, %v483
    %v758 = vpack.c.b16 %v486, %v484
    %v759 = vpack.c.b16 %v489, %v487
    %v760 = vpack.c.b16 %v490, %v488
    %v761 = vpack.c.b16 %v493, %v491
    %v762 = vpack.c.b16 %v494, %v492
    %v763 = vpack.c.b16 %v497, %v495
    %v764 = vpack.c.b16 %v498, %v496
    %v765 = vpack.c.b16 %v501, %v499
    %v766 = vpack.c.b16 %v502, %v500
    %v767 = vpack.c.b16 %v505, %v503
    %v768 = vpack.c.b16 %v506, %v504
    %v769 = vpack.c.b16 %v509, %v507
    %v770 = vpack.c.b16 %v510, %v508
    %v771 = vpack.c.b16 %v513, %v511
    %v772 = vpack.c.b16 %v514, %v512
    %v773 = vpack.c.b16 %v517, %v515
    %v774 = vpack.c.b16 %v518, %v516
    %v775 = vpack.c.b16 %v521, %v519
    %v776 = vpack.c.b16 %v522, %v520
    %v777 = vpack.c.b16 %v525, %v523
    %v778 = vpack.c.b16 %v526, %v524
    %v779 = vpack.c.b16 %v529, %v527
    %v780 = vpack.c.b16 %v530, %v528
    %v781 = vpack.c.b16 %v533, %v531
    %v782 = vpack.c.b16 %v534, %v532
    %v783 = vpack.c.b16 %v537, %v535
    %v784 = vpack.c.b16 %v538, %v536
    %v785 = vpack.c.b16 %v541, %v539
    %v786 = vpack.c.b16 %v542, %v540
    %v787 = vpack.c.b16 %v545, %v543
    %v788 = vpack.c.b16 %v546, %v544
    %v789 = vpack.c.b16 %v549, %v547
    %v790 = vpack.c.b16 %v550, %v548
    %v791 = vpack.c.b16 %v553, %v551
    %v792 = vpack.c.b16 %v554, %v552
    %v793 = vpack.c.b16 %v557, %v555
    %v794 = vpack.c.b16 %v558, %v556
    %v795 = vpack.c.b16 %v561, %v559
    %v796 = vpack.c.b16 %v562, %v560
    %v797 = vpack.c.b16 %v565, %v563
    %v798 = vpack.c.b16 %v566, %v564
    %v799 = vpack.c.b16 %v569, %v567
    %v800 = vpack.c.b16 %v570, %v568
    %v801 = vpack.c.b16 %v573, %v571
    %v802 = vpack.c.b16 %v574, %v572
    %v803 = vpack.c.b16 %v577, %v575
    %v804 = vpack.c.b16 %v578, %v576
    %v805 = vpack.c.b16 %v581, %v579
    %v806 = vpack.c.b16 %v582, %v580
    %v807 = vpack.c.b16 %v585, %v583
    %v808 = vpack.c.b16 %v586, %v584
    %v809 = vpack.c.b16 %v589, %v587
    %v810 = vpack.c.b16 %v590, %v588
    %v811 = vpack.c.b16 %v593, %v591
    %v812 = vpack.c.b16 %v594, %v592
    %v813 = vpack.c.b16 %v597, %v595
    %v814 = vpack.c.b16 %v598, %v596
    %v815 = vpack.c.b16 %v601, %v599
    %v816 = vpack.c.b16 %v602, %v600
    %v817 = vpack.c.b16 %v605, %v603
    %v818 = vpack.c.b16 %v606, %v604
    %v819 = vpack.c.b16 %v609, %v607
    %v820 = vpack.c.b16 %v610, %v608
    %v821 = vpack.c.b16 %v613, %v611
    %v822 = vpack.c.b16 %v614, %v612
    %v823 = vpack.c.b16 %v617, %v615
    %v824 = vpack.c.b16 %v618, %v616
    %v825 = vpack.c.b16 %v621, %v619
    %v826 = vpack.c.b16 %v622, %v620
    %v827 = vpack.c.b16 %v625, %v623
    %v828 = vpack.c.b16 %v626, %v624
    %v829 = vpack.c.b16 %v629, %v627
    %v830 = vpack.c.b16 %v630, %v628
    %v831 = vpack.c.b16 %v633, %v631
    %v832 = vpack.c.b16 %v634, %v632
    %v833 = vpack.c.b16 %v637, %v635
    %v834 = vpack.c.b16 %v638, %v636
    %v835 = vpack.c.b16 %v641, %v639
    %v836 = vpack.c.b16 %v642, %v640
    %v837 = vpack.c.b16 %v645, %v643
    %v838 = vpack.c.b16 %v646, %v644
    %v839 = vpack.c.b16 %v649, %v647
    %v840 = vpack.c.b16 %v650, %v648
    %v841 = vpack.c.b16 %v653, %v651
    %v842 = vpack.c.b16 %v654, %v652
    %v843 = vpack.c.b16 %v657, %v655
    %v844 = vpack.c.b16 %v658, %v656
    %v845 = vpack.c.b16 %v661, %v659
    %v846 = vpack.c.b16 %v662, %v660
    %v847 = vpack.c.b16 %v665, %v663
    %v848 = vpack.c.b16 %v666, %v664
    %v849 = vpack.c.b16 %v669, %v667
    %v850 = vpack.c.b16 %v670, %v668
    %v851 = vpack.c.b16 %v673, %v671
    %v852 = vpack.c.b16 %v674, %v672
    %v853 = vpack.c.b16 %v677, %v675
    %v854 = vpack.c.b16 %v678, %v676
    %v855 = vpack.c.b16 %v681, %v679
    %v856 = vpack.c.b16 %v682, %v680
    %v857 = vpack.c.b16 %v685, %v683
    %v858 = vpack.c.b16 %v686, %v684
    %v859 = vpack.c.b16 %v689, %v687
    %v860 = vpack.c.b16 %v690, %v688
    %v861 = vpack.c.b16 %v693, %v691
    %v862 = vpack.c.b16 %v694, %v692
    %v863 = vpack.c.b16 %v697, %v695
    %v864 = vpack.c.b16 %v698, %v696
    %v865 = vpack.c.b16 %v701, %v699
    %v866 = vpack.c.b16 %v702, %v700
    %v867 = vpack.c.b16 %v705, %v703
    %v868 = vpack.c.b16 %v706, %v704
    %v869 = vpack.c.b16 %v709, %v707
    %v870 = vpack.c.b16 %v710, %v708
    %v871 = vpack.c.b16 %v713, %v711
    %v872 = vpack.c.b16 %v714, %v712
    %v873 = vpack.c.b16 %v717, %v715
    %v874 = vpack.c.b16 %v718, %v716
    %v875 = vpack.c.b16 %v721, %v719
    %v876 = vpack.c.b16 %v722, %v720
    %v877 = vpack.c.b16 %v725, %v723
    %v878 = vpack.c.b16 %v726, %v724
    %v879 = vpack.c.b16 %v729, %v727
    %v880 = vpack.c.b16 %v730, %v728
    %v881 = vpack.c.b16 %v733, %v731
    %v882 = vpack.c.b16 %v734, %v732
    %v883 = vpack.c.b16 %v737, %v735
    %v884 = vpack.c.b16 %v738, %v736
    %v885 = vpack.c.b16 %v741, %v739
    %v886 = vpack.c.b16 %v742, %v740
    %1031 = vmatprep.subr.bf16.mxu0 %v744
    %1032 = vmatpush1.bf16.msra.mxu0 %v743
    %1033 = vmatprep.subr.bf16.mxu0 %v746
    %1034 = vmatpush1.bf16.msra.mxu0 %v745
    %1035 = vmatprep.subr.bf16.mxu0 %v748
    %1036 = vmatpush1.bf16.msra.mxu0 %v747
    %1037 = vmatprep.subr.bf16.mxu0 %v750
    %1038 = vmatpush1.bf16.msra.mxu0 %v749
    %1039 = vmatprep.subr.bf16.mxu0 %v752
    %1040 = vmatpush1.bf16.msra.mxu0 %v751
    %1041 = vmatprep.subr.bf16.mxu0 %v754
    %1042 = vmatpush1.bf16.msra.mxu0 %v753
    %1043 = vmatprep.subr.bf16.mxu0 %v756
    %1044 = vmatpush1.bf16.msra.mxu0 %v755
    %1045 = vmatprep.subr.bf16.mxu0 %v758
    %1046 = vmatpush1.bf16.msra.mxu0 %v757
    %1047 = vmatprep.subr.bf16.mxu0 %v760
    %1048 = vmatpush1.bf16.msra.mxu0 %v759
    %1049 = vmatprep.subr.bf16.mxu0 %v762
    %1050 = vmatpush1.bf16.msra.mxu0 %v761
    %1051 = vmatprep.subr.bf16.mxu0 %v764
    %1052 = vmatpush1.bf16.msra.mxu0 %v763
    %1053 = vmatprep.subr.bf16.mxu0 %v766
    %1054 = vmatpush1.bf16.msra.mxu0 %v765
    %1055 = vmatprep.subr.bf16.mxu0 %v768
    %1056 = vmatpush1.bf16.msra.mxu0 %v767
    %1057 = vmatprep.subr.bf16.mxu0 %v770
    %1058 = vmatpush1.bf16.msra.mxu0 %v769
    %1059 = vmatprep.subr.bf16.mxu0 %v772
    %1060 = vmatpush1.bf16.msra.mxu0 %v771
    %1061 = vmatprep.subr.bf16.mxu0 %v774
    %1062 = vmatpush1.bf16.msra.mxu0 %v773
    %1063 = vmatprep.mubr.bf16.mxu0 %v276
    %1064 = vmatmul.mubr.bf16.gmra.mrb[0].mxu0 %v275
    %v1065 = vpop.f32.mrb[0].mxu0
    %v1066 = vadd.f32 0.0, %v1065
    %v1067 = vpop.f32.mrb[0].mxu0
    %v1068 = vadd.f32 0.0, %v1067
    %v1069 = vpop.f32.mrb[0].mxu0
    %v1070 = vadd.f32 0.0, %v1069
    %v1071 = vpop.f32.mrb[0].mxu0
    %v1072 = vadd.f32 0.0, %v1071
    %1073 = vmatprep.mubr.bf16.mxu0 %v285
    %1074 = vmatmul.mubr.bf16.gmra.mrb[0].mxu0 %v284
    %v1075 = vpop.f32.mrb[0].mxu0
    %v1076 = vadd.f32 0.0, %v1075
    %v1077 = vpop.f32.mrb[0].mxu0
    %v1078 = vadd.f32 0.0, %v1077
    %v1079 = vpop.f32.mrb[0].mxu0
    %v1080 = vadd.f32 0.0, %v1079
    %v1081 = vpop.f32.mrb[0].mxu0
    %v1082 = vadd.f32 0.0, %v1081
    %1083 = vdwg.mxu0
    %1084 = vmatprep.subr.bf16.mxu0 %v776
    %1085 = vmatpush1.bf16.msra.mxu0 %v775
    %1086 = vmatprep.subr.bf16.mxu0 %v778
    %1087 = vmatpush1.bf16.msra.mxu0 %v777
    %1088 = vmatprep.subr.bf16.mxu0 %v780
    %1089 = vmatpush1.bf16.msra.mxu0 %v779
    %1090 = vmatprep.subr.bf16.mxu0 %v782
    %1091 = vmatpush1.bf16.msra.mxu0 %v781
    %1092 = vmatprep.subr.bf16.mxu0 %v784
    %1093 = vmatpush1.bf16.msra.mxu0 %v783
    %1094 = vmatprep.subr.bf16.mxu0 %v786
    %1095 = vmatpush1.bf16.msra.mxu0 %v785
    %1096 = vmatprep.subr.bf16.mxu0 %v788
    %1097 = vmatpush1.bf16.msra.mxu0 %v787
    %1098 = vmatprep.subr.bf16.mxu0 %v790
    %1099 = vmatpush1.bf16.msra.mxu0 %v789
    %1100 = vmatprep.subr.bf16.mxu0 %v792
    %1101 = vmatpush1.bf16.msra.mxu0 %v791
    %1102 = vmatprep.subr.bf16.mxu0 %v794
    %1103 = vmatpush1.bf16.msra.mxu0 %v793
    %1104 = vmatprep.subr.bf16.mxu0 %v796
    %1105 = vmatpush1.bf16.msra.mxu0 %v795
    %1106 = vmatprep.subr.bf16.mxu0 %v798
    %1107 = vmatpush1.bf16.msra.mxu0 %v797
    %1108 = vmatprep.subr.bf16.mxu0 %v800
    %1109 = vmatpush1.bf16.msra.mxu0 %v799
    %1110 = vmatprep.subr.bf16.mxu0 %v802
    %1111 = vmatpush1.bf16.msra.mxu0 %v801
    %1112 = vmatprep.subr.bf16.mxu0 %v804
    %1113 = vmatpush1.bf16.msra.mxu0 %v803
    %1114 = vmatprep.subr.bf16.mxu0 %v806
    %1115 = vmatpush1.bf16.msra.mxu0 %v805
    %1116 = vmatprep.mubr.bf16.mxu0 %v278
    %1117 = vmatmul.mubr.bf16.gmra.mrb[0].mxu0 %v277
    %v1118 = vpop.f32.mrb[0].mxu0
    %v1119 = vadd.f32 %v1066, %v1118
    %v1120 = vpop.f32.mrb[0].mxu0
    %v1121 = vadd.f32 %v1068, %v1120
    %v1122 = vpop.f32.mrb[0].mxu0
    %v1123 = vadd.f32 %v1070, %v1122
    %v1124 = vpop.f32.mrb[0].mxu0
    %v1125 = vadd.f32 %v1072, %v1124
    %1126 = vmatprep.mubr.bf16.mxu0 %v287
    %1127 = vmatmul.mubr.bf16.gmra.mrb[0].mxu0 %v286
    %v1128 = vpop.f32.mrb[0].mxu0
    %v1129 = vadd.f32 %v1076, %v1128
    %v1130 = vpop.f32.mrb[0].mxu0
    %v1131 = vadd.f32 %v1078, %v1130
    %v1132 = vpop.f32.mrb[0].mxu0
    %v1133 = vadd.f32 %v1080, %v1132
    %v1134 = vpop.f32.mrb[0].mxu0
    %v1135 = vadd.f32 %v1082, %v1134
    %1136 = vdwg.mxu0
    %1137 = vmatprep.subr.bf16.mxu0 %v808
    %1138 = vmatpush1.bf16.msra.mxu0 %v807
    %1139 = vmatprep.subr.bf16.mxu0 %v810
    %1140 = vmatpush1.bf16.msra.mxu0 %v809
    %1141 = vmatprep.subr.bf16.mxu0 %v812
    %1142 = vmatpush1.bf16.msra.mxu0 %v811
    %1143 = vmatprep.subr.bf16.mxu0 %v814
    %1144 = vmatpush1.bf16.msra.mxu0 %v813
    %1145 = vmatprep.subr.bf16.mxu0 %v816
    %1146 = vmatpush1.bf16.msra.mxu0 %v815
    %1147 = vmatprep.subr.bf16.mxu0 %v818
    %1148 = vmatpush1.bf16.msra.mxu0 %v817
    %1149 = vmatprep.subr.bf16.mxu0 %v820
    %1150 = vmatpush1.bf16.msra.mxu0 %v819
    %1151 = vmatprep.subr.bf16.mxu0 %v822
    %1152 = vmatpush1.bf16.msra.mxu0 %v821
    %1153 = vmatprep.subr.bf16.mxu0 %v824
    %1154 = vmatpush1.bf16.msra.mxu0 %v823
    %1155 = vmatprep.subr.bf16.mxu0 %v826
    %1156 = vmatpush1.bf16.msra.mxu0 %v825
    %1157 = vmatprep.subr.bf16.mxu0 %v828
    %1158 = vmatpush1.bf16.msra.mxu0 %v827
    %1159 = vmatprep.subr.bf16.mxu0 %v830
    %1160 = vmatpush1.bf16.msra.mxu0 %v829
    %1161 = vmatprep.subr.bf16.mxu0 %v832
    %1162 = vmatpush1.bf16.msra.mxu0 %v831
    %1163 = vmatprep.subr.bf16.mxu0 %v834
    %1164 = vmatpush1.bf16.msra.mxu0 %v833
    %1165 = vmatprep.subr.bf16.mxu0 %v836
    %1166 = vmatpush1.bf16.msra.mxu0 %v835
    %1167 = vmatprep.subr.bf16.mxu0 %v838
    %1168 = vmatpush1.bf16.msra.mxu0 %v837
    %1169 = vmatprep.mubr.bf16.mxu0 %v280
    %1170 = vmatmul.mubr.bf16.gmra.mrb[0].mxu0 %v279
    %v1171 = vpop.f32.mrb[0].mxu0
    %v1172 = vadd.f32 %v1119, %v1171
    %v1173 = vpop.f32.mrb[0].mxu0
    %v1174 = vadd.f32 %v1121, %v1173
    %v1175 = vpop.f32.mrb[0].mxu0
    %v1176 = vadd.f32 %v1123, %v1175
    %v1177 = vpop.f32.mrb[0].mxu0
    %v1178 = vadd.f32 %v1125, %v1177
    %1179 = vmatprep.mubr.bf16.mxu0 %v289
    %1180 = vmatmul.mubr.bf16.gmra.mrb[0].mxu0 %v288
    %v1181 = vpop.f32.mrb[0].mxu0
    %v1182 = vadd.f32 %v1129, %v1181
    %v1183 = vpop.f32.mrb[0].mxu0
    %v1184 = vadd.f32 %v1131, %v1183
    %v1185 = vpop.f32.mrb[0].mxu0
    %v1186 = vadd.f32 %v1133, %v1185
    %v1187 = vpop.f32.mrb[0].mxu0
    %v1188 = vadd.f32 %v1135, %v1187
    %1189 = vdwg.mxu0
    %1190 = vmatprep.subr.bf16.mxu0 %v840
    %1191 = vmatpush1.bf16.msra.mxu0 %v839
    %1192 = vmatprep.subr.bf16.mxu0 %v842
    %1193 = vmatpush1.bf16.msra.mxu0 %v841
    %1194 = vmatprep.subr.bf16.mxu0 %v844
    %1195 = vmatpush1.bf16.msra.mxu0 %v843
    %1196 = vmatprep.subr.bf16.mxu0 %v846
    %1197 = vmatpush1.bf16.msra.mxu0 %v845
    %1198 = vmatprep.subr.bf16.mxu0 %v848
    %1199 = vmatpush1.bf16.msra.mxu0 %v847
    %1200 = vmatprep.subr.bf16.mxu0 %v850
    %1201 = vmatpush1.bf16.msra.mxu0 %v849
    %1202 = vmatprep.subr.bf16.mxu0 %v852
    %1203 = vmatpush1.bf16.msra.mxu0 %v851
    %1204 = vmatprep.subr.bf16.mxu0 %v854
    %1205 = vmatpush1.bf16.msra.mxu0 %v853
    %1206 = vmatprep.subr.bf16.mxu0 %v856
    %1207 = vmatpush1.bf16.msra.mxu0 %v855
    %1208 = vmatprep.subr.bf16.mxu0 %v858
    %1209 = vmatpush1.bf16.msra.mxu0 %v857
    %1210 = vmatprep.subr.bf16.mxu0 %v860
    %1211 = vmatpush1.bf16.msra.mxu0 %v859
    %1212 = vmatprep.subr.bf16.mxu0 %v862
    %1213 = vmatpush1.bf16.msra.mxu0 %v861
    %1214 = vmatprep.subr.bf16.mxu0 %v864
    %1215 = vmatpush1.bf16.msra.mxu0 %v863
    %1216 = vmatprep.subr.bf16.mxu0 %v866
    %1217 = vmatpush1.bf16.msra.mxu0 %v865
    %1218 = vmatprep.subr.bf16.mxu0 %v868
    %1219 = vmatpush1.bf16.msra.mxu0 %v867
    %1220 = vmatprep.subr.bf16.mxu0 %v870
    %1221 = vmatpush1.bf16.msra.mxu0 %v869
    %1222 = vmatprep.mubr.bf16.mxu0 %v282
    %1223 = vmatmul.mubr.bf16.gmra.mrb[0].mxu0 %v281
    %v1224 = vpop.f32.mrb[0].mxu0
    %v1225 = vadd.f32 %v1172, %v1224
    %v1226 = vpop.f32.mrb[0].mxu0
    %v1227 = vadd.f32 %v1174, %v1226
    %v1228 = vpop.f32.mrb[0].mxu0
    %v1229 = vadd.f32 %v1176, %v1228
    %v1230 = vpop.f32.mrb[0].mxu0
    %v1231 = vadd.f32 %v1178, %v1230
    %1232 = vmatprep.mubr.bf16.mxu0 %v291
    %1233 = vmatmul.mubr.bf16.gmra.mrb[0].mxu0 %v290
    %v1234 = vpop.f32.mrb[0].mxu0
    %v1235 = vadd.f32 %v1182, %v1234
    %v1236 = vpop.f32.mrb[0].mxu0
    %v1237 = vadd.f32 %v1184, %v1236
    %v1238 = vpop.f32.mrb[0].mxu0
    %v1239 = vadd.f32 %v1186, %v1238
    %v1240 = vpop.f32.mrb[0].mxu0
    %v1241 = vadd.f32 %v1188, %v1240
    %1242 = vdwg.mxu0
    %1243 = vmatprep.subr.bf16.mxu0 %v872
    %1244 = vmatpush1.bf16.msra.mxu0 %v871
    %1245 = vmatprep.subr.bf16.mxu0 %v874
    %1246 = vmatpush1.bf16.msra.mxu0 %v873
    %1247 = vmatprep.subr.bf16.mxu0 %v876
    %1248 = vmatpush1.bf16.msra.mxu0 %v875
    %1249 = vmatprep.subr.bf16.mxu0 %v878
    %1250 = vmatpush1.bf16.msra.mxu0 %v877
    %1251 = vmatprep.subr.bf16.mxu0 %v880
    %1252 = vmatpush1.bf16.msra.mxu0 %v879
    %1253 = vmatprep.subr.bf16.mxu0 %v882
    %1254 = vmatpush1.bf16.msra.mxu0 %v881
    %1255 = vmatprep.subr.bf16.mxu0 %v884
    %1256 = vmatpush1.bf16.msra.mxu0 %v883
    %1257 = vmatprep.subr.bf16.mxu0 %v886
    %1258 = vmatpush1.bf16.msra.mxu0 %v885
    %1259 = vmatprep.subr.bf16.mxu0 0
    %1260 = vmatpush1.bf16.msra.mxu0 0
    %1261 = vmatprep.subr.bf16.mxu0 0
    %1262 = vmatpush1.bf16.msra.mxu0 0
    %1263 = vmatprep.subr.bf16.mxu0 0
    %1264 = vmatpush1.bf16.msra.mxu0 0
    %1265 = vmatprep.subr.bf16.mxu0 0
    %1266 = vmatpush1.bf16.msra.mxu0 0
    %1267 = vmatprep.subr.bf16.mxu0 0
    %1268 = vmatpush1.bf16.msra.mxu0 0
    %1269 = vmatprep.subr.bf16.mxu0 0
    %1270 = vmatpush1.bf16.msra.mxu0 0
    %1271 = vmatprep.subr.bf16.mxu0 0
    %1272 = vmatpush1.bf16.msra.mxu0 0
    %1273 = vmatprep.subr.bf16.mxu0 0
    %1274 = vmatpush1.bf16.msra.mxu0 0
    %1275 = vmatprep.mubr.bf16.mxu0 0
    %1276 = vmatmul.mubr.bf16.gmra.mrb[0].mxu0 %v283
    %v1277 = vpop.f32.mrb[0].mxu0
    %v1278 = vadd.f32 %v1225, %v1277
    %v1279 = vpop.f32.mrb[0].mxu0
    %v1280 = vadd.f32 %v1227, %v1279
    %v1281 = vpop.f32.mrb[0].mxu0
    %v1282 = vadd.f32 %v1229, %v1281
    %v1283 = vpop.f32.mrb[0].mxu0
    %v1284 = vadd.f32 %v1231, %v1283
    %1285 = vmatprep.mubr.bf16.mxu0 0
    %1286 = vmatmul.mubr.bf16.gmra.mrb[0].mxu0 %v292
    %v1287 = vpop.f32.mrb[0].mxu0
    %v1288 = vadd.f32 %v1235, %v1287
    %v1289 = vpop.f32.mrb[0].mxu0
    %v1290 = vadd.f32 %v1237, %v1289
    %v1291 = vpop.f32.mrb[0].mxu0
    %v1292 = vadd.f32 %v1239, %v1291
    %v1293 = vpop.f32.mrb[0].mxu0
    %v1294 = vadd.f32 %v1241, %v1293
    %1295 = vdwg.mxu0
    %vm1296 = vcmask 523264
    %v1297 = vsel %vm1296, %v1278, 0.0
    %v1298 = vsel %vm1296, %v1282, 0.0
    %v1299 = vadd.f32 %v1297, %v1298
    %v1300 = vsel %vm1296, %v1288, 0.0
    %v1301 = vadd.f32 %v1299, %v1300
    %v1302 = vsel %vm1296, %v1292, 0.0
    %v1303 = vadd.f32 %v1301, %v1302
    %v1304 = vrot.slane %v1303, 4
    %v1305 = vadd.f32 %v1303, %v1304
    %v1306 = vrot.slane %v1305, 2
    %v1307 = vadd.f32 %v1305, %v1306
    %v1308 = vrot.slane %v1307, 1
    %v1309 = vadd.f32 %v1307, %v1308
    %vm1310 = vcmask 1048064
    %v1311 = vsel %vm1310, %v1278, 0.0
    %v1312 = vsel %vm1310, %v1282, 0.0
    %v1313 = vadd.f32 %v1311, %v1312
    %v1314 = vsel %vm1310, %v1288, 0.0
    %v1315 = vadd.f32 %v1313, %v1314
    %v1316 = vsel %vm1310, %v1292, 0.0
    %v1317 = vadd.f32 %v1315, %v1316
    %v1318 = vrot.slane %v1317, 4
    %v1319 = vadd.f32 %v1317, %v1318
    %v1320 = vrot.slane %v1319, 2
    %v1321 = vadd.f32 %v1319, %v1320
    %v1322 = vrot.slane %v1321, 1
    %v1323 = vadd.f32 %v1321, %v1322
    %1325 = vrot.lane.b32.xlu0 %v1323, 64
    %v1326 = vpop.permute.xlu0 %1325
    %v1328 = vadd.f32 %v1309, %v1326
    %v1329 = vsel %vm1296, %v1280, 0.0
    %v1330 = vsel %vm1296, %v1284, 0.0
    %v1331 = vadd.f32 %v1329, %v1330
    %v1332 = vsel %vm1296, %v1290, 0.0
    %v1333 = vadd.f32 %v1331, %v1332
    %v1334 = vsel %vm1296, %v1294, 0.0
    %v1335 = vadd.f32 %v1333, %v1334
    %v1336 = vrot.slane %v1335, 4
    %v1337 = vadd.f32 %v1335, %v1336
    %v1338 = vrot.slane %v1337, 2
    %v1339 = vadd.f32 %v1337, %v1338
    %v1340 = vrot.slane %v1339, 1
    %v1341 = vadd.f32 %v1339, %v1340
    %v1342 = vadd.f32 %v1328, %v1341
    %v1343 = vsel %vm1310, %v1280, 0.0
    %v1344 = vsel %vm1310, %v1284, 0.0
    %v1345 = vadd.f32 %v1343, %v1344
    %v1346 = vsel %vm1310, %v1290, 0.0
    %v1347 = vadd.f32 %v1345, %v1346
    %v1348 = vsel %vm1310, %v1294, 0.0
    %v1349 = vadd.f32 %v1347, %v1348
    %v1350 = vrot.slane %v1349, 4
    %v1351 = vadd.f32 %v1349, %v1350
    %v1352 = vrot.slane %v1351, 2
    %v1353 = vadd.f32 %v1351, %v1352
    %v1354 = vrot.slane %v1353, 1
    %v1355 = vadd.f32 %v1353, %v1354
    %1357 = vrot.lane.b32.xlu0 %v1355, 64
    %v1358 = vpop.permute.xlu0 %1357
    %v1360 = vadd.f32 %v1342, %v1358
    %v1361 = vmul.f32 %v1360, 0.0078125
    %v1362 = vlaneseq
    %v1363 = vshrl.u32 %v1362, 7
    %v1364 = vsub.s32 0, %v1363
    %v1365 = vrot.slane %v1361, %v1364
    %v1366 = vsub.f32 %v1278, %v1365
    %v1367 = vsub.f32 %v1282, %v1365
    %v1368 = vsub.f32 %v1288, %v1365
    %v1369 = vsub.f32 %v1292, %v1365
    %v1370 = vmul.f32 %v1366, %v1366
    %v1371 = vmul.f32 %v1367, %v1367
    %v1372 = vmul.f32 %v1368, %v1368
    %v1373 = vmul.f32 %v1369, %v1369
    %v1374 = vsel %vm1296, %v1370, 0.0
    %v1375 = vsel %vm1296, %v1371, 0.0
    %v1376 = vadd.f32 %v1374, %v1375
    %v1377 = vsel %vm1296, %v1372, 0.0
    %v1378 = vadd.f32 %v1376, %v1377
    %v1379 = vsel %vm1296, %v1373, 0.0
    %v1380 = vadd.f32 %v1378, %v1379
    %v1381 = vrot.slane %v1380, 4
    %v1382 = vadd.f32 %v1380, %v1381
    %v1383 = vrot.slane %v1382, 2
    %v1384 = vadd.f32 %v1382, %v1383
    %v1385 = vrot.slane %v1384, 1
    %v1386 = vadd.f32 %v1384, %v1385
    %v1387 = vadd.f32 %v1386, 0.0
    %1389 = vrot.lane.b32.xlu0 %v1365, 64
    %v1390 = vpop.permute.xlu0 %1389
    %v1392 = vsub.f32 %v1278, %v1390
    %v1393 = vsub.f32 %v1282, %v1390
    %v1394 = vsub.f32 %v1288, %v1390
    %v1395 = vsub.f32 %v1292, %v1390
    %v1396 = vmul.f32 %v1392, %v1392
    %v1397 = vmul.f32 %v1393, %v1393
    %v1398 = vmul.f32 %v1394, %v1394
    %v1399 = vmul.f32 %v1395, %v1395
    %v1400 = vsel %vm1310, %v1396, 0.0
    %v1401 = vsel %vm1310, %v1397, 0.0
    %v1402 = vadd.f32 %v1400, %v1401
    %v1403 = vsel %vm1310, %v1398, 0.0
    %v1404 = vadd.f32 %v1402, %v1403
    %v1405 = vsel %vm1310, %v1399, 0.0
    %v1406 = vadd.f32 %v1404, %v1405
    %v1407 = vrot.slane %v1406, 4
    %v1408 = vadd.f32 %v1406, %v1407
    %v1409 = vrot.slane %v1408, 2
    %v1410 = vadd.f32 %v1408, %v1409
    %v1411 = vrot.slane %v1410, 1
    %v1412 = vadd.f32 %v1410, %v1411
    %1414 = vrot.lane.b32.xlu0 %v1412, 64
    %v1415 = vpop.permute.xlu0 %1414
    %v1417 = vadd.f32 %v1387, %v1415
    %v1418 = vsub.f32 %v1280, %v1365
    %v1419 = vsub.f32 %v1284, %v1365
    %v1420 = vsub.f32 %v1290, %v1365
    %v1421 = vsub.f32 %v1294, %v1365
    %v1422 = vmul.f32 %v1418, %v1418
    %v1423 = vmul.f32 %v1419, %v1419
    %v1424 = vmul.f32 %v1420, %v1420
    %v1425 = vmul.f32 %v1421, %v1421
    %v1426 = vsel %vm1296, %v1422, 0.0
    %v1427 = vsel %vm1296, %v1423, 0.0
    %v1428 = vadd.f32 %v1426, %v1427
    %v1429 = vsel %vm1296, %v1424, 0.0
    %v1430 = vadd.f32 %v1428, %v1429
    %v1431 = vsel %vm1296, %v1425, 0.0
    %v1432 = vadd.f32 %v1430, %v1431
    %v1433 = vrot.slane %v1432, 4
    %v1434 = vadd.f32 %v1432, %v1433
    %v1435 = vrot.slane %v1434, 2
    %v1436 = vadd.f32 %v1434, %v1435
    %v1437 = vrot.slane %v1436, 1
    %v1438 = vadd.f32 %v1436, %v1437
    %v1439 = vadd.f32 %v1417, %v1438
    %v1440 = vsub.f32 %v1280, %v1390
    %v1441 = vsub.f32 %v1284, %v1390
    %v1442 = vsub.f32 %v1290, %v1390
    %v1443 = vsub.f32 %v1294, %v1390
    %v1444 = vmul.f32 %v1440, %v1440
    %v1445 = vmul.f32 %v1441, %v1441
    %v1446 = vmul.f32 %v1442, %v1442
    %v1447 = vmul.f32 %v1443, %v1443
    %v1448 = vsel %vm1310, %v1444, 0.0
    %v1449 = vsel %vm1310, %v1445, 0.0
    %v1450 = vadd.f32 %v1448, %v1449
    %v1451 = vsel %vm1310, %v1446, 0.0
    %v1452 = vadd.f32 %v1450, %v1451
    %v1453 = vsel %vm1310, %v1447, 0.0
    %v1454 = vadd.f32 %v1452, %v1453
    %v1455 = vrot.slane %v1454, 4
    %v1456 = vadd.f32 %v1454, %v1455
    %v1457 = vrot.slane %v1456, 2
    %v1458 = vadd.f32 %v1456, %v1457
    %v1459 = vrot.slane %v1458, 1
    %v1460 = vadd.f32 %v1458, %v1459
    %1462 = vrot.lane.b32.xlu0 %v1460, 64
    %v1463 = vpop.permute.xlu0 %1462
    %v1465 = vadd.f32 %v1439, %v1463
    %v1466 = vmul.f32 %v1465, 0.0078125
    %v1467 = vld [vmem:[#allocation4] sm:$0x1]
    %v1468 = vadd.f32 %v1466, 1e-05
    %v1469 = vrsqrt.pop %v1468
    %v1470 = vmul.f32 %v1467, %v1469
    %v1471 = vld [vmem:[#allocation6] sm:$0x1]
    %v1472 = vmul.f32 %v1361, %v1470
    %v1473 = vsub.f32 %v1471, %v1472
    %v1475 = vlaneseq
    %v1476 = vshrl.u32 %v1475, 7
    %v1477 = vsub.s32 0, %v1476
    %v1478 = vrot.slane %v1470, %v1477
    %v1480 = vmul.f32 %v1278, %v1478
    %v1481 = vmul.f32 %v1282, %v1478
    %v1482 = vmul.f32 %v1288, %v1478
    %v1483 = vmul.f32 %v1292, %v1478
    %v1485 = vlaneseq
    %v1486 = vshrl.u32 %v1485, 7
    %v1487 = vsub.s32 0, %v1486
    %v1488 = vrot.slane %v1473, %v1487
    %v1490 = vadd.f32 %v1480, %v1488
    %v1491 = vadd.f32 %v1481, %v1488
    %v1492 = vadd.f32 %v1482, %v1488
    %v1493 = vadd.f32 %v1483, %v1488
    %v1494 = vmax.f32 %v1490, 0.0
    %v1495 = vmax.f32 %v1491, 0.0
    %v1496 = vmax.f32 %v1492, 0.0
    %v1497 = vmax.f32 %v1493, 0.0
    %1498 = vrot.lane.b32.xlu0 %v1478, 64
    %v1499 = vpop.permute.xlu0 %1498
    %v1501 = vmul.f32 %v1278, %v1499
    %v1502 = vmul.f32 %v1282, %v1499
    %v1503 = vmul.f32 %v1288, %v1499
    %v1504 = vmul.f32 %v1292, %v1499
    %1505 = vrot.lane.b32.xlu0 %v1488, 64
    %v1506 = vpop.permute.xlu0 %1505
    %v1508 = vadd.f32 %v1501, %v1506
    %v1509 = vadd.f32 %v1502, %v1506
    %v1510 = vadd.f32 %v1503, %v1506
    %v1511 = vadd.f32 %v1504, %v1506
    %v1512 = vmax.f32 %v1508, 0.0
    %v1513 = vmax.f32 %v1509, 0.0
    %v1514 = vmax.f32 %v1510, 0.0
    %v1515 = vmax.f32 %v1511, 0.0
    %v1516 = vmul.f32 %v1280, %v1478
    %v1517 = vmul.f32 %v1284, %v1478
    %v1518 = vmul.f32 %v1290, %v1478
    %v1519 = vmul.f32 %v1294, %v1478
    %v1520 = vadd.f32 %v1516, %v1488
    %v1521 = vadd.f32 %v1517, %v1488
    %v1522 = vadd.f32 %v1518, %v1488
    %v1523 = vadd.f32 %v1519, %v1488
    %v1524 = vmax.f32 %v1520, 0.0
    %v1525 = vmax.f32 %v1521, 0.0
    %v1526 = vmax.f32 %v1522, 0.0
    %v1527 = vmax.f32 %v1523, 0.0
    %v1528 = vmul.f32 %v1280, %v1499
    %v1529 = vmul.f32 %v1284, %v1499
    %v1530 = vmul.f32 %v1290, %v1499
    %v1531 = vmul.f32 %v1294, %v1499
    %v1532 = vadd.f32 %v1528, %v1506
    %v1533 = vadd.f32 %v1529, %v1506
    %v1534 = vadd.f32 %v1530, %v1506
    %v1535 = vadd.f32 %v1531, %v1506
    %v1536 = vmax.f32 %v1532, 0.0
    %v1537 = vmax.f32 %v1533, 0.0
    %v1538 = vmax.f32 %v1534, 0.0
    %v1539 = vmax.f32 %v1535, 0.0
    %v1540 = vsel %vm1296, %v1494, %v1512
    %v1541 = vsel %vm1296, %v1495, %v1513
    %v1542 = vsel %vm1296, %v1496, %v1514
    %v1543 = vsel %vm1296, %v1497, %v1515
    %v1544 = vsel %vm1296, %v1524, %v1536
    %v1545 = vsel %vm1296, %v1525, %v1537
    %v1546 = vsel %vm1296, %v1526, %v1538
    %v1547 = vsel %vm1296, %v1527, %v1539
    %v1548 = vpack.c.bf16 %v1541, %v1540
    %v1549 = vpack.c.bf16 %v1545, %v1544
    %v1550 = vpack.c.bf16 %v1543, %v1542
    %v1551 = vpack.c.bf16 %v1547, %v1546
    %v1556 = vunpack.c.l.b16 %v1548
    %v1557 = vunpack.c.l.b16 %v1549
    %v1558 = vunpack.c.h.b16 %v1548
    %v1559 = vunpack.c.h.b16 %v1549
    %v1560 = vunpack.c.l.b16 %v1550
    %v1561 = vunpack.c.l.b16 %v1551
    %v1562 = vunpack.c.h.b16 %v1550
    %v1563 = vunpack.c.h.b16 %v1551
    %v1564 = vpack.c.b16 %v1557, %v1556
    %v1565 = vpack.c.b16 %v1559, %v1558
    %v1566 = vpack.c.b16 %v1561, %v1560
    %v1567 = vpack.c.b16 %v1563, %v1562
    %1572 = vst [vmem:[%s4] sm:$0xff] %v1564
    %1573 = vst [vmem:[%s4 + $0x8] sm:$0xff] %v1565
    %1574 = vst [vmem:[%s4 + $0x10] sm:$0xff] %v1566
    %1575 = vst [vmem:[%s4 + $0x18] sm:$0xff] %v1567
    // Predicated region
    $region30: #{generator_forward.6} parent=1 // pred_check
      _
    $region31: #{generator_forward.6} parent=1 // pred_check_branch
      %1577 = sbr.rel (0) target = $region33
    $region32: #{generator_forward.6} parent=1 // pred_region
      _
    $region33: #{generator_forward.6} parent=1 // pred_fallthru
      _
    // Predicated region
    $region34: #{generator_forward.6} parent=1 // pred_check
      _
    $region35: #{generator_forward.6} parent=1 // pred_check_branch
      %1579 = sbr.rel (0) target = $region37
    $region36: #{generator_forward.6} parent=1 // pred_region
      _
    $region37: #{generator_forward.6} parent=1 // pred_fallthru
      _
    %1580 = vsyncpa [#allocation3], 1
    %1581 = vsyncpa [#allocation5], 1

// kernel: generator_forward.7
$region0: #{generator_forward.7}
  #allocation0 [shape = 'u32[]', space=smem, size = 0x4, offset = 0x4, fixed_abs, tag = 'smem constant byte address 0x4 - core index']
  #allocation1 [shape = 'u32[144,128]{1,0:T(1,128)}', space=vmem, size = 0x12000, scoped, tag = 'internal scratch']
  %s0 = inlined_call_operand.vmem [shape: bf16[128,576], index: 0, kind: input, shape index: {}]
  %s1 = inlined_call_operand.hbm [shape: bf16[576,128], index: 1, kind: input, shape index: {}]
  %s2 = inlined_call_operand.hbm [shape: f32[1,32], index: 2, kind: input, shape index: {}]
  %s3 = inlined_call_operand.hbm [shape: f32[1,32], index: 3, kind: input, shape index: {}]
  %s4 = inlined_call_operand.vmem [shape: bf16[128,128], index: 4, kind: output, shape index: {}]
  %s5 = sld [smem:[#allocation0]]
  $region38: #{generator_forward.7} parent=0
    _
  %s7 = ssub.s32 1, %s5
  %s8 = scalar_select 0, %s7, %s5
  $region1: #{generator_forward.7} parent=0
    #allocation2 [shape = 'u8[147456]{0}', space=vmem, size = 0x24000, scoped, tag = 'input window, operand 1, single buffered']
    #allocation3 [shape = 's32[1]{0}', space=sflag, size = 0x4, scoped, tag = 'scoped memory for generator_forward.7']
    #allocation4 [shape = 'u8[512]{0}', space=vmem, size = 0x400, scoped, tag = 'input window, operand 2, single buffered']
    #allocation5 [shape = 's32[1]{0}', space=sflag, size = 0x4, scoped, tag = 'scoped memory for generator_forward.7']
    #allocation6 [shape = 'u8[512]{0}', space=vmem, size = 0x400, scoped, tag = 'input window, operand 3, single buffered']
    %9 = vsyncpa [#allocation3], 0
    %10 = vsyncpa [#allocation5], 0
    // Predicated region
    $region2: #{generator_forward.7} parent=1 // pred_check
      _
    $region3: #{generator_forward.7} parent=1 // pred_check_branch
      %12 = sbr.rel (0) target = $region5
    $region4: #{generator_forward.7} parent=1 // pred_region
      _
    $region5: #{generator_forward.7} parent=1 // pred_fallthru
      _
    // Predicated region
    $region6: #{generator_forward.7} parent=1 // pred_check
      _
    $region7: #{generator_forward.7} parent=1 // pred_check_branch
      %14 = sbr.rel (0) target = $region9
    $region8: #{generator_forward.7} parent=1 // pred_region
      %s16 = ssub.s32 4608, 4608
      %17 = vsyncadd [#allocation3], %s16
      %s18 = sshll.u32 [#allocation2], 4
      %s19 = int_to_ptr.vmem [resolvable:$true] %s18
      %24 = dma.hbm_to_vmem [thread:$0]  %s1, 4608, %s19, [#allocation3], 64, 64, 4
    $region9: #{generator_forward.7} parent=1 // pred_fallthru
      _
    // Predicated region
    $region10: #{generator_forward.7} parent=1 // pred_check
      _
    $region11: #{generator_forward.7} parent=1 // pred_check_branch
      %26 = sbr.rel (0) target = $region13
    $region12: #{generator_forward.7} parent=1 // pred_region
      %s28 = ssub.s32 16, 16
      %29 = vsyncadd [#allocation5], %s28
      %s31 = sshll.u32 [#allocation4], 4
      %s32 = int_to_ptr.vmem [resolvable:$true] %s31
      %34 = dma.hbm_to_vmem [thread:$0]  %s2, 16, %s32, [#allocation5]
    $region13: #{generator_forward.7} parent=1 // pred_fallthru
      _
    // Predicated region
    $region14: #{generator_forward.7} parent=1 // pred_check
      _
    $region15: #{generator_forward.7} parent=1 // pred_check_branch
      %36 = sbr.rel (0) target = $region17
    $region16: #{generator_forward.7} parent=1 // pred_region
      %s38 = ssub.s32 16, 16
      %39 = vsyncadd [#allocation5], %s38
      %s41 = sshll.u32 [#allocation6], 4
      %s42 = int_to_ptr.vmem [resolvable:$true] %s41
      %44 = dma.hbm_to_vmem [thread:$0]  %s3, 16, %s42, [#allocation5]
    $region17: #{generator_forward.7} parent=1 // pred_fallthru
      _
    // Predicated region
    $region18: #{generator_forward.7} parent=1 // pred_check
      _
    $region19: #{generator_forward.7} parent=1 // pred_check_branch
      %46 = sbr.rel (0) target = $region21
    $region20: #{generator_forward.7} parent=1 // pred_region
      %47 = dma.done [#allocation3], 4608
    $region21: #{generator_forward.7} parent=1 // pred_fallthru
      _
    // Predicated region
    $region22: #{generator_forward.7} parent=1 // pred_check
      _
    $region23: #{generator_forward.7} parent=1 // pred_check_branch
      %49 = sbr.rel (0) target = $region25
    $region24: #{generator_forward.7} parent=1 // pred_region
      %50 = dma.done [#allocation5], 16
    $region25: #{generator_forward.7} parent=1 // pred_fallthru
      _
    // Predicated region
    $region26: #{generator_forward.7} parent=1 // pred_check
      _
    $region27: #{generator_forward.7} parent=1 // pred_check_branch
      %52 = sbr.rel (0) target = $region29
    $region28: #{generator_forward.7} parent=1 // pred_region
      %53 = dma.done [#allocation5], 16
    $region29: #{generator_forward.7} parent=1 // pred_fallthru
      _
    %v55 = vld [vmem:[%s0] sm:$0xff]
    %v56 = vld [vmem:[%s0 + $0x8] sm:$0xff]
    %v57 = vld [vmem:[%s0 + $0x10] sm:$0xf]
    %v58 = vld [vmem:[%s0 + $0x14] sm:$0xff]
    %v59 = vld [vmem:[%s0 + $0x1c] sm:$0xff]
    %v60 = vld [vmem:[%s0 + $0x24] sm:$0xf]
    %v61 = vld [vmem:[%s0 + $0x28] sm:$0xff]
    %v62 = vld [vmem:[%s0 + $0x30] sm:$0xff]
    %v63 = vld [vmem:[%s0 + $0x38] sm:$0xf]
    %v64 = vld [vmem:[%s0 + $0x3c] sm:$0xff]
    %v65 = vld [vmem:[%s0 + $0x44] sm:$0xff]
    %v66 = vld [vmem:[%s0 + $0x4c] sm:$0xf]
    %v67 = vld [vmem:[%s0 + $0x50] sm:$0xff]
    %v68 = vld [vmem:[%s0 + $0x58] sm:$0xff]
    %v69 = vld [vmem:[%s0 + $0x60] sm:$0xf]
    %v70 = vld [vmem:[%s0 + $0x64] sm:$0xff]
    %v71 = vld [vmem:[%s0 + $0x6c] sm:$0xff]
    %v72 = vld [vmem:[%s0 + $0x74] sm:$0xf]
    %v73 = vld [vmem:[%s0 + $0x78] sm:$0xff]
    %v74 = vld [vmem:[%s0 + $0x80] sm:$0xff]
    %v75 = vld [vmem:[%s0 + $0x88] sm:$0xf]
    %v76 = vld [vmem:[%s0 + $0x8c] sm:$0xff]
    %v77 = vld [vmem:[%s0 + $0x94] sm:$0xff]
    %v78 = vld [vmem:[%s0 + $0x9c] sm:$0xf]
    %v79 = vld [vmem:[%s0 + $0xa0] sm:$0xff]
    %v80 = vld [vmem:[%s0 + $0xa8] sm:$0xff]
    %v81 = vld [vmem:[%s0 + $0xb0] sm:$0xf]
    %v82 = vld [vmem:[%s0 + $0xb4] sm:$0xff]
    %v83 = vld [vmem:[%s0 + $0xbc] sm:$0xff]
    %v84 = vld [vmem:[%s0 + $0xc4] sm:$0xf]
    %v85 = vld [vmem:[%s0 + $0xc8] sm:$0xff]
    %v86 = vld [vmem:[%s0 + $0xd0] sm:$0xff]
    %v87 = vld [vmem:[%s0 + $0xd8] sm:$0xf]
    %v88 = vld [vmem:[%s0 + $0xdc] sm:$0xff]
    %v89 = vld [vmem:[%s0 + $0xe4] sm:$0xff]
    %v90 = vld [vmem:[%s0 + $0xec] sm:$0xf]
    %v91 = vld [vmem:[%s0 + $0xf0] sm:$0xff]
    %v92 = vld [vmem:[%s0 + $0xf8] sm:$0xff]
    %v93 = vld [vmem:[%s0 + $0x100] sm:$0xf]
    %v94 = vld [vmem:[%s0 + $0x104] sm:$0xff]
    %v95 = vld [vmem:[%s0 + $0x10c] sm:$0xff]
    %v96 = vld [vmem:[%s0 + $0x114] sm:$0xf]
    %v97 = vld [vmem:[%s0 + $0x118] sm:$0xff]
    %v98 = vld [vmem:[%s0 + $0x120] sm:$0xff]
    %v99 = vld [vmem:[%s0 + $0x128] sm:$0xf]
    %v100 = vld [vmem:[%s0 + $0x12c] sm:$0xff]
    %v101 = vld [vmem:[%s0 + $0x134] sm:$0xff]
    %v102 = vld [vmem:[%s0 + $0x13c] sm:$0xf]
    %v103 = vld [vmem:[#allocation2] sm:$0xf]
    %v104 = vld [vmem:[#allocation2 + $0x4] sm:$0xf]
    %v105 = vld [vmem:[#allocation2 + $0x8] sm:$0xf]
    %v106 = vld [vmem:[#allocation2 + $0xc] sm:$0xf]
    %v107 = vld [vmem:[#allocation2 + $0x10] sm:$0xf]
    %v108 = vld [vmem:[#allocation2 + $0x14] sm:$0xf]
    %v109 = vld [vmem:[#allocation2 + $0x18] sm:$0xf]
    %v110 = vld [vmem:[#allocation2 + $0x1c] sm:$0xf]
    %v111 = vld [vmem:[#allocation2 + $0x20] sm:$0xf]
    %v112 = vld [vmem:[#allocation2 + $0x24] sm:$0xf]
    %v113 = vld [vmem:[#allocation2 + $0x28] sm:$0xf]
    %v114 = vld [vmem:[#allocation2 + $0x2c] sm:$0xf]
    %v115 = vld [vmem:[#allocation2 + $0x30] sm:$0xf]
    %v116 = vld [vmem:[#allocation2 + $0x34] sm:$0xf]
    %v117 = vld [vmem:[#allocation2 + $0x38] sm:$0xf]
    %v118 = vld [vmem:[#allocation2 + $0x3c] sm:$0xf]
    %v119 = vld [vmem:[#allocation2 + $0x40] sm:$0xf]
    %v120 = vld [vmem:[#allocation2 + $0x44] sm:$0xf]
    %v121 = vld [vmem:[#allocation2 + $0x48] sm:$0xf]
    %v122 = vld [vmem:[#allocation2 + $0x4c] sm:$0xf]
    %v123 = vld [vmem:[#allocation2 + $0x50] sm:$0xf]
    %v124 = vld [vmem:[#allocation2 + $0x54] sm:$0xf]
    %v125 = vld [vmem:[#allocation2 + $0x58] sm:$0xf]
    %v126 = vld [vmem:[#allocation2 + $0x5c] sm:$0xf]
    %v127 = vld [vmem:[#allocation2 + $0x60] sm:$0xf]
    %v128 = vld [vmem:[#allocation2 + $0x64] sm:$0xf]
    %v129 = vld [vmem:[#allocation2 + $0x68] sm:$0xf]
    %v130 = vld [vmem:[#allocation2 + $0x6c] sm:$0xf]
    %v131 = vld [vmem:[#allocation2 + $0x70] sm:$0xf]
    %v132 = vld [vmem:[#allocation2 + $0x74] sm:$0xf]
    %v133 = vld [vmem:[#allocation2 + $0x78] sm:$0xf]
    %v134 = vld [vmem:[#allocation2 + $0x7c] sm:$0xf]
    %v135 = vld [vmem:[#allocation2 + $0x80] sm:$0xf]
    %v136 = vld [vmem:[#allocation2 + $0x84] sm:$0xf]
    %v137 = vld [vmem:[#allocation2 + $0x88] sm:$0xf]
    %v138 = vld [vmem:[#allocation2 + $0x8c] sm:$0xf]
    %v139 = vld [vmem:[#allocation2 + $0x90] sm:$0xf]
    %v140 = vld [vmem:[#allocation2 + $0x94] sm:$0xf]
    %v141 = vld [vmem:[#allocation2 + $0x98] sm:$0xf]
    %v142 = vld [vmem:[#allocation2 + $0x9c] sm:$0xf]
    %v143 = vld [vmem:[#allocation2 + $0xa0] sm:$0xf]
    %v144 = vld [vmem:[#allocation2 + $0xa4] sm:$0xf]
    %v145 = vld [vmem:[#allocation2 + $0xa8] sm:$0xf]
    %v146 = vld [vmem:[#allocation2 + $0xac] sm:$0xf]
    %v147 = vld [vmem:[#allocation2 + $0xb0] sm:$0xf]
    %v148 = vld [vmem:[#allocation2 + $0xb4] sm:$0xf]
    %v149 = vld [vmem:[#allocation2 + $0xb8] sm:$0xf]
    %v150 = vld [vmem:[#allocation2 + $0xbc] sm:$0xf]
    %v151 = vld [vmem:[#allocation2 + $0xc0] sm:$0xf]
    %v152 = vld [vmem:[#allocation2 + $0xc4] sm:$0xf]
    %v153 = vld [vmem:[#allocation2 + $0xc8] sm:$0xf]
    %v154 = vld [vmem:[#allocation2 + $0xcc] sm:$0xf]
    %v155 = vld [vmem:[#allocation2 + $0xd0] sm:$0xf]
    %v156 = vld [vmem:[#allocation2 + $0xd4] sm:$0xf]
    %v157 = vld [vmem:[#allocation2 + $0xd8] sm:$0xf]
    %v158 = vld [vmem:[#allocation2 + $0xdc] sm:$0xf]
    %v159 = vld [vmem:[#allocation2 + $0xe0] sm:$0xf]
    %v160 = vld [vmem:[#allocation2 + $0xe4] sm:$0xf]
    %v161 = vld [vmem:[#allocation2 + $0xe8] sm:$0xf]
    %v162 = vld [vmem:[#allocation2 + $0xec] sm:$0xf]
    %v163 = vld [vmem:[#allocation2 + $0xf0] sm:$0xf]
    %v164 = vld [vmem:[#allocation2 + $0xf4] sm:$0xf]
    %v165 = vld [vmem:[#allocation2 + $0xf8] sm:$0xf]
    %v166 = vld [vmem:[#allocation2 + $0xfc] sm:$0xf]
    %v167 = vld [vmem:[#allocation2 + $0x100] sm:$0xf]
    %v168 = vld [vmem:[#allocation2 + $0x104] sm:$0xf]
    %v169 = vld [vmem:[#allocation2 + $0x108] sm:$0xf]
    %v170 = vld [vmem:[#allocation2 + $0x10c] sm:$0xf]
    %v171 = vld [vmem:[#allocation2 + $0x110] sm:$0xf]
    %v172 = vld [vmem:[#allocation2 + $0x114] sm:$0xf]
    %v173 = vld [vmem:[#allocation2 + $0x118] sm:$0xf]
    %v174 = vld [vmem:[#allocation2 + $0x11c] sm:$0xf]
    %v223 = vunpack.c.l.b16 %v55
    %v224 = vunpack.c.h.b16 %v55
    %v225 = vunpack.c.l.b16 %v56
    %v226 = vunpack.c.h.b16 %v56
    %v227 = vunpack.c.l.b16 %v57
    %v228 = vunpack.c.l.b16 %v58
    %v229 = vunpack.c.h.b16 %v58
    %v230 = vunpack.c.l.b16 %v59
    %v231 = vunpack.c.h.b16 %v59
    %v232 = vunpack.c.l.b16 %v60
    %v233 = vunpack.c.l.b16 %v61
    %v234 = vunpack.c.h.b16 %v61
    %v235 = vunpack.c.l.b16 %v62
    %v236 = vunpack.c.h.b16 %v62
    %v237 = vunpack.c.l.b16 %v63
    %v238 = vunpack.c.l.b16 %v64
    %v239 = vunpack.c.h.b16 %v64
    %v240 = vunpack.c.l.b16 %v65
    %v241 = vunpack.c.h.b16 %v65
    %v242 = vunpack.c.l.b16 %v66
    %v243 = vunpack.c.l.b16 %v67
    %v244 = vunpack.c.h.b16 %v67
    %v245 = vunpack.c.l.b16 %v68
    %v246 = vunpack.c.h.b16 %v68
    %v247 = vunpack.c.l.b16 %v69
    %v248 = vunpack.c.l.b16 %v70
    %v249 = vunpack.c.h.b16 %v70
    %v250 = vunpack.c.l.b16 %v71
    %v251 = vunpack.c.h.b16 %v71
    %v252 = vunpack.c.l.b16 %v72
    %v253 = vunpack.c.l.b16 %v73
    %v254 = vunpack.c.h.b16 %v73
    %v255 = vunpack.c.l.b16 %v74
    %v256 = vunpack.c.h.b16 %v74
    %v257 = vunpack.c.l.b16 %v75
    %v258 = vunpack.c.l.b16 %v76
    %v259 = vunpack.c.h.b16 %v76
    %v260 = vunpack.c.l.b16 %v77
    %v261 = vunpack.c.h.b16 %v77
    %v262 = vunpack.c.l.b16 %v78
    %v263 = vunpack.c.l.b16 %v79
    %v264 = vunpack.c.h.b16 %v79
    %v265 = vunpack.c.l.b16 %v80
    %v266 = vunpack.c.h.b16 %v80
    %v267 = vunpack.c.l.b16 %v81
    %v268 = vunpack.c.l.b16 %v82
    %v269 = vunpack.c.h.b16 %v82
    %v270 = vunpack.c.l.b16 %v83
    %v271 = vunpack.c.h.b16 %v83
    %v272 = vunpack.c.l.b16 %v84
    %v273 = vunpack.c.l.b16 %v85
    %v274 = vunpack.c.h.b16 %v85
    %v275 = vunpack.c.l.b16 %v86
    %v276 = vunpack.c.h.b16 %v86
    %v277 = vunpack.c.l.b16 %v87
    %v278 = vunpack.c.l.b16 %v88
    %v279 = vunpack.c.h.b16 %v88
    %v280 = vunpack.c.l.b16 %v89
    %v281 = vunpack.c.h.b16 %v89
    %v282 = vunpack.c.l.b16 %v90
    %v283 = vunpack.c.l.b16 %v91
    %v284 = vunpack.c.h.b16 %v91
    %v285 = vunpack.c.l.b16 %v92
    %v286 = vunpack.c.h.b16 %v92
    %v287 = vunpack.c.l.b16 %v93
    %v288 = vunpack.c.l.b16 %v94
    %v289 = vunpack.c.h.b16 %v94
    %v290 = vunpack.c.l.b16 %v95
    %v291 = vunpack.c.h.b16 %v95
    %v292 = vunpack.c.l.b16 %v96
    %v293 = vunpack.c.l.b16 %v97
    %v294 = vunpack.c.h.b16 %v97
    %v295 = vunpack.c.l.b16 %v98
    %v296 = vunpack.c.h.b16 %v98
    %v297 = vunpack.c.l.b16 %v99
    %v298 = vunpack.c.l.b16 %v100
    %v299 = vunpack.c.h.b16 %v100
    %v300 = vunpack.c.l.b16 %v101
    %v301 = vunpack.c.h.b16 %v101
    %v302 = vunpack.c.l.b16 %v102
    %v303 = vpack.c.b16 %v228, %v223
    %v304 = vpack.c.b16 %v229, %v224
    %v305 = vpack.c.b16 %v230, %v225
    %v306 = vpack.c.b16 %v231, %v226
    %v307 = vpack.c.b16 %v232, %v227
    %v308 = vpack.c.b16 %v238, %v233
    %v309 = vpack.c.b16 %v239, %v234
    %v310 = vpack.c.b16 %v240, %v235
    %v311 = vpack.c.b16 %v241, %v236
    %v312 = vpack.c.b16 %v242, %v237
    %v313 = vpack.c.b16 %v248, %v243
    %v314 = vpack.c.b16 %v249, %v244
    %v315 = vpack.c.b16 %v250, %v245
    %v316 = vpack.c.b16 %v251, %v246
    %v317 = vpack.c.b16 %v252, %v247
    %v318 = vpack.c.b16 %v258, %v253
    %v319 = vpack.c.b16 %v259, %v254
    %v320 = vpack.c.b16 %v260, %v255
    %v321 = vpack.c.b16 %v261, %v256
    %v322 = vpack.c.b16 %v262, %v257
    %v323 = vpack.c.b16 %v268, %v263
    %v324 = vpack.c.b16 %v269, %v264
    %v325 = vpack.c.b16 %v270, %v265
    %v326 = vpack.c.b16 %v271, %v266
    %v327 = vpack.c.b16 %v272, %v267
    %v328 = vpack.c.b16 %v278, %v273
    %v329 = vpack.c.b16 %v279, %v274
    %v330 = vpack.c.b16 %v280, %v275
    %v331 = vpack.c.b16 %v281, %v276
    %v332 = vpack.c.b16 %v282, %v277
    %v333 = vpack.c.b16 %v288, %v283
    %v334 = vpack.c.b16 %v289, %v284
    %v335 = vpack.c.b16 %v290, %v285
    %v336 = vpack.c.b16 %v291, %v286
    %v337 = vpack.c.b16 %v292, %v287
    %v338 = vpack.c.b16 %v298, %v293
    %v339 = vpack.c.b16 %v299, %v294
    %v340 = vpack.c.b16 %v300, %v295
    %v341 = vpack.c.b16 %v301, %v296
    %v342 = vpack.c.b16 %v302, %v297
    %v447 = vunpack.c.l.b16 %v103
    %v448 = vunpack.c.l.b16 %v104
    %v449 = vunpack.c.l.b16 %v105
    %v450 = vunpack.c.l.b16 %v106
    %v451 = vunpack.c.l.b16 %v107
    %v452 = vunpack.c.l.b16 %v108
    %v453 = vunpack.c.l.b16 %v109
    %v454 = vunpack.c.l.b16 %v110
    %v455 = vunpack.c.l.b16 %v111
    %v456 = vunpack.c.l.b16 %v112
    %v457 = vunpack.c.l.b16 %v113
    %v458 = vunpack.c.l.b16 %v114
    %v459 = vunpack.c.l.b16 %v115
    %v460 = vunpack.c.l.b16 %v116
    %v461 = vunpack.c.l.b16 %v117
    %v462 = vunpack.c.l.b16 %v118
    %v463 = vunpack.c.l.b16 %v119
    %v464 = vunpack.c.l.b16 %v120
    %v465 = vunpack.c.l.b16 %v121
    %v466 = vunpack.c.l.b16 %v122
    %v467 = vunpack.c.l.b16 %v123
    %v468 = vunpack.c.l.b16 %v124
    %v469 = vunpack.c.l.b16 %v125
    %v470 = vunpack.c.l.b16 %v126
    %v471 = vunpack.c.l.b16 %v127
    %v472 = vunpack.c.l.b16 %v128
    %v473 = vunpack.c.l.b16 %v129
    %v474 = vunpack.c.l.b16 %v130
    %v475 = vunpack.c.l.b16 %v131
    %v476 = vunpack.c.l.b16 %v132
    %v477 = vunpack.c.l.b16 %v133
    %v478 = vunpack.c.l.b16 %v134
    %v479 = vunpack.c.l.b16 %v135
    %v480 = vunpack.c.l.b16 %v136
    %v481 = vunpack.c.l.b16 %v137
    %v482 = vunpack.c.l.b16 %v138
    %v483 = vunpack.c.l.b16 %v139
    %v484 = vunpack.c.l.b16 %v140
    %v485 = vunpack.c.l.b16 %v141
    %v486 = vunpack.c.l.b16 %v142
    %v487 = vunpack.c.l.b16 %v143
    %v488 = vunpack.c.l.b16 %v144
    %v489 = vunpack.c.l.b16 %v145
    %v490 = vunpack.c.l.b16 %v146
    %v491 = vunpack.c.l.b16 %v147
    %v492 = vunpack.c.l.b16 %v148
    %v493 = vunpack.c.l.b16 %v149
    %v494 = vunpack.c.l.b16 %v150
    %v495 = vunpack.c.l.b16 %v151
    %v496 = vunpack.c.l.b16 %v152
    %v497 = vunpack.c.l.b16 %v153
    %v498 = vunpack.c.l.b16 %v154
    %v499 = vunpack.c.l.b16 %v155
    %v500 = vunpack.c.l.b16 %v156
    %v501 = vunpack.c.l.b16 %v157
    %v502 = vunpack.c.l.b16 %v158
    %v503 = vunpack.c.l.b16 %v159
    %v504 = vunpack.c.l.b16 %v160
    %v505 = vunpack.c.l.b16 %v161
    %v506 = vunpack.c.l.b16 %v162
    %v507 = vunpack.c.l.b16 %v163
    %v508 = vunpack.c.l.b16 %v164
    %v509 = vunpack.c.l.b16 %v165
    %v510 = vunpack.c.l.b16 %v166
    %v511 = vunpack.c.l.b16 %v167
    %v512 = vunpack.c.l.b16 %v168
    %v513 = vunpack.c.l.b16 %v169
    %v514 = vunpack.c.l.b16 %v170
    %v515 = vunpack.c.l.b16 %v171
    %v516 = vunpack.c.l.b16 %v172
    %v517 = vunpack.c.l.b16 %v173
    %v518 = vunpack.c.l.b16 %v174
    %v519 = vpack.c.b16 %v448, %v447
    %v520 = vpack.c.b16 %v450, %v449
    %v521 = vpack.c.b16 %v452, %v451
    %v522 = vpack.c.b16 %v454, %v453
    %v523 = vpack.c.b16 %v456, %v455
    %v524 = vpack.c.b16 %v458, %v457
    %v525 = vpack.c.b16 %v460, %v459
    %v526 = vpack.c.b16 %v462, %v461
    %v527 = vpack.c.b16 %v464, %v463
    %v528 = vpack.c.b16 %v466, %v465
    %v529 = vpack.c.b16 %v468, %v467
    %v530 = vpack.c.b16 %v470, %v469
    %v531 = vpack.c.b16 %v472, %v471
    %v532 = vpack.c.b16 %v474, %v473
    %v533 = vpack.c.b16 %v476, %v475
    %v534 = vpack.c.b16 %v478, %v477
    %v535 = vpack.c.b16 %v480, %v479
    %v536 = vpack.c.b16 %v482, %v481
    %v537 = vpack.c.b16 %v484, %v483
    %v538 = vpack.c.b16 %v486, %v485
    %v539 = vpack.c.b16 %v488, %v487
    %v540 = vpack.c.b16 %v490, %v489
    %v541 = vpack.c.b16 %v492, %v491
    %v542 = vpack.c.b16 %v494, %v493
    %v543 = vpack.c.b16 %v496, %v495
    %v544 = vpack.c.b16 %v498, %v497
    %v545 = vpack.c.b16 %v500, %v499
    %v546 = vpack.c.b16 %v502, %v501
    %v547 = vpack.c.b16 %v504, %v503
    %v548 = vpack.c.b16 %v506, %v505
    %v549 = vpack.c.b16 %v508, %v507
    %v550 = vpack.c.b16 %v510, %v509
    %v551 = vpack.c.b16 %v512, %v511
    %v552 = vpack.c.b16 %v514, %v513
    %v553 = vpack.c.b16 %v516, %v515
    %v554 = vpack.c.b16 %v518, %v517
    %vm591 = vcmask 523264
    %v593 = vsel %vm591, %v307, 0
    %v596 = vsel %vm591, %v312, 0
    %v599 = vsel %vm591, %v317, 0
    %v602 = vsel %vm591, %v322, 0
    %v605 = vsel %vm591, %v327, 0
    %v608 = vsel %vm591, %v332, 0
    %v611 = vsel %vm591, %v337, 0
    %v614 = vsel %vm591, %v342, 0
    %616 = vmatprep.subr.bf16.mxu0 0
    %617 = vmatpush1.bf16.msra.mxu0 %v519
    %618 = vmatprep.subr.bf16.mxu0 0
    %619 = vmatpush1.bf16.msra.mxu0 %v520
    %620 = vmatprep.subr.bf16.mxu0 0
    %621 = vmatpush1.bf16.msra.mxu0 %v521
    %622 = vmatprep.subr.bf16.mxu0 0
    %623 = vmatpush1.bf16.msra.mxu0 %v522
    %624 = vmatprep.subr.bf16.mxu0 0
    %625 = vmatpush1.bf16.msra.mxu0 %v523
    %626 = vmatprep.subr.bf16.mxu0 0
    %627 = vmatpush1.bf16.msra.mxu0 %v524
    %628 = vmatprep.subr.bf16.mxu0 0
    %629 = vmatpush1.bf16.msra.mxu0 %v525
    %630 = vmatprep.subr.bf16.mxu0 0
    %631 = vmatpush1.bf16.msra.mxu0 %v526
    %632 = vmatprep.subr.bf16.mxu0 0
    %633 = vmatpush1.bf16.msra.mxu0 %v527
    %634 = vmatprep.subr.bf16.mxu0 0
    %635 = vmatpush1.bf16.msra.mxu0 %v528
    %636 = vmatprep.subr.bf16.mxu0 0
    %637 = vmatpush1.bf16.msra.mxu0 %v529
    %638 = vmatprep.subr.bf16.mxu0 0
    %639 = vmatpush1.bf16.msra.mxu0 %v530
    %640 = vmatprep.subr.bf16.mxu0 0
    %641 = vmatpush1.bf16.msra.mxu0 %v531
    %642 = vmatprep.subr.bf16.mxu0 0
    %643 = vmatpush1.bf16.msra.mxu0 %v532
    %644 = vmatprep.subr.bf16.mxu0 0
    %645 = vmatpush1.bf16.msra.mxu0 %v533
    %646 = vmatprep.subr.bf16.mxu0 0
    %647 = vmatpush1.bf16.msra.mxu0 %v534
    %648 = vmatprep.mubr.bf16.mxu0 %v304
    %649 = vmatmul.mubr.bf16.gmra.mrb[0].mxu0 %v303
    %v650 = vpop.f32.mrb[0].mxu0
    %v651 = vadd.f32 0.0, %v650
    %v652 = vpop.f32.mrb[0].mxu0
    %v653 = vpop.f32.mrb[0].mxu0
    %v654 = vadd.f32 0.0, %v653
    %v655 = vpop.f32.mrb[0].mxu0
    %656 = vmatprep.mubr.bf16.mxu0 %v309
    %657 = vmatmul.mubr.bf16.gmra.mrb[0].mxu0 %v308
    %v658 = vpop.f32.mrb[0].mxu0
    %v659 = vadd.f32 0.0, %v658
    %v660 = vpop.f32.mrb[0].mxu0
    %v661 = vpop.f32.mrb[0].mxu0
    %v662 = vadd.f32 0.0, %v661
    %v663 = vpop.f32.mrb[0].mxu0
    %664 = vmatprep.mubr.bf16.mxu0 %v314
    %665 = vmatmul.mubr.bf16.gmra.mrb[0].mxu0 %v313
    %v666 = vpop.f32.mrb[0].mxu0
    %v667 = vadd.f32 0.0, %v666
    %v668 = vpop.f32.mrb[0].mxu0
    %v669 = vpop.f32.mrb[0].mxu0
    %v670 = vadd.f32 0.0, %v669
    %v671 = vpop.f32.mrb[0].mxu0
    %672 = vmatprep.mubr.bf16.mxu0 %v319
    %673 = vmatmul.mubr.bf16.gmra.mrb[0].mxu0 %v318
    %v674 = vpop.f32.mrb[0].mxu0
    %v675 = vadd.f32 0.0, %v674
    %v676 = vpop.f32.mrb[0].mxu0
    %v677 = vpop.f32.mrb[0].mxu0
    %v678 = vadd.f32 0.0, %v677
    %v679 = vpop.f32.mrb[0].mxu0
    %680 = vmatprep.mubr.bf16.mxu0 %v324
    %681 = vmatmul.mubr.bf16.gmra.mrb[0].mxu0 %v323
    %v682 = vpop.f32.mrb[0].mxu0
    %v683 = vadd.f32 0.0, %v682
    %v684 = vpop.f32.mrb[0].mxu0
    %v685 = vpop.f32.mrb[0].mxu0
    %v686 = vadd.f32 0.0, %v685
    %v687 = vpop.f32.mrb[0].mxu0
    %688 = vmatprep.mubr.bf16.mxu0 %v329
    %689 = vmatmul.mubr.bf16.gmra.mrb[0].mxu0 %v328
    %v690 = vpop.f32.mrb[0].mxu0
    %v691 = vadd.f32 0.0, %v690
    %v692 = vpop.f32.mrb[0].mxu0
    %v693 = vpop.f32.mrb[0].mxu0
    %v694 = vadd.f32 0.0, %v693
    %v695 = vpop.f32.mrb[0].mxu0
    %696 = vmatprep.mubr.bf16.mxu0 %v334
    %697 = vmatmul.mubr.bf16.gmra.mrb[0].mxu0 %v333
    %v698 = vpop.f32.mrb[0].mxu0
    %v699 = vadd.f32 0.0, %v698
    %v700 = vpop.f32.mrb[0].mxu0
    %v701 = vpop.f32.mrb[0].mxu0
    %v702 = vadd.f32 0.0, %v701
    %v703 = vpop.f32.mrb[0].mxu0
    %704 = vmatprep.mubr.bf16.mxu0 %v339
    %705 = vmatmul.mubr.bf16.gmra.mrb[0].mxu0 %v338
    %v706 = vpop.f32.mrb[0].mxu0
    %v707 = vadd.f32 0.0, %v706
    %v708 = vpop.f32.mrb[0].mxu0
    %v709 = vpop.f32.mrb[0].mxu0
    %v710 = vadd.f32 0.0, %v709
    %v711 = vpop.f32.mrb[0].mxu0
    %712 = vdwg.mxu0
    %713 = vmatprep.subr.bf16.mxu0 0
    %714 = vmatpush1.bf16.msra.mxu0 %v535
    %715 = vmatprep.subr.bf16.mxu0 0
    %716 = vmatpush1.bf16.msra.mxu0 %v536
    %717 = vmatprep.subr.bf16.mxu0 0
    %718 = vmatpush1.bf16.msra.mxu0 %v537
    %719 = vmatprep.subr.bf16.mxu0 0
    %720 = vmatpush1.bf16.msra.mxu0 %v538
    %721 = vmatprep.subr.bf16.mxu0 0
    %722 = vmatpush1.bf16.msra.mxu0 %v539
    %723 = vmatprep.subr.bf16.mxu0 0
    %724 = vmatpush1.bf16.msra.mxu0 %v540
    %725 = vmatprep.subr.bf16.mxu0 0
    %726 = vmatpush1.bf16.msra.mxu0 %v541
    %727 = vmatprep.subr.bf16.mxu0 0
    %728 = vmatpush1.bf16.msra.mxu0 %v542
    %729 = vmatprep.subr.bf16.mxu0 0
    %730 = vmatpush1.bf16.msra.mxu0 %v543
    %731 = vmatprep.subr.bf16.mxu0 0
    %732 = vmatpush1.bf16.msra.mxu0 %v544
    %733 = vmatprep.subr.bf16.mxu0 0
    %734 = vmatpush1.bf16.msra.mxu0 %v545
    %735 = vmatprep.subr.bf16.mxu0 0
    %736 = vmatpush1.bf16.msra.mxu0 %v546
    %737 = vmatprep.subr.bf16.mxu0 0
    %738 = vmatpush1.bf16.msra.mxu0 %v547
    %739 = vmatprep.subr.bf16.mxu0 0
    %740 = vmatpush1.bf16.msra.mxu0 %v548
    %741 = vmatprep.subr.bf16.mxu0 0
    %742 = vmatpush1.bf16.msra.mxu0 %v549
    %743 = vmatprep.subr.bf16.mxu0 0
    %744 = vmatpush1.bf16.msra.mxu0 %v550
    %745 = vmatprep.mubr.bf16.mxu0 %v306
    %746 = vmatmul.mubr.bf16.gmra.mrb[0].mxu0 %v305
    %v747 = vpop.f32.mrb[0].mxu0
    %v748 = vadd.f32 %v651, %v747
    %v749 = vpop.f32.mrb[0].mxu0
    %v750 = vpop.f32.mrb[0].mxu0
    %v751 = vadd.f32 %v654, %v750
    %v752 = vpop.f32.mrb[0].mxu0
    %753 = vmatprep.mubr.bf16.mxu0 %v311
    %754 = vmatmul.mubr.bf16.gmra.mrb[0].mxu0 %v310
    %v755 = vpop.f32.mrb[0].mxu0
    %v756 = vadd.f32 %v659, %v755
    %v757 = vpop.f32.mrb[0].mxu0
    %v758 = vpop.f32.mrb[0].mxu0
    %v759 = vadd.f32 %v662, %v758
    %v760 = vpop.f32.mrb[0].mxu0
    %761 = vmatprep.mubr.bf16.mxu0 %v316
    %762 = vmatmul.mubr.bf16.gmra.mrb[0].mxu0 %v315
    %v763 = vpop.f32.mrb[0].mxu0
    %v764 = vadd.f32 %v667, %v763
    %v765 = vpop.f32.mrb[0].mxu0
    %v766 = vpop.f32.mrb[0].mxu0
    %v767 = vadd.f32 %v670, %v766
    %v768 = vpop.f32.mrb[0].mxu0
    %769 = vmatprep.mubr.bf16.mxu0 %v321
    %770 = vmatmul.mubr.bf16.gmra.mrb[0].mxu0 %v320
    %v771 = vpop.f32.mrb[0].mxu0
    %v772 = vadd.f32 %v675, %v771
    %v773 = vpop.f32.mrb[0].mxu0
    %v774 = vpop.f32.mrb[0].mxu0
    %v775 = vadd.f32 %v678, %v774
    %v776 = vpop.f32.mrb[0].mxu0
    %777 = vmatprep.mubr.bf16.mxu0 %v326
    %778 = vmatmul.mubr.bf16.gmra.mrb[0].mxu0 %v325
    %v779 = vpop.f32.mrb[0].mxu0
    %v780 = vadd.f32 %v683, %v779
    %v781 = vpop.f32.mrb[0].mxu0
    %v782 = vpop.f32.mrb[0].mxu0
    %v783 = vadd.f32 %v686, %v782
    %v784 = vpop.f32.mrb[0].mxu0
    %785 = vmatprep.mubr.bf16.mxu0 %v331
    %786 = vmatmul.mubr.bf16.gmra.mrb[0].mxu0 %v330
    %v787 = vpop.f32.mrb[0].mxu0
    %v788 = vadd.f32 %v691, %v787
    %v789 = vpop.f32.mrb[0].mxu0
    %v790 = vpop.f32.mrb[0].mxu0
    %v791 = vadd.f32 %v694, %v790
    %v792 = vpop.f32.mrb[0].mxu0
    %793 = vmatprep.mubr.bf16.mxu0 %v336
    %794 = vmatmul.mubr.bf16.gmra.mrb[0].mxu0 %v335
    %v795 = vpop.f32.mrb[0].mxu0
    %v796 = vadd.f32 %v699, %v795
    %v797 = vpop.f32.mrb[0].mxu0
    %v798 = vpop.f32.mrb[0].mxu0
    %v799 = vadd.f32 %v702, %v798
    %v800 = vpop.f32.mrb[0].mxu0
    %801 = vmatprep.mubr.bf16.mxu0 %v341
    %802 = vmatmul.mubr.bf16.gmra.mrb[0].mxu0 %v340
    %v803 = vpop.f32.mrb[0].mxu0
    %v804 = vadd.f32 %v707, %v803
    %v805 = vpop.f32.mrb[0].mxu0
    %v806 = vpop.f32.mrb[0].mxu0
    %v807 = vadd.f32 %v710, %v806
    %v808 = vpop.f32.mrb[0].mxu0
    %809 = vdwg.mxu0
    %810 = vmatprep.subr.bf16.mxu0 0
    %811 = vmatpush1.bf16.msra.mxu0 %v551
    %812 = vmatprep.subr.bf16.mxu0 0
    %813 = vmatpush1.bf16.msra.mxu0 %v552
    %814 = vmatprep.subr.bf16.mxu0 0
    %815 = vmatpush1.bf16.msra.mxu0 %v553
    %816 = vmatprep.subr.bf16.mxu0 0
    %817 = vmatpush1.bf16.msra.mxu0 %v554
    %818 = vmatprep.subr.bf16.mxu0 0
    %819 = vmatpush1.bf16.msra.mxu0 0
    %820 = vmatprep.subr.bf16.mxu0 0
    %821 = vmatpush1.bf16.msra.mxu0 0
    %822 = vmatprep.subr.bf16.mxu0 0
    %823 = vmatpush1.bf16.msra.mxu0 0
    %824 = vmatprep.subr.bf16.mxu0 0
    %825 = vmatpush1.bf16.msra.mxu0 0
    %826 = vmatprep.subr.bf16.mxu0 0
    %827 = vmatpush1.bf16.msra.mxu0 0
    %828 = vmatprep.subr.bf16.mxu0 0
    %829 = vmatpush1.bf16.msra.mxu0 0
    %830 = vmatprep.subr.bf16.mxu0 0
    %831 = vmatpush1.bf16.msra.mxu0 0
    %832 = vmatprep.subr.bf16.mxu0 0
    %833 = vmatpush1.bf16.msra.mxu0 0
    %834 = vmatprep.subr.bf16.mxu0 0
    %835 = vmatpush1.bf16.msra.mxu0 0
    %836 = vmatprep.subr.bf16.mxu0 0
    %837 = vmatpush1.bf16.msra.mxu0 0
    %838 = vmatprep.subr.bf16.mxu0 0
    %839 = vmatpush1.bf16.msra.mxu0 0
    %840 = vmatprep.subr.bf16.mxu0 0
    %841 = vmatpush1.bf16.msra.mxu0 0
    %842 = vmatprep.mubr.bf16.mxu0 0
    %843 = vmatmul.mubr.bf16.gmra.mrb[0].mxu0 %v593
    %v844 = vpop.f32.mrb[0].mxu0
    %v845 = vadd.f32 %v748, %v844
    %v846 = vpop.f32.mrb[0].mxu0
    %v847 = vpop.f32.mrb[0].mxu0
    %v848 = vadd.f32 %v751, %v847
    %v849 = vpop.f32.mrb[0].mxu0
    %850 = vmatprep.mubr.bf16.mxu0 0
    %851 = vmatmul.mubr.bf16.gmra.mrb[0].mxu0 %v596
    %v852 = vpop.f32.mrb[0].mxu0
    %v853 = vadd.f32 %v756, %v852
    %v854 = vpop.f32.mrb[0].mxu0
    %v855 = vpop.f32.mrb[0].mxu0
    %v856 = vadd.f32 %v759, %v855
    %v857 = vpop.f32.mrb[0].mxu0
    %858 = vmatprep.mubr.bf16.mxu0 0
    %859 = vmatmul.mubr.bf16.gmra.mrb[0].mxu0 %v599
    %v860 = vpop.f32.mrb[0].mxu0
    %v861 = vadd.f32 %v764, %v860
    %v862 = vpop.f32.mrb[0].mxu0
    %v863 = vpop.f32.mrb[0].mxu0
    %v864 = vadd.f32 %v767, %v863
    %v865 = vpop.f32.mrb[0].mxu0
    %866 = vmatprep.mubr.bf16.mxu0 0
    %867 = vmatmul.mubr.bf16.gmra.mrb[0].mxu0 %v602
    %v868 = vpop.f32.mrb[0].mxu0
    %v869 = vadd.f32 %v772, %v868
    %v870 = vpop.f32.mrb[0].mxu0
    %v871 = vpop.f32.mrb[0].mxu0
    %v872 = vadd.f32 %v775, %v871
    %v873 = vpop.f32.mrb[0].mxu0
    %874 = vmatprep.mubr.bf16.mxu0 0
    %875 = vmatmul.mubr.bf16.gmra.mrb[0].mxu0 %v605
    %v876 = vpop.f32.mrb[0].mxu0
    %v877 = vadd.f32 %v780, %v876
    %v878 = vpop.f32.mrb[0].mxu0
    %v879 = vpop.f32.mrb[0].mxu0
    %v880 = vadd.f32 %v783, %v879
    %v881 = vpop.f32.mrb[0].mxu0
    %882 = vmatprep.mubr.bf16.mxu0 0
    %883 = vmatmul.mubr.bf16.gmra.mrb[0].mxu0 %v608
    %v884 = vpop.f32.mrb[0].mxu0
    %v885 = vadd.f32 %v788, %v884
    %v886 = vpop.f32.mrb[0].mxu0
    %v887 = vpop.f32.mrb[0].mxu0
    %v888 = vadd.f32 %v791, %v887
    %v889 = vpop.f32.mrb[0].mxu0
    %890 = vmatprep.mubr.bf16.mxu0 0
    %891 = vmatmul.mubr.bf16.gmra.mrb[0].mxu0 %v611
    %v892 = vpop.f32.mrb[0].mxu0
    %v893 = vadd.f32 %v796, %v892
    %v894 = vpop.f32.mrb[0].mxu0
    %v895 = vpop.f32.mrb[0].mxu0
    %v896 = vadd.f32 %v799, %v895
    %v897 = vpop.f32.mrb[0].mxu0
    %898 = vmatprep.mubr.bf16.mxu0 0
    %899 = vmatmul.mubr.bf16.gmra.mrb[0].mxu0 %v614
    %v900 = vpop.f32.mrb[0].mxu0
    %v901 = vadd.f32 %v804, %v900
    %v902 = vpop.f32.mrb[0].mxu0
    %v903 = vpop.f32.mrb[0].mxu0
    %v904 = vadd.f32 %v807, %v903
    %v905 = vpop.f32.mrb[0].mxu0
    %906 = vdwg.mxu0
    %vm907 = vcmask 261120
    %v908 = vsel %vm907, %v845, 0.0
    %v909 = vsel %vm907, %v848, 0.0
    %v910 = vadd.f32 %v908, %v909
    %v911 = vsel %vm907, %v853, 0.0
    %v912 = vadd.f32 %v910, %v911
    %v913 = vsel %vm907, %v856, 0.0
    %v914 = vadd.f32 %v912, %v913
    %v915 = vsel %vm907, %v861, 0.0
    %v916 = vadd.f32 %v914, %v915
    %v917 = vsel %vm907, %v864, 0.0
    %v918 = vadd.f32 %v916, %v917
    %v919 = vsel %vm907, %v869, 0.0
    %v920 = vadd.f32 %v918, %v919
    %v921 = vsel %vm907, %v872, 0.0
    %v922 = vadd.f32 %v920, %v921
    %v923 = vsel %vm907, %v877, 0.0
    %v924 = vadd.f32 %v922, %v923
    %v925 = vsel %vm907, %v880, 0.0
    %v926 = vadd.f32 %v924, %v925
    %v927 = vsel %vm907, %v885, 0.0
    %v928 = vadd.f32 %v926, %v927
    %v929 = vsel %vm907, %v888, 0.0
    %v930 = vadd.f32 %v928, %v929
    %v931 = vsel %vm907, %v893, 0.0
    %v932 = vadd.f32 %v930, %v931
    %v933 = vsel %vm907, %v896, 0.0
    %v934 = vadd.f32 %v932, %v933
    %v935 = vsel %vm907, %v901, 0.0
    %v936 = vadd.f32 %v934, %v935
    %v937 = vsel %vm907, %v904, 0.0
    %v938 = vadd.f32 %v936, %v937
    %v939 = vrot.slane %v938, 4
    %v940 = vadd.f32 %v938, %v939
    %v941 = vrot.slane %v940, 2
    %v942 = vadd.f32 %v940, %v941
    %v943 = vrot.slane %v942, 1
    %v944 = vadd.f32 %v942, %v943
    %vm945 = vcmask 523520
    %v946 = vsel %vm945, %v845, 0.0
    %v947 = vsel %vm945, %v848, 0.0
    %v948 = vadd.f32 %v946, %v947
    %v949 = vsel %vm945, %v853, 0.0
    %v950 = vadd.f32 %v948, %v949
    %v951 = vsel %vm945, %v856, 0.0
    %v952 = vadd.f32 %v950, %v951
    %v953 = vsel %vm945, %v861, 0.0
    %v954 = vadd.f32 %v952, %v953
    %v955 = vsel %vm945, %v864, 0.0
    %v956 = vadd.f32 %v954, %v955
    %v957 = vsel %vm945, %v869, 0.0
    %v958 = vadd.f32 %v956, %v957
    %v959 = vsel %vm945, %v872, 0.0
    %v960 = vadd.f32 %v958, %v959
    %v961 = vsel %vm945, %v877, 0.0
    %v962 = vadd.f32 %v960, %v961
    %v963 = vsel %vm945, %v880, 0.0
    %v964 = vadd.f32 %v962, %v963
    %v965 = vsel %vm945, %v885, 0.0
    %v966 = vadd.f32 %v964, %v965
    %v967 = vsel %vm945, %v888, 0.0
    %v968 = vadd.f32 %v966, %v967
    %v969 = vsel %vm945, %v893, 0.0
    %v970 = vadd.f32 %v968, %v969
    %v971 = vsel %vm945, %v896, 0.0
    %v972 = vadd.f32 %v970, %v971
    %v973 = vsel %vm945, %v901, 0.0
    %v974 = vadd.f32 %v972, %v973
    %v975 = vsel %vm945, %v904, 0.0
    %v976 = vadd.f32 %v974, %v975
    %v977 = vrot.slane %v976, 4
    %v978 = vadd.f32 %v976, %v977
    %v979 = vrot.slane %v978, 2
    %v980 = vadd.f32 %v978, %v979
    %v981 = vrot.slane %v980, 1
    %v982 = vadd.f32 %v980, %v981
    %984 = vrot.lane.b32.xlu0 %v982, 96
    %v985 = vpop.permute.xlu0 %984
    %v987 = vadd.f32 %v944, %v985
    %vm988 = vcmask 785920
    %v989 = vsel %vm988, %v845, 0.0
    %v990 = vsel %vm988, %v848, 0.0
    %v991 = vadd.f32 %v989, %v990
    %v992 = vsel %vm988, %v853, 0.0
    %v993 = vadd.f32 %v991, %v992
    %v994 = vsel %vm988, %v856, 0.0
    %v995 = vadd.f32 %v993, %v994
    %v996 = vsel %vm988, %v861, 0.0
    %v997 = vadd.f32 %v995, %v996
    %v998 = vsel %vm988, %v864, 0.0
    %v999 = vadd.f32 %v997, %v998
    %v1000 = vsel %vm988, %v869, 0.0
    %v1001 = vadd.f32 %v999, %v1000
    %v1002 = vsel %vm988, %v872, 0.0
    %v1003 = vadd.f32 %v1001, %v1002
    %v1004 = vsel %vm988, %v877, 0.0
    %v1005 = vadd.f32 %v1003, %v1004
    %v1006 = vsel %vm988, %v880, 0.0
    %v1007 = vadd.f32 %v1005, %v1006
    %v1008 = vsel %vm988, %v885, 0.0
    %v1009 = vadd.f32 %v1007, %v1008
    %v1010 = vsel %vm988, %v888, 0.0
    %v1011 = vadd.f32 %v1009, %v1010
    %v1012 = vsel %vm988, %v893, 0.0
    %v1013 = vadd.f32 %v1011, %v1012
    %v1014 = vsel %vm988, %v896, 0.0
    %v1015 = vadd.f32 %v1013, %v1014
    %v1016 = vsel %vm988, %v901, 0.0
    %v1017 = vadd.f32 %v1015, %v1016
    %v1018 = vsel %vm988, %v904, 0.0
    %v1019 = vadd.f32 %v1017, %v1018
    %v1020 = vrot.slane %v1019, 4
    %v1021 = vadd.f32 %v1019, %v1020
    %v1022 = vrot.slane %v1021, 2
    %v1023 = vadd.f32 %v1021, %v1022
    %v1024 = vrot.slane %v1023, 1
    %v1025 = vadd.f32 %v1023, %v1024
    %1027 = vrot.lane.b32.xlu0 %v1025, 64
    %v1028 = vpop.permute.xlu0 %1027
    %v1030 = vadd.f32 %v987, %v1028
    %vm1031 = vcmask 1048320
    %v1032 = vsel %vm1031, %v845, 0.0
    %v1033 = vsel %vm1031, %v848, 0.0
    %v1034 = vadd.f32 %v1032, %v1033
    %v1035 = vsel %vm1031, %v853, 0.0
    %v1036 = vadd.f32 %v1034, %v1035
    %v1037 = vsel %vm1031, %v856, 0.0
    %v1038 = vadd.f32 %v1036, %v1037
    %v1039 = vsel %vm1031, %v861, 0.0
    %v1040 = vadd.f32 %v1038, %v1039
    %v1041 = vsel %vm1031, %v864, 0.0
    %v1042 = vadd.f32 %v1040, %v1041
    %v1043 = vsel %vm1031, %v869, 0.0
    %v1044 = vadd.f32 %v1042, %v1043
    %v1045 = vsel %vm1031, %v872, 0.0
    %v1046 = vadd.f32 %v1044, %v1045
    %v1047 = vsel %vm1031, %v877, 0.0
    %v1048 = vadd.f32 %v1046, %v1047
    %v1049 = vsel %vm1031, %v880, 0.0
    %v1050 = vadd.f32 %v1048, %v1049
    %v1051 = vsel %vm1031, %v885, 0.0
    %v1052 = vadd.f32 %v1050, %v1051
    %v1053 = vsel %vm1031, %v888, 0.0
    %v1054 = vadd.f32 %v1052, %v1053
    %v1055 = vsel %vm1031, %v893, 0.0
    %v1056 = vadd.f32 %v1054, %v1055
    %v1057 = vsel %vm1031, %v896, 0.0
    %v1058 = vadd.f32 %v1056, %v1057
    %v1059 = vsel %vm1031, %v901, 0.0
    %v1060 = vadd.f32 %v1058, %v1059
    %v1061 = vsel %vm1031, %v904, 0.0
    %v1062 = vadd.f32 %v1060, %v1061
    %v1063 = vrot.slane %v1062, 4
    %v1064 = vadd.f32 %v1062, %v1063
    %v1065 = vrot.slane %v1064, 2
    %v1066 = vadd.f32 %v1064, %v1065
    %v1067 = vrot.slane %v1066, 1
    %v1068 = vadd.f32 %v1066, %v1067
    %1070 = vrot.lane.b32.xlu0 %v1068, 32
    %v1071 = vpop.permute.xlu0 %1070
    %v1073 = vadd.f32 %v1030, %v1071
    %v1074 = vmul.f32 %v1073, 0.001953125
    %v1075 = vlaneseq
    %v1076 = vshrl.u32 %v1075, 7
    %v1077 = vsub.s32 0, %v1076
    %v1078 = vrot.slane %v1074, %v1077
    %v1079 = vsub.f32 %v845, %v1078
    %v1080 = vsub.f32 %v848, %v1078
    %v1081 = vsub.f32 %v853, %v1078
    %v1082 = vsub.f32 %v856, %v1078
    %v1083 = vsub.f32 %v861, %v1078
    %v1084 = vsub.f32 %v864, %v1078
    %v1085 = vsub.f32 %v869, %v1078
    %v1086 = vsub.f32 %v872, %v1078
    %v1087 = vsub.f32 %v877, %v1078
    %v1088 = vsub.f32 %v880, %v1078
    %v1089 = vsub.f32 %v885, %v1078
    %v1090 = vsub.f32 %v888, %v1078
    %v1091 = vsub.f32 %v893, %v1078
    %v1092 = vsub.f32 %v896, %v1078
    %v1093 = vsub.f32 %v901, %v1078
    %v1094 = vsub.f32 %v904, %v1078
    %v1095 = vmul.f32 %v1079, %v1079
    %v1096 = vmul.f32 %v1080, %v1080
    %v1097 = vmul.f32 %v1081, %v1081
    %v1098 = vmul.f32 %v1082, %v1082
    %v1099 = vmul.f32 %v1083, %v1083
    %v1100 = vmul.f32 %v1084, %v1084
    %v1101 = vmul.f32 %v1085, %v1085
    %v1102 = vmul.f32 %v1086, %v1086
    %v1103 = vmul.f32 %v1087, %v1087
    %v1104 = vmul.f32 %v1088, %v1088
    %v1105 = vmul.f32 %v1089, %v1089
    %v1106 = vmul.f32 %v1090, %v1090
    %v1107 = vmul.f32 %v1091, %v1091
    %v1108 = vmul.f32 %v1092, %v1092
    %v1109 = vmul.f32 %v1093, %v1093
    %v1110 = vmul.f32 %v1094, %v1094
    %v1111 = vsel %vm907, %v1095, 0.0
    %v1112 = vsel %vm907, %v1096, 0.0
    %v1113 = vadd.f32 %v1111, %v1112
    %v1114 = vsel %vm907, %v1097, 0.0
    %v1115 = vadd.f32 %v1113, %v1114
    %v1116 = vsel %vm907, %v1098, 0.0
    %v1117 = vadd.f32 %v1115, %v1116
    %v1118 = vsel %vm907, %v1099, 0.0
    %v1119 = vadd.f32 %v1117, %v1118
    %v1120 = vsel %vm907, %v1100, 0.0
    %v1121 = vadd.f32 %v1119, %v1120
    %v1122 = vsel %vm907, %v1101, 0.0
    %v1123 = vadd.f32 %v1121, %v1122
    %v1124 = vsel %vm907, %v1102, 0.0
    %v1125 = vadd.f32 %v1123, %v1124
    %v1126 = vsel %vm907, %v1103, 0.0
    %v1127 = vadd.f32 %v1125, %v1126
    %v1128 = vsel %vm907, %v1104, 0.0
    %v1129 = vadd.f32 %v1127, %v1128
    %v1130 = vsel %vm907, %v1105, 0.0
    %v1131 = vadd.f32 %v1129, %v1130
    %v1132 = vsel %vm907, %v1106, 0.0
    %v1133 = vadd.f32 %v1131, %v1132
    %v1134 = vsel %vm907, %v1107, 0.0
    %v1135 = vadd.f32 %v1133, %v1134
    %v1136 = vsel %vm907, %v1108, 0.0
    %v1137 = vadd.f32 %v1135, %v1136
    %v1138 = vsel %vm907, %v1109, 0.0
    %v1139 = vadd.f32 %v1137, %v1138
    %v1140 = vsel %vm907, %v1110, 0.0
    %v1141 = vadd.f32 %v1139, %v1140
    %v1142 = vrot.slane %v1141, 4
    %v1143 = vadd.f32 %v1141, %v1142
    %v1144 = vrot.slane %v1143, 2
    %v1145 = vadd.f32 %v1143, %v1144
    %v1146 = vrot.slane %v1145, 1
    %v1147 = vadd.f32 %v1145, %v1146
    %v1148 = vadd.f32 %v1147, 0.0
    %1150 = vrot.lane.b32.xlu0 %v1078, 32
    %v1151 = vpop.permute.xlu0 %1150
    %v1153 = vsub.f32 %v845, %v1151
    %v1154 = vsub.f32 %v848, %v1151
    %v1155 = vsub.f32 %v853, %v1151
    %v1156 = vsub.f32 %v856, %v1151
    %v1157 = vsub.f32 %v861, %v1151
    %v1158 = vsub.f32 %v864, %v1151
    %v1159 = vsub.f32 %v869, %v1151
    %v1160 = vsub.f32 %v872, %v1151
    %v1161 = vsub.f32 %v877, %v1151
    %v1162 = vsub.f32 %v880, %v1151
    %v1163 = vsub.f32 %v885, %v1151
    %v1164 = vsub.f32 %v888, %v1151
    %v1165 = vsub.f32 %v893, %v1151
    %v1166 = vsub.f32 %v896, %v1151
    %v1167 = vsub.f32 %v901, %v1151
    %v1168 = vsub.f32 %v904, %v1151
    %v1169 = vmul.f32 %v1153, %v1153
    %v1170 = vmul.f32 %v1154, %v1154
    %v1171 = vmul.f32 %v1155, %v1155
    %v1172 = vmul.f32 %v1156, %v1156
    %v1173 = vmul.f32 %v1157, %v1157
    %v1174 = vmul.f32 %v1158, %v1158
    %v1175 = vmul.f32 %v1159, %v1159
    %v1176 = vmul.f32 %v1160, %v1160
    %v1177 = vmul.f32 %v1161, %v1161
    %v1178 = vmul.f32 %v1162, %v1162
    %v1179 = vmul.f32 %v1163, %v1163
    %v1180 = vmul.f32 %v1164, %v1164
    %v1181 = vmul.f32 %v1165, %v1165
    %v1182 = vmul.f32 %v1166, %v1166
    %v1183 = vmul.f32 %v1167, %v1167
    %v1184 = vmul.f32 %v1168, %v1168
    %v1185 = vsel %vm945, %v1169, 0.0
    %v1186 = vsel %vm945, %v1170, 0.0
    %v1187 = vadd.f32 %v1185, %v1186
    %v1188 = vsel %vm945, %v1171, 0.0
    %v1189 = vadd.f32 %v1187, %v1188
    %v1190 = vsel %vm945, %v1172, 0.0
    %v1191 = vadd.f32 %v1189, %v1190
    %v1192 = vsel %vm945, %v1173, 0.0
    %v1193 = vadd.f32 %v1191, %v1192
    %v1194 = vsel %vm945, %v1174, 0.0
    %v1195 = vadd.f32 %v1193, %v1194
    %v1196 = vsel %vm945, %v1175, 0.0
    %v1197 = vadd.f32 %v1195, %v1196
    %v1198 = vsel %vm945, %v1176, 0.0
    %v1199 = vadd.f32 %v1197, %v1198
    %v1200 = vsel %vm945, %v1177, 0.0
    %v1201 = vadd.f32 %v1199, %v1200
    %v1202 = vsel %vm945, %v1178, 0.0
    %v1203 = vadd.f32 %v1201, %v1202
    %v1204 = vsel %vm945, %v1179, 0.0
    %v1205 = vadd.f32 %v1203, %v1204
    %v1206 = vsel %vm945, %v1180, 0.0
    %v1207 = vadd.f32 %v1205, %v1206
    %v1208 = vsel %vm945, %v1181, 0.0
    %v1209 = vadd.f32 %v1207, %v1208
    %v1210 = vsel %vm945, %v1182, 0.0
    %v1211 = vadd.f32 %v1209, %v1210
    %v1212 = vsel %vm945, %v1183, 0.0
    %v1213 = vadd.f32 %v1211, %v1212
    %v1214 = vsel %vm945, %v1184, 0.0
    %v1215 = vadd.f32 %v1213, %v1214
    %v1216 = vrot.slane %v1215, 4
    %v1217 = vadd.f32 %v1215, %v1216
    %v1218 = vrot.slane %v1217, 2
    %v1219 = vadd.f32 %v1217, %v1218
    %v1220 = vrot.slane %v1219, 1
    %v1221 = vadd.f32 %v1219, %v1220
    %1223 = vrot.lane.b32.xlu0 %v1221, 96
    %v1224 = vpop.permute.xlu0 %1223
    %v1226 = vadd.f32 %v1148, %v1224
    %1227 = vrot.lane.b32.xlu0 %v1078, 64
    %v1228 = vpop.permute.xlu0 %1227
    %v1230 = vsub.f32 %v845, %v1228
    %v1231 = vsub.f32 %v848, %v1228
    %v1232 = vsub.f32 %v853, %v1228
    %v1233 = vsub.f32 %v856, %v1228
    %v1234 = vsub.f32 %v861, %v1228
    %v1235 = vsub.f32 %v864, %v1228
    %v1236 = vsub.f32 %v869, %v1228
    %v1237 = vsub.f32 %v872, %v1228
    %v1238 = vsub.f32 %v877, %v1228
    %v1239 = vsub.f32 %v880, %v1228
    %v1240 = vsub.f32 %v885, %v1228
    %v1241 = vsub.f32 %v888, %v1228
    %v1242 = vsub.f32 %v893, %v1228
    %v1243 = vsub.f32 %v896, %v1228
    %v1244 = vsub.f32 %v901, %v1228
    %v1245 = vsub.f32 %v904, %v1228
    %v1246 = vmul.f32 %v1230, %v1230
    %v1247 = vmul.f32 %v1231, %v1231
    %v1248 = vmul.f32 %v1232, %v1232
    %v1249 = vmul.f32 %v1233, %v1233
    %v1250 = vmul.f32 %v1234, %v1234
    %v1251 = vmul.f32 %v1235, %v1235
    %v1252 = vmul.f32 %v1236, %v1236
    %v1253 = vmul.f32 %v1237, %v1237
    %v1254 = vmul.f32 %v1238, %v1238
    %v1255 = vmul.f32 %v1239, %v1239
    %v1256 = vmul.f32 %v1240, %v1240
    %v1257 = vmul.f32 %v1241, %v1241
    %v1258 = vmul.f32 %v1242, %v1242
    %v1259 = vmul.f32 %v1243, %v1243
    %v1260 = vmul.f32 %v1244, %v1244
    %v1261 = vmul.f32 %v1245, %v1245
    %v1262 = vsel %vm988, %v1246, 0.0
    %v1263 = vsel %vm988, %v1247, 0.0
    %v1264 = vadd.f32 %v1262, %v1263
    %v1265 = vsel %vm988, %v1248, 0.0
    %v1266 = vadd.f32 %v1264, %v1265
    %v1267 = vsel %vm988, %v1249, 0.0
    %v1268 = vadd.f32 %v1266, %v1267
    %v1269 = vsel %vm988, %v1250, 0.0
    %v1270 = vadd.f32 %v1268, %v1269
    %v1271 = vsel %vm988, %v1251, 0.0
    %v1272 = vadd.f32 %v1270, %v1271
    %v1273 = vsel %vm988, %v1252, 0.0
    %v1274 = vadd.f32 %v1272, %v1273
    %v1275 = vsel %vm988, %v1253, 0.0
    %v1276 = vadd.f32 %v1274, %v1275
    %v1277 = vsel %vm988, %v1254, 0.0
    %v1278 = vadd.f32 %v1276, %v1277
    %v1279 = vsel %vm988, %v1255, 0.0
    %v1280 = vadd.f32 %v1278, %v1279
    %v1281 = vsel %vm988, %v1256, 0.0
    %v1282 = vadd.f32 %v1280, %v1281
    %v1283 = vsel %vm988, %v1257, 0.0
    %v1284 = vadd.f32 %v1282, %v1283
    %v1285 = vsel %vm988, %v1258, 0.0
    %v1286 = vadd.f32 %v1284, %v1285
    %v1287 = vsel %vm988, %v1259, 0.0
    %v1288 = vadd.f32 %v1286, %v1287
    %v1289 = vsel %vm988, %v1260, 0.0
    %v1290 = vadd.f32 %v1288, %v1289
    %v1291 = vsel %vm988, %v1261, 0.0
    %v1292 = vadd.f32 %v1290, %v1291
    %v1293 = vrot.slane %v1292, 4
    %v1294 = vadd.f32 %v1292, %v1293
    %v1295 = vrot.slane %v1294, 2
    %v1296 = vadd.f32 %v1294, %v1295
    %v1297 = vrot.slane %v1296, 1
    %v1298 = vadd.f32 %v1296, %v1297
    %1300 = vrot.lane.b32.xlu0 %v1298, 64
    %v1301 = vpop.permute.xlu0 %1300
    %v1303 = vadd.f32 %v1226, %v1301
    %1304 = vrot.lane.b32.xlu0 %v1078, 96
    %v1305 = vpop.permute.xlu0 %1304
    %v1307 = vsub.f32 %v845, %v1305
    %v1308 = vsub.f32 %v848, %v1305
    %v1309 = vsub.f32 %v853, %v1305
    %v1310 = vsub.f32 %v856, %v1305
    %v1311 = vsub.f32 %v861, %v1305
    %v1312 = vsub.f32 %v864, %v1305
    %v1313 = vsub.f32 %v869, %v1305
    %v1314 = vsub.f32 %v872, %v1305
    %v1315 = vsub.f32 %v877, %v1305
    %v1316 = vsub.f32 %v880, %v1305
    %v1317 = vsub.f32 %v885, %v1305
    %v1318 = vsub.f32 %v888, %v1305
    %v1319 = vsub.f32 %v893, %v1305
    %v1320 = vsub.f32 %v896, %v1305
    %v1321 = vsub.f32 %v901, %v1305
    %v1322 = vsub.f32 %v904, %v1305
    %v1323 = vmul.f32 %v1307, %v1307
    %v1324 = vmul.f32 %v1308, %v1308
    %v1325 = vmul.f32 %v1309, %v1309
    %v1326 = vmul.f32 %v1310, %v1310
    %v1327 = vmul.f32 %v1311, %v1311
    %v1328 = vmul.f32 %v1312, %v1312
    %v1329 = vmul.f32 %v1313, %v1313
    %v1330 = vmul.f32 %v1314, %v1314
    %v1331 = vmul.f32 %v1315, %v1315
    %v1332 = vmul.f32 %v1316, %v1316
    %v1333 = vmul.f32 %v1317, %v1317
    %v1334 = vmul.f32 %v1318, %v1318
    %v1335 = vmul.f32 %v1319, %v1319
    %v1336 = vmul.f32 %v1320, %v1320
    %v1337 = vmul.f32 %v1321, %v1321
    %v1338 = vmul.f32 %v1322, %v1322
    %v1339 = vsel %vm1031, %v1323, 0.0
    %v1340 = vsel %vm1031, %v1324, 0.0
    %v1341 = vadd.f32 %v1339, %v1340
    %v1342 = vsel %vm1031, %v1325, 0.0
    %v1343 = vadd.f32 %v1341, %v1342
    %v1344 = vsel %vm1031, %v1326, 0.0
    %v1345 = vadd.f32 %v1343, %v1344
    %v1346 = vsel %vm1031, %v1327, 0.0
    %v1347 = vadd.f32 %v1345, %v1346
    %v1348 = vsel %vm1031, %v1328, 0.0
    %v1349 = vadd.f32 %v1347, %v1348
    %v1350 = vsel %vm1031, %v1329, 0.0
    %v1351 = vadd.f32 %v1349, %v1350
    %v1352 = vsel %vm1031, %v1330, 0.0
    %v1353 = vadd.f32 %v1351, %v1352
    %v1354 = vsel %vm1031, %v1331, 0.0
    %v1355 = vadd.f32 %v1353, %v1354
    %v1356 = vsel %vm1031, %v1332, 0.0
    %v1357 = vadd.f32 %v1355, %v1356
    %v1358 = vsel %vm1031, %v1333, 0.0
    %v1359 = vadd.f32 %v1357, %v1358
    %v1360 = vsel %vm1031, %v1334, 0.0
    %v1361 = vadd.f32 %v1359, %v1360
    %v1362 = vsel %vm1031, %v1335, 0.0
    %v1363 = vadd.f32 %v1361, %v1362
    %v1364 = vsel %vm1031, %v1336, 0.0
    %v1365 = vadd.f32 %v1363, %v1364
    %v1366 = vsel %vm1031, %v1337, 0.0
    %v1367 = vadd.f32 %v1365, %v1366
    %v1368 = vsel %vm1031, %v1338, 0.0
    %v1369 = vadd.f32 %v1367, %v1368
    %v1370 = vrot.slane %v1369, 4
    %v1371 = vadd.f32 %v1369, %v1370
    %v1372 = vrot.slane %v1371, 2
    %v1373 = vadd.f32 %v1371, %v1372
    %v1374 = vrot.slane %v1373, 1
    %v1375 = vadd.f32 %v1373, %v1374
    %1377 = vrot.lane.b32.xlu0 %v1375, 32
    %v1378 = vpop.permute.xlu0 %1377
    %v1380 = vadd.f32 %v1303, %v1378
    %v1381 = vmul.f32 %v1380, 0.001953125
    %v1382 = vld [vmem:[#allocation4] sm:$0x1]
    %v1383 = vadd.f32 %v1381, 1e-05
    %v1384 = vrsqrt.pop %v1383
    %v1385 = vmul.f32 %v1382, %v1384
    %v1386 = vld [vmem:[#allocation6] sm:$0x1]
    %v1387 = vmul.f32 %v1074, %v1385
    %v1388 = vsub.f32 %v1386, %v1387
    %v1390 = vlaneseq
    %v1391 = vshrl.u32 %v1390, 7
    %v1392 = vsub.s32 0, %v1391
    %v1393 = vrot.slane %v1385, %v1392
    %v1395 = vmul.f32 %v845, %v1393
    %v1396 = vmul.f32 %v848, %v1393
    %v1397 = vmul.f32 %v853, %v1393
    %v1398 = vmul.f32 %v856, %v1393
    %v1399 = vmul.f32 %v861, %v1393
    %v1400 = vmul.f32 %v864, %v1393
    %v1401 = vmul.f32 %v869, %v1393
    %v1402 = vmul.f32 %v872, %v1393
    %v1403 = vmul.f32 %v877, %v1393
    %v1404 = vmul.f32 %v880, %v1393
    %v1405 = vmul.f32 %v885, %v1393
    %v1406 = vmul.f32 %v888, %v1393
    %v1407 = vmul.f32 %v893, %v1393
    %v1408 = vmul.f32 %v896, %v1393
    %v1409 = vmul.f32 %v901, %v1393
    %v1410 = vmul.f32 %v904, %v1393
    %v1412 = vlaneseq
    %v1413 = vshrl.u32 %v1412, 7
    %v1414 = vsub.s32 0, %v1413
    %v1415 = vrot.slane %v1388, %v1414
    %v1417 = vadd.f32 %v1395, %v1415
    %v1418 = vadd.f32 %v1396, %v1415
    %v1419 = vadd.f32 %v1397, %v1415
    %v1420 = vadd.f32 %v1398, %v1415
    %v1421 = vadd.f32 %v1399, %v1415
    %v1422 = vadd.f32 %v1400, %v1415
    %v1423 = vadd.f32 %v1401, %v1415
    %v1424 = vadd.f32 %v1402, %v1415
    %v1425 = vadd.f32 %v1403, %v1415
    %v1426 = vadd.f32 %v1404, %v1415
    %v1427 = vadd.f32 %v1405, %v1415
    %v1428 = vadd.f32 %v1406, %v1415
    %v1429 = vadd.f32 %v1407, %v1415
    %v1430 = vadd.f32 %v1408, %v1415
    %v1431 = vadd.f32 %v1409, %v1415
    %v1432 = vadd.f32 %v1410, %v1415
    %v1433 = vmax.f32 %v1417, 0.0
    %v1434 = vmax.f32 %v1418, 0.0
    %v1435 = vmax.f32 %v1419, 0.0
    %v1436 = vmax.f32 %v1420, 0.0
    %v1437 = vmax.f32 %v1421, 0.0
    %v1438 = vmax.f32 %v1422, 0.0
    %v1439 = vmax.f32 %v1423, 0.0
    %v1440 = vmax.f32 %v1424, 0.0
    %v1441 = vmax.f32 %v1425, 0.0
    %v1442 = vmax.f32 %v1426, 0.0
    %v1443 = vmax.f32 %v1427, 0.0
    %v1444 = vmax.f32 %v1428, 0.0
    %v1445 = vmax.f32 %v1429, 0.0
    %v1446 = vmax.f32 %v1430, 0.0
    %v1447 = vmax.f32 %v1431, 0.0
    %v1448 = vmax.f32 %v1432, 0.0
    %1449 = vrot.lane.b32.xlu0 %v1393, 32
    %v1450 = vpop.permute.xlu0 %1449
    %v1452 = vmul.f32 %v845, %v1450
    %v1453 = vmul.f32 %v848, %v1450
    %v1454 = vmul.f32 %v853, %v1450
    %v1455 = vmul.f32 %v856, %v1450
    %v1456 = vmul.f32 %v861, %v1450
    %v1457 = vmul.f32 %v864, %v1450
    %v1458 = vmul.f32 %v869, %v1450
    %v1459 = vmul.f32 %v872, %v1450
    %v1460 = vmul.f32 %v877, %v1450
    %v1461 = vmul.f32 %v880, %v1450
    %v1462 = vmul.f32 %v885, %v1450
    %v1463 = vmul.f32 %v888, %v1450
    %v1464 = vmul.f32 %v893, %v1450
    %v1465 = vmul.f32 %v896, %v1450
    %v1466 = vmul.f32 %v901, %v1450
    %v1467 = vmul.f32 %v904, %v1450
    %1468 = vrot.lane.b32.xlu0 %v1415, 32
    %v1469 = vpop.permute.xlu0 %1468
    %v1471 = vadd.f32 %v1452, %v1469
    %v1472 = vadd.f32 %v1453, %v1469
    %v1473 = vadd.f32 %v1454, %v1469
    %v1474 = vadd.f32 %v1455, %v1469
    %v1475 = vadd.f32 %v1456, %v1469
    %v1476 = vadd.f32 %v1457, %v1469
    %v1477 = vadd.f32 %v1458, %v1469
    %v1478 = vadd.f32 %v1459, %v1469
    %v1479 = vadd.f32 %v1460, %v1469
    %v1480 = vadd.f32 %v1461, %v1469
    %v1481 = vadd.f32 %v1462, %v1469
    %v1482 = vadd.f32 %v1463, %v1469
    %v1483 = vadd.f32 %v1464, %v1469
    %v1484 = vadd.f32 %v1465, %v1469
    %v1485 = vadd.f32 %v1466, %v1469
    %v1486 = vadd.f32 %v1467, %v1469
    %v1487 = vmax.f32 %v1471, 0.0
    %v1488 = vmax.f32 %v1472, 0.0
    %v1489 = vmax.f32 %v1473, 0.0
    %v1490 = vmax.f32 %v1474, 0.0
    %v1491 = vmax.f32 %v1475, 0.0
    %v1492 = vmax.f32 %v1476, 0.0
    %v1493 = vmax.f32 %v1477, 0.0
    %v1494 = vmax.f32 %v1478, 0.0
    %v1495 = vmax.f32 %v1479, 0.0
    %v1496 = vmax.f32 %v1480, 0.0
    %v1497 = vmax.f32 %v1481, 0.0
    %v1498 = vmax.f32 %v1482, 0.0
    %v1499 = vmax.f32 %v1483, 0.0
    %v1500 = vmax.f32 %v1484, 0.0
    %v1501 = vmax.f32 %v1485, 0.0
    %v1502 = vmax.f32 %v1486, 0.0
    %1503 = vrot.lane.b32.xlu0 %v1393, 64
    %v1504 = vpop.permute.xlu0 %1503
    %v1506 = vmul.f32 %v845, %v1504
    %v1507 = vmul.f32 %v848, %v1504
    %v1508 = vmul.f32 %v853, %v1504
    %v1509 = vmul.f32 %v856, %v1504
    %v1510 = vmul.f32 %v861, %v1504
    %v1511 = vmul.f32 %v864, %v1504
    %v1512 = vmul.f32 %v869, %v1504
    %v1513 = vmul.f32 %v872, %v1504
    %v1514 = vmul.f32 %v877, %v1504
    %v1515 = vmul.f32 %v880, %v1504
    %v1516 = vmul.f32 %v885, %v1504
    %v1517 = vmul.f32 %v888, %v1504
    %v1518 = vmul.f32 %v893, %v1504
    %v1519 = vmul.f32 %v896, %v1504
    %v1520 = vmul.f32 %v901, %v1504
    %v1521 = vmul.f32 %v904, %v1504
    %1522 = vrot.lane.b32.xlu0 %v1415, 64
    %v1523 = vpop.permute.xlu0 %1522
    %v1525 = vadd.f32 %v1506, %v1523
    %v1526 = vadd.f32 %v1507, %v1523
    %v1527 = vadd.f32 %v1508, %v1523
    %v1528 = vadd.f32 %v1509, %v1523
    %v1529 = vadd.f32 %v1510, %v1523
    %v1530 = vadd.f32 %v1511, %v1523
    %v1531 = vadd.f32 %v1512, %v1523
    %v1532 = vadd.f32 %v1513, %v1523
    %v1533 = vadd.f32 %v1514, %v1523
    %v1534 = vadd.f32 %v1515, %v1523
    %v1535 = vadd.f32 %v1516, %v1523
    %v1536 = vadd.f32 %v1517, %v1523
    %v1537 = vadd.f32 %v1518, %v1523
    %v1538 = vadd.f32 %v1519, %v1523
    %v1539 = vadd.f32 %v1520, %v1523
    %v1540 = vadd.f32 %v1521, %v1523
    %v1541 = vmax.f32 %v1525, 0.0
    %v1542 = vmax.f32 %v1526, 0.0
    %v1543 = vmax.f32 %v1527, 0.0
    %v1544 = vmax.f32 %v1528, 0.0
    %v1545 = vmax.f32 %v1529, 0.0
    %v1546 = vmax.f32 %v1530, 0.0
    %v1547 = vmax.f32 %v1531, 0.0
    %v1548 = vmax.f32 %v1532, 0.0
    %v1549 = vmax.f32 %v1533, 0.0
    %v1550 = vmax.f32 %v1534, 0.0
    %v1551 = vmax.f32 %v1535, 0.0
    %v1552 = vmax.f32 %v1536, 0.0
    %v1553 = vmax.f32 %v1537, 0.0
    %v1554 = vmax.f32 %v1538, 0.0
    %v1555 = vmax.f32 %v1539, 0.0
    %v1556 = vmax.f32 %v1540, 0.0
    %1557 = vrot.lane.b32.xlu0 %v1393, 96
    %v1558 = vpop.permute.xlu0 %1557
    %v1560 = vmul.f32 %v845, %v1558
    %v1561 = vmul.f32 %v848, %v1558
    %v1562 = vmul.f32 %v853, %v1558
    %v1563 = vmul.f32 %v856, %v1558
    %v1564 = vmul.f32 %v861, %v1558
    %v1565 = vmul.f32 %v864, %v1558
    %v1566 = vmul.f32 %v869, %v1558
    %v1567 = vmul.f32 %v872, %v1558
    %v1568 = vmul.f32 %v877, %v1558
    %v1569 = vmul.f32 %v880, %v1558
    %v1570 = vmul.f32 %v885, %v1558
    %v1571 = vmul.f32 %v888, %v1558
    %v1572 = vmul.f32 %v893, %v1558
    %v1573 = vmul.f32 %v896, %v1558
    %v1574 = vmul.f32 %v901, %v1558
    %v1575 = vmul.f32 %v904, %v1558
    %1576 = vrot.lane.b32.xlu0 %v1415, 96
    %v1577 = vpop.permute.xlu0 %1576
    %v1579 = vadd.f32 %v1560, %v1577
    %v1580 = vadd.f32 %v1561, %v1577
    %v1581 = vadd.f32 %v1562, %v1577
    %v1582 = vadd.f32 %v1563, %v1577
    %v1583 = vadd.f32 %v1564, %v1577
    %v1584 = vadd.f32 %v1565, %v1577
    %v1585 = vadd.f32 %v1566, %v1577
    %v1586 = vadd.f32 %v1567, %v1577
    %v1587 = vadd.f32 %v1568, %v1577
    %v1588 = vadd.f32 %v1569, %v1577
    %v1589 = vadd.f32 %v1570, %v1577
    %v1590 = vadd.f32 %v1571, %v1577
    %v1591 = vadd.f32 %v1572, %v1577
    %v1592 = vadd.f32 %v1573, %v1577
    %v1593 = vadd.f32 %v1574, %v1577
    %v1594 = vadd.f32 %v1575, %v1577
    %v1595 = vmax.f32 %v1579, 0.0
    %v1596 = vmax.f32 %v1580, 0.0
    %v1597 = vmax.f32 %v1581, 0.0
    %v1598 = vmax.f32 %v1582, 0.0
    %v1599 = vmax.f32 %v1583, 0.0
    %v1600 = vmax.f32 %v1584, 0.0
    %v1601 = vmax.f32 %v1585, 0.0
    %v1602 = vmax.f32 %v1586, 0.0
    %v1603 = vmax.f32 %v1587, 0.0
    %v1604 = vmax.f32 %v1588, 0.0
    %v1605 = vmax.f32 %v1589, 0.0
    %v1606 = vmax.f32 %v1590, 0.0
    %v1607 = vmax.f32 %v1591, 0.0
    %v1608 = vmax.f32 %v1592, 0.0
    %v1609 = vmax.f32 %v1593, 0.0
    %v1610 = vmax.f32 %v1594, 0.0
    %v1611 = vsel %vm907, %v1433, %v1487
    %v1612 = vsel %vm907, %v1434, %v1488
    %v1613 = vsel %vm907, %v1435, %v1489
    %v1614 = vsel %vm907, %v1436, %v1490
    %v1615 = vsel %vm907, %v1437, %v1491
    %v1616 = vsel %vm907, %v1438, %v1492
    %v1617 = vsel %vm907, %v1439, %v1493
    %v1618 = vsel %vm907, %v1440, %v1494
    %v1619 = vsel %vm907, %v1441, %v1495
    %v1620 = vsel %vm907, %v1442, %v1496
    %v1621 = vsel %vm907, %v1443, %v1497
    %v1622 = vsel %vm907, %v1444, %v1498
    %v1623 = vsel %vm907, %v1445, %v1499
    %v1624 = vsel %vm907, %v1446, %v1500
    %v1625 = vsel %vm907, %v1447, %v1501
    %v1626 = vsel %vm907, %v1448, %v1502
    %v1627 = vsel %vm591, %v1611, %v1541
    %v1628 = vsel %vm591, %v1612, %v1542
    %v1629 = vsel %vm591, %v1613, %v1543
    %v1630 = vsel %vm591, %v1614, %v1544
    %v1631 = vsel %vm591, %v1615, %v1545
    %v1632 = vsel %vm591, %v1616, %v1546
    %v1633 = vsel %vm591, %v1617, %v1547
    %v1634 = vsel %vm591, %v1618, %v1548
    %v1635 = vsel %vm591, %v1619, %v1549
    %v1636 = vsel %vm591, %v1620, %v1550
    %v1637 = vsel %vm591, %v1621, %v1551
    %v1638 = vsel %vm591, %v1622, %v1552
    %v1639 = vsel %vm591, %v1623, %v1553
    %v1640 = vsel %vm591, %v1624, %v1554
    %v1641 = vsel %vm591, %v1625, %v1555
    %v1642 = vsel %vm591, %v1626, %v1556
    %vm1643 = vcmask 785408
    %v1644 = vsel %vm1643, %v1627, %v1595
    %v1645 = vsel %vm1643, %v1628, %v1596
    %v1646 = vsel %vm1643, %v1629, %v1597
    %v1647 = vsel %vm1643, %v1630, %v1598
    %v1648 = vsel %vm1643, %v1631, %v1599
    %v1649 = vsel %vm1643, %v1632, %v1600
    %v1650 = vsel %vm1643, %v1633, %v1601
    %v1651 = vsel %vm1643, %v1634, %v1602
    %v1652 = vsel %vm1643, %v1635, %v1603
    %v1653 = vsel %vm1643, %v1636, %v1604
    %v1654 = vsel %vm1643, %v1637, %v1605
    %v1655 = vsel %vm1643, %v1638, %v1606
    %v1656 = vsel %vm1643, %v1639, %v1607
    %v1657 = vsel %vm1643, %v1640, %v1608
    %v1658 = vsel %vm1643, %v1641, %v1609
    %v1659 = vsel %vm1643, %v1642, %v1610
    %v1660 = vpack.c.bf16 %v1645, %v1644
    %v1661 = vpack.c.bf16 %v1647, %v1646
    %v1662 = vpack.c.bf16 %v1649, %v1648
    %v1663 = vpack.c.bf16 %v1651, %v1650
    %v1664 = vpack.c.bf16 %v1653, %v1652
    %v1665 = vpack.c.bf16 %v1655, %v1654
    %v1666 = vpack.c.bf16 %v1657, %v1656
    %v1667 = vpack.c.bf16 %v1659, %v1658
    %v1676 = vunpack.c.l.b16 %v1660
    %v1677 = vunpack.c.h.b16 %v1660
    %v1678 = vunpack.c.l.b16 %v1661
    %v1679 = vunpack.c.h.b16 %v1661
    %v1680 = vunpack.c.l.b16 %v1662
    %v1681 = vunpack.c.h.b16 %v1662
    %v1682 = vunpack.c.l.b16 %v1663
    %v1683 = vunpack.c.h.b16 %v1663
    %v1684 = vunpack.c.l.b16 %v1664
    %v1685 = vunpack.c.h.b16 %v1664
    %v1686 = vunpack.c.l.b16 %v1665
    %v1687 = vunpack.c.h.b16 %v1665
    %v1688 = vunpack.c.l.b16 %v1666
    %v1689 = vunpack.c.h.b16 %v1666
    %v1690 = vunpack.c.l.b16 %v1667
    %v1691 = vunpack.c.h.b16 %v1667
    %v1692 = vpack.c.b16 %v1676, %v1676
    %v1693 = vpack.c.b16 %v1677, %v1677
    %v1694 = vpack.c.b16 %v1678, %v1678
    %v1695 = vpack.c.b16 %v1679, %v1679
    %v1696 = vpack.c.b16 %v1680, %v1680
    %v1697 = vpack.c.b16 %v1681, %v1681
    %v1698 = vpack.c.b16 %v1682, %v1682
    %v1699 = vpack.c.b16 %v1683, %v1683
    %v1700 = vpack.c.b16 %v1684, %v1684
    %v1701 = vpack.c.b16 %v1685, %v1685
    %v1702 = vpack.c.b16 %v1686, %v1686
    %v1703 = vpack.c.b16 %v1687, %v1687
    %v1704 = vpack.c.b16 %v1688, %v1688
    %v1705 = vpack.c.b16 %v1689, %v1689
    %v1706 = vpack.c.b16 %v1690, %v1690
    %v1707 = vpack.c.b16 %v1691, %v1691
    %1724 = vst [vmem:[%s4] sm:$0xf] %v1692
    %1725 = vst [vmem:[%s4 + $0x4] sm:$0xf] %v1693
    %1726 = vst [vmem:[%s4 + $0x8] sm:$0xf] %v1694
    %1727 = vst [vmem:[%s4 + $0xc] sm:$0xf] %v1695
    %1728 = vst [vmem:[%s4 + $0x10] sm:$0xf] %v1696
    %1729 = vst [vmem:[%s4 + $0x14] sm:$0xf] %v1697
    %1730 = vst [vmem:[%s4 + $0x18] sm:$0xf] %v1698
    %1731 = vst [vmem:[%s4 + $0x1c] sm:$0xf] %v1699
    %1732 = vst [vmem:[%s4 + $0x20] sm:$0xf] %v1700
    %1733 = vst [vmem:[%s4 + $0x24] sm:$0xf] %v1701
    %1734 = vst [vmem:[%s4 + $0x28] sm:$0xf] %v1702
    %1735 = vst [vmem:[%s4 + $0x2c] sm:$0xf] %v1703
    %1736 = vst [vmem:[%s4 + $0x30] sm:$0xf] %v1704
    %1737 = vst [vmem:[%s4 + $0x34] sm:$0xf] %v1705
    %1738 = vst [vmem:[%s4 + $0x38] sm:$0xf] %v1706
    %1739 = vst [vmem:[%s4 + $0x3c] sm:$0xf] %v1707
    // Predicated region
    $region30: #{generator_forward.7} parent=1 // pred_check
      _
    $region31: #{generator_forward.7} parent=1 // pred_check_branch
      %1741 = sbr.rel (0) target = $region33
    $region32: #{generator_forward.7} parent=1 // pred_region
      _
    $region33: #{generator_forward.7} parent=1 // pred_fallthru
      _
    // Predicated region
    $region34: #{generator_forward.7} parent=1 // pred_check
      _
    $region35: #{generator_forward.7} parent=1 // pred_check_branch
      %1743 = sbr.rel (0) target = $region37
    $region36: #{generator_forward.7} parent=1 // pred_region
      _
    $region37: #{generator_forward.7} parent=1 // pred_fallthru
      _
    %1744 = vsyncpa [#allocation3], 1
    %1745 = vsyncpa [#allocation5], 1

// kernel: generator_forward.8
$region0: #{generator_forward.8}
  #allocation0 [shape = 'u32[]', space=smem, size = 0x4, offset = 0x4, fixed_abs, tag = 'smem constant byte address 0x4 - core index']
  #allocation1 [shape = 'u32[144,128]{1,0:T(1,128)}', space=vmem, size = 0x12000, scoped, tag = 'internal scratch']
  %s0 = inlined_call_operand.vmem [shape: bf16[512,288], index: 0, kind: input, shape index: {}]
  %s1 = inlined_call_operand.hbm [shape: bf16[288,128], index: 1, kind: input, shape index: {}]
  %s2 = inlined_call_operand.vmem [shape: f32[1,32], index: 2, kind: input, shape index: {}]
  %s3 = inlined_call_operand.vmem [shape: f32[1,32], index: 3, kind: input, shape index: {}]
  %s4 = inlined_call_operand.vmem [shape: bf16[512,128], index: 4, kind: output, shape index: {}]
  %s5 = sld [smem:[#allocation0]]
  $region30: #{generator_forward.8} parent=0
    _
  %s7 = ssub.s32 1, %s5
  %s8 = scalar_select 0, %s7, %s5
  $region1: #{generator_forward.8} parent=0
    #allocation2 [shape = 'u8[73728]{0}', space=vmem, size = 0x12000, scoped, tag = 'input window, operand 1, single buffered']
    #allocation3 [shape = 's32[1]{0}', space=sflag, size = 0x4, scoped, tag = 'scoped memory for generator_forward.8']
    %9 = vsyncpa [#allocation3], 0
    // Predicated region
    $region2: #{generator_forward.8} parent=1 // pred_check
      _
    $region3: #{generator_forward.8} parent=1 // pred_check_branch
      %11 = sbr.rel (0) target = $region5
    $region4: #{generator_forward.8} parent=1 // pred_region
      _
    $region5: #{generator_forward.8} parent=1 // pred_fallthru
      _
    // Predicated region
    $region6: #{generator_forward.8} parent=1 // pred_check
      _
    $region7: #{generator_forward.8} parent=1 // pred_check_branch
      %13 = sbr.rel (0) target = $region9
    $region8: #{generator_forward.8} parent=1 // pred_region
      %s15 = ssub.s32 2304, 2304
      %16 = vsyncadd [#allocation3], %s15
      %s17 = sshll.u32 [#allocation2], 4
      %s18 = int_to_ptr.vmem [resolvable:$true] %s17
      %23 = dma.hbm_to_vmem [thread:$0]  %s1, 2304, %s18, [#allocation3], 64, 64, 4
    $region9: #{generator_forward.8} parent=1 // pred_fallthru
      _
    // Predicated region
    $region10: #{generator_forward.8} parent=1 // pred_check
      _
    $region11: #{generator_forward.8} parent=1 // pred_check_branch
      %25 = sbr.rel (0) target = $region13
    $region12: #{generator_forward.8} parent=1 // pred_region
      _
    $region13: #{generator_forward.8} parent=1 // pred_fallthru
      _
    // Predicated region
    $region14: #{generator_forward.8} parent=1 // pred_check
      _
    $region15: #{generator_forward.8} parent=1 // pred_check_branch
      %27 = sbr.rel (0) target = $region17
    $region16: #{generator_forward.8} parent=1 // pred_region
      _
    $region17: #{generator_forward.8} parent=1 // pred_fallthru
      _
    // Predicated region
    $region18: #{generator_forward.8} parent=1 // pred_check
      _
    $region19: #{generator_forward.8} parent=1 // pred_check_branch
      %29 = sbr.rel (0) target = $region21
    $region20: #{generator_forward.8} parent=1 // pred_region
      %30 = dma.done [#allocation3], 2304
    $region21: #{generator_forward.8} parent=1 // pred_fallthru
      _
    %v32 = vld [vmem:[%s0] sm:$0xff]
    %v33 = vld [vmem:[%s0 + $0x8] sm:$0xf]
    %v34 = vld [vmem:[%s0 + $0xc] sm:$0xff]
    %v35 = vld [vmem:[%s0 + $0x14] sm:$0xf]
    %v36 = vld [vmem:[%s0 + $0x18] sm:$0xff]
    %v37 = vld [vmem:[%s0 + $0x20] sm:$0xf]
    %v38 = vld [vmem:[%s0 + $0x24] sm:$0xff]
    %v39 = vld [vmem:[%s0 + $0x2c] sm:$0xf]
    %v40 = vld [vmem:[%s0 + $0x30] sm:$0xff]
    %v41 = vld [vmem:[%s0 + $0x38] sm:$0xf]
    %v42 = vld [vmem:[%s0 + $0x3c] sm:$0xff]
    %v43 = vld [vmem:[%s0 + $0x44] sm:$0xf]
    %v44 = vld [vmem:[%s0 + $0x48] sm:$0xff]
    %v45 = vld [vmem:[%s0 + $0x50] sm:$0xf]
    %v46 = vld [vmem:[%s0 + $0x54] sm:$0xff]
    %v47 = vld [vmem:[%s0 + $0x5c] sm:$0xf]
    %v48 = vld [vmem:[%s0 + $0x60] sm:$0xff]
    %v49 = vld [vmem:[%s0 + $0x68] sm:$0xf]
    %v50 = vld [vmem:[%s0 + $0x6c] sm:$0xff]
    %v51 = vld [vmem:[%s0 + $0x74] sm:$0xf]
    %v52 = vld [vmem:[%s0 + $0x78] sm:$0xff]
    %v53 = vld [vmem:[%s0 + $0x80] sm:$0xf]
    %v54 = vld [vmem:[%s0 + $0x84] sm:$0xff]
    %v55 = vld [vmem:[%s0 + $0x8c] sm:$0xf]
    %v56 = vld [vmem:[%s0 + $0x90] sm:$0xff]
    %v57 = vld [vmem:[%s0 + $0x98] sm:$0xf]
    %v58 = vld [vmem:[%s0 + $0x9c] sm:$0xff]
    %v59 = vld [vmem:[%s0 + $0xa4] sm:$0xf]
    %v60 = vld [vmem:[%s0 + $0xa8] sm:$0xff]
    %v61 = vld [vmem:[%s0 + $0xb0] sm:$0xf]
    %v62 = vld [vmem:[%s0 + $0xb4] sm:$0xff]
    %v63 = vld [vmem:[%s0 + $0xbc] sm:$0xf]
    %v64 = vld [vmem:[%s0 + $0xc0] sm:$0xff]
    %v65 = vld [vmem:[%s0 + $0xc8] sm:$0xf]
    %v66 = vld [vmem:[%s0 + $0xcc] sm:$0xff]
    %v67 = vld [vmem:[%s0 + $0xd4] sm:$0xf]
    %v68 = vld [vmem:[%s0 + $0xd8] sm:$0xff]
    %v69 = vld [vmem:[%s0 + $0xe0] sm:$0xf]
    %v70 = vld [vmem:[%s0 + $0xe4] sm:$0xff]
    %v71 = vld [vmem:[%s0 + $0xec] sm:$0xf]
    %v72 = vld [vmem:[%s0 + $0xf0] sm:$0xff]
    %v73 = vld [vmem:[%s0 + $0xf8] sm:$0xf]
    %v74 = vld [vmem:[%s0 + $0xfc] sm:$0xff]
    %v75 = vld [vmem:[%s0 + $0x104] sm:$0xf]
    %v76 = vld [vmem:[%s0 + $0x108] sm:$0xff]
    %v77 = vld [vmem:[%s0 + $0x110] sm:$0xf]
    %v78 = vld [vmem:[%s0 + $0x114] sm:$0xff]
    %v79 = vld [vmem:[%s0 + $0x11c] sm:$0xf]
    %v80 = vld [vmem:[%s0 + $0x120] sm:$0xff]
    %v81 = vld [vmem:[%s0 + $0x128] sm:$0xf]
    %v82 = vld [vmem:[%s0 + $0x12c] sm:$0xff]
    %v83 = vld [vmem:[%s0 + $0x134] sm:$0xf]
    %v84 = vld [vmem:[%s0 + $0x138] sm:$0xff]
    %v85 = vld [vmem:[%s0 + $0x140] sm:$0xf]
    %v86 = vld [vmem:[%s0 + $0x144] sm:$0xff]
    %v87 = vld [vmem:[%s0 + $0x14c] sm:$0xf]
    %v88 = vld [vmem:[%s0 + $0x150] sm:$0xff]
    %v89 = vld [vmem:[%s0 + $0x158] sm:$0xf]
    %v90 = vld [vmem:[%s0 + $0x15c] sm:$0xff]
    %v91 = vld [vmem:[%s0 + $0x164] sm:$0xf]
    %v92 = vld [vmem:[%s0 + $0x168] sm:$0xff]
    %v93 = vld [vmem:[%s0 + $0x170] sm:$0xf]
    %v94 = vld [vmem:[%s0 + $0x174] sm:$0xff]
    %v95 = vld [vmem:[%s0 + $0x17c] sm:$0xf]
    %v96 = vld [vmem:[%s0 + $0x180] sm:$0xff]
    %v97 = vld [vmem:[%s0 + $0x188] sm:$0xf]
    %v98 = vld [vmem:[%s0 + $0x18c] sm:$0xff]
    %v99 = vld [vmem:[%s0 + $0x194] sm:$0xf]
    %v100 = vld [vmem:[%s0 + $0x198] sm:$0xff]
    %v101 = vld [vmem:[%s0 + $0x1a0] sm:$0xf]
    %v102 = vld [vmem:[%s0 + $0x1a4] sm:$0xff]
    %v103 = vld [vmem:[%s0 + $0x1ac] sm:$0xf]
    %v104 = vld [vmem:[%s0 + $0x1b0] sm:$0xff]
    %v105 = vld [vmem:[%s0 + $0x1b8] sm:$0xf]
    %v106 = vld [vmem:[%s0 + $0x1bc] sm:$0xff]
    %v107 = vld [vmem:[%s0 + $0x1c4] sm:$0xf]
    %v108 = vld [vmem:[%s0 + $0x1c8] sm:$0xff]
    %v109 = vld [vmem:[%s0 + $0x1d0] sm:$0xf]
    %v110 = vld [vmem:[%s0 + $0x1d4] sm:$0xff]
    %v111 = vld [vmem:[%s0 + $0x1dc] sm:$0xf]
    %v112 = vld [vmem:[%s0 + $0x1e0] sm:$0xff]
    %v113 = vld [vmem:[%s0 + $0x1e8] sm:$0xf]
    %v114 = vld [vmem:[%s0 + $0x1ec] sm:$0xff]
    %v115 = vld [vmem:[%s0 + $0x1f4] sm:$0xf]
    %v116 = vld [vmem:[%s0 + $0x1f8] sm:$0xff]
    %v117 = vld [vmem:[%s0 + $0x200] sm:$0xf]
    %v118 = vld [vmem:[%s0 + $0x204] sm:$0xff]
    %v119 = vld [vmem:[%s0 + $0x20c] sm:$0xf]
    %v120 = vld [vmem:[%s0 + $0x210] sm:$0xff]
    %v121 = vld [vmem:[%s0 + $0x218] sm:$0xf]
    %v122 = vld [vmem:[%s0 + $0x21c] sm:$0xff]
    %v123 = vld [vmem:[%s0 + $0x224] sm:$0xf]
    %v124 = vld [vmem:[%s0 + $0x228] sm:$0xff]
    %v125 = vld [vmem:[%s0 + $0x230] sm:$0xf]
    %v126 = vld [vmem:[%s0 + $0x234] sm:$0xff]
    %v127 = vld [vmem:[%s0 + $0x23c] sm:$0xf]
    %v128 = vld [vmem:[%s0 + $0x240] sm:$0xff]
    %v129 = vld [vmem:[%s0 + $0x248] sm:$0xf]
    %v130 = vld [vmem:[%s0 + $0x24c] sm:$0xff]
    %v131 = vld [vmem:[%s0 + $0x254] sm:$0xf]
    %v132 = vld [vmem:[%s0 + $0x258] sm:$0xff]
    %v133 = vld [vmem:[%s0 + $0x260] sm:$0xf]
    %v134 = vld [vmem:[%s0 + $0x264] sm:$0xff]
    %v135 = vld [vmem:[%s0 + $0x26c] sm:$0xf]
    %v136 = vld [vmem:[%s0 + $0x270] sm:$0xff]
    %v137 = vld [vmem:[%s0 + $0x278] sm:$0xf]
    %v138 = vld [vmem:[%s0 + $0x27c] sm:$0xff]
    %v139 = vld [vmem:[%s0 + $0x284] sm:$0xf]
    %v140 = vld [vmem:[%s0 + $0x288] sm:$0xff]
    %v141 = vld [vmem:[%s0 + $0x290] sm:$0xf]
    %v142 = vld [vmem:[%s0 + $0x294] sm:$0xff]
    %v143 = vld [vmem:[%s0 + $0x29c] sm:$0xf]
    %v144 = vld [vmem:[%s0 + $0x2a0] sm:$0xff]
    %v145 = vld [vmem:[%s0 + $0x2a8] sm:$0xf]
    %v146 = vld [vmem:[%s0 + $0x2ac] sm:$0xff]
    %v147 = vld [vmem:[%s0 + $0x2b4] sm:$0xf]
    %v148 = vld [vmem:[%s0 + $0x2b8] sm:$0xff]
    %v149 = vld [vmem:[%s0 + $0x2c0] sm:$0xf]
    %v150 = vld [vmem:[%s0 + $0x2c4] sm:$0xff]
    %v151 = vld [vmem:[%s0 + $0x2cc] sm:$0xf]
    %v152 = vld [vmem:[%s0 + $0x2d0] sm:$0xff]
    %v153 = vld [vmem:[%s0 + $0x2d8] sm:$0xf]
    %v154 = vld [vmem:[%s0 + $0x2dc] sm:$0xff]
    %v155 = vld [vmem:[%s0 + $0x2e4] sm:$0xf]
    %v156 = vld [vmem:[%s0 + $0x2e8] sm:$0xff]
    %v157 = vld [vmem:[%s0 + $0x2f0] sm:$0xf]
    %v158 = vld [vmem:[%s0 + $0x2f4] sm:$0xff]
    %v159 = vld [vmem:[%s0 + $0x2fc] sm:$0xf]
    %v160 = vld [vmem:[#allocation2] sm:$0xf]
    %v161 = vld [vmem:[#allocation2 + $0x4] sm:$0xf]
    %v162 = vld [vmem:[#allocation2 + $0x8] sm:$0xf]
    %v163 = vld [vmem:[#allocation2 + $0xc] sm:$0xf]
    %v164 = vld [vmem:[#allocation2 + $0x10] sm:$0xf]
    %v165 = vld [vmem:[#allocation2 + $0x14] sm:$0xf]
    %v166 = vld [vmem:[#allocation2 + $0x18] sm:$0xf]
    %v167 = vld [vmem:[#allocation2 + $0x1c] sm:$0xf]
    %v168 = vld [vmem:[#allocation2 + $0x20] sm:$0xf]
    %v169 = vld [vmem:[#allocation2 + $0x24] sm:$0xf]
    %v170 = vld [vmem:[#allocation2 + $0x28] sm:$0xf]
    %v171 = vld [vmem:[#allocation2 + $0x2c] sm:$0xf]
    %v172 = vld [vmem:[#allocation2 + $0x30] sm:$0xf]
    %v173 = vld [vmem:[#allocation2 + $0x34] sm:$0xf]
    %v174 = vld [vmem:[#allocation2 + $0x38] sm:$0xf]
    %v175 = vld [vmem:[#allocation2 + $0x3c] sm:$0xf]
    %v176 = vld [vmem:[#allocation2 + $0x40] sm:$0xf]
    %v177 = vld [vmem:[#allocation2 + $0x44] sm:$0xf]
    %v178 = vld [vmem:[#allocation2 + $0x48] sm:$0xf]
    %v179 = vld [vmem:[#allocation2 + $0x4c] sm:$0xf]
    %v180 = vld [vmem:[#allocation2 + $0x50] sm:$0xf]
    %v181 = vld [vmem:[#allocation2 + $0x54] sm:$0xf]
    %v182 = vld [vmem:[#allocation2 + $0x58] sm:$0xf]
    %v183 = vld [vmem:[#allocation2 + $0x5c] sm:$0xf]
    %v184 = vld [vmem:[#allocation2 + $0x60] sm:$0xf]
    %v185 = vld [vmem:[#allocation2 + $0x64] sm:$0xf]
    %v186 = vld [vmem:[#allocation2 + $0x68] sm:$0xf]
    %v187 = vld [vmem:[#allocation2 + $0x6c] sm:$0xf]
    %v188 = vld [vmem:[#allocation2 + $0x70] sm:$0xf]
    %v189 = vld [vmem:[#allocation2 + $0x74] sm:$0xf]
    %v190 = vld [vmem:[#allocation2 + $0x78] sm:$0xf]
    %v191 = vld [vmem:[#allocation2 + $0x7c] sm:$0xf]
    %v192 = vld [vmem:[#allocation2 + $0x80] sm:$0xf]
    %v193 = vld [vmem:[#allocation2 + $0x84] sm:$0xf]
    %v194 = vld [vmem:[#allocation2 + $0x88] sm:$0xf]
    %v195 = vld [vmem:[#allocation2 + $0x8c] sm:$0xf]
    %v324 = vunpack.c.l.b16 %v32
    %v325 = vunpack.c.h.b16 %v32
    %v326 = vunpack.c.l.b16 %v33
    %v327 = vunpack.c.l.b16 %v34
    %v328 = vunpack.c.h.b16 %v34
    %v329 = vunpack.c.l.b16 %v35
    %v330 = vunpack.c.l.b16 %v36
    %v331 = vunpack.c.h.b16 %v36
    %v332 = vunpack.c.l.b16 %v37
    %v333 = vunpack.c.l.b16 %v38
    %v334 = vunpack.c.h.b16 %v38
    %v335 = vunpack.c.l.b16 %v39
    %v336 = vunpack.c.l.b16 %v40
    %v337 = vunpack.c.h.b16 %v40
    %v338 = vunpack.c.l.b16 %v41
    %v339 = vunpack.c.l.b16 %v42
    %v340 = vunpack.c.h.b16 %v42
    %v341 = vunpack.c.l.b16 %v43
    %v342 = vunpack.c.l.b16 %v44
    %v343 = vunpack.c.h.b16 %v44
    %v344 = vunpack.c.l.b16 %v45
    %v345 = vunpack.c.l.b16 %v46
    %v346 = vunpack.c.h.b16 %v46
    %v347 = vunpack.c.l.b16 %v47
    %v348 = vunpack.c.l.b16 %v48
    %v349 = vunpack.c.h.b16 %v48
    %v350 = vunpack.c.l.b16 %v49
    %v351 = vunpack.c.l.b16 %v50
    %v352 = vunpack.c.h.b16 %v50
    %v353 = vunpack.c.l.b16 %v51
    %v354 = vunpack.c.l.b16 %v52
    %v355 = vunpack.c.h.b16 %v52
    %v356 = vunpack.c.l.b16 %v53
    %v357 = vunpack.c.l.b16 %v54
    %v358 = vunpack.c.h.b16 %v54
    %v359 = vunpack.c.l.b16 %v55
    %v360 = vunpack.c.l.b16 %v56
    %v361 = vunpack.c.h.b16 %v56
    %v362 = vunpack.c.l.b16 %v57
    %v363 = vunpack.c.l.b16 %v58
    %v364 = vunpack.c.h.b16 %v58
    %v365 = vunpack.c.l.b16 %v59
    %v366 = vunpack.c.l.b16 %v60
    %v367 = vunpack.c.h.b16 %v60
    %v368 = vunpack.c.l.b16 %v61
    %v369 = vunpack.c.l.b16 %v62
    %v370 = vunpack.c.h.b16 %v62
    %v371 = vunpack.c.l.b16 %v63
    %v372 = vunpack.c.l.b16 %v64
    %v373 = vunpack.c.h.b16 %v64
    %v374 = vunpack.c.l.b16 %v65
    %v375 = vunpack.c.l.b16 %v66
    %v376 = vunpack.c.h.b16 %v66
    %v377 = vunpack.c.l.b16 %v67
    %v378 = vunpack.c.l.b16 %v68
    %v379 = vunpack.c.h.b16 %v68
    %v380 = vunpack.c.l.b16 %v69
    %v381 = vunpack.c.l.b16 %v70
    %v382 = vunpack.c.h.b16 %v70
    %v383 = vunpack.c.l.b16 %v71
    %v384 = vunpack.c.l.b16 %v72
    %v385 = vunpack.c.h.b16 %v72
    %v386 = vunpack.c.l.b16 %v73
    %v387 = vunpack.c.l.b16 %v74
    %v388 = vunpack.c.h.b16 %v74
    %v389 = vunpack.c.l.b16 %v75
    %v390 = vunpack.c.l.b16 %v76
    %v391 = vunpack.c.h.b16 %v76
    %v392 = vunpack.c.l.b16 %v77
    %v393 = vunpack.c.l.b16 %v78
    %v394 = vunpack.c.h.b16 %v78
    %v395 = vunpack.c.l.b16 %v79
    %v396 = vunpack.c.l.b16 %v80
    %v397 = vunpack.c.h.b16 %v80
    %v398 = vunpack.c.l.b16 %v81
    %v399 = vunpack.c.l.b16 %v82
    %v400 = vunpack.c.h.b16 %v82
    %v401 = vunpack.c.l.b16 %v83
    %v402 = vunpack.c.l.b16 %v84
    %v403 = vunpack.c.h.b16 %v84
    %v404 = vunpack.c.l.b16 %v85
    %v405 = vunpack.c.l.b16 %v86
    %v406 = vunpack.c.h.b16 %v86
    %v407 = vunpack.c.l.b16 %v87
    %v408 = vunpack.c.l.b16 %v88
    %v409 = vunpack.c.h.b16 %v88
    %v410 = vunpack.c.l.b16 %v89
    %v411 = vunpack.c.l.b16 %v90
    %v412 = vunpack.c.h.b16 %v90
    %v413 = vunpack.c.l.b16 %v91
    %v414 = vunpack.c.l.b16 %v92
    %v415 = vunpack.c.h.b16 %v92
    %v416 = vunpack.c.l.b16 %v93
    %v417 = vunpack.c.l.b16 %v94
    %v418 = vunpack.c.h.b16 %v94
    %v419 = vunpack.c.l.b16 %v95
    %v420 = vunpack.c.l.b16 %v96
    %v421 = vunpack.c.h.b16 %v96
    %v422 = vunpack.c.l.b16 %v97
    %v423 = vunpack.c.l.b16 %v98
    %v424 = vunpack.c.h.b16 %v98
    %v425 = vunpack.c.l.b16 %v99
    %v426 = vunpack.c.l.b16 %v100
    %v427 = vunpack.c.h.b16 %v100
    %v428 = vunpack.c.l.b16 %v101
    %v429 = vunpack.c.l.b16 %v102
    %v430 = vunpack.c.h.b16 %v102
    %v431 = vunpack.c.l.b16 %v103
    %v432 = vunpack.c.l.b16 %v104
    %v433 = vunpack.c.h.b16 %v104
    %v434 = vunpack.c.l.b16 %v105
    %v435 = vunpack.c.l.b16 %v106
    %v436 = vunpack.c.h.b16 %v106
    %v437 = vunpack.c.l.b16 %v107
    %v438 = vunpack.c.l.b16 %v108
    %v439 = vunpack.c.h.b16 %v108
    %v440 = vunpack.c.l.b16 %v109
    %v441 = vunpack.c.l.b16 %v110
    %v442 = vunpack.c.h.b16 %v110
    %v443 = vunpack.c.l.b16 %v111
    %v444 = vunpack.c.l.b16 %v112
    %v445 = vunpack.c.h.b16 %v112
    %v446 = vunpack.c.l.b16 %v113
    %v447 = vunpack.c.l.b16 %v114
    %v448 = vunpack.c.h.b16 %v114
    %v449 = vunpack.c.l.b16 %v115
    %v450 = vunpack.c.l.b16 %v116
    %v451 = vunpack.c.h.b16 %v116
    %v452 = vunpack.c.l.b16 %v117
    %v453 = vunpack.c.l.b16 %v118
    %v454 = vunpack.c.h.b16 %v118
    %v455 = vunpack.c.l.b16 %v119
    %v456 = vunpack.c.l.b16 %v120
    %v457 = vunpack.c.h.b16 %v120
    %v458 = vunpack.c.l.b16 %v121
    %v459 = vunpack.c.l.b16 %v122
    %v460 = vunpack.c.h.b16 %v122
    %v461 = vunpack.c.l.b16 %v123
    %v462 = vunpack.c.l.b16 %v124
    %v463 = vunpack.c.h.b16 %v124
    %v464 = vunpack.c.l.b16 %v125
    %v465 = vunpack.c.l.b16 %v126
    %v466 = vunpack.c.h.b16 %v126
    %v467 = vunpack.c.l.b16 %v127
    %v468 = vunpack.c.l.b16 %v128
    %v469 = vunpack.c.h.b16 %v128
    %v470 = vunpack.c.l.b16 %v129
    %v471 = vunpack.c.l.b16 %v130
    %v472 = vunpack.c.h.b16 %v130
    %v473 = vunpack.c.l.b16 %v131
    %v474 = vunpack.c.l.b16 %v132
    %v475 = vunpack.c.h.b16 %v132
    %v476 = vunpack.c.l.b16 %v133
    %v477 = vunpack.c.l.b16 %v134
    %v478 = vunpack.c.h.b16 %v134
    %v479 = vunpack.c.l.b16 %v135
    %v480 = vunpack.c.l.b16 %v136
    %v481 = vunpack.c.h.b16 %v136
    %v482 = vunpack.c.l.b16 %v137
    %v483 = vunpack.c.l.b16 %v138
    %v484 = vunpack.c.h.b16 %v138
    %v485 = vunpack.c.l.b16 %v139
    %v486 = vunpack.c.l.b16 %v140
    %v487 = vunpack.c.h.b16 %v140
    %v488 = vunpack.c.l.b16 %v141
    %v489 = vunpack.c.l.b16 %v142
    %v490 = vunpack.c.h.b16 %v142
    %v491 = vunpack.c.l.b16 %v143
    %v492 = vunpack.c.l.b16 %v144
    %v493 = vunpack.c.h.b16 %v144
    %v494 = vunpack.c.l.b16 %v145
    %v495 = vunpack.c.l.b16 %v146
    %v496 = vunpack.c.h.b16 %v146
    %v497 = vunpack.c.l.b16 %v147
    %v498 = vunpack.c.l.b16 %v148
    %v499 = vunpack.c.h.b16 %v148
    %v500 = vunpack.c.l.b16 %v149
    %v501 = vunpack.c.l.b16 %v150
    %v502 = vunpack.c.h.b16 %v150
    %v503 = vunpack.c.l.b16 %v151
    %v504 = vunpack.c.l.b16 %v152
    %v505 = vunpack.c.h.b16 %v152
    %v506 = vunpack.c.l.b16 %v153
    %v507 = vunpack.c.l.b16 %v154
    %v508 = vunpack.c.h.b16 %v154
    %v509 = vunpack.c.l.b16 %v155
    %v510 = vunpack.c.l.b16 %v156
    %v511 = vunpack.c.h.b16 %v156
    %v512 = vunpack.c.l.b16 %v157
    %v513 = vunpack.c.l.b16 %v158
    %v514 = vunpack.c.h.b16 %v158
    %v515 = vunpack.c.l.b16 %v159
    %v516 = vpack.c.b16 %v327, %v324
    %v517 = vpack.c.b16 %v328, %v325
    %v518 = vpack.c.b16 %v329, %v326
    %v519 = vpack.c.b16 %v333, %v330
    %v520 = vpack.c.b16 %v334, %v331
    %v521 = vpack.c.b16 %v335, %v332
    %v522 = vpack.c.b16 %v339, %v336
    %v523 = vpack.c.b16 %v340, %v337
    %v524 = vpack.c.b16 %v341, %v338
    %v525 = vpack.c.b16 %v345, %v342
    %v526 = vpack.c.b16 %v346, %v343
    %v527 = vpack.c.b16 %v347, %v344
    %v528 = vpack.c.b16 %v351, %v348
    %v529 = vpack.c.b16 %v352, %v349
    %v530 = vpack.c.b16 %v353, %v350
    %v531 = vpack.c.b16 %v357, %v354
    %v532 = vpack.c.b16 %v358, %v355
    %v533 = vpack.c.b16 %v359, %v356
    %v534 = vpack.c.b16 %v363, %v360
    %v535 = vpack.c.b16 %v364, %v361
    %v536 = vpack.c.b16 %v365, %v362
    %v537 = vpack.c.b16 %v369, %v366
    %v538 = vpack.c.b16 %v370, %v367
    %v539 = vpack.c.b16 %v371, %v368
    %v540 = vpack.c.b16 %v375, %v372
    %v541 = vpack.c.b16 %v376, %v373
    %v542 = vpack.c.b16 %v377, %v374
    %v543 = vpack.c.b16 %v381, %v378
    %v544 = vpack.c.b16 %v382, %v379
    %v545 = vpack.c.b16 %v383, %v380
    %v546 = vpack.c.b16 %v387, %v384
    %v547 = vpack.c.b16 %v388, %v385
    %v548 = vpack.c.b16 %v389, %v386
    %v549 = vpack.c.b16 %v393, %v390
    %v550 = vpack.c.b16 %v394, %v391
    %v551 = vpack.c.b16 %v395, %v392
    %v552 = vpack.c.b16 %v399, %v396
    %v553 = vpack.c.b16 %v400, %v397
    %v554 = vpack.c.b16 %v401, %v398
    %v555 = vpack.c.b16 %v405, %v402
    %v556 = vpack.c.b16 %v406, %v403
    %v557 = vpack.c.b16 %v407, %v404
    %v558 = vpack.c.b16 %v411, %v408
    %v559 = vpack.c.b16 %v412, %v409
    %v560 = vpack.c.b16 %v413, %v410
    %v561 = vpack.c.b16 %v417, %v414
    %v562 = vpack.c.b16 %v418, %v415
    %v563 = vpack.c.b16 %v419, %v416
    %v564 = vpack.c.b16 %v423, %v420
    %v565 = vpack.c.b16 %v424, %v421
    %v566 = vpack.c.b16 %v425, %v422
    %v567 = vpack.c.b16 %v429, %v426
    %v568 = vpack.c.b16 %v430, %v427
    %v569 = vpack.c.b16 %v431, %v428
    %v570 = vpack.c.b16 %v435, %v432
    %v571 = vpack.c.b16 %v436, %v433
    %v572 = vpack.c.b16 %v437, %v434
    %v573 = vpack.c.b16 %v441, %v438
    %v574 = vpack.c.b16 %v442, %v439
    %v575 = vpack.c.b16 %v443, %v440
    %v576 = vpack.c.b16 %v447, %v444
    %v577 = vpack.c.b16 %v448, %v445
    %v578 = vpack.c.b16 %v449, %v446
    %v579 = vpack.c.b16 %v453, %v450
    %v580 = vpack.c.b16 %v454, %v451
    %v581 = vpack.c.b16 %v455, %v452
    %v582 = vpack.c.b16 %v459, %v456
    %v583 = vpack.c.b16 %v460, %v457
    %v584 = vpack.c.b16 %v461, %v458
    %v585 = vpack.c.b16 %v465, %v462
    %v586 = vpack.c.b16 %v466, %v463
    %v587 = vpack.c.b16 %v467, %v464
    %v588 = vpack.c.b16 %v471, %v468
    %v589 = vpack.c.b16 %v472, %v469
    %v590 = vpack.c.b16 %v473, %v470
    %v591 = vpack.c.b16 %v477, %v474
    %v592 = vpack.c.b16 %v478, %v475
    %v593 = vpack.c.b16 %v479, %v476
    %v594 = vpack.c.b16 %v483, %v480
    %v595 = vpack.c.b16 %v484, %v481
    %v596 = vpack.c.b16 %v485, %v482
    %v597 = vpack.c.b16 %v489, %v486
    %v598 = vpack.c.b16 %v490, %v487
    %v599 = vpack.c.b16 %v491, %v488
    %v600 = vpack.c.b16 %v495, %v492
    %v601 = vpack.c.b16 %v496, %v493
    %v602 = vpack.c.b16 %v497, %v494
    %v603 = vpack.c.b16 %v501, %v498
    %v604 = vpack.c.b16 %v502, %v499
    %v605 = vpack.c.b16 %v503, %v500
    %v606 = vpack.c.b16 %v507, %v504
    %v607 = vpack.c.b16 %v508, %v505
    %v608 = vpack.c.b16 %v509, %v506
    %v609 = vpack.c.b16 %v513, %v510
    %v610 = vpack.c.b16 %v514, %v511
    %v611 = vpack.c.b16 %v515, %v512
    %v712 = vunpack.c.l.b16 %v160
    %v713 = vunpack.c.l.b16 %v161
    %v714 = vunpack.c.l.b16 %v162
    %v715 = vunpack.c.l.b16 %v163
    %v716 = vunpack.c.l.b16 %v164
    %v717 = vunpack.c.l.b16 %v165
    %v718 = vunpack.c.l.b16 %v166
    %v719 = vunpack.c.l.b16 %v167
    %v720 = vunpack.c.l.b16 %v168
    %v721 = vunpack.c.l.b16 %v169
    %v722 = vunpack.c.l.b16 %v170
    %v723 = vunpack.c.l.b16 %v171
    %v724 = vunpack.c.l.b16 %v172
    %v725 = vunpack.c.l.b16 %v173
    %v726 = vunpack.c.l.b16 %v174
    %v727 = vunpack.c.l.b16 %v175
    %v728 = vunpack.c.l.b16 %v176
    %v729 = vunpack.c.l.b16 %v177
    %v730 = vunpack.c.l.b16 %v178
    %v731 = vunpack.c.l.b16 %v179
    %v732 = vunpack.c.l.b16 %v180
    %v733 = vunpack.c.l.b16 %v181
    %v734 = vunpack.c.l.b16 %v182
    %v735 = vunpack.c.l.b16 %v183
    %v736 = vunpack.c.l.b16 %v184
    %v737 = vunpack.c.l.b16 %v185
    %v738 = vunpack.c.l.b16 %v186
    %v739 = vunpack.c.l.b16 %v187
    %v740 = vunpack.c.l.b16 %v188
    %v741 = vunpack.c.l.b16 %v189
    %v742 = vunpack.c.l.b16 %v190
    %v743 = vunpack.c.l.b16 %v191
    %v744 = vunpack.c.l.b16 %v192
    %v745 = vunpack.c.l.b16 %v193
    %v746 = vunpack.c.l.b16 %v194
    %v747 = vunpack.c.l.b16 %v195
    %v748 = vpack.c.b16 %v713, %v712
    %v749 = vpack.c.b16 %v715, %v714
    %v750 = vpack.c.b16 %v717, %v716
    %v751 = vpack.c.b16 %v719, %v718
    %v752 = vpack.c.b16 %v721, %v720
    %v753 = vpack.c.b16 %v723, %v722
    %v754 = vpack.c.b16 %v725, %v724
    %v755 = vpack.c.b16 %v727, %v726
    %v756 = vpack.c.b16 %v729, %v728
    %v757 = vpack.c.b16 %v731, %v730
    %v758 = vpack.c.b16 %v733, %v732
    %v759 = vpack.c.b16 %v735, %v734
    %v760 = vpack.c.b16 %v737, %v736
    %v761 = vpack.c.b16 %v739, %v738
    %v762 = vpack.c.b16 %v741, %v740
    %v763 = vpack.c.b16 %v743, %v742
    %v764 = vpack.c.b16 %v745, %v744
    %v765 = vpack.c.b16 %v747, %v746
    %vm784 = vcmask 261120
    %v786 = vsel %vm784, %v518, 0
    %v789 = vsel %vm784, %v521, 0
    %v792 = vsel %vm784, %v524, 0
    %v795 = vsel %vm784, %v527, 0
    %v798 = vsel %vm784, %v530, 0
    %v801 = vsel %vm784, %v533, 0
    %v804 = vsel %vm784, %v536, 0
    %v807 = vsel %vm784, %v539, 0
    %v810 = vsel %vm784, %v542, 0
    %v813 = vsel %vm784, %v545, 0
    %v816 = vsel %vm784, %v548, 0
    %v819 = vsel %vm784, %v551, 0
    %v822 = vsel %vm784, %v554, 0
    %v825 = vsel %vm784, %v557, 0
    %v828 = vsel %vm784, %v560, 0
    %v831 = vsel %vm784, %v563, 0
    %v834 = vsel %vm784, %v566, 0
    %v837 = vsel %vm784, %v569, 0
    %v840 = vsel %vm784, %v572, 0
    %v843 = vsel %vm784, %v575, 0
    %v846 = vsel %vm784, %v578, 0
    %v849 = vsel %vm784, %v581, 0
    %v852 = vsel %vm784, %v584, 0
    %v855 = vsel %vm784, %v587, 0
    %v858 = vsel %vm784, %v590, 0
    %v861 = vsel %vm784, %v593, 0
    %v864 = vsel %vm784, %v596, 0
    %v867 = vsel %vm784, %v599, 0
    %v870 = vsel %vm784, %v602, 0
    %v873 = vsel %vm784, %v605, 0
    %v876 = vsel %vm784, %v608, 0
    %v879 = vsel %vm784, %v611, 0
    %881 = vmatprep.subr.bf16.mxu0 0
    %882 = vmatpush1.bf16.msra.mxu0 %v748
    %883 = vmatprep.subr.bf16.mxu0 0
    %884 = vmatpush1.bf16.msra.mxu0 %v749
    %885 = vmatprep.subr.bf16.mxu0 0
    %886 = vmatpush1.bf16.msra.mxu0 %v750
    %887 = vmatprep.subr.bf16.mxu0 0
    %888 = vmatpush1.bf16.msra.mxu0 %v751
    %889 = vmatprep.subr.bf16.mxu0 0
    %890 = vmatpush1.bf16.msra.mxu0 %v752
    %891 = vmatprep.subr.bf16.mxu0 0
    %892 = vmatpush1.bf16.msra.mxu0 %v753
    %893 = vmatprep.subr.bf16.mxu0 0
    %894 = vmatpush1.bf16.msra.mxu0 %v754
    %895 = vmatprep.subr.bf16.mxu0 0
    %896 = vmatpush1.bf16.msra.mxu0 %v755
    %897 = vmatprep.subr.bf16.mxu0 0
    %898 = vmatpush1.bf16.msra.mxu0 %v756
    %899 = vmatprep.subr.bf16.mxu0 0
    %900 = vmatpush1.bf16.msra.mxu0 %v757
    %901 = vmatprep.subr.bf16.mxu0 0
    %902 = vmatpush1.bf16.msra.mxu0 %v758
    %903 = vmatprep.subr.bf16.mxu0 0
    %904 = vmatpush1.bf16.msra.mxu0 %v759
    %905 = vmatprep.subr.bf16.mxu0 0
    %906 = vmatpush1.bf16.msra.mxu0 %v760
    %907 = vmatprep.subr.bf16.mxu0 0
    %908 = vmatpush1.bf16.msra.mxu0 %v761
    %909 = vmatprep.subr.bf16.mxu0 0
    %910 = vmatpush1.bf16.msra.mxu0 %v762
    %911 = vmatprep.subr.bf16.mxu0 0
    %912 = vmatpush1.bf16.msra.mxu0 %v763
    %913 = vmatprep.mubr.bf16.mxu0 %v517
    %914 = vmatmul.mubr.bf16.gmra.mrb[0].mxu0 %v516
    %v915 = vpop.f32.mrb[0].mxu0
    %v916 = vadd.f32 0.0, %v915
    %v917 = vpop.f32.mrb[0].mxu0
    %v918 = vpop.f32.mrb[0].mxu0
    %v919 = vadd.f32 0.0, %v918
    %v920 = vpop.f32.mrb[0].mxu0
    %921 = vmatprep.mubr.bf16.mxu0 %v520
    %922 = vmatmul.mubr.bf16.gmra.mrb[0].mxu0 %v519
    %v923 = vpop.f32.mrb[0].mxu0
    %v924 = vadd.f32 0.0, %v923
    %v925 = vpop.f32.mrb[0].mxu0
    %v926 = vpop.f32.mrb[0].mxu0
    %v927 = vadd.f32 0.0, %v926
    %v928 = vpop.f32.mrb[0].mxu0
    %929 = vmatprep.mubr.bf16.mxu0 %v523
    %930 = vmatmul.mubr.bf16.gmra.mrb[0].mxu0 %v522
    %v931 = vpop.f32.mrb[0].mxu0
    %v932 = vadd.f32 0.0, %v931
    %v933 = vpop.f32.mrb[0].mxu0
    %v934 = vpop.f32.mrb[0].mxu0
    %v935 = vadd.f32 0.0, %v934
    %v936 = vpop.f32.mrb[0].mxu0
    %937 = vmatprep.mubr.bf16.mxu0 %v526
    %938 = vmatmul.mubr.bf16.gmra.mrb[0].mxu0 %v525
    %v939 = vpop.f32.mrb[0].mxu0
    %v940 = vadd.f32 0.0, %v939
    %v941 = vpop.f32.mrb[0].mxu0
    %v942 = vpop.f32.mrb[0].mxu0
    %v943 = vadd.f32 0.0, %v942
    %v944 = vpop.f32.mrb[0].mxu0
    %945 = vmatprep.mubr.bf16.mxu0 %v529
    %946 = vmatmul.mubr.bf16.gmra.mrb[0].mxu0 %v528
    %v947 = vpop.f32.mrb[0].mxu0
    %v948 = vadd.f32 0.0, %v947
    %v949 = vpop.f32.mrb[0].mxu0
    %v950 = vpop.f32.mrb[0].mxu0
    %v951 = vadd.f32 0.0, %v950
    %v952 = vpop.f32.mrb[0].mxu0
    %953 = vmatprep.mubr.bf16.mxu0 %v532
    %954 = vmatmul.mubr.bf16.gmra.mrb[0].mxu0 %v531
    %v955 = vpop.f32.mrb[0].mxu0
    %v956 = vadd.f32 0.0, %v955
    %v957 = vpop.f32.mrb[0].mxu0
    %v958 = vpop.f32.mrb[0].mxu0
    %v959 = vadd.f32 0.0, %v958
    %v960 = vpop.f32.mrb[0].mxu0
    %961 = vmatprep.mubr.bf16.mxu0 %v535
    %962 = vmatmul.mubr.bf16.gmra.mrb[0].mxu0 %v534
    %v963 = vpop.f32.mrb[0].mxu0
    %v964 = vadd.f32 0.0, %v963
    %v965 = vpop.f32.mrb[0].mxu0
    %v966 = vpop.f32.mrb[0].mxu0
    %v967 = vadd.f32 0.0, %v966
    %v968 = vpop.f32.mrb[0].mxu0
    %969 = vmatprep.mubr.bf16.mxu0 %v538
    %970 = vmatmul.mubr.bf16.gmra.mrb[0].mxu0 %v537
    %v971 = vpop.f32.mrb[0].mxu0
    %v972 = vadd.f32 0.0, %v971
    %v973 = vpop.f32.mrb[0].mxu0
    %v974 = vpop.f32.mrb[0].mxu0
    %v975 = vadd.f32 0.0, %v974
    %v976 = vpop.f32.mrb[0].mxu0
    %977 = vmatprep.mubr.bf16.mxu0 %v541
    %978 = vmatmul.mubr.bf16.gmra.mrb[0].mxu0 %v540
    %v979 = vpop.f32.mrb[0].mxu0
    %v980 = vadd.f32 0.0, %v979
    %v981 = vpop.f32.mrb[0].mxu0
    %v982 = vpop.f32.mrb[0].mxu0
    %v983 = vadd.f32 0.0, %v982
    %v984 = vpop.f32.mrb[0].mxu0
    %985 = vmatprep.mubr.bf16.mxu0 %v544
    %986 = vmatmul.mubr.bf16.gmra.mrb[0].mxu0 %v543
    %v987 = vpop.f32.mrb[0].mxu0
    %v988 = vadd.f32 0.0, %v987
    %v989 = vpop.f32.mrb[0].mxu0
    %v990 = vpop.f32.mrb[0].mxu0
    %v991 = vadd.f32 0.0, %v990
    %v992 = vpop.f32.mrb[0].mxu0
    %993 = vmatprep.mubr.bf16.mxu0 %v547
    %994 = vmatmul.mubr.bf16.gmra.mrb[0].mxu0 %v546
    %v995 = vpop.f32.mrb[0].mxu0
    %v996 = vadd.f32 0.0, %v995
    %v997 = vpop.f32.mrb[0].mxu0
    %v998 = vpop.f32.mrb[0].mxu0
    %v999 = vadd.f32 0.0, %v998
    %v1000 = vpop.f32.mrb[0].mxu0
    %1001 = vmatprep.mubr.bf16.mxu0 %v550
    %1002 = vmatmul.mubr.bf16.gmra.mrb[0].mxu0 %v549
    %v1003 = vpop.f32.mrb[0].mxu0
    %v1004 = vadd.f32 0.0, %v1003
    %v1005 = vpop.f32.mrb[0].mxu0
    %v1006 = vpop.f32.mrb[0].mxu0
    %v1007 = vadd.f32 0.0, %v1006
    %v1008 = vpop.f32.mrb[0].mxu0
    %1009 = vmatprep.mubr.bf16.mxu0 %v553
    %1010 = vmatmul.mubr.bf16.gmra.mrb[0].mxu0 %v552
    %v1011 = vpop.f32.mrb[0].mxu0
    %v1012 = vadd.f32 0.0, %v1011
    %v1013 = vpop.f32.mrb[0].mxu0
    %v1014 = vpop.f32.mrb[0].mxu0
    %v1015 = vadd.f32 0.0, %v1014
    %v1016 = vpop.f32.mrb[0].mxu0
    %1017 = vmatprep.mubr.bf16.mxu0 %v556
    %1018 = vmatmul.mubr.bf16.gmra.mrb[0].mxu0 %v555
    %v1019 = vpop.f32.mrb[0].mxu0
    %v1020 = vadd.f32 0.0, %v1019
    %v1021 = vpop.f32.mrb[0].mxu0
    %v1022 = vpop.f32.mrb[0].mxu0
    %v1023 = vadd.f32 0.0, %v1022
    %v1024 = vpop.f32.mrb[0].mxu0
    %1025 = vmatprep.mubr.bf16.mxu0 %v559
    %1026 = vmatmul.mubr.bf16.gmra.mrb[0].mxu0 %v558
    %v1027 = vpop.f32.mrb[0].mxu0
    %v1028 = vadd.f32 0.0, %v1027
    %v1029 = vpop.f32.mrb[0].mxu0
    %v1030 = vpop.f32.mrb[0].mxu0
    %v1031 = vadd.f32 0.0, %v1030
    %v1032 = vpop.f32.mrb[0].mxu0
    %1033 = vmatprep.mubr.bf16.mxu0 %v562
    %1034 = vmatmul.mubr.bf16.gmra.mrb[0].mxu0 %v561
    %v1035 = vpop.f32.mrb[0].mxu0
    %v1036 = vadd.f32 0.0, %v1035
    %v1037 = vpop.f32.mrb[0].mxu0
    %v1038 = vpop.f32.mrb[0].mxu0
    %v1039 = vadd.f32 0.0, %v1038
    %v1040 = vpop.f32.mrb[0].mxu0
    %1041 = vmatprep.mubr.bf16.mxu0 %v565
    %1042 = vmatmul.mubr.bf16.gmra.mrb[0].mxu0 %v564
    %v1043 = vpop.f32.mrb[0].mxu0
    %v1044 = vadd.f32 0.0, %v1043
    %v1045 = vpop.f32.mrb[0].mxu0
    %v1046 = vpop.f32.mrb[0].mxu0
    %v1047 = vadd.f32 0.0, %v1046
    %v1048 = vpop.f32.mrb[0].mxu0
    %1049 = vmatprep.mubr.bf16.mxu0 %v568
    %1050 = vmatmul.mubr.bf16.gmra.mrb[0].mxu0 %v567
    %v1051 = vpop.f32.mrb[0].mxu0
    %v1052 = vadd.f32 0.0, %v1051
    %v1053 = vpop.f32.mrb[0].mxu0
    %v1054 = vpop.f32.mrb[0].mxu0
    %v1055 = vadd.f32 0.0, %v1054
    %v1056 = vpop.f32.mrb[0].mxu0
    %1057 = vmatprep.mubr.bf16.mxu0 %v571
    %1058 = vmatmul.mubr.bf16.gmra.mrb[0].mxu0 %v570
    %v1059 = vpop.f32.mrb[0].mxu0
    %v1060 = vadd.f32 0.0, %v1059
    %v1061 = vpop.f32.mrb[0].mxu0
    %v1062 = vpop.f32.mrb[0].mxu0
    %v1063 = vadd.f32 0.0, %v1062
    %v1064 = vpop.f32.mrb[0].mxu0
    %1065 = vmatprep.mubr.bf16.mxu0 %v574
    %1066 = vmatmul.mubr.bf16.gmra.mrb[0].mxu0 %v573
    %v1067 = vpop.f32.mrb[0].mxu0
    %v1068 = vadd.f32 0.0, %v1067
    %v1069 = vpop.f32.mrb[0].mxu0
    %v1070 = vpop.f32.mrb[0].mxu0
    %v1071 = vadd.f32 0.0, %v1070
    %v1072 = vpop.f32.mrb[0].mxu0
    %1073 = vmatprep.mubr.bf16.mxu0 %v577
    %1074 = vmatmul.mubr.bf16.gmra.mrb[0].mxu0 %v576
    %v1075 = vpop.f32.mrb[0].mxu0
    %v1076 = vadd.f32 0.0, %v1075
    %v1077 = vpop.f32.mrb[0].mxu0
    %v1078 = vpop.f32.mrb[0].mxu0
    %v1079 = vadd.f32 0.0, %v1078
    %v1080 = vpop.f32.mrb[0].mxu0
    %1081 = vmatprep.mubr.bf16.mxu0 %v580
    %1082 = vmatmul.mubr.bf16.gmra.mrb[0].mxu0 %v579
    %v1083 = vpop.f32.mrb[0].mxu0
    %v1084 = vadd.f32 0.0, %v1083
    %v1085 = vpop.f32.mrb[0].mxu0
    %v1086 = vpop.f32.mrb[0].mxu0
    %v1087 = vadd.f32 0.0, %v1086
    %v1088 = vpop.f32.mrb[0].mxu0
    %1089 = vmatprep.mubr.bf16.mxu0 %v583
    %1090 = vmatmul.mubr.bf16.gmra.mrb[0].mxu0 %v582
    %v1091 = vpop.f32.mrb[0].mxu0
    %v1092 = vadd.f32 0.0, %v1091
    %v1093 = vpop.f32.mrb[0].mxu0
    %v1094 = vpop.f32.mrb[0].mxu0
    %v1095 = vadd.f32 0.0, %v1094
    %v1096 = vpop.f32.mrb[0].mxu0
    %1097 = vmatprep.mubr.bf16.mxu0 %v586
    %1098 = vmatmul.mubr.bf16.gmra.mrb[0].mxu0 %v585
    %v1099 = vpop.f32.mrb[0].mxu0
    %v1100 = vadd.f32 0.0, %v1099
    %v1101 = vpop.f32.mrb[0].mxu0
    %v1102 = vpop.f32.mrb[0].mxu0
    %v1103 = vadd.f32 0.0, %v1102
    %v1104 = vpop.f32.mrb[0].mxu0
    %1105 = vmatprep.mubr.bf16.mxu0 %v589
    %1106 = vmatmul.mubr.bf16.gmra.mrb[0].mxu0 %v588
    %v1107 = vpop.f32.mrb[0].mxu0
    %v1108 = vadd.f32 0.0, %v1107
    %v1109 = vpop.f32.mrb[0].mxu0
    %v1110 = vpop.f32.mrb[0].mxu0
    %v1111 = vadd.f32 0.0, %v1110
    %v1112 = vpop.f32.mrb[0].mxu0
    %1113 = vmatprep.mubr.bf16.mxu0 %v592
    %1114 = vmatmul.mubr.bf16.gmra.mrb[0].mxu0 %v591
    %v1115 = vpop.f32.mrb[0].mxu0
    %v1116 = vadd.f32 0.0, %v1115
    %v1117 = vpop.f32.mrb[0].mxu0
    %v1118 = vpop.f32.mrb[0].mxu0
    %v1119 = vadd.f32 0.0, %v1118
    %v1120 = vpop.f32.mrb[0].mxu0
    %1121 = vmatprep.mubr.bf16.mxu0 %v595
    %1122 = vmatmul.mubr.bf16.gmra.mrb[0].mxu0 %v594
    %v1123 = vpop.f32.mrb[0].mxu0
    %v1124 = vadd.f32 0.0, %v1123
    %v1125 = vpop.f32.mrb[0].mxu0
    %v1126 = vpop.f32.mrb[0].mxu0
    %v1127 = vadd.f32 0.0, %v1126
    %v1128 = vpop.f32.mrb[0].mxu0
    %1129 = vmatprep.mubr.bf16.mxu0 %v598
    %1130 = vmatmul.mubr.bf16.gmra.mrb[0].mxu0 %v597
    %v1131 = vpop.f32.mrb[0].mxu0
    %v1132 = vadd.f32 0.0, %v1131
    %v1133 = vpop.f32.mrb[0].mxu0
    %v1134 = vpop.f32.mrb[0].mxu0
    %v1135 = vadd.f32 0.0, %v1134
    %v1136 = vpop.f32.mrb[0].mxu0
    %1137 = vmatprep.mubr.bf16.mxu0 %v601
    %1138 = vmatmul.mubr.bf16.gmra.mrb[0].mxu0 %v600
    %v1139 = vpop.f32.mrb[0].mxu0
    %v1140 = vadd.f32 0.0, %v1139
    %v1141 = vpop.f32.mrb[0].mxu0
    %v1142 = vpop.f32.mrb[0].mxu0
    %v1143 = vadd.f32 0.0, %v1142
    %v1144 = vpop.f32.mrb[0].mxu0
    %1145 = vmatprep.mubr.bf16.mxu0 %v604
    %1146 = vmatmul.mubr.bf16.gmra.mrb[0].mxu0 %v603
    %v1147 = vpop.f32.mrb[0].mxu0
    %v1148 = vadd.f32 0.0, %v1147
    %v1149 = vpop.f32.mrb[0].mxu0
    %v1150 = vpop.f32.mrb[0].mxu0
    %v1151 = vadd.f32 0.0, %v1150
    %v1152 = vpop.f32.mrb[0].mxu0
    %1153 = vmatprep.mubr.bf16.mxu0 %v607
    %1154 = vmatmul.mubr.bf16.gmra.mrb[0].mxu0 %v606
    %v1155 = vpop.f32.mrb[0].mxu0
    %v1156 = vadd.f32 0.0, %v1155
    %v1157 = vpop.f32.mrb[0].mxu0
    %v1158 = vpop.f32.mrb[0].mxu0
    %v1159 = vadd.f32 0.0, %v1158
    %v1160 = vpop.f32.mrb[0].mxu0
    %1161 = vmatprep.mubr.bf16.mxu0 %v610
    %1162 = vmatmul.mubr.bf16.gmra.mrb[0].mxu0 %v609
    %v1163 = vpop.f32.mrb[0].mxu0
    %v1164 = vadd.f32 0.0, %v1163
    %v1165 = vpop.f32.mrb[0].mxu0
    %v1166 = vpop.f32.mrb[0].mxu0
    %v1167 = vadd.f32 0.0, %v1166
    %v1168 = vpop.f32.mrb[0].mxu0
    %1169 = vdwg.mxu0
    %1170 = vmatprep.subr.bf16.mxu0 0
    %1171 = vmatpush1.bf16.msra.mxu0 %v764
    %1172 = vmatprep.subr.bf16.mxu0 0
    %1173 = vmatpush1.bf16.msra.mxu0 %v765
    %1174 = vmatprep.subr.bf16.mxu0 0
    %1175 = vmatpush1.bf16.msra.mxu0 0
    %1176 = vmatprep.subr.bf16.mxu0 0
    %1177 = vmatpush1.bf16.msra.mxu0 0
    %1178 = vmatprep.subr.bf16.mxu0 0
    %1179 = vmatpush1.bf16.msra.mxu0 0
    %1180 = vmatprep.subr.bf16.mxu0 0
    %1181 = vmatpush1.bf16.msra.mxu0 0
    %1182 = vmatprep.subr.bf16.mxu0 0
    %1183 = vmatpush1.bf16.msra.mxu0 0
    %1184 = vmatprep.subr.bf16.mxu0 0
    %1185 = vmatpush1.bf16.msra.mxu0 0
    %1186 = vmatprep.subr.bf16.mxu0 0
    %1187 = vmatpush1.bf16.msra.mxu0 0
    %1188 = vmatprep.subr.bf16.mxu0 0
    %1189 = vmatpush1.bf16.msra.mxu0 0
    %1190 = vmatprep.subr.bf16.mxu0 0
    %1191 = vmatpush1.bf16.msra.mxu0 0
    %1192 = vmatprep.subr.bf16.mxu0 0
    %1193 = vmatpush1.bf16.msra.mxu0 0
    %1194 = vmatprep.subr.bf16.mxu0 0
    %1195 = vmatpush1.bf16.msra.mxu0 0
    %1196 = vmatprep.subr.bf16.mxu0 0
    %1197 = vmatpush1.bf16.msra.mxu0 0
    %1198 = vmatprep.subr.bf16.mxu0 0
    %1199 = vmatpush1.bf16.msra.mxu0 0
    %1200 = vmatprep.subr.bf16.mxu0 0
    %1201 = vmatpush1.bf16.msra.mxu0 0
    %1202 = vmatprep.mubr.bf16.mxu0 0
    %1203 = vmatmul.mubr.bf16.gmra.mrb[0].mxu0 %v786
    %v1204 = vpop.f32.mrb[0].mxu0
    %v1205 = vadd.f32 %v916, %v1204
    %v1206 = vpop.f32.mrb[0].mxu0
    %v1207 = vpop.f32.mrb[0].mxu0
    %v1208 = vadd.f32 %v919, %v1207
    %v1209 = vpop.f32.mrb[0].mxu0
    %1210 = vmatprep.mubr.bf16.mxu0 0
    %1211 = vmatmul.mubr.bf16.gmra.mrb[0].mxu0 %v789
    %v1212 = vpop.f32.mrb[0].mxu0
    %v1213 = vadd.f32 %v924, %v1212
    %v1214 = vpop.f32.mrb[0].mxu0
    %v1215 = vpop.f32.mrb[0].mxu0
    %v1216 = vadd.f32 %v927, %v1215
    %v1217 = vpop.f32.mrb[0].mxu0
    %1218 = vmatprep.mubr.bf16.mxu0 0
    %1219 = vmatmul.mubr.bf16.gmra.mrb[0].mxu0 %v792
    %v1220 = vpop.f32.mrb[0].mxu0
    %v1221 = vadd.f32 %v932, %v1220
    %v1222 = vpop.f32.mrb[0].mxu0
    %v1223 = vpop.f32.mrb[0].mxu0
    %v1224 = vadd.f32 %v935, %v1223
    %v1225 = vpop.f32.mrb[0].mxu0
    %1226 = vmatprep.mubr.bf16.mxu0 0
    %1227 = vmatmul.mubr.bf16.gmra.mrb[0].mxu0 %v795
    %v1228 = vpop.f32.mrb[0].mxu0
    %v1229 = vadd.f32 %v940, %v1228
    %v1230 = vpop.f32.mrb[0].mxu0
    %v1231 = vpop.f32.mrb[0].mxu0
    %v1232 = vadd.f32 %v943, %v1231
    %v1233 = vpop.f32.mrb[0].mxu0
    %1234 = vmatprep.mubr.bf16.mxu0 0
    %1235 = vmatmul.mubr.bf16.gmra.mrb[0].mxu0 %v798
    %v1236 = vpop.f32.mrb[0].mxu0
    %v1237 = vadd.f32 %v948, %v1236
    %v1238 = vpop.f32.mrb[0].mxu0
    %v1239 = vpop.f32.mrb[0].mxu0
    %v1240 = vadd.f32 %v951, %v1239
    %v1241 = vpop.f32.mrb[0].mxu0
    %1242 = vmatprep.mubr.bf16.mxu0 0
    %1243 = vmatmul.mubr.bf16.gmra.mrb[0].mxu0 %v801
    %v1244 = vpop.f32.mrb[0].mxu0
    %v1245 = vadd.f32 %v956, %v1244
    %v1246 = vpop.f32.mrb[0].mxu0
    %v1247 = vpop.f32.mrb[0].mxu0
    %v1248 = vadd.f32 %v959, %v1247
    %v1249 = vpop.f32.mrb[0].mxu0
    %1250 = vmatprep.mubr.bf16.mxu0 0
    %1251 = vmatmul.mubr.bf16.gmra.mrb[0].mxu0 %v804
    %v1252 = vpop.f32.mrb[0].mxu0
    %v1253 = vadd.f32 %v964, %v1252
    %v1254 = vpop.f32.mrb[0].mxu0
    %v1255 = vpop.f32.mrb[0].mxu0
    %v1256 = vadd.f32 %v967, %v1255
    %v1257 = vpop.f32.mrb[0].mxu0
    %1258 = vmatprep.mubr.bf16.mxu0 0
    %1259 = vmatmul.mubr.bf16.gmra.mrb[0].mxu0 %v807
    %v1260 = vpop.f32.mrb[0].mxu0
    %v1261 = vadd.f32 %v972, %v1260
    %v1262 = vpop.f32.mrb[0].mxu0
    %v1263 = vpop.f32.mrb[0].mxu0
    %v1264 = vadd.f32 %v975, %v1263
    %v1265 = vpop.f32.mrb[0].mxu0
    %1266 = vmatprep.mubr.bf16.mxu0 0
    %1267 = vmatmul.mubr.bf16.gmra.mrb[0].mxu0 %v810
    %v1268 = vpop.f32.mrb[0].mxu0
    %v1269 = vadd.f32 %v980, %v1268
    %v1270 = vpop.f32.mrb[0].mxu0
    %v1271 = vpop.f32.mrb[0].mxu0
    %v1272 = vadd.f32 %v983, %v1271
    %v1273 = vpop.f32.mrb[0].mxu0
    %1274 = vmatprep.mubr.bf16.mxu0 0
    %1275 = vmatmul.mubr.bf16.gmra.mrb[0].mxu0 %v813
    %v1276 = vpop.f32.mrb[0].mxu0
    %v1277 = vadd.f32 %v988, %v1276
    %v1278 = vpop.f32.mrb[0].mxu0
    %v1279 = vpop.f32.mrb[0].mxu0
    %v1280 = vadd.f32 %v991, %v1279
    %v1281 = vpop.f32.mrb[0].mxu0
    %1282 = vmatprep.mubr.bf16.mxu0 0
    %1283 = vmatmul.mubr.bf16.gmra.mrb[0].mxu0 %v816
    %v1284 = vpop.f32.mrb[0].mxu0
    %v1285 = vadd.f32 %v996, %v1284
    %v1286 = vpop.f32.mrb[0].mxu0
    %v1287 = vpop.f32.mrb[0].mxu0
    %v1288 = vadd.f32 %v999, %v1287
    %v1289 = vpop.f32.mrb[0].mxu0
    %1290 = vmatprep.mubr.bf16.mxu0 0
    %1291 = vmatmul.mubr.bf16.gmra.mrb[0].mxu0 %v819
    %v1292 = vpop.f32.mrb[0].mxu0
    %v1293 = vadd.f32 %v1004, %v1292
    %v1294 = vpop.f32.mrb[0].mxu0
    %v1295 = vpop.f32.mrb[0].mxu0
    %v1296 = vadd.f32 %v1007, %v1295
    %v1297 = vpop.f32.mrb[0].mxu0
    %1298 = vmatprep.mubr.bf16.mxu0 0
    %1299 = vmatmul.mubr.bf16.gmra.mrb[0].mxu0 %v822
    %v1300 = vpop.f32.mrb[0].mxu0
    %v1301 = vadd.f32 %v1012, %v1300
    %v1302 = vpop.f32.mrb[0].mxu0
    %v1303 = vpop.f32.mrb[0].mxu0
    %v1304 = vadd.f32 %v1015, %v1303
    %v1305 = vpop.f32.mrb[0].mxu0
    %1306 = vmatprep.mubr.bf16.mxu0 0
    %1307 = vmatmul.mubr.bf16.gmra.mrb[0].mxu0 %v825
    %v1308 = vpop.f32.mrb[0].mxu0
    %v1309 = vadd.f32 %v1020, %v1308
    %v1310 = vpop.f32.mrb[0].mxu0
    %v1311 = vpop.f32.mrb[0].mxu0
    %v1312 = vadd.f32 %v1023, %v1311
    %v1313 = vpop.f32.mrb[0].mxu0
    %1314 = vmatprep.mubr.bf16.mxu0 0
    %1315 = vmatmul.mubr.bf16.gmra.mrb[0].mxu0 %v828
    %v1316 = vpop.f32.mrb[0].mxu0
    %v1317 = vadd.f32 %v1028, %v1316
    %v1318 = vpop.f32.mrb[0].mxu0
    %v1319 = vpop.f32.mrb[0].mxu0
    %v1320 = vadd.f32 %v1031, %v1319
    %v1321 = vpop.f32.mrb[0].mxu0
    %1322 = vmatprep.mubr.bf16.mxu0 0
    %1323 = vmatmul.mubr.bf16.gmra.mrb[0].mxu0 %v831
    %v1324 = vpop.f32.mrb[0].mxu0
    %v1325 = vadd.f32 %v1036, %v1324
    %v1326 = vpop.f32.mrb[0].mxu0
    %v1327 = vpop.f32.mrb[0].mxu0
    %v1328 = vadd.f32 %v1039, %v1327
    %v1329 = vpop.f32.mrb[0].mxu0
    %1330 = vmatprep.mubr.bf16.mxu0 0
    %1331 = vmatmul.mubr.bf16.gmra.mrb[0].mxu0 %v834
    %v1332 = vpop.f32.mrb[0].mxu0
    %v1333 = vadd.f32 %v1044, %v1332
    %v1334 = vpop.f32.mrb[0].mxu0
    %v1335 = vpop.f32.mrb[0].mxu0
    %v1336 = vadd.f32 %v1047, %v1335
    %v1337 = vpop.f32.mrb[0].mxu0
    %1338 = vmatprep.mubr.bf16.mxu0 0
    %1339 = vmatmul.mubr.bf16.gmra.mrb[0].mxu0 %v837
    %v1340 = vpop.f32.mrb[0].mxu0
    %v1341 = vadd.f32 %v1052, %v1340
    %v1342 = vpop.f32.mrb[0].mxu0
    %v1343 = vpop.f32.mrb[0].mxu0
    %v1344 = vadd.f32 %v1055, %v1343
    %v1345 = vpop.f32.mrb[0].mxu0
    %1346 = vmatprep.mubr.bf16.mxu0 0
    %1347 = vmatmul.mubr.bf16.gmra.mrb[0].mxu0 %v840
    %v1348 = vpop.f32.mrb[0].mxu0
    %v1349 = vadd.f32 %v1060, %v1348
    %v1350 = vpop.f32.mrb[0].mxu0
    %v1351 = vpop.f32.mrb[0].mxu0
    %v1352 = vadd.f32 %v1063, %v1351
    %v1353 = vpop.f32.mrb[0].mxu0
    %1354 = vmatprep.mubr.bf16.mxu0 0
    %1355 = vmatmul.mubr.bf16.gmra.mrb[0].mxu0 %v843
    %v1356 = vpop.f32.mrb[0].mxu0
    %v1357 = vadd.f32 %v1068, %v1356
    %v1358 = vpop.f32.mrb[0].mxu0
    %v1359 = vpop.f32.mrb[0].mxu0
    %v1360 = vadd.f32 %v1071, %v1359
    %v1361 = vpop.f32.mrb[0].mxu0
    %1362 = vmatprep.mubr.bf16.mxu0 0
    %1363 = vmatmul.mubr.bf16.gmra.mrb[0].mxu0 %v846
    %v1364 = vpop.f32.mrb[0].mxu0
    %v1365 = vadd.f32 %v1076, %v1364
    %v1366 = vpop.f32.mrb[0].mxu0
    %v1367 = vpop.f32.mrb[0].mxu0
    %v1368 = vadd.f32 %v1079, %v1367
    %v1369 = vpop.f32.mrb[0].mxu0
    %1370 = vmatprep.mubr.bf16.mxu0 0
    %1371 = vmatmul.mubr.bf16.gmra.mrb[0].mxu0 %v849
    %v1372 = vpop.f32.mrb[0].mxu0
    %v1373 = vadd.f32 %v1084, %v1372
    %v1374 = vpop.f32.mrb[0].mxu0
    %v1375 = vpop.f32.mrb[0].mxu0
    %v1376 = vadd.f32 %v1087, %v1375
    %v1377 = vpop.f32.mrb[0].mxu0
    %1378 = vmatprep.mubr.bf16.mxu0 0
    %1379 = vmatmul.mubr.bf16.gmra.mrb[0].mxu0 %v852
    %v1380 = vpop.f32.mrb[0].mxu0
    %v1381 = vadd.f32 %v1092, %v1380
    %v1382 = vpop.f32.mrb[0].mxu0
    %v1383 = vpop.f32.mrb[0].mxu0
    %v1384 = vadd.f32 %v1095, %v1383
    %v1385 = vpop.f32.mrb[0].mxu0
    %1386 = vmatprep.mubr.bf16.mxu0 0
    %1387 = vmatmul.mubr.bf16.gmra.mrb[0].mxu0 %v855
    %v1388 = vpop.f32.mrb[0].mxu0
    %v1389 = vadd.f32 %v1100, %v1388
    %v1390 = vpop.f32.mrb[0].mxu0
    %v1391 = vpop.f32.mrb[0].mxu0
    %v1392 = vadd.f32 %v1103, %v1391
    %v1393 = vpop.f32.mrb[0].mxu0
    %1394 = vmatprep.mubr.bf16.mxu0 0
    %1395 = vmatmul.mubr.bf16.gmra.mrb[0].mxu0 %v858
    %v1396 = vpop.f32.mrb[0].mxu0
    %v1397 = vadd.f32 %v1108, %v1396
    %v1398 = vpop.f32.mrb[0].mxu0
    %v1399 = vpop.f32.mrb[0].mxu0
    %v1400 = vadd.f32 %v1111, %v1399
    %v1401 = vpop.f32.mrb[0].mxu0
    %1402 = vmatprep.mubr.bf16.mxu0 0
    %1403 = vmatmul.mubr.bf16.gmra.mrb[0].mxu0 %v861
    %v1404 = vpop.f32.mrb[0].mxu0
    %v1405 = vadd.f32 %v1116, %v1404
    %v1406 = vpop.f32.mrb[0].mxu0
    %v1407 = vpop.f32.mrb[0].mxu0
    %v1408 = vadd.f32 %v1119, %v1407
    %v1409 = vpop.f32.mrb[0].mxu0
    %1410 = vmatprep.mubr.bf16.mxu0 0
    %1411 = vmatmul.mubr.bf16.gmra.mrb[0].mxu0 %v864
    %v1412 = vpop.f32.mrb[0].mxu0
    %v1413 = vadd.f32 %v1124, %v1412
    %v1414 = vpop.f32.mrb[0].mxu0
    %v1415 = vpop.f32.mrb[0].mxu0
    %v1416 = vadd.f32 %v1127, %v1415
    %v1417 = vpop.f32.mrb[0].mxu0
    %1418 = vmatprep.mubr.bf16.mxu0 0
    %1419 = vmatmul.mubr.bf16.gmra.mrb[0].mxu0 %v867
    %v1420 = vpop.f32.mrb[0].mxu0
    %v1421 = vadd.f32 %v1132, %v1420
    %v1422 = vpop.f32.mrb[0].mxu0
    %v1423 = vpop.f32.mrb[0].mxu0
    %v1424 = vadd.f32 %v1135, %v1423
    %v1425 = vpop.f32.mrb[0].mxu0
    %1426 = vmatprep.mubr.bf16.mxu0 0
    %1427 = vmatmul.mubr.bf16.gmra.mrb[0].mxu0 %v870
    %v1428 = vpop.f32.mrb[0].mxu0
    %v1429 = vadd.f32 %v1140, %v1428
    %v1430 = vpop.f32.mrb[0].mxu0
    %v1431 = vpop.f32.mrb[0].mxu0
    %v1432 = vadd.f32 %v1143, %v1431
    %v1433 = vpop.f32.mrb[0].mxu0
    %1434 = vmatprep.mubr.bf16.mxu0 0
    %1435 = vmatmul.mubr.bf16.gmra.mrb[0].mxu0 %v873
    %v1436 = vpop.f32.mrb[0].mxu0
    %v1437 = vadd.f32 %v1148, %v1436
    %v1438 = vpop.f32.mrb[0].mxu0
    %v1439 = vpop.f32.mrb[0].mxu0
    %v1440 = vadd.f32 %v1151, %v1439
    %v1441 = vpop.f32.mrb[0].mxu0
    %1442 = vmatprep.mubr.bf16.mxu0 0
    %1443 = vmatmul.mubr.bf16.gmra.mrb[0].mxu0 %v876
    %v1444 = vpop.f32.mrb[0].mxu0
    %v1445 = vadd.f32 %v1156, %v1444
    %v1446 = vpop.f32.mrb[0].mxu0
    %v1447 = vpop.f32.mrb[0].mxu0
    %v1448 = vadd.f32 %v1159, %v1447
    %v1449 = vpop.f32.mrb[0].mxu0
    %1450 = vmatprep.mubr.bf16.mxu0 0
    %1451 = vmatmul.mubr.bf16.gmra.mrb[0].mxu0 %v879
    %v1452 = vpop.f32.mrb[0].mxu0
    %v1453 = vadd.f32 %v1164, %v1452
    %v1454 = vpop.f32.mrb[0].mxu0
    %v1455 = vpop.f32.mrb[0].mxu0
    %v1456 = vadd.f32 %v1167, %v1455
    %v1457 = vpop.f32.mrb[0].mxu0
    %1458 = vdwg.mxu0
    %v1459 = vsel %vm784, %v1205, 0.0
    %v1460 = vsel %vm784, %v1208, 0.0
    %v1461 = vadd.f32 %v1459, %v1460
    %v1462 = vsel %vm784, %v1213, 0.0
    %v1463 = vadd.f32 %v1461, %v1462
    %v1464 = vsel %vm784, %v1216, 0.0
    %v1465 = vadd.f32 %v1463, %v1464
    %v1466 = vsel %vm784, %v1221, 0.0
    %v1467 = vadd.f32 %v1465, %v1466
    %v1468 = vsel %vm784, %v1224, 0.0
    %v1469 = vadd.f32 %v1467, %v1468
    %v1470 = vsel %vm784, %v1229, 0.0
    %v1471 = vadd.f32 %v1469, %v1470
    %v1472 = vsel %vm784, %v1232, 0.0
    %v1473 = vadd.f32 %v1471, %v1472
    %v1474 = vsel %vm784, %v1237, 0.0
    %v1475 = vadd.f32 %v1473, %v1474
    %v1476 = vsel %vm784, %v1240, 0.0
    %v1477 = vadd.f32 %v1475, %v1476
    %v1478 = vsel %vm784, %v1245, 0.0
    %v1479 = vadd.f32 %v1477, %v1478
    %v1480 = vsel %vm784, %v1248, 0.0
    %v1481 = vadd.f32 %v1479, %v1480
    %v1482 = vsel %vm784, %v1253, 0.0
    %v1483 = vadd.f32 %v1481, %v1482
    %v1484 = vsel %vm784, %v1256, 0.0
    %v1485 = vadd.f32 %v1483, %v1484
    %v1486 = vsel %vm784, %v1261, 0.0
    %v1487 = vadd.f32 %v1485, %v1486
    %v1488 = vsel %vm784, %v1264, 0.0
    %v1489 = vadd.f32 %v1487, %v1488
    %v1490 = vsel %vm784, %v1269, 0.0
    %v1491 = vadd.f32 %v1489, %v1490
    %v1492 = vsel %vm784, %v1272, 0.0
    %v1493 = vadd.f32 %v1491, %v1492
    %v1494 = vsel %vm784, %v1277, 0.0
    %v1495 = vadd.f32 %v1493, %v1494
    %v1496 = vsel %vm784, %v1280, 0.0
    %v1497 = vadd.f32 %v1495, %v1496
    %v1498 = vsel %vm784, %v1285, 0.0
    %v1499 = vadd.f32 %v1497, %v1498
    %v1500 = vsel %vm784, %v1288, 0.0
    %v1501 = vadd.f32 %v1499, %v1500
    %v1502 = vsel %vm784, %v1293, 0.0
    %v1503 = vadd.f32 %v1501, %v1502
    %v1504 = vsel %vm784, %v1296, 0.0
    %v1505 = vadd.f32 %v1503, %v1504
    %v1506 = vsel %vm784, %v1301, 0.0
    %v1507 = vadd.f32 %v1505, %v1506
    %v1508 = vsel %vm784, %v1304, 0.0
    %v1509 = vadd.f32 %v1507, %v1508
    %v1510 = vsel %vm784, %v1309, 0.0
    %v1511 = vadd.f32 %v1509, %v1510
    %v1512 = vsel %vm784, %v1312, 0.0
    %v1513 = vadd.f32 %v1511, %v1512
    %v1514 = vsel %vm784, %v1317, 0.0
    %v1515 = vadd.f32 %v1513, %v1514
    %v1516 = vsel %vm784, %v1320, 0.0
    %v1517 = vadd.f32 %v1515, %v1516
    %v1518 = vsel %vm784, %v1325, 0.0
    %v1519 = vadd.f32 %v1517, %v1518
    %v1520 = vsel %vm784, %v1328, 0.0
    %v1521 = vadd.f32 %v1519, %v1520
    %v1522 = vsel %vm784, %v1333, 0.0
    %v1523 = vadd.f32 %v1521, %v1522
    %v1524 = vsel %vm784, %v1336, 0.0
    %v1525 = vadd.f32 %v1523, %v1524
    %v1526 = vsel %vm784, %v1341, 0.0
    %v1527 = vadd.f32 %v1525, %v1526
    %v1528 = vsel %vm784, %v1344, 0.0
    %v1529 = vadd.f32 %v1527, %v1528
    %v1530 = vsel %vm784, %v1349, 0.0
    %v1531 = vadd.f32 %v1529, %v1530
    %v1532 = vsel %vm784, %v1352, 0.0
    %v1533 = vadd.f32 %v1531, %v1532
    %v1534 = vsel %vm784, %v1357, 0.0
    %v1535 = vadd.f32 %v1533, %v1534
    %v1536 = vsel %vm784, %v1360, 0.0
    %v1537 = vadd.f32 %v1535, %v1536
    %v1538 = vsel %vm784, %v1365, 0.0
    %v1539 = vadd.f32 %v1537, %v1538
    %v1540 = vsel %vm784, %v1368, 0.0
    %v1541 = vadd.f32 %v1539, %v1540
    %v1542 = vsel %vm784, %v1373, 0.0
    %v1543 = vadd.f32 %v1541, %v1542
    %v1544 = vsel %vm784, %v1376, 0.0
    %v1545 = vadd.f32 %v1543, %v1544
    %v1546 = vsel %vm784, %v1381, 0.0
    %v1547 = vadd.f32 %v1545, %v1546
    %v1548 = vsel %vm784, %v1384, 0.0
    %v1549 = vadd.f32 %v1547, %v1548
    %v1550 = vsel %vm784, %v1389, 0.0
    %v1551 = vadd.f32 %v1549, %v1550
    %v1552 = vsel %vm784, %v1392, 0.0
    %v1553 = vadd.f32 %v1551, %v1552
    %v1554 = vsel %vm784, %v1397, 0.0
    %v1555 = vadd.f32 %v1553, %v1554
    %v1556 = vsel %vm784, %v1400, 0.0
    %v1557 = vadd.f32 %v1555, %v1556
    %v1558 = vsel %vm784, %v1405, 0.0
    %v1559 = vadd.f32 %v1557, %v1558
    %v1560 = vsel %vm784, %v1408, 0.0
    %v1561 = vadd.f32 %v1559, %v1560
    %v1562 = vsel %vm784, %v1413, 0.0
    %v1563 = vadd.f32 %v1561, %v1562
    %v1564 = vsel %vm784, %v1416, 0.0
    %v1565 = vadd.f32 %v1563, %v1564
    %v1566 = vsel %vm784, %v1421, 0.0
    %v1567 = vadd.f32 %v1565, %v1566
    %v1568 = vsel %vm784, %v1424, 0.0
    %v1569 = vadd.f32 %v1567, %v1568
    %v1570 = vsel %vm784, %v1429, 0.0
    %v1571 = vadd.f32 %v1569, %v1570
    %v1572 = vsel %vm784, %v1432, 0.0
    %v1573 = vadd.f32 %v1571, %v1572
    %v1574 = vsel %vm784, %v1437, 0.0
    %v1575 = vadd.f32 %v1573, %v1574
    %v1576 = vsel %vm784, %v1440, 0.0
    %v1577 = vadd.f32 %v1575, %v1576
    %v1578 = vsel %vm784, %v1445, 0.0
    %v1579 = vadd.f32 %v1577, %v1578
    %v1580 = vsel %vm784, %v1448, 0.0
    %v1581 = vadd.f32 %v1579, %v1580
    %v1582 = vsel %vm784, %v1453, 0.0
    %v1583 = vadd.f32 %v1581, %v1582
    %v1584 = vsel %vm784, %v1456, 0.0
    %v1585 = vadd.f32 %v1583, %v1584
    %v1586 = vrot.slane %v1585, 4
    %v1587 = vadd.f32 %v1585, %v1586
    %v1588 = vrot.slane %v1587, 2
    %v1589 = vadd.f32 %v1587, %v1588
    %v1590 = vrot.slane %v1589, 1
    %v1591 = vadd.f32 %v1589, %v1590
    %vm1592 = vcmask 523520
    %v1593 = vsel %vm1592, %v1205, 0.0
    %v1594 = vsel %vm1592, %v1208, 0.0
    %v1595 = vadd.f32 %v1593, %v1594
    %v1596 = vsel %vm1592, %v1213, 0.0
    %v1597 = vadd.f32 %v1595, %v1596
    %v1598 = vsel %vm1592, %v1216, 0.0
    %v1599 = vadd.f32 %v1597, %v1598
    %v1600 = vsel %vm1592, %v1221, 0.0
    %v1601 = vadd.f32 %v1599, %v1600
    %v1602 = vsel %vm1592, %v1224, 0.0
    %v1603 = vadd.f32 %v1601, %v1602
    %v1604 = vsel %vm1592, %v1229, 0.0
    %v1605 = vadd.f32 %v1603, %v1604
    %v1606 = vsel %vm1592, %v1232, 0.0
    %v1607 = vadd.f32 %v1605, %v1606
    %v1608 = vsel %vm1592, %v1237, 0.0
    %v1609 = vadd.f32 %v1607, %v1608
    %v1610 = vsel %vm1592, %v1240, 0.0
    %v1611 = vadd.f32 %v1609, %v1610
    %v1612 = vsel %vm1592, %v1245, 0.0
    %v1613 = vadd.f32 %v1611, %v1612
    %v1614 = vsel %vm1592, %v1248, 0.0
    %v1615 = vadd.f32 %v1613, %v1614
    %v1616 = vsel %vm1592, %v1253, 0.0
    %v1617 = vadd.f32 %v1615, %v1616
    %v1618 = vsel %vm1592, %v1256, 0.0
    %v1619 = vadd.f32 %v1617, %v1618
    %v1620 = vsel %vm1592, %v1261, 0.0
    %v1621 = vadd.f32 %v1619, %v1620
    %v1622 = vsel %vm1592, %v1264, 0.0
    %v1623 = vadd.f32 %v1621, %v1622
    %v1624 = vsel %vm1592, %v1269, 0.0
    %v1625 = vadd.f32 %v1623, %v1624
    %v1626 = vsel %vm1592, %v1272, 0.0
    %v1627 = vadd.f32 %v1625, %v1626
    %v1628 = vsel %vm1592, %v1277, 0.0
    %v1629 = vadd.f32 %v1627, %v1628
    %v1630 = vsel %vm1592, %v1280, 0.0
    %v1631 = vadd.f32 %v1629, %v1630
    %v1632 = vsel %vm1592, %v1285, 0.0
    %v1633 = vadd.f32 %v1631, %v1632
    %v1634 = vsel %vm1592, %v1288, 0.0
    %v1635 = vadd.f32 %v1633, %v1634
    %v1636 = vsel %vm1592, %v1293, 0.0
    %v1637 = vadd.f32 %v1635, %v1636
    %v1638 = vsel %vm1592, %v1296, 0.0
    %v1639 = vadd.f32 %v1637, %v1638
    %v1640 = vsel %vm1592, %v1301, 0.0
    %v1641 = vadd.f32 %v1639, %v1640
    %v1642 = vsel %vm1592, %v1304, 0.0
    %v1643 = vadd.f32 %v1641, %v1642
    %v1644 = vsel %vm1592, %v1309, 0.0
    %v1645 = vadd.f32 %v1643, %v1644
    %v1646 = vsel %vm1592, %v1312, 0.0
    %v1647 = vadd.f32 %v1645, %v1646
    %v1648 = vsel %vm1592, %v1317, 0.0
    %v1649 = vadd.f32 %v1647, %v1648
    %v1650 = vsel %vm1592, %v1320, 0.0
    %v1651 = vadd.f32 %v1649, %v1650
    %v1652 = vsel %vm1592, %v1325, 0.0
    %v1653 = vadd.f32 %v1651, %v1652
    %v1654 = vsel %vm1592, %v1328, 0.0
    %v1655 = vadd.f32 %v1653, %v1654
    %v1656 = vsel %vm1592, %v1333, 0.0
    %v1657 = vadd.f32 %v1655, %v1656
    %v1658 = vsel %vm1592, %v1336, 0.0
    %v1659 = vadd.f32 %v1657, %v1658
    %v1660 = vsel %vm1592, %v1341, 0.0
    %v1661 = vadd.f32 %v1659, %v1660
    %v1662 = vsel %vm1592, %v1344, 0.0
    %v1663 = vadd.f32 %v1661, %v1662
    %v1664 = vsel %vm1592, %v1349, 0.0
    %v1665 = vadd.f32 %v1663, %v1664
    %v1666 = vsel %vm1592, %v1352, 0.0
    %v1667 = vadd.f32 %v1665, %v1666
    %v1668 = vsel %vm1592, %v1357, 0.0
    %v1669 = vadd.f32 %v1667, %v1668
    %v1670 = vsel %vm1592, %v1360, 0.0
    %v1671 = vadd.f32 %v1669, %v1670
    %v1672 = vsel %vm1592, %v1365, 0.0
    %v1673 = vadd.f32 %v1671, %v1672
    %v1674 = vsel %vm1592, %v1368, 0.0
    %v1675 = vadd.f32 %v1673, %v1674
    %v1676 = vsel %vm1592, %v1373, 0.0
    %v1677 = vadd.f32 %v1675, %v1676
    %v1678 = vsel %vm1592, %v1376, 0.0
    %v1679 = vadd.f32 %v1677, %v1678
    %v1680 = vsel %vm1592, %v1381, 0.0
    %v1681 = vadd.f32 %v1679, %v1680
    %v1682 = vsel %vm1592, %v1384, 0.0
    %v1683 = vadd.f32 %v1681, %v1682
    %v1684 = vsel %vm1592, %v1389, 0.0
    %v1685 = vadd.f32 %v1683, %v1684
    %v1686 = vsel %vm1592, %v1392, 0.0
    %v1687 = vadd.f32 %v1685, %v1686
    %v1688 = vsel %vm1592, %v1397, 0.0
    %v1689 = vadd.f32 %v1687, %v1688
    %v1690 = vsel %vm1592, %v1400, 0.0
    %v1691 = vadd.f32 %v1689, %v1690
    %v1692 = vsel %vm1592, %v1405, 0.0
    %v1693 = vadd.f32 %v1691, %v1692
    %v1694 = vsel %vm1592, %v1408, 0.0
    %v1695 = vadd.f32 %v1693, %v1694
    %v1696 = vsel %vm1592, %v1413, 0.0
    %v1697 = vadd.f32 %v1695, %v1696
    %v1698 = vsel %vm1592, %v1416, 0.0
    %v1699 = vadd.f32 %v1697, %v1698
    %v1700 = vsel %vm1592, %v1421, 0.0
    %v1701 = vadd.f32 %v1699, %v1700
    %v1702 = vsel %vm1592, %v1424, 0.0
    %v1703 = vadd.f32 %v1701, %v1702
    %v1704 = vsel %vm1592, %v1429, 0.0
    %v1705 = vadd.f32 %v1703, %v1704
    %v1706 = vsel %vm1592, %v1432, 0.0
    %v1707 = vadd.f32 %v1705, %v1706
    %v1708 = vsel %vm1592, %v1437, 0.0
    %v1709 = vadd.f32 %v1707, %v1708
    %v1710 = vsel %vm1592, %v1440, 0.0
    %v1711 = vadd.f32 %v1709, %v1710
    %v1712 = vsel %vm1592, %v1445, 0.0
    %v1713 = vadd.f32 %v1711, %v1712
    %v1714 = vsel %vm1592, %v1448, 0.0
    %v1715 = vadd.f32 %v1713, %v1714
    %v1716 = vsel %vm1592, %v1453, 0.0
    %v1717 = vadd.f32 %v1715, %v1716
    %v1718 = vsel %vm1592, %v1456, 0.0
    %v1719 = vadd.f32 %v1717, %v1718
    %v1720 = vrot.slane %v1719, 4
    %v1721 = vadd.f32 %v1719, %v1720
    %v1722 = vrot.slane %v1721, 2
    %v1723 = vadd.f32 %v1721, %v1722
    %v1724 = vrot.slane %v1723, 1
    %v1725 = vadd.f32 %v1723, %v1724
    %1727 = vrot.lane.b32.xlu0 %v1725, 96
    %v1728 = vpop.permute.xlu0 %1727
    %v1730 = vadd.f32 %v1591, %v1728
    %vm1731 = vcmask 785920
    %v1732 = vsel %vm1731, %v1205, 0.0
    %v1733 = vsel %vm1731, %v1208, 0.0
    %v1734 = vadd.f32 %v1732, %v1733
    %v1735 = vsel %vm1731, %v1213, 0.0
    %v1736 = vadd.f32 %v1734, %v1735
    %v1737 = vsel %vm1731, %v1216, 0.0
    %v1738 = vadd.f32 %v1736, %v1737
    %v1739 = vsel %vm1731, %v1221, 0.0
    %v1740 = vadd.f32 %v1738, %v1739
    %v1741 = vsel %vm1731, %v1224, 0.0
    %v1742 = vadd.f32 %v1740, %v1741
    %v1743 = vsel %vm1731, %v1229, 0.0
    %v1744 = vadd.f32 %v1742, %v1743
    %v1745 = vsel %vm1731, %v1232, 0.0
    %v1746 = vadd.f32 %v1744, %v1745
    %v1747 = vsel %vm1731, %v1237, 0.0
    %v1748 = vadd.f32 %v1746, %v1747
    %v1749 = vsel %vm1731, %v1240, 0.0
    %v1750 = vadd.f32 %v1748, %v1749
    %v1751 = vsel %vm1731, %v1245, 0.0
    %v1752 = vadd.f32 %v1750, %v1751
    %v1753 = vsel %vm1731, %v1248, 0.0
    %v1754 = vadd.f32 %v1752, %v1753
    %v1755 = vsel %vm1731, %v1253, 0.0
    %v1756 = vadd.f32 %v1754, %v1755
    %v1757 = vsel %vm1731, %v1256, 0.0
    %v1758 = vadd.f32 %v1756, %v1757
    %v1759 = vsel %vm1731, %v1261, 0.0
    %v1760 = vadd.f32 %v1758, %v1759
    %v1761 = vsel %vm1731, %v1264, 0.0
    %v1762 = vadd.f32 %v1760, %v1761
    %v1763 = vsel %vm1731, %v1269, 0.0
    %v1764 = vadd.f32 %v1762, %v1763
    %v1765 = vsel %vm1731, %v1272, 0.0
    %v1766 = vadd.f32 %v1764, %v1765
    %v1767 = vsel %vm1731, %v1277, 0.0
    %v1768 = vadd.f32 %v1766, %v1767
    %v1769 = vsel %vm1731, %v1280, 0.0
    %v1770 = vadd.f32 %v1768, %v1769
    %v1771 = vsel %vm1731, %v1285, 0.0
    %v1772 = vadd.f32 %v1770, %v1771
    %v1773 = vsel %vm1731, %v1288, 0.0
    %v1774 = vadd.f32 %v1772, %v1773
    %v1775 = vsel %vm1731, %v1293, 0.0
    %v1776 = vadd.f32 %v1774, %v1775
    %v1777 = vsel %vm1731, %v1296, 0.0
    %v1778 = vadd.f32 %v1776, %v1777
    %v1779 = vsel %vm1731, %v1301, 0.0
    %v1780 = vadd.f32 %v1778, %v1779
    %v1781 = vsel %vm1731, %v1304, 0.0
    %v1782 = vadd.f32 %v1780, %v1781
    %v1783 = vsel %vm1731, %v1309, 0.0
    %v1784 = vadd.f32 %v1782, %v1783
    %v1785 = vsel %vm1731, %v1312, 0.0
    %v1786 = vadd.f32 %v1784, %v1785
    %v1787 = vsel %vm1731, %v1317, 0.0
    %v1788 = vadd.f32 %v1786, %v1787
    %v1789 = vsel %vm1731, %v1320, 0.0
    %v1790 = vadd.f32 %v1788, %v1789
    %v1791 = vsel %vm1731, %v1325, 0.0
    %v1792 = vadd.f32 %v1790, %v1791
    %v1793 = vsel %vm1731, %v1328, 0.0
    %v1794 = vadd.f32 %v1792, %v1793
    %v1795 = vsel %vm1731, %v1333, 0.0
    %v1796 = vadd.f32 %v1794, %v1795
    %v1797 = vsel %vm1731, %v1336, 0.0
    %v1798 = vadd.f32 %v1796, %v1797
    %v1799 = vsel %vm1731, %v1341, 0.0
    %v1800 = vadd.f32 %v1798, %v1799
    %v1801 = vsel %vm1731, %v1344, 0.0
    %v1802 = vadd.f32 %v1800, %v1801
    %v1803 = vsel %vm1731, %v1349, 0.0
    %v1804 = vadd.f32 %v1802, %v1803
    %v1805 = vsel %vm1731, %v1352, 0.0
    %v1806 = vadd.f32 %v1804, %v1805
    %v1807 = vsel %vm1731, %v1357, 0.0
    %v1808 = vadd.f32 %v1806, %v1807
    %v1809 = vsel %vm1731, %v1360, 0.0
    %v1810 = vadd.f32 %v1808, %v1809
    %v1811 = vsel %vm1731, %v1365, 0.0
    %v1812 = vadd.f32 %v1810, %v1811
    %v1813 = vsel %vm1731, %v1368, 0.0
    %v1814 = vadd.f32 %v1812, %v1813
    %v1815 = vsel %vm1731, %v1373, 0.0
    %v1816 = vadd.f32 %v1814, %v1815
    %v1817 = vsel %vm1731, %v1376, 0.0
    %v1818 = vadd.f32 %v1816, %v1817
    %v1819 = vsel %vm1731, %v1381, 0.0
    %v1820 = vadd.f32 %v1818, %v1819
    %v1821 = vsel %vm1731, %v1384, 0.0
    %v1822 = vadd.f32 %v1820, %v1821
    %v1823 = vsel %vm1731, %v1389, 0.0
    %v1824 = vadd.f32 %v1822, %v1823
    %v1825 = vsel %vm1731, %v1392, 0.0
    %v1826 = vadd.f32 %v1824, %v1825
    %v1827 = vsel %vm1731, %v1397, 0.0
    %v1828 = vadd.f32 %v1826, %v1827
    %v1829 = vsel %vm1731, %v1400, 0.0
    %v1830 = vadd.f32 %v1828, %v1829
    %v1831 = vsel %vm1731, %v1405, 0.0
    %v1832 = vadd.f32 %v1830, %v1831
    %v1833 = vsel %vm1731, %v1408, 0.0
    %v1834 = vadd.f32 %v1832, %v1833
    %v1835 = vsel %vm1731, %v1413, 0.0
    %v1836 = vadd.f32 %v1834, %v1835
    %v1837 = vsel %vm1731, %v1416, 0.0
    %v1838 = vadd.f32 %v1836, %v1837
    %v1839 = vsel %vm1731, %v1421, 0.0
    %v1840 = vadd.f32 %v1838, %v1839
    %v1841 = vsel %vm1731, %v1424, 0.0
    %v1842 = vadd.f32 %v1840, %v1841
    %v1843 = vsel %vm1731, %v1429, 0.0
    %v1844 = vadd.f32 %v1842, %v1843
    %v1845 = vsel %vm1731, %v1432, 0.0
    %v1846 = vadd.f32 %v1844, %v1845
    %v1847 = vsel %vm1731, %v1437, 0.0
    %v1848 = vadd.f32 %v1846, %v1847
    %v1849 = vsel %vm1731, %v1440, 0.0
    %v1850 = vadd.f32 %v1848, %v1849
    %v1851 = vsel %vm1731, %v1445, 0.0
    %v1852 = vadd.f32 %v1850, %v1851
    %v1853 = vsel %vm1731, %v1448, 0.0
    %v1854 = vadd.f32 %v1852, %v1853
    %v1855 = vsel %vm1731, %v1453, 0.0
    %v1856 = vadd.f32 %v1854, %v1855
    %v1857 = vsel %vm1731, %v1456, 0.0
    %v1858 = vadd.f32 %v1856, %v1857
    %v1859 = vrot.slane %v1858, 4
    %v1860 = vadd.f32 %v1858, %v1859
    %v1861 = vrot.slane %v1860, 2
    %v1862 = vadd.f32 %v1860, %v1861
    %v1863 = vrot.slane %v1862, 1
    %v1864 = vadd.f32 %v1862, %v1863
    %1866 = vrot.lane.b32.xlu0 %v1864, 64
    %v1867 = vpop.permute.xlu0 %1866
    %v1869 = vadd.f32 %v1730, %v1867
    %vm1870 = vcmask 1048320
    %v1871 = vsel %vm1870, %v1205, 0.0
    %v1872 = vsel %vm1870, %v1208, 0.0
    %v1873 = vadd.f32 %v1871, %v1872
    %v1874 = vsel %vm1870, %v1213, 0.0
    %v1875 = vadd.f32 %v1873, %v1874
    %v1876 = vsel %vm1870, %v1216, 0.0
    %v1877 = vadd.f32 %v1875, %v1876
    %v1878 = vsel %vm1870, %v1221, 0.0
    %v1879 = vadd.f32 %v1877, %v1878
    %v1880 = vsel %vm1870, %v1224, 0.0
    %v1881 = vadd.f32 %v1879, %v1880
    %v1882 = vsel %vm1870, %v1229, 0.0
    %v1883 = vadd.f32 %v1881, %v1882
    %v1884 = vsel %vm1870, %v1232, 0.0
    %v1885 = vadd.f32 %v1883, %v1884
    %v1886 = vsel %vm1870, %v1237, 0.0
    %v1887 = vadd.f32 %v1885, %v1886
    %v1888 = vsel %vm1870, %v1240, 0.0
    %v1889 = vadd.f32 %v1887, %v1888
    %v1890 = vsel %vm1870, %v1245, 0.0
    %v1891 = vadd.f32 %v1889, %v1890
    %v1892 = vsel %vm1870, %v1248, 0.0
    %v1893 = vadd.f32 %v1891, %v1892
    %v1894 = vsel %vm1870, %v1253, 0.0
    %v1895 = vadd.f32 %v1893, %v1894
    %v1896 = vsel %vm1870, %v1256, 0.0
    %v1897 = vadd.f32 %v1895, %v1896
    %v1898 = vsel %vm1870, %v1261, 0.0
    %v1899 = vadd.f32 %v1897, %v1898
    %v1900 = vsel %vm1870, %v1264, 0.0
    %v1901 = vadd.f32 %v1899, %v1900
    %v1902 = vsel %vm1870, %v1269, 0.0
    %v1903 = vadd.f32 %v1901, %v1902
    %v1904 = vsel %vm1870, %v1272, 0.0
    %v1905 = vadd.f32 %v1903, %v1904
    %v1906 = vsel %vm1870, %v1277, 0.0
    %v1907 = vadd.f32 %v1905, %v1906
    %v1908 = vsel %vm1870, %v1280, 0.0
    %v1909 = vadd.f32 %v1907, %v1908
    %v1910 = vsel %vm1870, %v1285, 0.0
    %v1911 = vadd.f32 %v1909, %v1910
    %v1912 = vsel %vm1870, %v1288, 0.0
    %v1913 = vadd.f32 %v1911, %v1912
    %v1914 = vsel %vm1870, %v1293, 0.0
    %v1915 = vadd.f32 %v1913, %v1914
    %v1916 = vsel %vm1870, %v1296, 0.0
    %v1917 = vadd.f32 %v1915, %v1916
    %v1918 = vsel %vm1870, %v1301, 0.0
    %v1919 = vadd.f32 %v1917, %v1918
    %v1920 = vsel %vm1870, %v1304, 0.0
    %v1921 = vadd.f32 %v1919, %v1920
    %v1922 = vsel %vm1870, %v1309, 0.0
    %v1923 = vadd.f32 %v1921, %v1922
    %v1924 = vsel %vm1870, %v1312, 0.0
    %v1925 = vadd.f32 %v1923, %v1924
    %v1926 = vsel %vm1870, %v1317, 0.0
    %v1927 = vadd.f32 %v1925, %v1926
    %v1928 = vsel %vm1870, %v1320, 0.0
    %v1929 = vadd.f32 %v1927, %v1928
    %v1930 = vsel %vm1870, %v1325, 0.0
    %v1931 = vadd.f32 %v1929, %v1930
    %v1932 = vsel %vm1870, %v1328, 0.0
    %v1933 = vadd.f32 %v1931, %v1932
    %v1934 = vsel %vm1870, %v1333, 0.0
    %v1935 = vadd.f32 %v1933, %v1934
    %v1936 = vsel %vm1870, %v1336, 0.0
    %v1937 = vadd.f32 %v1935, %v1936
    %v1938 = vsel %vm1870, %v1341, 0.0
    %v1939 = vadd.f32 %v1937, %v1938
    %v1940 = vsel %vm1870, %v1344, 0.0
    %v1941 = vadd.f32 %v1939, %v1940
    %v1942 = vsel %vm1870, %v1349, 0.0
    %v1943 = vadd.f32 %v1941, %v1942
    %v1944 = vsel %vm1870, %v1352, 0.0
    %v1945 = vadd.f32 %v1943, %v1944
    %v1946 = vsel %vm1870, %v1357, 0.0
    %v1947 = vadd.f32 %v1945, %v1946
    %v1948 = vsel %vm1870, %v1360, 0.0
    %v1949 = vadd.f32 %v1947, %v1948
    %v1950 = vsel %vm1870, %v1365, 0.0
    %v1951 = vadd.f32 %v1949, %v1950
    %v1952 = vsel %vm1870, %v1368, 0.0
    %v1953 = vadd.f32 %v1951, %v1952
    %v1954 = vsel %vm1870, %v1373, 0.0
    %v1955 = vadd.f32 %v1953, %v1954
    %v1956 = vsel %vm1870, %v1376, 0.0
    %v1957 = vadd.f32 %v1955, %v1956
    %v1958 = vsel %vm1870, %v1381, 0.0
    %v1959 = vadd.f32 %v1957, %v1958
    %v1960 = vsel %vm1870, %v1384, 0.0
    %v1961 = vadd.f32 %v1959, %v1960
    %v1962 = vsel %vm1870, %v1389, 0.0
    %v1963 = vadd.f32 %v1961, %v1962
    %v1964 = vsel %vm1870, %v1392, 0.0
    %v1965 = vadd.f32 %v1963, %v1964
    %v1966 = vsel %vm1870, %v1397, 0.0
    %v1967 = vadd.f32 %v1965, %v1966
    %v1968 = vsel %vm1870, %v1400, 0.0
    %v1969 = vadd.f32 %v1967, %v1968
    %v1970 = vsel %vm1870, %v1405, 0.0
    %v1971 = vadd.f32 %v1969, %v1970
    %v1972 = vsel %vm1870, %v1408, 0.0
    %v1973 = vadd.f32 %v1971, %v1972
    %v1974 = vsel %vm1870, %v1413, 0.0
    %v1975 = vadd.f32 %v1973, %v1974
    %v1976 = vsel %vm1870, %v1416, 0.0
    %v1977 = vadd.f32 %v1975, %v1976
    %v1978 = vsel %vm1870, %v1421, 0.0
    %v1979 = vadd.f32 %v1977, %v1978
    %v1980 = vsel %vm1870, %v1424, 0.0
    %v1981 = vadd.f32 %v1979, %v1980
    %v1982 = vsel %vm1870, %v1429, 0.0
    %v1983 = vadd.f32 %v1981, %v1982
    %v1984 = vsel %vm1870, %v1432, 0.0
    %v1985 = vadd.f32 %v1983, %v1984
    %v1986 = vsel %vm1870, %v1437, 0.0
    %v1987 = vadd.f32 %v1985, %v1986
    %v1988 = vsel %vm1870, %v1440, 0.0
    %v1989 = vadd.f32 %v1987, %v1988
    %v1990 = vsel %vm1870, %v1445, 0.0
    %v1991 = vadd.f32 %v1989, %v1990
    %v1992 = vsel %vm1870, %v1448, 0.0
    %v1993 = vadd.f32 %v1991, %v1992
    %v1994 = vsel %vm1870, %v1453, 0.0
    %v1995 = vadd.f32 %v1993, %v1994
    %v1996 = vsel %vm1870, %v1456, 0.0
    %v1997 = vadd.f32 %v1995, %v1996
    %v1998 = vrot.slane %v1997, 4
    %v1999 = vadd.f32 %v1997, %v1998
    %v2000 = vrot.slane %v1999, 2
    %v2001 = vadd.f32 %v1999, %v2000
    %v2002 = vrot.slane %v2001, 1
    %v2003 = vadd.f32 %v2001, %v2002
    %2005 = vrot.lane.b32.xlu0 %v2003, 32
    %v2006 = vpop.permute.xlu0 %2005
    %v2008 = vadd.f32 %v1869, %v2006
    %v2009 = vmul.f32 %v2008, 0.00048828125
    %v2010 = vlaneseq
    %v2011 = vshrl.u32 %v2010, 7
    %v2012 = vsub.s32 0, %v2011
    %v2013 = vrot.slane %v2009, %v2012
    %v2014 = vsub.f32 %v1205, %v2013
    %v2015 = vsub.f32 %v1208, %v2013
    %v2016 = vsub.f32 %v1213, %v2013
    %v2017 = vsub.f32 %v1216, %v2013
    %v2018 = vsub.f32 %v1221, %v2013
    %v2019 = vsub.f32 %v1224, %v2013
    %v2020 = vsub.f32 %v1229, %v2013
    %v2021 = vsub.f32 %v1232, %v2013
    %v2022 = vsub.f32 %v1237, %v2013
    %v2023 = vsub.f32 %v1240, %v2013
    %v2024 = vsub.f32 %v1245, %v2013
    %v2025 = vsub.f32 %v1248, %v2013
    %v2026 = vsub.f32 %v1253, %v2013
    %v2027 = vsub.f32 %v1256, %v2013
    %v2028 = vsub.f32 %v1261, %v2013
    %v2029 = vsub.f32 %v1264, %v2013
    %v2030 = vsub.f32 %v1269, %v2013
    %v2031 = vsub.f32 %v1272, %v2013
    %v2032 = vsub.f32 %v1277, %v2013
    %v2033 = vsub.f32 %v1280, %v2013
    %v2034 = vsub.f32 %v1285, %v2013
    %v2035 = vsub.f32 %v1288, %v2013
    %v2036 = vsub.f32 %v1293, %v2013
    %v2037 = vsub.f32 %v1296, %v2013
    %v2038 = vsub.f32 %v1301, %v2013
    %v2039 = vsub.f32 %v1304, %v2013
    %v2040 = vsub.f32 %v1309, %v2013
    %v2041 = vsub.f32 %v1312, %v2013
    %v2042 = vsub.f32 %v1317, %v2013
    %v2043 = vsub.f32 %v1320, %v2013
    %v2044 = vsub.f32 %v1325, %v2013
    %v2045 = vsub.f32 %v1328, %v2013
    %v2046 = vsub.f32 %v1333, %v2013
    %v2047 = vsub.f32 %v1336, %v2013
    %v2048 = vsub.f32 %v1341, %v2013
    %v2049 = vsub.f32 %v1344, %v2013
    %v2050 = vsub.f32 %v1349, %v2013
    %v2051 = vsub.f32 %v1352, %v2013
    %v2052 = vsub.f32 %v1357, %v2013
    %v2053 = vsub.f32 %v1360, %v2013
    %v2054 = vsub.f32 %v1365, %v2013
    %v2055 = vsub.f32 %v1368, %v2013
    %v2056 = vsub.f32 %v1373, %v2013
    %v2057 = vsub.f32 %v1376, %v2013
    %v2058 = vsub.f32 %v1381, %v2013
    %v2059 = vsub.f32 %v1384, %v2013
    %v2060 = vsub.f32 %v1389, %v2013
    %v2061 = vsub.f32 %v1392, %v2013
    %v2062 = vsub.f32 %v1397, %v2013
    %v2063 = vsub.f32 %v1400, %v2013
    %v2064 = vsub.f32 %v1405, %v2013
    %v2065 = vsub.f32 %v1408, %v2013
    %v2066 = vsub.f32 %v1413, %v2013
    %v2067 = vsub.f32 %v1416, %v2013
    %v2068 = vsub.f32 %v1421, %v2013
    %v2069 = vsub.f32 %v1424, %v2013
    %v2070 = vsub.f32 %v1429, %v2013
    %v2071 = vsub.f32 %v1432, %v2013
    %v2072 = vsub.f32 %v1437, %v2013
    %v2073 = vsub.f32 %v1440, %v2013
    %v2074 = vsub.f32 %v1445, %v2013
    %v2075 = vsub.f32 %v1448, %v2013
    %v2076 = vsub.f32 %v1453, %v2013
    %v2077 = vsub.f32 %v1456, %v2013
    %v2078 = vmul.f32 %v2014, %v2014
    %v2079 = vmul.f32 %v2015, %v2015
    %v2080 = vmul.f32 %v2016, %v2016
    %v2081 = vmul.f32 %v2017, %v2017
    %v2082 = vmul.f32 %v2018, %v2018
    %v2083 = vmul.f32 %v2019, %v2019
    %v2084 = vmul.f32 %v2020, %v2020
    %v2085 = vmul.f32 %v2021, %v2021
    %v2086 = vmul.f32 %v2022, %v2022
    %v2087 = vmul.f32 %v2023, %v2023
    %v2088 = vmul.f32 %v2024, %v2024
    %v2089 = vmul.f32 %v2025, %v2025
    %v2090 = vmul.f32 %v2026, %v2026
    %v2091 = vmul.f32 %v2027, %v2027
    %v2092 = vmul.f32 %v2028, %v2028
    %v2093 = vmul.f32 %v2029, %v2029
    %v2094 = vmul.f32 %v2030, %v2030
    %v2095 = vmul.f32 %v2031, %v2031
    %v2096 = vmul.f32 %v2032, %v2032
    %v2097 = vmul.f32 %v2033, %v2033
    %v2098 = vmul.f32 %v2034, %v2034
    %v2099 = vmul.f32 %v2035, %v2035
    %v2100 = vmul.f32 %v2036, %v2036
    %v2101 = vmul.f32 %v2037, %v2037
    %v2102 = vmul.f32 %v2038, %v2038
    %v2103 = vmul.f32 %v2039, %v2039
    %v2104 = vmul.f32 %v2040, %v2040
    %v2105 = vmul.f32 %v2041, %v2041
    %v2106 = vmul.f32 %v2042, %v2042
    %v2107 = vmul.f32 %v2043, %v2043
    %v2108 = vmul.f32 %v2044, %v2044
    %v2109 = vmul.f32 %v2045, %v2045
    %v2110 = vmul.f32 %v2046, %v2046
    %v2111 = vmul.f32 %v2047, %v2047
    %v2112 = vmul.f32 %v2048, %v2048
    %v2113 = vmul.f32 %v2049, %v2049
    %v2114 = vmul.f32 %v2050, %v2050
    %v2115 = vmul.f32 %v2051, %v2051
    %v2116 = vmul.f32 %v2052, %v2052
    %v2117 = vmul.f32 %v2053, %v2053
    %v2118 = vmul.f32 %v2054, %v2054
    %v2119 = vmul.f32 %v2055, %v2055
    %v2120 = vmul.f32 %v2056, %v2056
    %v2121 = vmul.f32 %v2057, %v2057
    %v2122 = vmul.f32 %v2058, %v2058
    %v2123 = vmul.f32 %v2059, %v2059
    %v2124 = vmul.f32 %v2060, %v2060
    %v2125 = vmul.f32 %v2061, %v2061
    %v2126 = vmul.f32 %v2062, %v2062
    %v2127 = vmul.f32 %v2063, %v2063
    %v2128 = vmul.f32 %v2064, %v2064
    %v2129 = vmul.f32 %v2065, %v2065
    %v2130 = vmul.f32 %v2066, %v2066
    %v2131 = vmul.f32 %v2067, %v2067
    %v2132 = vmul.f32 %v2068, %v2068
    %v2133 = vmul.f32 %v2069, %v2069
    %v2134 = vmul.f32 %v2070, %v2070
    %v2135 = vmul.f32 %v2071, %v2071
    %v2136 = vmul.f32 %v2072, %v2072
    %v2137 = vmul.f32 %v2073, %v2073
    %v2138 = vmul.f32 %v2074, %v2074
    %v2139 = vmul.f32 %v2075, %v2075
    %v2140 = vmul.f32 %v2076, %v2076
    %v2141 = vmul.f32 %v2077, %v2077
    %v2142 = vsel %vm784, %v2078, 0.0
    %v2143 = vsel %vm784, %v2079, 0.0
    %v2144 = vadd.f32 %v2142, %v2143
    %v2145 = vsel %vm784, %v2080, 0.0
    %v2146 = vadd.f32 %v2144, %v2145
    %v2147 = vsel %vm784, %v2081, 0.0
    %v2148 = vadd.f32 %v2146, %v2147
    %v2149 = vsel %vm784, %v2082, 0.0
    %v2150 = vadd.f32 %v2148, %v2149
    %v2151 = vsel %vm784, %v2083, 0.0
    %v2152 = vadd.f32 %v2150, %v2151
    %v2153 = vsel %vm784, %v2084, 0.0
    %v2154 = vadd.f32 %v2152, %v2153
    %v2155 = vsel %vm784, %v2085, 0.0
    %v2156 = vadd.f32 %v2154, %v2155
    %v2157 = vsel %vm784, %v2086, 0.0
    %v2158 = vadd.f32 %v2156, %v2157
    %v2159 = vsel %vm784, %v2087, 0.0
    %v2160 = vadd.f32 %v2158, %v2159
    %v2161 = vsel %vm784, %v2088, 0.0
    %v2162 = vadd.f32 %v2160, %v2161
    %v2163 = vsel %vm784, %v2089, 0.0
    %v2164 = vadd.f32 %v2162, %v2163
    %v2165 = vsel %vm784, %v2090, 0.0
    %v2166 = vadd.f32 %v2164, %v2165
    %v2167 = vsel %vm784, %v2091, 0.0
    %v2168 = vadd.f32 %v2166, %v2167
    %v2169 = vsel %vm784, %v2092, 0.0
    %v2170 = vadd.f32 %v2168, %v2169
    %v2171 = vsel %vm784, %v2093, 0.0
    %v2172 = vadd.f32 %v2170, %v2171
    %v2173 = vsel %vm784, %v2094, 0.0
    %v2174 = vadd.f32 %v2172, %v2173
    %v2175 = vsel %vm784, %v2095, 0.0
    %v2176 = vadd.f32 %v2174, %v2175
    %v2177 = vsel %vm784, %v2096, 0.0
    %v2178 = vadd.f32 %v2176, %v2177
    %v2179 = vsel %vm784, %v2097, 0.0
    %v2180 = vadd.f32 %v2178, %v2179
    %v2181 = vsel %vm784, %v2098, 0.0
    %v2182 = vadd.f32 %v2180, %v2181
    %v2183 = vsel %vm784, %v2099, 0.0
    %v2184 = vadd.f32 %v2182, %v2183
    %v2185 = vsel %vm784, %v2100, 0.0
    %v2186 = vadd.f32 %v2184, %v2185
    %v2187 = vsel %vm784, %v2101, 0.0
    %v2188 = vadd.f32 %v2186, %v2187
    %v2189 = vsel %vm784, %v2102, 0.0
    %v2190 = vadd.f32 %v2188, %v2189
    %v2191 = vsel %vm784, %v2103, 0.0
    %v2192 = vadd.f32 %v2190, %v2191
    %v2193 = vsel %vm784, %v2104, 0.0
    %v2194 = vadd.f32 %v2192, %v2193
    %v2195 = vsel %vm784, %v2105, 0.0
    %v2196 = vadd.f32 %v2194, %v2195
    %v2197 = vsel %vm784, %v2106, 0.0
    %v2198 = vadd.f32 %v2196, %v2197
    %v2199 = vsel %vm784, %v2107, 0.0
    %v2200 = vadd.f32 %v2198, %v2199
    %v2201 = vsel %vm784, %v2108, 0.0
    %v2202 = vadd.f32 %v2200, %v2201
    %v2203 = vsel %vm784, %v2109, 0.0
    %v2204 = vadd.f32 %v2202, %v2203
    %v2205 = vsel %vm784, %v2110, 0.0
    %v2206 = vadd.f32 %v2204, %v2205
    %v2207 = vsel %vm784, %v2111, 0.0
    %v2208 = vadd.f32 %v2206, %v2207
    %v2209 = vsel %vm784, %v2112, 0.0
    %v2210 = vadd.f32 %v2208, %v2209
    %v2211 = vsel %vm784, %v2113, 0.0
    %v2212 = vadd.f32 %v2210, %v2211
    %v2213 = vsel %vm784, %v2114, 0.0
    %v2214 = vadd.f32 %v2212, %v2213
    %v2215 = vsel %vm784, %v2115, 0.0
    %v2216 = vadd.f32 %v2214, %v2215
    %v2217 = vsel %vm784, %v2116, 0.0
    %v2218 = vadd.f32 %v2216, %v2217
    %v2219 = vsel %vm784, %v2117, 0.0
    %v2220 = vadd.f32 %v2218, %v2219
    %v2221 = vsel %vm784, %v2118, 0.0
    %v2222 = vadd.f32 %v2220, %v2221
    %v2223 = vsel %vm784, %v2119, 0.0
    %v2224 = vadd.f32 %v2222, %v2223
    %v2225 = vsel %vm784, %v2120, 0.0
    %v2226 = vadd.f32 %v2224, %v2225
    %v2227 = vsel %vm784, %v2121, 0.0
    %v2228 = vadd.f32 %v2226, %v2227
    %v2229 = vsel %vm784, %v2122, 0.0
    %v2230 = vadd.f32 %v2228, %v2229
    %v2231 = vsel %vm784, %v2123, 0.0
    %v2232 = vadd.f32 %v2230, %v2231
    %v2233 = vsel %vm784, %v2124, 0.0
    %v2234 = vadd.f32 %v2232, %v2233
    %v2235 = vsel %vm784, %v2125, 0.0
    %v2236 = vadd.f32 %v2234, %v2235
    %v2237 = vsel %vm784, %v2126, 0.0
    %v2238 = vadd.f32 %v2236, %v2237
    %v2239 = vsel %vm784, %v2127, 0.0
    %v2240 = vadd.f32 %v2238, %v2239
    %v2241 = vsel %vm784, %v2128, 0.0
    %v2242 = vadd.f32 %v2240, %v2241
    %v2243 = vsel %vm784, %v2129, 0.0
    %v2244 = vadd.f32 %v2242, %v2243
    %v2245 = vsel %vm784, %v2130, 0.0
    %v2246 = vadd.f32 %v2244, %v2245
    %v2247 = vsel %vm784, %v2131, 0.0
    %v2248 = vadd.f32 %v2246, %v2247
    %v2249 = vsel %vm784, %v2132, 0.0
    %v2250 = vadd.f32 %v2248, %v2249
    %v2251 = vsel %vm784, %v2133, 0.0
    %v2252 = vadd.f32 %v2250, %v2251
    %v2253 = vsel %vm784, %v2134, 0.0
    %v2254 = vadd.f32 %v2252, %v2253
    %v2255 = vsel %vm784, %v2135, 0.0
    %v2256 = vadd.f32 %v2254, %v2255
    %v2257 = vsel %vm784, %v2136, 0.0
    %v2258 = vadd.f32 %v2256, %v2257
    %v2259 = vsel %vm784, %v2137, 0.0
    %v2260 = vadd.f32 %v2258, %v2259
    %v2261 = vsel %vm784, %v2138, 0.0
    %v2262 = vadd.f32 %v2260, %v2261
    %v2263 = vsel %vm784, %v2139, 0.0
    %v2264 = vadd.f32 %v2262, %v2263
    %v2265 = vsel %vm784, %v2140, 0.0
    %v2266 = vadd.f32 %v2264, %v2265
    %v2267 = vsel %vm784, %v2141, 0.0
    %v2268 = vadd.f32 %v2266, %v2267
    %v2269 = vrot.slane %v2268, 4
    %v2270 = vadd.f32 %v2268, %v2269
    %v2271 = vrot.slane %v2270, 2
    %v2272 = vadd.f32 %v2270, %v2271
    %v2273 = vrot.slane %v2272, 1
    %v2274 = vadd.f32 %v2272, %v2273
    %v2275 = vadd.f32 %v2274, 0.0
    %2277 = vrot.lane.b32.xlu0 %v2013, 32
    %v2278 = vpop.permute.xlu0 %2277
    %v2280 = vsub.f32 %v1205, %v2278
    %v2281 = vsub.f32 %v1208, %v2278
    %v2282 = vsub.f32 %v1213, %v2278
    %v2283 = vsub.f32 %v1216, %v2278
    %v2284 = vsub.f32 %v1221, %v2278
    %v2285 = vsub.f32 %v1224, %v2278
    %v2286 = vsub.f32 %v1229, %v2278
    %v2287 = vsub.f32 %v1232, %v2278
    %v2288 = vsub.f32 %v1237, %v2278
    %v2289 = vsub.f32 %v1240, %v2278
    %v2290 = vsub.f32 %v1245, %v2278
    %v2291 = vsub.f32 %v1248, %v2278
    %v2292 = vsub.f32 %v1253, %v2278
    %v2293 = vsub.f32 %v1256, %v2278
    %v2294 = vsub.f32 %v1261, %v2278
    %v2295 = vsub.f32 %v1264, %v2278
    %v2296 = vsub.f32 %v1269, %v2278
    %v2297 = vsub.f32 %v1272, %v2278
    %v2298 = vsub.f32 %v1277, %v2278
    %v2299 = vsub.f32 %v1280, %v2278
    %v2300 = vsub.f32 %v1285, %v2278
    %v2301 = vsub.f32 %v1288, %v2278
    %v2302 = vsub.f32 %v1293, %v2278
    %v2303 = vsub.f32 %v1296, %v2278
    %v2304 = vsub.f32 %v1301, %v2278
    %v2305 = vsub.f32 %v1304, %v2278
    %v2306 = vsub.f32 %v1309, %v2278
    %v2307 = vsub.f32 %v1312, %v2278
    %v2308 = vsub.f32 %v1317, %v2278
    %v2309 = vsub.f32 %v1320, %v2278
    %v2310 = vsub.f32 %v1325, %v2278
    %v2311 = vsub.f32 %v1328, %v2278
    %v2312 = vsub.f32 %v1333, %v2278
    %v2313 = vsub.f32 %v1336, %v2278
    %v2314 = vsub.f32 %v1341, %v2278
    %v2315 = vsub.f32 %v1344, %v2278
    %v2316 = vsub.f32 %v1349, %v2278
    %v2317 = vsub.f32 %v1352, %v2278
    %v2318 = vsub.f32 %v1357, %v2278
    %v2319 = vsub.f32 %v1360, %v2278
    %v2320 = vsub.f32 %v1365, %v2278
    %v2321 = vsub.f32 %v1368, %v2278
    %v2322 = vsub.f32 %v1373, %v2278
    %v2323 = vsub.f32 %v1376, %v2278
    %v2324 = vsub.f32 %v1381, %v2278
    %v2325 = vsub.f32 %v1384, %v2278
    %v2326 = vsub.f32 %v1389, %v2278
    %v2327 = vsub.f32 %v1392, %v2278
    %v2328 = vsub.f32 %v1397, %v2278
    %v2329 = vsub.f32 %v1400, %v2278
    %v2330 = vsub.f32 %v1405, %v2278
    %v2331 = vsub.f32 %v1408, %v2278
    %v2332 = vsub.f32 %v1413, %v2278
    %v2333 = vsub.f32 %v1416, %v2278
    %v2334 = vsub.f32 %v1421, %v2278
    %v2335 = vsub.f32 %v1424, %v2278
    %v2336 = vsub.f32 %v1429, %v2278
    %v2337 = vsub.f32 %v1432, %v2278
    %v2338 = vsub.f32 %v1437, %v2278
    %v2339 = vsub.f32 %v1440, %v2278
    %v2340 = vsub.f32 %v1445, %v2278
    %v2341 = vsub.f32 %v1448, %v2278
    %v2342 = vsub.f32 %v1453, %v2278
    %v2343 = vsub.f32 %v1456, %v2278
    %v2344 = vmul.f32 %v2280, %v2280
    %v2345 = vmul.f32 %v2281, %v2281
    %v2346 = vmul.f32 %v2282, %v2282
    %v2347 = vmul.f32 %v2283, %v2283
    %v2348 = vmul.f32 %v2284, %v2284
    %v2349 = vmul.f32 %v2285, %v2285
    %v2350 = vmul.f32 %v2286, %v2286
    %v2351 = vmul.f32 %v2287, %v2287
    %v2352 = vmul.f32 %v2288, %v2288
    %v2353 = vmul.f32 %v2289, %v2289
    %v2354 = vmul.f32 %v2290, %v2290
    %v2355 = vmul.f32 %v2291, %v2291
    %v2356 = vmul.f32 %v2292, %v2292
    %v2357 = vmul.f32 %v2293, %v2293
    %v2358 = vmul.f32 %v2294, %v2294
    %v2359 = vmul.f32 %v2295, %v2295
    %v2360 = vmul.f32 %v2296, %v2296
    %v2361 = vmul.f32 %v2297, %v2297
    %v2362 = vmul.f32 %v2298, %v2298
    %v2363 = vmul.f32 %v2299, %v2299
    %v2364 = vmul.f32 %v2300, %v2300
    %v2365 = vmul.f32 %v2301, %v2301
    %v2366 = vmul.f32 %v2302, %v2302
    %v2367 = vmul.f32 %v2303, %v2303
    %v2368 = vmul.f32 %v2304, %v2304
    %v2369 = vmul.f32 %v2305, %v2305
    %v2370 = vmul.f32 %v2306, %v2306
    %v2371 = vmul.f32 %v2307, %v2307
    %v2372 = vmul.f32 %v2308, %v2308
    %v2373 = vmul.f32 %v2309, %v2309
    %v2374 = vmul.f32 %v2310, %v2310
    %v2375 = vmul.f32 %v2311, %v2311
    %v2376 = vmul.f32 %v2312, %v2312
    %v2377 = vmul.f32 %v2313, %v2313
    %v2378 = vmul.f32 %v2314, %v2314
    %v2379 = vmul.f32 %v2315, %v2315
    %v2380 = vmul.f32 %v2316, %v2316
    %v2381 = vmul.f32 %v2317, %v2317
    %v2382 = vmul.f32 %v2318, %v2318
    %v2383 = vmul.f32 %v2319, %v2319
    %v2384 = vmul.f32 %v2320, %v2320
    %v2385 = vmul.f32 %v2321, %v2321
    %v2386 = vmul.f32 %v2322, %v2322
    %v2387 = vmul.f32 %v2323, %v2323
    %v2388 = vmul.f32 %v2324, %v2324
    %v2389 = vmul.f32 %v2325, %v2325
    %v2390 = vmul.f32 %v2326, %v2326
    %v2391 = vmul.f32 %v2327, %v2327
    %v2392 = vmul.f32 %v2328, %v2328
    %v2393 = vmul.f32 %v2329, %v2329
    %v2394 = vmul.f32 %v2330, %v2330
    %v2395 = vmul.f32 %v2331, %v2331
    %v2396 = vmul.f32 %v2332, %v2332
    %v2397 = vmul.f32 %v2333, %v2333
    %v2398 = vmul.f32 %v2334, %v2334
    %v2399 = vmul.f32 %v2335, %v2335
    %v2400 = vmul.f32 %v2336, %v2336
    %v2401 = vmul.f32 %v2337, %v2337
    %v2402 = vmul.f32 %v2338, %v2338
    %v2403 = vmul.f32 %v2339, %v2339
    %v2404 = vmul.f32 %v2340, %v2340
    %v2405 = vmul.f32 %v2341, %v2341
    %v2406 = vmul.f32 %v2342, %v2342
    %v2407 = vmul.f32 %v2343, %v2343
    %v2408 = vsel %vm1592, %v2344, 0.0
    %v2409 = vsel %vm1592, %v2345, 0.0
    %v2410 = vadd.f32 %v2408, %v2409
    %v2411 = vsel %vm1592, %v2346, 0.0
    %v2412 = vadd.f32 %v2410, %v2411
    %v2413 = vsel %vm1592, %v2347, 0.0
    %v2414 = vadd.f32 %v2412, %v2413
    %v2415 = vsel %vm1592, %v2348, 0.0
    %v2416 = vadd.f32 %v2414, %v2415
    %v2417 = vsel %vm1592, %v2349, 0.0
    %v2418 = vadd.f32 %v2416, %v2417
    %v2419 = vsel %vm1592, %v2350, 0.0
    %v2420 = vadd.f32 %v2418, %v2419
    %v2421 = vsel %vm1592, %v2351, 0.0
    %v2422 = vadd.f32 %v2420, %v2421
    %v2423 = vsel %vm1592, %v2352, 0.0
    %v2424 = vadd.f32 %v2422, %v2423
    %v2425 = vsel %vm1592, %v2353, 0.0
    %v2426 = vadd.f32 %v2424, %v2425
    %v2427 = vsel %vm1592, %v2354, 0.0
    %v2428 = vadd.f32 %v2426, %v2427
    %v2429 = vsel %vm1592, %v2355, 0.0
    %v2430 = vadd.f32 %v2428, %v2429
    %v2431 = vsel %vm1592, %v2356, 0.0
    %v2432 = vadd.f32 %v2430, %v2431
    %v2433 = vsel %vm1592, %v2357, 0.0
    %v2434 = vadd.f32 %v2432, %v2433
    %v2435 = vsel %vm1592, %v2358, 0.0
    %v2436 = vadd.f32 %v2434, %v2435
    %v2437 = vsel %vm1592, %v2359, 0.0
    %v2438 = vadd.f32 %v2436, %v2437
    %v2439 = vsel %vm1592, %v2360, 0.0
    %v2440 = vadd.f32 %v2438, %v2439
    %v2441 = vsel %vm1592, %v2361, 0.0
    %v2442 = vadd.f32 %v2440, %v2441
    %v2443 = vsel %vm1592, %v2362, 0.0
    %v2444 = vadd.f32 %v2442, %v2443
    %v2445 = vsel %vm1592, %v2363, 0.0
    %v2446 = vadd.f32 %v2444, %v2445
    %v2447 = vsel %vm1592, %v2364, 0.0
    %v2448 = vadd.f32 %v2446, %v2447
    %v2449 = vsel %vm1592, %v2365, 0.0
    %v2450 = vadd.f32 %v2448, %v2449
    %v2451 = vsel %vm1592, %v2366, 0.0
    %v2452 = vadd.f32 %v2450, %v2451
    %v2453 = vsel %vm1592, %v2367, 0.0
    %v2454 = vadd.f32 %v2452, %v2453
    %v2455 = vsel %vm1592, %v2368, 0.0
    %v2456 = vadd.f32 %v2454, %v2455
    %v2457 = vsel %vm1592, %v2369, 0.0
    %v2458 = vadd.f32 %v2456, %v2457
    %v2459 = vsel %vm1592, %v2370, 0.0
    %v2460 = vadd.f32 %v2458, %v2459
    %v2461 = vsel %vm1592, %v2371, 0.0
    %v2462 = vadd.f32 %v2460, %v2461
    %v2463 = vsel %vm1592, %v2372, 0.0
    %v2464 = vadd.f32 %v2462, %v2463
    %v2465 = vsel %vm1592, %v2373, 0.0
    %v2466 = vadd.f32 %v2464, %v2465
    %v2467 = vsel %vm1592, %v2374, 0.0
    %v2468 = vadd.f32 %v2466, %v2467
    %v2469 = vsel %vm1592, %v2375, 0.0
    %v2470 = vadd.f32 %v2468, %v2469
    %v2471 = vsel %vm1592, %v2376, 0.0
    %v2472 = vadd.f32 %v2470, %v2471
    %v2473 = vsel %vm1592, %v2377, 0.0
    %v2474 = vadd.f32 %v2472, %v2473
    %v2475 = vsel %vm1592, %v2378, 0.0
    %v2476 = vadd.f32 %v2474, %v2475
    %v2477 = vsel %vm1592, %v2379, 0.0
    %v2478 = vadd.f32 %v2476, %v2477
    %v2479 = vsel %vm1592, %v2380, 0.0
    %v2480 = vadd.f32 %v2478, %v2479
    %v2481 = vsel %vm1592, %v2381, 0.0
    %v2482 = vadd.f32 %v2480, %v2481
    %v2483 = vsel %vm1592, %v2382, 0.0
    %v2484 = vadd.f32 %v2482, %v2483
    %v2485 = vsel %vm1592, %v2383, 0.0
    %v2486 = vadd.f32 %v2484, %v2485
    %v2487 = vsel %vm1592, %v2384, 0.0
    %v2488 = vadd.f32 %v2486, %v2487
    %v2489 = vsel %vm1592, %v2385, 0.0
    %v2490 = vadd.f32 %v2488, %v2489
    %v2491 = vsel %vm1592, %v2386, 0.0
    %v2492 = vadd.f32 %v2490, %v2491
    %v2493 = vsel %vm1592, %v2387, 0.0
    %v2494 = vadd.f32 %v2492, %v2493
    %v2495 = vsel %vm1592, %v2388, 0.0
    %v2496 = vadd.f32 %v2494, %v2495
    %v2497 = vsel %vm1592, %v2389, 0.0
    %v2498 = vadd.f32 %v2496, %v2497
    %v2499 = vsel %vm1592, %v2390, 0.0
    %v2500 = vadd.f32 %v2498, %v2499
    %v2501 = vsel %vm1592, %v2391, 0.0
    %v2502 = vadd.f32 %v2500, %v2501
    %v2503 = vsel %vm1592, %v2392, 0.0
    %v2504 = vadd.f32 %v2502, %v2503
    %v2505 = vsel %vm1592, %v2393, 0.0
    %v2506 = vadd.f32 %v2504, %v2505
    %v2507 = vsel %vm1592, %v2394, 0.0
    %v2508 = vadd.f32 %v2506, %v2507
    %v2509 = vsel %vm1592, %v2395, 0.0
    %v2510 = vadd.f32 %v2508, %v2509
    %v2511 = vsel %vm1592, %v2396, 0.0
    %v2512 = vadd.f32 %v2510, %v2511
    %v2513 = vsel %vm1592, %v2397, 0.0
    %v2514 = vadd.f32 %v2512, %v2513
    %v2515 = vsel %vm1592, %v2398, 0.0
    %v2516 = vadd.f32 %v2514, %v2515
    %v2517 = vsel %vm1592, %v2399, 0.0
    %v2518 = vadd.f32 %v2516, %v2517
    %v2519 = vsel %vm1592, %v2400, 0.0
    %v2520 = vadd.f32 %v2518, %v2519
    %v2521 = vsel %vm1592, %v2401, 0.0
    %v2522 = vadd.f32 %v2520, %v2521
    %v2523 = vsel %vm1592, %v2402, 0.0
    %v2524 = vadd.f32 %v2522, %v2523
    %v2525 = vsel %vm1592, %v2403, 0.0
    %v2526 = vadd.f32 %v2524, %v2525
    %v2527 = vsel %vm1592, %v2404, 0.0
    %v2528 = vadd.f32 %v2526, %v2527
    %v2529 = vsel %vm1592, %v2405, 0.0
    %v2530 = vadd.f32 %v2528, %v2529
    %v2531 = vsel %vm1592, %v2406, 0.0
    %v2532 = vadd.f32 %v2530, %v2531
    %v2533 = vsel %vm1592, %v2407, 0.0
    %v2534 = vadd.f32 %v2532, %v2533
    %v2535 = vrot.slane %v2534, 4
    %v2536 = vadd.f32 %v2534, %v2535
    %v2537 = vrot.slane %v2536, 2
    %v2538 = vadd.f32 %v2536, %v2537
    %v2539 = vrot.slane %v2538, 1
    %v2540 = vadd.f32 %v2538, %v2539
    %2542 = vrot.lane.b32.xlu0 %v2540, 96
    %v2543 = vpop.permute.xlu0 %2542
    %v2545 = vadd.f32 %v2275, %v2543
    %2546 = vrot.lane.b32.xlu0 %v2013, 64
    %v2547 = vpop.permute.xlu0 %2546
    %v2549 = vsub.f32 %v1205, %v2547
    %v2550 = vsub.f32 %v1208, %v2547
    %v2551 = vsub.f32 %v1213, %v2547
    %v2552 = vsub.f32 %v1216, %v2547
    %v2553 = vsub.f32 %v1221, %v2547
    %v2554 = vsub.f32 %v1224, %v2547
    %v2555 = vsub.f32 %v1229, %v2547
    %v2556 = vsub.f32 %v1232, %v2547
    %v2557 = vsub.f32 %v1237, %v2547
    %v2558 = vsub.f32 %v1240, %v2547
    %v2559 = vsub.f32 %v1245, %v2547
    %v2560 = vsub.f32 %v1248, %v2547
    %v2561 = vsub.f32 %v1253, %v2547
    %v2562 = vsub.f32 %v1256, %v2547
    %v2563 = vsub.f32 %v1261, %v2547
    %v2564 = vsub.f32 %v1264, %v2547
    %v2565 = vsub.f32 %v1269, %v2547
    %v2566 = vsub.f32 %v1272, %v2547
    %v2567 = vsub.f32 %v1277, %v2547
    %v2568 = vsub.f32 %v1280, %v2547
    %v2569 = vsub.f32 %v1285, %v2547
    %v2570 = vsub.f32 %v1288, %v2547
    %v2571 = vsub.f32 %v1293, %v2547
    %v2572 = vsub.f32 %v1296, %v2547
    %v2573 = vsub.f32 %v1301, %v2547
    %v2574 = vsub.f32 %v1304, %v2547
    %v2575 = vsub.f32 %v1309, %v2547
    %v2576 = vsub.f32 %v1312, %v2547
    %v2577 = vsub.f32 %v1317, %v2547
    %v2578 = vsub.f32 %v1320, %v2547
    %v2579 = vsub.f32 %v1325, %v2547
    %v2580 = vsub.f32 %v1328, %v2547
    %v2581 = vsub.f32 %v1333, %v2547
    %v2582 = vsub.f32 %v1336, %v2547
    %v2583 = vsub.f32 %v1341, %v2547
    %v2584 = vsub.f32 %v1344, %v2547
    %v2585 = vsub.f32 %v1349, %v2547
    %v2586 = vsub.f32 %v1352, %v2547
    %v2587 = vsub.f32 %v1357, %v2547
    %v2588 = vsub.f32 %v1360, %v2547
    %v2589 = vsub.f32 %v1365, %v2547
    %v2590 = vsub.f32 %v1368, %v2547
    %v2591 = vsub.f32 %v1373, %v2547
    %v2592 = vsub.f32 %v1376, %v2547
    %v2593 = vsub.f32 %v1381, %v2547
    %v2594 = vsub.f32 %v1384, %v2547
    %v2595 = vsub.f32 %v1389, %v2547
    %v2596 = vsub.f32 %v1392, %v2547
    %v2597 = vsub.f32 %v1397, %v2547
    %v2598 = vsub.f32 %v1400, %v2547
    %v2599 = vsub.f32 %v1405, %v2547
    %v2600 = vsub.f32 %v1408, %v2547
    %v2601 = vsub.f32 %v1413, %v2547
    %v2602 = vsub.f32 %v1416, %v2547
    %v2603 = vsub.f32 %v1421, %v2547
    %v2604 = vsub.f32 %v1424, %v2547
    %v2605 = vsub.f32 %v1429, %v2547
    %v2606 = vsub.f32 %v1432, %v2547
    %v2607 = vsub.f32 %v1437, %v2547
    %v2608 = vsub.f32 %v1440, %v2547
    %v2609 = vsub.f32 %v1445, %v2547
    %v2610 = vsub.f32 %v1448, %v2547
    %v2611 = vsub.f32 %v1453, %v2547
    %v2612 = vsub.f32 %v1456, %v2547
    %v2613 = vmul.f32 %v2549, %v2549
    %v2614 = vmul.f32 %v2550, %v2550
    %v2615 = vmul.f32 %v2551, %v2551
    %v2616 = vmul.f32 %v2552, %v2552
    %v2617 = vmul.f32 %v2553, %v2553
    %v2618 = vmul.f32 %v2554, %v2554
    %v2619 = vmul.f32 %v2555, %v2555
    %v2620 = vmul.f32 %v2556, %v2556
    %v2621 = vmul.f32 %v2557, %v2557
    %v2622 = vmul.f32 %v2558, %v2558
    %v2623 = vmul.f32 %v2559, %v2559
    %v2624 = vmul.f32 %v2560, %v2560
    %v2625 = vmul.f32 %v2561, %v2561
    %v2626 = vmul.f32 %v2562, %v2562
    %v2627 = vmul.f32 %v2563, %v2563
    %v2628 = vmul.f32 %v2564, %v2564
    %v2629 = vmul.f32 %v2565, %v2565
    %v2630 = vmul.f32 %v2566, %v2566
    %v2631 = vmul.f32 %v2567, %v2567
    %v2632 = vmul.f32 %v2568, %v2568
    %v2633 = vmul.f32 %v2569, %v2569
    %v2634 = vmul.f32 %v2570, %v2570
    %v2635 = vmul.f32 %v2571, %v2571
    %v2636 = vmul.f32 %v2572, %v2572
    %v2637 = vmul.f32 %v2573, %v2573
    %v2638 = vmul.f32 %v2574, %v2574
    %v2639 = vmul.f32 %v2575, %v2575
    %v2640 = vmul.f32 %v2576, %v2576
    %v2641 = vmul.f32 %v2577, %v2577
    %v2642 = vmul.f32 %v2578, %v2578
    %v2643 = vmul.f32 %v2579, %v2579
    %v2644 = vmul.f32 %v2580, %v2580
    %v2645 = vmul.f32 %v2581, %v2581
    %v2646 = vmul.f32 %v2582, %v2582
    %v2647 = vmul.f32 %v2583, %v2583
    %v2648 = vmul.f32 %v2584, %v2584
    %v2649 = vmul.f32 %v2585, %v2585
    %v2650 = vmul.f32 %v2586, %v2586
    %v2651 = vmul.f32 %v2587, %v2587
    %v2652 = vmul.f32 %v2588, %v2588
    %v2653 = vmul.f32 %v2589, %v2589
    %v2654 = vmul.f32 %v2590, %v2590
    %v2655 = vmul.f32 %v2591, %v2591
    %v2656 = vmul.f32 %v2592, %v2592
    %v2657 = vmul.f32 %v2593, %v2593
    %v2658 = vmul.f32 %v2594, %v2594
    %v2659 = vmul.f32 %v2595, %v2595
    %v2660 = vmul.f32 %v2596, %v2596
    %v2661 = vmul.f32 %v2597, %v2597
    %v2662 = vmul.f32 %v2598, %v2598
    %v2663 = vmul.f32 %v2599, %v2599
    %v2664 = vmul.f32 %v2600, %v2600
    %v2665 = vmul.f32 %v2601, %v2601
    %v2666 = vmul.f32 %v2602, %v2602
    %v2667 = vmul.f32 %v2603, %v2603
    %v2668 = vmul.f32 %v2604, %v2604
    %v2669 = vmul.f32 %v2605, %v2605
    %v2670 = vmul.f32 %v2606, %v2606
    %v2671 = vmul.f32 %v2607, %v2607
    %v2672 = vmul.f32 %v2608, %v2608
    %v2673 = vmul.f32 %v2609, %v2609
    %v2674 = vmul.f32 %v2610, %v2610
    %v2675 = vmul.f32 %v2611, %v2611
    %v2676 = vmul.f32 %v2612, %v2612
    %v2677 = vsel %vm1731, %v2613, 0.0
    %v2678 = vsel %vm1731, %v2614, 0.0
    %v2679 = vadd.f32 %v2677, %v2678
    %v2680 = vsel %vm1731, %v2615, 0.0
    %v2681 = vadd.f32 %v2679, %v2680
    %v2682 = vsel %vm1731, %v2616, 0.0
    %v2683 = vadd.f32 %v2681, %v2682
    %v2684 = vsel %vm1731, %v2617, 0.0
    %v2685 = vadd.f32 %v2683, %v2684
    %v2686 = vsel %vm1731, %v2618, 0.0
    %v2687 = vadd.f32 %v2685, %v2686
    %v2688 = vsel %vm1731, %v2619, 0.0
    %v2689 = vadd.f32 %v2687, %v2688
    %v2690 = vsel %vm1731, %v2620, 0.0
    %v2691 = vadd.f32 %v2689, %v2690
    %v2692 = vsel %vm1731, %v2621, 0.0
    %v2693 = vadd.f32 %v2691, %v2692
    %v2694 = vsel %vm1731, %v2622, 0.0
    %v2695 = vadd.f32 %v2693, %v2694
    %v2696 = vsel %vm1731, %v2623, 0.0
    %v2697 = vadd.f32 %v2695, %v2696
    %v2698 = vsel %vm1731, %v2624, 0.0
    %v2699 = vadd.f32 %v2697, %v2698
    %v2700 = vsel %vm1731, %v2625, 0.0
    %v2701 = vadd.f32 %v2699, %v2700
    %v2702 = vsel %vm1731, %v2626, 0.0
    %v2703 = vadd.f32 %v2701, %v2702
    %v2704 = vsel %vm1731, %v2627, 0.0
    %v2705 = vadd.f32 %v2703, %v2704
    %v2706 = vsel %vm1731, %v2628, 0.0
    %v2707 = vadd.f32 %v2705, %v2706
    %v2708 = vsel %vm1731, %v2629, 0.0
    %v2709 = vadd.f32 %v2707, %v2708
    %v2710 = vsel %vm1731, %v2630, 0.0
    %v2711 = vadd.f32 %v2709, %v2710
    %v2712 = vsel %vm1731, %v2631, 0.0
    %v2713 = vadd.f32 %v2711, %v2712
    %v2714 = vsel %vm1731, %v2632, 0.0
    %v2715 = vadd.f32 %v2713, %v2714
    %v2716 = vsel %vm1731, %v2633, 0.0
    %v2717 = vadd.f32 %v2715, %v2716
    %v2718 = vsel %vm1731, %v2634, 0.0
    %v2719 = vadd.f32 %v2717, %v2718
    %v2720 = vsel %vm1731, %v2635, 0.0
    %v2721 = vadd.f32 %v2719, %v2720
    %v2722 = vsel %vm1731, %v2636, 0.0
    %v2723 = vadd.f32 %v2721, %v2722
    %v2724 = vsel %vm1731, %v2637, 0.0
    %v2725 = vadd.f32 %v2723, %v2724
    %v2726 = vsel %vm1731, %v2638, 0.0
    %v2727 = vadd.f32 %v2725, %v2726
    %v2728 = vsel %vm1731, %v2639, 0.0
    %v2729 = vadd.f32 %v2727, %v2728
    %v2730 = vsel %vm1731, %v2640, 0.0
    %v2731 = vadd.f32 %v2729, %v2730
    %v2732 = vsel %vm1731, %v2641, 0.0
    %v2733 = vadd.f32 %v2731, %v2732
    %v2734 = vsel %vm1731, %v2642, 0.0
    %v2735 = vadd.f32 %v2733, %v2734
    %v2736 = vsel %vm1731, %v2643, 0.0
    %v2737 = vadd.f32 %v2735, %v2736
    %v2738 = vsel %vm1731, %v2644, 0.0
    %v2739 = vadd.f32 %v2737, %v2738
    %v2740 = vsel %vm1731, %v2645, 0.0
    %v2741 = vadd.f32 %v2739, %v2740
    %v2742 = vsel %vm1731, %v2646, 0.0
    %v2743 = vadd.f32 %v2741, %v2742
    %v2744 = vsel %vm1731, %v2647, 0.0
    %v2745 = vadd.f32 %v2743, %v2744
    %v2746 = vsel %vm1731, %v2648, 0.0
    %v2747 = vadd.f32 %v2745, %v2746
    %v2748 = vsel %vm1731, %v2649, 0.0
    %v2749 = vadd.f32 %v2747, %v2748
    %v2750 = vsel %vm1731, %v2650, 0.0
    %v2751 = vadd.f32 %v2749, %v2750
    %v2752 = vsel %vm1731, %v2651, 0.0
    %v2753 = vadd.f32 %v2751, %v2752
    %v2754 = vsel %vm1731, %v2652, 0.0
    %v2755 = vadd.f32 %v2753, %v2754
    %v2756 = vsel %vm1731, %v2653, 0.0
    %v2757 = vadd.f32 %v2755, %v2756
    %v2758 = vsel %vm1731, %v2654, 0.0
    %v2759 = vadd.f32 %v2757, %v2758
    %v2760 = vsel %vm1731, %v2655, 0.0
    %v2761 = vadd.f32 %v2759, %v2760
    %v2762 = vsel %vm1731, %v2656, 0.0
    %v2763 = vadd.f32 %v2761, %v2762
    %v2764 = vsel %vm1731, %v2657, 0.0
    %v2765 = vadd.f32 %v2763, %v2764
    %v2766 = vsel %vm1731, %v2658, 0.0
    %v2767 = vadd.f32 %v2765, %v2766
    %v2768 = vsel %vm1731, %v2659, 0.0
    %v2769 = vadd.f32 %v2767, %v2768
    %v2770 = vsel %vm1731, %v2660, 0.0
    %v2771 = vadd.f32 %v2769, %v2770
    %v2772 = vsel %vm1731, %v2661, 0.0
    %v2773 = vadd.f32 %v2771, %v2772
    %v2774 = vsel %vm1731, %v2662, 0.0
    %v2775 = vadd.f32 %v2773, %v2774
    %v2776 = vsel %vm1731, %v2663, 0.0
    %v2777 = vadd.f32 %v2775, %v2776
    %v2778 = vsel %vm1731, %v2664, 0.0
    %v2779 = vadd.f32 %v2777, %v2778
    %v2780 = vsel %vm1731, %v2665, 0.0
    %v2781 = vadd.f32 %v2779, %v2780
    %v2782 = vsel %vm1731, %v2666, 0.0
    %v2783 = vadd.f32 %v2781, %v2782
    %v2784 = vsel %vm1731, %v2667, 0.0
    %v2785 = vadd.f32 %v2783, %v2784
    %v2786 = vsel %vm1731, %v2668, 0.0
    %v2787 = vadd.f32 %v2785, %v2786
    %v2788 = vsel %vm1731, %v2669, 0.0
    %v2789 = vadd.f32 %v2787, %v2788
    %v2790 = vsel %vm1731, %v2670, 0.0
    %v2791 = vadd.f32 %v2789, %v2790
    %v2792 = vsel %vm1731, %v2671, 0.0
    %v2793 = vadd.f32 %v2791, %v2792
    %v2794 = vsel %vm1731, %v2672, 0.0
    %v2795 = vadd.f32 %v2793, %v2794
    %v2796 = vsel %vm1731, %v2673, 0.0
    %v2797 = vadd.f32 %v2795, %v2796
    %v2798 = vsel %vm1731, %v2674, 0.0
    %v2799 = vadd.f32 %v2797, %v2798
    %v2800 = vsel %vm1731, %v2675, 0.0
    %v2801 = vadd.f32 %v2799, %v2800
    %v2802 = vsel %vm1731, %v2676, 0.0
    %v2803 = vadd.f32 %v2801, %v2802
    %v2804 = vrot.slane %v2803, 4
    %v2805 = vadd.f32 %v2803, %v2804
    %v2806 = vrot.slane %v2805, 2
    %v2807 = vadd.f32 %v2805, %v2806
    %v2808 = vrot.slane %v2807, 1
    %v2809 = vadd.f32 %v2807, %v2808
    %2811 = vrot.lane.b32.xlu0 %v2809, 64
    %v2812 = vpop.permute.xlu0 %2811
    %v2814 = vadd.f32 %v2545, %v2812
    %2815 = vrot.lane.b32.xlu0 %v2013, 96
    %v2816 = vpop.permute.xlu0 %2815
    %v2818 = vsub.f32 %v1205, %v2816
    %v2819 = vsub.f32 %v1208, %v2816
    %v2820 = vsub.f32 %v1213, %v2816
    %v2821 = vsub.f32 %v1216, %v2816
    %v2822 = vsub.f32 %v1221, %v2816
    %v2823 = vsub.f32 %v1224, %v2816
    %v2824 = vsub.f32 %v1229, %v2816
    %v2825 = vsub.f32 %v1232, %v2816
    %v2826 = vsub.f32 %v1237, %v2816
    %v2827 = vsub.f32 %v1240, %v2816
    %v2828 = vsub.f32 %v1245, %v2816
    %v2829 = vsub.f32 %v1248, %v2816
    %v2830 = vsub.f32 %v1253, %v2816
    %v2831 = vsub.f32 %v1256, %v2816
    %v2832 = vsub.f32 %v1261, %v2816
    %v2833 = vsub.f32 %v1264, %v2816
    %v2834 = vsub.f32 %v1269, %v2816
    %v2835 = vsub.f32 %v1272, %v2816
    %v2836 = vsub.f32 %v1277, %v2816
    %v2837 = vsub.f32 %v1280, %v2816
    %v2838 = vsub.f32 %v1285, %v2816
    %v2839 = vsub.f32 %v1288, %v2816
    %v2840 = vsub.f32 %v1293, %v2816
    %v2841 = vsub.f32 %v1296, %v2816
    %v2842 = vsub.f32 %v1301, %v2816
    %v2843 = vsub.f32 %v1304, %v2816
    %v2844 = vsub.f32 %v1309, %v2816
    %v2845 = vsub.f32 %v1312, %v2816
    %v2846 = vsub.f32 %v1317, %v2816
    %v2847 = vsub.f32 %v1320, %v2816
    %v2848 = vsub.f32 %v1325, %v2816
    %v2849 = vsub.f32 %v1328, %v2816
    %v2850 = vsub.f32 %v1333, %v2816
    %v2851 = vsub.f32 %v1336, %v2816
    %v2852 = vsub.f32 %v1341, %v2816
    %v2853 = vsub.f32 %v1344, %v2816
    %v2854 = vsub.f32 %v1349, %v2816
    %v2855 = vsub.f32 %v1352, %v2816
    %v2856 = vsub.f32 %v1357, %v2816
    %v2857 = vsub.f32 %v1360, %v2816
    %v2858 = vsub.f32 %v1365, %v2816
    %v2859 = vsub.f32 %v1368, %v2816
    %v2860 = vsub.f32 %v1373, %v2816
    %v2861 = vsub.f32 %v1376, %v2816
    %v2862 = vsub.f32 %v1381, %v2816
    %v2863 = vsub.f32 %v1384, %v2816
    %v2864 = vsub.f32 %v1389, %v2816
    %v2865 = vsub.f32 %v1392, %v2816
    %v2866 = vsub.f32 %v1397, %v2816
    %v2867 = vsub.f32 %v1400, %v2816
    %v2868 = vsub.f32 %v1405, %v2816
    %v2869 = vsub.f32 %v1408, %v2816
    %v2870 = vsub.f32 %v1413, %v2816
    %v2871 = vsub.f32 %v1416, %v2816
    %v2872 = vsub.f32 %v1421, %v2816
    %v2873 = vsub.f32 %v1424, %v2816
    %v2874 = vsub.f32 %v1429, %v2816
    %v2875 = vsub.f32 %v1432, %v2816
    %v2876 = vsub.f32 %v1437, %v2816
    %v2877 = vsub.f32 %v1440, %v2816
    %v2878 = vsub.f32 %v1445, %v2816
    %v2879 = vsub.f32 %v1448, %v2816
    %v2880 = vsub.f32 %v1453, %v2816
    %v2881 = vsub.f32 %v1456, %v2816
    %v2882 = vmul.f32 %v2818, %v2818
    %v2883 = vmul.f32 %v2819, %v2819
    %v2884 = vmul.f32 %v2820, %v2820
    %v2885 = vmul.f32 %v2821, %v2821
    %v2886 = vmul.f32 %v2822, %v2822
    %v2887 = vmul.f32 %v2823, %v2823
    %v2888 = vmul.f32 %v2824, %v2824
    %v2889 = vmul.f32 %v2825, %v2825
    %v2890 = vmul.f32 %v2826, %v2826
    %v2891 = vmul.f32 %v2827, %v2827
    %v2892 = vmul.f32 %v2828, %v2828
    %v2893 = vmul.f32 %v2829, %v2829
    %v2894 = vmul.f32 %v2830, %v2830
    %v2895 = vmul.f32 %v2831, %v2831
    %v2896 = vmul.f32 %v2832, %v2832
    %v2897 = vmul.f32 %v2833, %v2833
    %v2898 = vmul.f32 %v2834, %v2834
    %v2899 = vmul.f32 %v2835, %v2835
    %v2900 = vmul.f32 %v2836, %v2836
    %v2901 = vmul.f32 %v2837, %v2837
    %v2902 = vmul.f32 %v2838, %v2838
    %v2903 = vmul.f32 %v2839, %v2839
    %v2904 = vmul.f32 %v2840, %v2840
    %v2905 = vmul.f32 %v2841, %v2841
    %v2906 = vmul.f32 %v2842, %v2842
    %v2907 = vmul.f32 %v2843, %v2843
    %v2908 = vmul.f32 %v2844, %v2844
    %v2909 = vmul.f32 %v2845, %v2845
    %v2910 = vmul.f32 %v2846, %v2846
    %v2911 = vmul.f32 %v2847, %v2847
    %v2912 = vmul.f32 %v2848, %v2848
    %v2913 = vmul.f32 %v2849, %v2849
    %v2914 = vmul.f32 %v2850, %v2850
    %v2915 = vmul.f32 %v2851, %v2851
    %v2916 = vmul.f32 %v2852, %v2852
    %v2917 = vmul.f32 %v2853, %v2853
    %v2918 = vmul.f32 %v2854, %v2854
    %v2919 = vmul.f32 %v2855, %v2855
    %v2920 = vmul.f32 %v2856, %v2856
    %v2921 = vmul.f32 %v2857, %v2857
    %v2922 = vmul.f32 %v2858, %v2858
    %v2923 = vmul.f32 %v2859, %v2859
    %v2924 = vmul.f32 %v2860, %v2860
    %v2925 = vmul.f32 %v2861, %v2861
    %v2926 = vmul.f32 %v2862, %v2862
    %v2927 = vmul.f32 %v2863, %v2863
    %v2928 = vmul.f32 %v2864, %v2864
    %v2929 = vmul.f32 %v2865, %v2865
    %v2930 = vmul.f32 %v2866, %v2866
    %v2931 = vmul.f32 %v2867, %v2867
    %v2932 = vmul.f32 %v2868, %v2868
    %v2933 = vmul.f32 %v2869, %v2869
    %v2934 = vmul.f32 %v2870, %v2870
    %v2935 = vmul.f32 %v2871, %v2871
    %v2936 = vmul.f32 %v2872, %v2872
    %v2937 = vmul.f32 %v2873, %v2873
    %v2938 = vmul.f32 %v2874, %v2874
    %v2939 = vmul.f32 %v2875, %v2875
    %v2940 = vmul.f32 %v2876, %v2876
    %v2941 = vmul.f32 %v2877, %v2877
    %v2942 = vmul.f32 %v2878, %v2878
    %v2943 = vmul.f32 %v2879, %v2879
    %v2944 = vmul.f32 %v2880, %v2880
    %v2945 = vmul.f32 %v2881, %v2881
    %v2946 = vsel %vm1870, %v2882, 0.0
    %v2947 = vsel %vm1870, %v2883, 0.0
    %v2948 = vadd.f32 %v2946, %v2947
    %v2949 = vsel %vm1870, %v2884, 0.0
    %v2950 = vadd.f32 %v2948, %v2949
    %v2951 = vsel %vm1870, %v2885, 0.0
    %v2952 = vadd.f32 %v2950, %v2951
    %v2953 = vsel %vm1870, %v2886, 0.0
    %v2954 = vadd.f32 %v2952, %v2953
    %v2955 = vsel %vm1870, %v2887, 0.0
    %v2956 = vadd.f32 %v2954, %v2955
    %v2957 = vsel %vm1870, %v2888, 0.0
    %v2958 = vadd.f32 %v2956, %v2957
    %v2959 = vsel %vm1870, %v2889, 0.0
    %v2960 = vadd.f32 %v2958, %v2959
    %v2961 = vsel %vm1870, %v2890, 0.0
    %v2962 = vadd.f32 %v2960, %v2961
    %v2963 = vsel %vm1870, %v2891, 0.0
    %v2964 = vadd.f32 %v2962, %v2963
    %v2965 = vsel %vm1870, %v2892, 0.0
    %v2966 = vadd.f32 %v2964, %v2965
    %v2967 = vsel %vm1870, %v2893, 0.0
    %v2968 = vadd.f32 %v2966, %v2967
    %v2969 = vsel %vm1870, %v2894, 0.0
    %v2970 = vadd.f32 %v2968, %v2969
    %v2971 = vsel %vm1870, %v2895, 0.0
    %v2972 = vadd.f32 %v2970, %v2971
    %v2973 = vsel %vm1870, %v2896, 0.0
    %v2974 = vadd.f32 %v2972, %v2973
    %v2975 = vsel %vm1870, %v2897, 0.0
    %v2976 = vadd.f32 %v2974, %v2975
    %v2977 = vsel %vm1870, %v2898, 0.0
    %v2978 = vadd.f32 %v2976, %v2977
    %v2979 = vsel %vm1870, %v2899, 0.0
    %v2980 = vadd.f32 %v2978, %v2979
    %v2981 = vsel %vm1870, %v2900, 0.0
    %v2982 = vadd.f32 %v2980, %v2981
    %v2983 = vsel %vm1870, %v2901, 0.0
    %v2984 = vadd.f32 %v2982, %v2983
    %v2985 = vsel %vm1870, %v2902, 0.0
    %v2986 = vadd.f32 %v2984, %v2985
    %v2987 = vsel %vm1870, %v2903, 0.0
    %v2988 = vadd.f32 %v2986, %v2987
    %v2989 = vsel %vm1870, %v2904, 0.0
    %v2990 = vadd.f32 %v2988, %v2989
    %v2991 = vsel %vm1870, %v2905, 0.0
    %v2992 = vadd.f32 %v2990, %v2991
    %v2993 = vsel %vm1870, %v2906, 0.0
    %v2994 = vadd.f32 %v2992, %v2993
    %v2995 = vsel %vm1870, %v2907, 0.0
    %v2996 = vadd.f32 %v2994, %v2995
    %v2997 = vsel %vm1870, %v2908, 0.0
    %v2998 = vadd.f32 %v2996, %v2997
    %v2999 = vsel %vm1870, %v2909, 0.0
    %v3000 = vadd.f32 %v2998, %v2999
    %v3001 = vsel %vm1870, %v2910, 0.0
    %v3002 = vadd.f32 %v3000, %v3001
    %v3003 = vsel %vm1870, %v2911, 0.0
    %v3004 = vadd.f32 %v3002, %v3003
    %v3005 = vsel %vm1870, %v2912, 0.0
    %v3006 = vadd.f32 %v3004, %v3005
    %v3007 = vsel %vm1870, %v2913, 0.0
    %v3008 = vadd.f32 %v3006, %v3007
    %v3009 = vsel %vm1870, %v2914, 0.0
    %v3010 = vadd.f32 %v3008, %v3009
    %v3011 = vsel %vm1870, %v2915, 0.0
    %v3012 = vadd.f32 %v3010, %v3011
    %v3013 = vsel %vm1870, %v2916, 0.0
    %v3014 = vadd.f32 %v3012, %v3013
    %v3015 = vsel %vm1870, %v2917, 0.0
    %v3016 = vadd.f32 %v3014, %v3015
    %v3017 = vsel %vm1870, %v2918, 0.0
    %v3018 = vadd.f32 %v3016, %v3017
    %v3019 = vsel %vm1870, %v2919, 0.0
    %v3020 = vadd.f32 %v3018, %v3019
    %v3021 = vsel %vm1870, %v2920, 0.0
    %v3022 = vadd.f32 %v3020, %v3021
    %v3023 = vsel %vm1870, %v2921, 0.0
    %v3024 = vadd.f32 %v3022, %v3023
    %v3025 = vsel %vm1870, %v2922, 0.0
    %v3026 = vadd.f32 %v3024, %v3025
    %v3027 = vsel %vm1870, %v2923, 0.0
    %v3028 = vadd.f32 %v3026, %v3027
    %v3029 = vsel %vm1870, %v2924, 0.0
    %v3030 = vadd.f32 %v3028, %v3029
    %v3031 = vsel %vm1870, %v2925, 0.0
    %v3032 = vadd.f32 %v3030, %v3031
    %v3033 = vsel %vm1870, %v2926, 0.0
    %v3034 = vadd.f32 %v3032, %v3033
    %v3035 = vsel %vm1870, %v2927, 0.0
    %v3036 = vadd.f32 %v3034, %v3035
    %v3037 = vsel %vm1870, %v2928, 0.0
    %v3038 = vadd.f32 %v3036, %v3037
    %v3039 = vsel %vm1870, %v2929, 0.0
    %v3040 = vadd.f32 %v3038, %v3039
    %v3041 = vsel %vm1870, %v2930, 0.0
    %v3042 = vadd.f32 %v3040, %v3041
    %v3043 = vsel %vm1870, %v2931, 0.0
    %v3044 = vadd.f32 %v3042, %v3043
    %v3045 = vsel %vm1870, %v2932, 0.0
    %v3046 = vadd.f32 %v3044, %v3045
    %v3047 = vsel %vm1870, %v2933, 0.0
    %v3048 = vadd.f32 %v3046, %v3047
    %v3049 = vsel %vm1870, %v2934, 0.0
    %v3050 = vadd.f32 %v3048, %v3049
    %v3051 = vsel %vm1870, %v2935, 0.0
    %v3052 = vadd.f32 %v3050, %v3051
    %v3053 = vsel %vm1870, %v2936, 0.0
    %v3054 = vadd.f32 %v3052, %v3053
    %v3055 = vsel %vm1870, %v2937, 0.0
    %v3056 = vadd.f32 %v3054, %v3055
    %v3057 = vsel %vm1870, %v2938, 0.0
    %v3058 = vadd.f32 %v3056, %v3057
    %v3059 = vsel %vm1870, %v2939, 0.0
    %v3060 = vadd.f32 %v3058, %v3059
    %v3061 = vsel %vm1870, %v2940, 0.0
    %v3062 = vadd.f32 %v3060, %v3061
    %v3063 = vsel %vm1870, %v2941, 0.0
    %v3064 = vadd.f32 %v3062, %v3063
    %v3065 = vsel %vm1870, %v2942, 0.0
    %v3066 = vadd.f32 %v3064, %v3065
    %v3067 = vsel %vm1870, %v2943, 0.0
    %v3068 = vadd.f32 %v3066, %v3067
    %v3069 = vsel %vm1870, %v2944, 0.0
    %v3070 = vadd.f32 %v3068, %v3069
    %v3071 = vsel %vm1870, %v2945, 0.0
    %v3072 = vadd.f32 %v3070, %v3071
    %v3073 = vrot.slane %v3072, 4
    %v3074 = vadd.f32 %v3072, %v3073
    %v3075 = vrot.slane %v3074, 2
    %v3076 = vadd.f32 %v3074, %v3075
    %v3077 = vrot.slane %v3076, 1
    %v3078 = vadd.f32 %v3076, %v3077
    %3080 = vrot.lane.b32.xlu0 %v3078, 32
    %v3081 = vpop.permute.xlu0 %3080
    %v3083 = vadd.f32 %v2814, %v3081
    %v3084 = vmul.f32 %v3083, 0.00048828125
    %v3085 = vld [vmem:[%s2] sm:$0x1]
    %v3086 = vadd.f32 %v3084, 1e-05
    %v3087 = vrsqrt.pop %v3086
    %v3088 = vmul.f32 %v3085, %v3087
    %v3089 = vld [vmem:[%s3] sm:$0x1]
    %v3090 = vmul.f32 %v2009, %v3088
    %v3091 = vsub.f32 %v3089, %v3090
    %v3093 = vlaneseq
    %v3094 = vshrl.u32 %v3093, 7
    %v3095 = vsub.s32 0, %v3094
    %v3096 = vrot.slane %v3088, %v3095
    %v3098 = vmul.f32 %v1205, %v3096
    %v3099 = vmul.f32 %v1208, %v3096
    %v3100 = vmul.f32 %v1213, %v3096
    %v3101 = vmul.f32 %v1216, %v3096
    %v3102 = vmul.f32 %v1221, %v3096
    %v3103 = vmul.f32 %v1224, %v3096
    %v3104 = vmul.f32 %v1229, %v3096
    %v3105 = vmul.f32 %v1232, %v3096
    %v3106 = vmul.f32 %v1237, %v3096
    %v3107 = vmul.f32 %v1240, %v3096
    %v3108 = vmul.f32 %v1245, %v3096
    %v3109 = vmul.f32 %v1248, %v3096
    %v3110 = vmul.f32 %v1253, %v3096
    %v3111 = vmul.f32 %v1256, %v3096
    %v3112 = vmul.f32 %v1261, %v3096
    %v3113 = vmul.f32 %v1264, %v3096
    %v3114 = vmul.f32 %v1269, %v3096
    %v3115 = vmul.f32 %v1272, %v3096
    %v3116 = vmul.f32 %v1277, %v3096
    %v3117 = vmul.f32 %v1280, %v3096
    %v3118 = vmul.f32 %v1285, %v3096
    %v3119 = vmul.f32 %v1288, %v3096
    %v3120 = vmul.f32 %v1293, %v3096
    %v3121 = vmul.f32 %v1296, %v3096
    %v3122 = vmul.f32 %v1301, %v3096
    %v3123 = vmul.f32 %v1304, %v3096
    %v3124 = vmul.f32 %v1309, %v3096
    %v3125 = vmul.f32 %v1312, %v3096
    %v3126 = vmul.f32 %v1317, %v3096
    %v3127 = vmul.f32 %v1320, %v3096
    %v3128 = vmul.f32 %v1325, %v3096
    %v3129 = vmul.f32 %v1328, %v3096
    %v3130 = vmul.f32 %v1333, %v3096
    %v3131 = vmul.f32 %v1336, %v3096
    %v3132 = vmul.f32 %v1341, %v3096
    %v3133 = vmul.f32 %v1344, %v3096
    %v3134 = vmul.f32 %v1349, %v3096
    %v3135 = vmul.f32 %v1352, %v3096
    %v3136 = vmul.f32 %v1357, %v3096
    %v3137 = vmul.f32 %v1360, %v3096
    %v3138 = vmul.f32 %v1365, %v3096
    %v3139 = vmul.f32 %v1368, %v3096
    %v3140 = vmul.f32 %v1373, %v3096
    %v3141 = vmul.f32 %v1376, %v3096
    %v3142 = vmul.f32 %v1381, %v3096
    %v3143 = vmul.f32 %v1384, %v3096
    %v3144 = vmul.f32 %v1389, %v3096
    %v3145 = vmul.f32 %v1392, %v3096
    %v3146 = vmul.f32 %v1397, %v3096
    %v3147 = vmul.f32 %v1400, %v3096
    %v3148 = vmul.f32 %v1405, %v3096
    %v3149 = vmul.f32 %v1408, %v3096
    %v3150 = vmul.f32 %v1413, %v3096
    %v3151 = vmul.f32 %v1416, %v3096
    %v3152 = vmul.f32 %v1421, %v3096
    %v3153 = vmul.f32 %v1424, %v3096
    %v3154 = vmul.f32 %v1429, %v3096
    %v3155 = vmul.f32 %v1432, %v3096
    %v3156 = vmul.f32 %v1437, %v3096
    %v3157 = vmul.f32 %v1440, %v3096
    %v3158 = vmul.f32 %v1445, %v3096
    %v3159 = vmul.f32 %v1448, %v3096
    %v3160 = vmul.f32 %v1453, %v3096
    %v3161 = vmul.f32 %v1456, %v3096
    %v3163 = vlaneseq
    %v3164 = vshrl.u32 %v3163, 7
    %v3165 = vsub.s32 0, %v3164
    %v3166 = vrot.slane %v3091, %v3165
    %v3168 = vadd.f32 %v3098, %v3166
    %v3169 = vadd.f32 %v3099, %v3166
    %v3170 = vadd.f32 %v3100, %v3166
    %v3171 = vadd.f32 %v3101, %v3166
    %v3172 = vadd.f32 %v3102, %v3166
    %v3173 = vadd.f32 %v3103, %v3166
    %v3174 = vadd.f32 %v3104, %v3166
    %v3175 = vadd.f32 %v3105, %v3166
    %v3176 = vadd.f32 %v3106, %v3166
    %v3177 = vadd.f32 %v3107, %v3166
    %v3178 = vadd.f32 %v3108, %v3166
    %v3179 = vadd.f32 %v3109, %v3166
    %v3180 = vadd.f32 %v3110, %v3166
    %v3181 = vadd.f32 %v3111, %v3166
    %v3182 = vadd.f32 %v3112, %v3166
    %v3183 = vadd.f32 %v3113, %v3166
    %v3184 = vadd.f32 %v3114, %v3166
    %v3185 = vadd.f32 %v3115, %v3166
    %v3186 = vadd.f32 %v3116, %v3166
    %v3187 = vadd.f32 %v3117, %v3166
    %v3188 = vadd.f32 %v3118, %v3166
    %v3189 = vadd.f32 %v3119, %v3166
    %v3190 = vadd.f32 %v3120, %v3166
    %v3191 = vadd.f32 %v3121, %v3166
    %v3192 = vadd.f32 %v3122, %v3166
    %v3193 = vadd.f32 %v3123, %v3166
    %v3194 = vadd.f32 %v3124, %v3166
    %v3195 = vadd.f32 %v3125, %v3166
    %v3196 = vadd.f32 %v3126, %v3166
    %v3197 = vadd.f32 %v3127, %v3166
    %v3198 = vadd.f32 %v3128, %v3166
    %v3199 = vadd.f32 %v3129, %v3166
    %v3200 = vadd.f32 %v3130, %v3166
    %v3201 = vadd.f32 %v3131, %v3166
    %v3202 = vadd.f32 %v3132, %v3166
    %v3203 = vadd.f32 %v3133, %v3166
    %v3204 = vadd.f32 %v3134, %v3166
    %v3205 = vadd.f32 %v3135, %v3166
    %v3206 = vadd.f32 %v3136, %v3166
    %v3207 = vadd.f32 %v3137, %v3166
    %v3208 = vadd.f32 %v3138, %v3166
    %v3209 = vadd.f32 %v3139, %v3166
    %v3210 = vadd.f32 %v3140, %v3166
    %v3211 = vadd.f32 %v3141, %v3166
    %v3212 = vadd.f32 %v3142, %v3166
    %v3213 = vadd.f32 %v3143, %v3166
    %v3214 = vadd.f32 %v3144, %v3166
    %v3215 = vadd.f32 %v3145, %v3166
    %v3216 = vadd.f32 %v3146, %v3166
    %v3217 = vadd.f32 %v3147, %v3166
    %v3218 = vadd.f32 %v3148, %v3166
    %v3219 = vadd.f32 %v3149, %v3166
    %v3220 = vadd.f32 %v3150, %v3166
    %v3221 = vadd.f32 %v3151, %v3166
    %v3222 = vadd.f32 %v3152, %v3166
    %v3223 = vadd.f32 %v3153, %v3166
    %v3224 = vadd.f32 %v3154, %v3166
    %v3225 = vadd.f32 %v3155, %v3166
    %v3226 = vadd.f32 %v3156, %v3166
    %v3227 = vadd.f32 %v3157, %v3166
    %v3228 = vadd.f32 %v3158, %v3166
    %v3229 = vadd.f32 %v3159, %v3166
    %v3230 = vadd.f32 %v3160, %v3166
    %v3231 = vadd.f32 %v3161, %v3166
    %v3232 = vmax.f32 %v3168, 0.0
    %v3233 = vmax.f32 %v3169, 0.0
    %v3234 = vmax.f32 %v3170, 0.0
    %v3235 = vmax.f32 %v3171, 0.0
    %v3236 = vmax.f32 %v3172, 0.0
    %v3237 = vmax.f32 %v3173, 0.0
    %v3238 = vmax.f32 %v3174, 0.0
    %v3239 = vmax.f32 %v3175, 0.0
    %v3240 = vmax.f32 %v3176, 0.0
    %v3241 = vmax.f32 %v3177, 0.0
    %v3242 = vmax.f32 %v3178, 0.0
    %v3243 = vmax.f32 %v3179, 0.0
    %v3244 = vmax.f32 %v3180, 0.0
    %v3245 = vmax.f32 %v3181, 0.0
    %v3246 = vmax.f32 %v3182, 0.0
    %v3247 = vmax.f32 %v3183, 0.0
    %v3248 = vmax.f32 %v3184, 0.0
    %v3249 = vmax.f32 %v3185, 0.0
    %v3250 = vmax.f32 %v3186, 0.0
    %v3251 = vmax.f32 %v3187, 0.0
    %v3252 = vmax.f32 %v3188, 0.0
    %v3253 = vmax.f32 %v3189, 0.0
    %v3254 = vmax.f32 %v3190, 0.0
    %v3255 = vmax.f32 %v3191, 0.0
    %v3256 = vmax.f32 %v3192, 0.0
    %v3257 = vmax.f32 %v3193, 0.0
    %v3258 = vmax.f32 %v3194, 0.0
    %v3259 = vmax.f32 %v3195, 0.0
    %v3260 = vmax.f32 %v3196, 0.0
    %v3261 = vmax.f32 %v3197, 0.0
    %v3262 = vmax.f32 %v3198, 0.0
    %v3263 = vmax.f32 %v3199, 0.0
    %v3264 = vmax.f32 %v3200, 0.0
    %v3265 = vmax.f32 %v3201, 0.0
    %v3266 = vmax.f32 %v3202, 0.0
    %v3267 = vmax.f32 %v3203, 0.0
    %v3268 = vmax.f32 %v3204, 0.0
    %v3269 = vmax.f32 %v3205, 0.0
    %v3270 = vmax.f32 %v3206, 0.0
    %v3271 = vmax.f32 %v3207, 0.0
    %v3272 = vmax.f32 %v3208, 0.0
    %v3273 = vmax.f32 %v3209, 0.0
    %v3274 = vmax.f32 %v3210, 0.0
    %v3275 = vmax.f32 %v3211, 0.0
    %v3276 = vmax.f32 %v3212, 0.0
    %v3277 = vmax.f32 %v3213, 0.0
    %v3278 = vmax.f32 %v3214, 0.0
    %v3279 = vmax.f32 %v3215, 0.0
    %v3280 = vmax.f32 %v3216, 0.0
    %v3281 = vmax.f32 %v3217, 0.0
    %v3282 = vmax.f32 %v3218, 0.0
    %v3283 = vmax.f32 %v3219, 0.0
    %v3284 = vmax.f32 %v3220, 0.0
    %v3285 = vmax.f32 %v3221, 0.0
    %v3286 = vmax.f32 %v3222, 0.0
    %v3287 = vmax.f32 %v3223, 0.0
    %v3288 = vmax.f32 %v3224, 0.0
    %v3289 = vmax.f32 %v3225, 0.0
    %v3290 = vmax.f32 %v3226, 0.0
    %v3291 = vmax.f32 %v3227, 0.0
    %v3292 = vmax.f32 %v3228, 0.0
    %v3293 = vmax.f32 %v3229, 0.0
    %v3294 = vmax.f32 %v3230, 0.0
    %v3295 = vmax.f32 %v3231, 0.0
    %3296 = vrot.lane.b32.xlu0 %v3096, 32
    %v3297 = vpop.permute.xlu0 %3296
    %v3299 = vmul.f32 %v1205, %v3297
    %v3300 = vmul.f32 %v1208, %v3297
    %v3301 = vmul.f32 %v1213, %v3297
    %v3302 = vmul.f32 %v1216, %v3297
    %v3303 = vmul.f32 %v1221, %v3297
    %v3304 = vmul.f32 %v1224, %v3297
    %v3305 = vmul.f32 %v1229, %v3297
    %v3306 = vmul.f32 %v1232, %v3297
    %v3307 = vmul.f32 %v1237, %v3297
    %v3308 = vmul.f32 %v1240, %v3297
    %v3309 = vmul.f32 %v1245, %v3297
    %v3310 = vmul.f32 %v1248, %v3297
    %v3311 = vmul.f32 %v1253, %v3297
    %v3312 = vmul.f32 %v1256, %v3297
    %v3313 = vmul.f32 %v1261, %v3297
    %v3314 = vmul.f32 %v1264, %v3297
    %v3315 = vmul.f32 %v1269, %v3297
    %v3316 = vmul.f32 %v1272, %v3297
    %v3317 = vmul.f32 %v1277, %v3297
    %v3318 = vmul.f32 %v1280, %v3297
    %v3319 = vmul.f32 %v1285, %v3297
    %v3320 = vmul.f32 %v1288, %v3297
    %v3321 = vmul.f32 %v1293, %v3297
    %v3322 = vmul.f32 %v1296, %v3297
    %v3323 = vmul.f32 %v1301, %v3297
    %v3324 = vmul.f32 %v1304, %v3297
    %v3325 = vmul.f32 %v1309, %v3297
    %v3326 = vmul.f32 %v1312, %v3297
    %v3327 = vmul.f32 %v1317, %v3297
    %v3328 = vmul.f32 %v1320, %v3297
    %v3329 = vmul.f32 %v1325, %v3297
    %v3330 = vmul.f32 %v1328, %v3297
    %v3331 = vmul.f32 %v1333, %v3297
    %v3332 = vmul.f32 %v1336, %v3297
    %v3333 = vmul.f32 %v1341, %v3297
    %v3334 = vmul.f32 %v1344, %v3297
    %v3335 = vmul.f32 %v1349, %v3297
    %v3336 = vmul.f32 %v1352, %v3297
    %v3337 = vmul.f32 %v1357, %v3297
    %v3338 = vmul.f32 %v1360, %v3297
    %v3339 = vmul.f32 %v1365, %v3297
    %v3340 = vmul.f32 %v1368, %v3297
    %v3341 = vmul.f32 %v1373, %v3297
    %v3342 = vmul.f32 %v1376, %v3297
    %v3343 = vmul.f32 %v1381, %v3297
    %v3344 = vmul.f32 %v1384, %v3297
    %v3345 = vmul.f32 %v1389, %v3297
    %v3346 = vmul.f32 %v1392, %v3297
    %v3347 = vmul.f32 %v1397, %v3297
    %v3348 = vmul.f32 %v1400, %v3297
    %v3349 = vmul.f32 %v1405, %v3297
    %v3350 = vmul.f32 %v1408, %v3297
    %v3351 = vmul.f32 %v1413, %v3297
    %v3352 = vmul.f32 %v1416, %v3297
    %v3353 = vmul.f32 %v1421, %v3297
    %v3354 = vmul.f32 %v1424, %v3297
    %v3355 = vmul.f32 %v1429, %v3297
    %v3356 = vmul.f32 %v1432, %v3297
    %v3357 = vmul.f32 %v1437, %v3297
    %v3358 = vmul.f32 %v1440, %v3297
    %v3359 = vmul.f32 %v1445, %v3297
    %v3360 = vmul.f32 %v1448, %v3297
    %v3361 = vmul.f32 %v1453, %v3297
    %v3362 = vmul.f32 %v1456, %v3297
    %3363 = vrot.lane.b32.xlu0 %v3166, 32
    %v3364 = vpop.permute.xlu0 %3363
    %v3366 = vadd.f32 %v3299, %v3364
    %v3367 = vadd.f32 %v3300, %v3364
    %v3368 = vadd.f32 %v3301, %v3364
    %v3369 = vadd.f32 %v3302, %v3364
    %v3370 = vadd.f32 %v3303, %v3364
    %v3371 = vadd.f32 %v3304, %v3364
    %v3372 = vadd.f32 %v3305, %v3364
    %v3373 = vadd.f32 %v3306, %v3364
    %v3374 = vadd.f32 %v3307, %v3364
    %v3375 = vadd.f32 %v3308, %v3364
    %v3376 = vadd.f32 %v3309, %v3364
    %v3377 = vadd.f32 %v3310, %v3364
    %v3378 = vadd.f32 %v3311, %v3364
    %v3379 = vadd.f32 %v3312, %v3364
    %v3380 = vadd.f32 %v3313, %v3364
    %v3381 = vadd.f32 %v3314, %v3364
    %v3382 = vadd.f32 %v3315, %v3364
    %v3383 = vadd.f32 %v3316, %v3364
    %v3384 = vadd.f32 %v3317, %v3364
    %v3385 = vadd.f32 %v3318, %v3364
    %v3386 = vadd.f32 %v3319, %v3364
    %v3387 = vadd.f32 %v3320, %v3364
    %v3388 = vadd.f32 %v3321, %v3364
    %v3389 = vadd.f32 %v3322, %v3364
    %v3390 = vadd.f32 %v3323, %v3364
    %v3391 = vadd.f32 %v3324, %v3364
    %v3392 = vadd.f32 %v3325, %v3364
    %v3393 = vadd.f32 %v3326, %v3364
    %v3394 = vadd.f32 %v3327, %v3364
    %v3395 = vadd.f32 %v3328, %v3364
    %v3396 = vadd.f32 %v3329, %v3364
    %v3397 = vadd.f32 %v3330, %v3364
    %v3398 = vadd.f32 %v3331, %v3364
    %v3399 = vadd.f32 %v3332, %v3364
    %v3400 = vadd.f32 %v3333, %v3364
    %v3401 = vadd.f32 %v3334, %v3364
    %v3402 = vadd.f32 %v3335, %v3364
    %v3403 = vadd.f32 %v3336, %v3364
    %v3404 = vadd.f32 %v3337, %v3364
    %v3405 = vadd.f32 %v3338, %v3364
    %v3406 = vadd.f32 %v3339, %v3364
    %v3407 = vadd.f32 %v3340, %v3364
    %v3408 = vadd.f32 %v3341, %v3364
    %v3409 = vadd.f32 %v3342, %v3364
    %v3410 = vadd.f32 %v3343, %v3364
    %v3411 = vadd.f32 %v3344, %v3364
    %v3412 = vadd.f32 %v3345, %v3364
    %v3413 = vadd.f32 %v3346, %v3364
    %v3414 = vadd.f32 %v3347, %v3364
    %v3415 = vadd.f32 %v3348, %v3364
    %v3416 = vadd.f32 %v3349, %v3364
    %v3417 = vadd.f32 %v3350, %v3364
    %v3418 = vadd.f32 %v3351, %v3364
    %v3419 = vadd.f32 %v3352, %v3364
    %v3420 = vadd.f32 %v3353, %v3364
    %v3421 = vadd.f32 %v3354, %v3364
    %v3422 = vadd.f32 %v3355, %v3364
    %v3423 = vadd.f32 %v3356, %v3364
    %v3424 = vadd.f32 %v3357, %v3364
    %v3425 = vadd.f32 %v3358, %v3364
    %v3426 = vadd.f32 %v3359, %v3364
    %v3427 = vadd.f32 %v3360, %v3364
    %v3428 = vadd.f32 %v3361, %v3364
    %v3429 = vadd.f32 %v3362, %v3364
    %v3430 = vmax.f32 %v3366, 0.0
    %v3431 = vmax.f32 %v3367, 0.0
    %v3432 = vmax.f32 %v3368, 0.0
    %v3433 = vmax.f32 %v3369, 0.0
    %v3434 = vmax.f32 %v3370, 0.0
    %v3435 = vmax.f32 %v3371, 0.0
    %v3436 = vmax.f32 %v3372, 0.0
    %v3437 = vmax.f32 %v3373, 0.0
    %v3438 = vmax.f32 %v3374, 0.0
    %v3439 = vmax.f32 %v3375, 0.0
    %v3440 = vmax.f32 %v3376, 0.0
    %v3441 = vmax.f32 %v3377, 0.0
    %v3442 = vmax.f32 %v3378, 0.0
    %v3443 = vmax.f32 %v3379, 0.0
    %v3444 = vmax.f32 %v3380, 0.0
    %v3445 = vmax.f32 %v3381, 0.0
    %v3446 = vmax.f32 %v3382, 0.0
    %v3447 = vmax.f32 %v3383, 0.0
    %v3448 = vmax.f32 %v3384, 0.0
    %v3449 = vmax.f32 %v3385, 0.0
    %v3450 = vmax.f32 %v3386, 0.0
    %v3451 = vmax.f32 %v3387, 0.0
    %v3452 = vmax.f32 %v3388, 0.0
    %v3453 = vmax.f32 %v3389, 0.0
    %v3454 = vmax.f32 %v3390, 0.0
    %v3455 = vmax.f32 %v3391, 0.0
    %v3456 = vmax.f32 %v3392, 0.0
    %v3457 = vmax.f32 %v3393, 0.0
    %v3458 = vmax.f32 %v3394, 0.0
    %v3459 = vmax.f32 %v3395, 0.0
    %v3460 = vmax.f32 %v3396, 0.0
    %v3461 = vmax.f32 %v3397, 0.0
    %v3462 = vmax.f32 %v3398, 0.0
    %v3463 = vmax.f32 %v3399, 0.0
    %v3464 = vmax.f32 %v3400, 0.0
    %v3465 = vmax.f32 %v3401, 0.0
    %v3466 = vmax.f32 %v3402, 0.0
    %v3467 = vmax.f32 %v3403, 0.0
    %v3468 = vmax.f32 %v3404, 0.0
    %v3469 = vmax.f32 %v3405, 0.0
    %v3470 = vmax.f32 %v3406, 0.0
    %v3471 = vmax.f32 %v3407, 0.0
    %v3472 = vmax.f32 %v3408, 0.0
    %v3473 = vmax.f32 %v3409, 0.0
    %v3474 = vmax.f32 %v3410, 0.0
    %v3475 = vmax.f32 %v3411, 0.0
    %v3476 = vmax.f32 %v3412, 0.0
    %v3477 = vmax.f32 %v3413, 0.0
    %v3478 = vmax.f32 %v3414, 0.0
    %v3479 = vmax.f32 %v3415, 0.0
    %v3480 = vmax.f32 %v3416, 0.0
    %v3481 = vmax.f32 %v3417, 0.0
    %v3482 = vmax.f32 %v3418, 0.0
    %v3483 = vmax.f32 %v3419, 0.0
    %v3484 = vmax.f32 %v3420, 0.0
    %v3485 = vmax.f32 %v3421, 0.0
    %v3486 = vmax.f32 %v3422, 0.0
    %v3487 = vmax.f32 %v3423, 0.0
    %v3488 = vmax.f32 %v3424, 0.0
    %v3489 = vmax.f32 %v3425, 0.0
    %v3490 = vmax.f32 %v3426, 0.0
    %v3491 = vmax.f32 %v3427, 0.0
    %v3492 = vmax.f32 %v3428, 0.0
    %v3493 = vmax.f32 %v3429, 0.0
    %3494 = vrot.lane.b32.xlu0 %v3096, 64
    %v3495 = vpop.permute.xlu0 %3494
    %v3497 = vmul.f32 %v1205, %v3495
    %v3498 = vmul.f32 %v1208, %v3495
    %v3499 = vmul.f32 %v1213, %v3495
    %v3500 = vmul.f32 %v1216, %v3495
    %v3501 = vmul.f32 %v1221, %v3495
    %v3502 = vmul.f32 %v1224, %v3495
    %v3503 = vmul.f32 %v1229, %v3495
    %v3504 = vmul.f32 %v1232, %v3495
    %v3505 = vmul.f32 %v1237, %v3495
    %v3506 = vmul.f32 %v1240, %v3495
    %v3507 = vmul.f32 %v1245, %v3495
    %v3508 = vmul.f32 %v1248, %v3495
    %v3509 = vmul.f32 %v1253, %v3495
    %v3510 = vmul.f32 %v1256, %v3495
    %v3511 = vmul.f32 %v1261, %v3495
    %v3512 = vmul.f32 %v1264, %v3495
    %v3513 = vmul.f32 %v1269, %v3495
    %v3514 = vmul.f32 %v1272, %v3495
    %v3515 = vmul.f32 %v1277, %v3495
    %v3516 = vmul.f32 %v1280, %v3495
    %v3517 = vmul.f32 %v1285, %v3495
    %v3518 = vmul.f32 %v1288, %v3495
    %v3519 = vmul.f32 %v1293, %v3495
    %v3520 = vmul.f32 %v1296, %v3495
    %v3521 = vmul.f32 %v1301, %v3495
    %v3522 = vmul.f32 %v1304, %v3495
    %v3523 = vmul.f32 %v1309, %v3495
    %v3524 = vmul.f32 %v1312, %v3495
    %v3525 = vmul.f32 %v1317, %v3495
    %v3526 = vmul.f32 %v1320, %v3495
    %v3527 = vmul.f32 %v1325, %v3495
    %v3528 = vmul.f32 %v1328, %v3495
    %v3529 = vmul.f32 %v1333, %v3495
    %v3530 = vmul.f32 %v1336, %v3495
    %v3531 = vmul.f32 %v1341, %v3495
    %v3532 = vmul.f32 %v1344, %v3495
    %v3533 = vmul.f32 %v1349, %v3495
    %v3534 = vmul.f32 %v1352, %v3495
    %v3535 = vmul.f32 %v1357, %v3495
    %v3536 = vmul.f32 %v1360, %v3495
    %v3537 = vmul.f32 %v1365, %v3495
    %v3538 = vmul.f32 %v1368, %v3495
    %v3539 = vmul.f32 %v1373, %v3495
    %v3540 = vmul.f32 %v1376, %v3495
    %v3541 = vmul.f32 %v1381, %v3495
    %v3542 = vmul.f32 %v1384, %v3495
    %v3543 = vmul.f32 %v1389, %v3495
    %v3544 = vmul.f32 %v1392, %v3495
    %v3545 = vmul.f32 %v1397, %v3495
    %v3546 = vmul.f32 %v1400, %v3495
    %v3547 = vmul.f32 %v1405, %v3495
    %v3548 = vmul.f32 %v1408, %v3495
    %v3549 = vmul.f32 %v1413, %v3495
    %v3550 = vmul.f32 %v1416, %v3495
    %v3551 = vmul.f32 %v1421, %v3495
    %v3552 = vmul.f32 %v1424, %v3495
    %v3553 = vmul.f32 %v1429, %v3495
    %v3554 = vmul.f32 %v1432, %v3495
    %v3555 = vmul.f32 %v1437, %v3495
    %v3556 = vmul.f32 %v1440, %v3495
    %v3557 = vmul.f32 %v1445, %v3495
    %v3558 = vmul.f32 %v1448, %v3495
    %v3559 = vmul.f32 %v1453, %v3495
    %v3560 = vmul.f32 %v1456, %v3495
    %3561 = vrot.lane.b32.xlu0 %v3166, 64
    %v3562 = vpop.permute.xlu0 %3561
    %v3564 = vadd.f32 %v3497, %v3562
    %v3565 = vadd.f32 %v3498, %v3562
    %v3566 = vadd.f32 %v3499, %v3562
    %v3567 = vadd.f32 %v3500, %v3562
    %v3568 = vadd.f32 %v3501, %v3562
    %v3569 = vadd.f32 %v3502, %v3562
    %v3570 = vadd.f32 %v3503, %v3562
    %v3571 = vadd.f32 %v3504, %v3562
    %v3572 = vadd.f32 %v3505, %v3562
    %v3573 = vadd.f32 %v3506, %v3562
    %v3574 = vadd.f32 %v3507, %v3562
    %v3575 = vadd.f32 %v3508, %v3562
    %v3576 = vadd.f32 %v3509, %v3562
    %v3577 = vadd.f32 %v3510, %v3562
    %v3578 = vadd.f32 %v3511, %v3562
    %v3579 = vadd.f32 %v3512, %v3562
    %v3580 = vadd.f32 %v3513, %v3562
    %v3581 = vadd.f32 %v3514, %v3562
    %v3582 = vadd.f32 %v3515, %v3562
    %v3583 = vadd.f32 %v3516, %v3562
    %v3584 = vadd.f32 %v3517, %v3562
    %v3585 = vadd.f32 %v3518, %v3562
    %v3586 = vadd.f32 %v3519, %v3562
    %v3587 = vadd.f32 %v3520, %v3562
    %v3588 = vadd.f32 %v3521, %v3562
    %v3589 = vadd.f32 %v3522, %v3562
    %v3590 = vadd.f32 %v3523, %v3562
    %v3591 = vadd.f32 %v3524, %v3562
    %v3592 = vadd.f32 %v3525, %v3562
    %v3593 = vadd.f32 %v3526, %v3562
    %v3594 = vadd.f32 %v3527, %v3562
    %v3595 = vadd.f32 %v3528, %v3562
    %v3596 = vadd.f32 %v3529, %v3562
    %v3597 = vadd.f32 %v3530, %v3562
    %v3598 = vadd.f32 %v3531, %v3562
    %v3599 = vadd.f32 %v3532, %v3562
    %v3600 = vadd.f32 %v3533, %v3562
    %v3601 = vadd.f32 %v3534, %v3562
    %v3602 = vadd.f32 %v3535, %v3562
    %v3603 = vadd.f32 %v3536, %v3562
    %v3604 = vadd.f32 %v3537, %v3562
    %v3605 = vadd.f32 %v3538, %v3562
    %v3606 = vadd.f32 %v3539, %v3562
    %v3607 = vadd.f32 %v3540, %v3562
    %v3608 = vadd.f32 %v3541, %v3562
    %v3609 = vadd.f32 %v3542, %v3562
    %v3610 = vadd.f32 %v3543, %v3562
    %v3611 = vadd.f32 %v3544, %v3562
    %v3612 = vadd.f32 %v3545, %v3562
    %v3613 = vadd.f32 %v3546, %v3562
    %v3614 = vadd.f32 %v3547, %v3562
    %v3615 = vadd.f32 %v3548, %v3562
    %v3616 = vadd.f32 %v3549, %v3562
    %v3617 = vadd.f32 %v3550, %v3562
    %v3618 = vadd.f32 %v3551, %v3562
    %v3619 = vadd.f32 %v3552, %v3562
    %v3620 = vadd.f32 %v3553, %v3562
    %v3621 = vadd.f32 %v3554, %v3562
    %v3622 = vadd.f32 %v3555, %v3562
    %v3623 = vadd.f32 %v3556, %v3562
    %v3624 = vadd.f32 %v3557, %v3562
    %v3625 = vadd.f32 %v3558, %v3562
    %v3626 = vadd.f32 %v3559, %v3562
    %v3627 = vadd.f32 %v3560, %v3562
    %v3628 = vmax.f32 %v3564, 0.0
    %v3629 = vmax.f32 %v3565, 0.0
    %v3630 = vmax.f32 %v3566, 0.0
    %v3631 = vmax.f32 %v3567, 0.0
    %v3632 = vmax.f32 %v3568, 0.0
    %v3633 = vmax.f32 %v3569, 0.0
    %v3634 = vmax.f32 %v3570, 0.0
    %v3635 = vmax.f32 %v3571, 0.0
    %v3636 = vmax.f32 %v3572, 0.0
    %v3637 = vmax.f32 %v3573, 0.0
    %v3638 = vmax.f32 %v3574, 0.0
    %v3639 = vmax.f32 %v3575, 0.0
    %v3640 = vmax.f32 %v3576, 0.0
    %v3641 = vmax.f32 %v3577, 0.0
    %v3642 = vmax.f32 %v3578, 0.0
    %v3643 = vmax.f32 %v3579, 0.0
    %v3644 = vmax.f32 %v3580, 0.0
    %v3645 = vmax.f32 %v3581, 0.0
    %v3646 = vmax.f32 %v3582, 0.0
    %v3647 = vmax.f32 %v3583, 0.0
    %v3648 = vmax.f32 %v3584, 0.0
    %v3649 = vmax.f32 %v3585, 0.0
    %v3650 = vmax.f32 %v3586, 0.0
    %v3651 = vmax.f32 %v3587, 0.0
    %v3652 = vmax.f32 %v3588, 0.0
    %v3653 = vmax.f32 %v3589, 0.0
    %v3654 = vmax.f32 %v3590, 0.0
    %v3655 = vmax.f32 %v3591, 0.0
    %v3656 = vmax.f32 %v3592, 0.0
    %v3657 = vmax.f32 %v3593, 0.0
    %v3658 = vmax.f32 %v3594, 0.0
    %v3659 = vmax.f32 %v3595, 0.0
    %v3660 = vmax.f32 %v3596, 0.0
    %v3661 = vmax.f32 %v3597, 0.0
    %v3662 = vmax.f32 %v3598, 0.0
    %v3663 = vmax.f32 %v3599, 0.0
    %v3664 = vmax.f32 %v3600, 0.0
    %v3665 = vmax.f32 %v3601, 0.0
    %v3666 = vmax.f32 %v3602, 0.0
    %v3667 = vmax.f32 %v3603, 0.0
    %v3668 = vmax.f32 %v3604, 0.0
    %v3669 = vmax.f32 %v3605, 0.0
    %v3670 = vmax.f32 %v3606, 0.0
    %v3671 = vmax.f32 %v3607, 0.0
    %v3672 = vmax.f32 %v3608, 0.0
    %v3673 = vmax.f32 %v3609, 0.0
    %v3674 = vmax.f32 %v3610, 0.0
    %v3675 = vmax.f32 %v3611, 0.0
    %v3676 = vmax.f32 %v3612, 0.0
    %v3677 = vmax.f32 %v3613, 0.0
    %v3678 = vmax.f32 %v3614, 0.0
    %v3679 = vmax.f32 %v3615, 0.0
    %v3680 = vmax.f32 %v3616, 0.0
    %v3681 = vmax.f32 %v3617, 0.0
    %v3682 = vmax.f32 %v3618, 0.0
    %v3683 = vmax.f32 %v3619, 0.0
    %v3684 = vmax.f32 %v3620, 0.0
    %v3685 = vmax.f32 %v3621, 0.0
    %v3686 = vmax.f32 %v3622, 0.0
    %v3687 = vmax.f32 %v3623, 0.0
    %v3688 = vmax.f32 %v3624, 0.0
    %v3689 = vmax.f32 %v3625, 0.0
    %v3690 = vmax.f32 %v3626, 0.0
    %v3691 = vmax.f32 %v3627, 0.0
    %3692 = vrot.lane.b32.xlu0 %v3096, 96
    %v3693 = vpop.permute.xlu0 %3692
    %v3695 = vmul.f32 %v1205, %v3693
    %v3696 = vmul.f32 %v1208, %v3693
    %v3697 = vmul.f32 %v1213, %v3693
    %v3698 = vmul.f32 %v1216, %v3693
    %v3699 = vmul.f32 %v1221, %v3693
    %v3700 = vmul.f32 %v1224, %v3693
    %v3701 = vmul.f32 %v1229, %v3693
    %v3702 = vmul.f32 %v1232, %v3693
    %v3703 = vmul.f32 %v1237, %v3693
    %v3704 = vmul.f32 %v1240, %v3693
    %v3705 = vmul.f32 %v1245, %v3693
    %v3706 = vmul.f32 %v1248, %v3693
    %v3707 = vmul.f32 %v1253, %v3693
    %v3708 = vmul.f32 %v1256, %v3693
    %v3709 = vmul.f32 %v1261, %v3693
    %v3710 = vmul.f32 %v1264, %v3693
    %v3711 = vmul.f32 %v1269, %v3693
    %v3712 = vmul.f32 %v1272, %v3693
    %v3713 = vmul.f32 %v1277, %v3693
    %v3714 = vmul.f32 %v1280, %v3693
    %v3715 = vmul.f32 %v1285, %v3693
    %v3716 = vmul.f32 %v1288, %v3693
    %v3717 = vmul.f32 %v1293, %v3693
    %v3718 = vmul.f32 %v1296, %v3693
    %v3719 = vmul.f32 %v1301, %v3693
    %v3720 = vmul.f32 %v1304, %v3693
    %v3721 = vmul.f32 %v1309, %v3693
    %v3722 = vmul.f32 %v1312, %v3693
    %v3723 = vmul.f32 %v1317, %v3693
    %v3724 = vmul.f32 %v1320, %v3693
    %v3725 = vmul.f32 %v1325, %v3693
    %v3726 = vmul.f32 %v1328, %v3693
    %v3727 = vmul.f32 %v1333, %v3693
    %v3728 = vmul.f32 %v1336, %v3693
    %v3729 = vmul.f32 %v1341, %v3693
    %v3730 = vmul.f32 %v1344, %v3693
    %v3731 = vmul.f32 %v1349, %v3693
    %v3732 = vmul.f32 %v1352, %v3693
    %v3733 = vmul.f32 %v1357, %v3693
    %v3734 = vmul.f32 %v1360, %v3693
    %v3735 = vmul.f32 %v1365, %v3693
    %v3736 = vmul.f32 %v1368, %v3693
    %v3737 = vmul.f32 %v1373, %v3693
    %v3738 = vmul.f32 %v1376, %v3693
    %v3739 = vmul.f32 %v1381, %v3693
    %v3740 = vmul.f32 %v1384, %v3693
    %v3741 = vmul.f32 %v1389, %v3693
    %v3742 = vmul.f32 %v1392, %v3693
    %v3743 = vmul.f32 %v1397, %v3693
    %v3744 = vmul.f32 %v1400, %v3693
    %v3745 = vmul.f32 %v1405, %v3693
    %v3746 = vmul.f32 %v1408, %v3693
    %v3747 = vmul.f32 %v1413, %v3693
    %v3748 = vmul.f32 %v1416, %v3693
    %v3749 = vmul.f32 %v1421, %v3693
    %v3750 = vmul.f32 %v1424, %v3693
    %v3751 = vmul.f32 %v1429, %v3693
    %v3752 = vmul.f32 %v1432, %v3693
    %v3753 = vmul.f32 %v1437, %v3693
    %v3754 = vmul.f32 %v1440, %v3693
    %v3755 = vmul.f32 %v1445, %v3693
    %v3756 = vmul.f32 %v1448, %v3693
    %v3757 = vmul.f32 %v1453, %v3693
    %v3758 = vmul.f32 %v1456, %v3693
    %3759 = vrot.lane.b32.xlu0 %v3166, 96
    %v3760 = vpop.permute.xlu0 %3759
    %v3762 = vadd.f32 %v3695, %v3760
    %v3763 = vadd.f32 %v3696, %v3760
    %v3764 = vadd.f32 %v3697, %v3760
    %v3765 = vadd.f32 %v3698, %v3760
    %v3766 = vadd.f32 %v3699, %v3760
    %v3767 = vadd.f32 %v3700, %v3760
    %v3768 = vadd.f32 %v3701, %v3760
    %v3769 = vadd.f32 %v3702, %v3760
    %v3770 = vadd.f32 %v3703, %v3760
    %v3771 = vadd.f32 %v3704, %v3760
    %v3772 = vadd.f32 %v3705, %v3760
    %v3773 = vadd.f32 %v3706, %v3760
    %v3774 = vadd.f32 %v3707, %v3760
    %v3775 = vadd.f32 %v3708, %v3760
    %v3776 = vadd.f32 %v3709, %v3760
    %v3777 = vadd.f32 %v3710, %v3760
    %v3778 = vadd.f32 %v3711, %v3760
    %v3779 = vadd.f32 %v3712, %v3760
    %v3780 = vadd.f32 %v3713, %v3760
    %v3781 = vadd.f32 %v3714, %v3760
    %v3782 = vadd.f32 %v3715, %v3760
    %v3783 = vadd.f32 %v3716, %v3760
    %v3784 = vadd.f32 %v3717, %v3760
    %v3785 = vadd.f32 %v3718, %v3760
    %v3786 = vadd.f32 %v3719, %v3760
    %v3787 = vadd.f32 %v3720, %v3760
    %v3788 = vadd.f32 %v3721, %v3760
    %v3789 = vadd.f32 %v3722, %v3760
    %v3790 = vadd.f32 %v3723, %v3760
    %v3791 = vadd.f32 %v3724, %v3760
    %v3792 = vadd.f32 %v3725, %v3760
    %v3793 = vadd.f32 %v3726, %v3760
    %v3794 = vadd.f32 %v3727, %v3760
    %v3795 = vadd.f32 %v3728, %v3760
    %v3796 = vadd.f32 %v3729, %v3760
    %v3797 = vadd.f32 %v3730, %v3760
    %v3798 = vadd.f32 %v3731, %v3760
    %v3799 = vadd.f32 %v3732, %v3760
    %v3800 = vadd.f32 %v3733, %v3760
    %v3801 = vadd.f32 %v3734, %v3760
    %v3802 = vadd.f32 %v3735, %v3760
    %v3803 = vadd.f32 %v3736, %v3760
    %v3804 = vadd.f32 %v3737, %v3760
    %v3805 = vadd.f32 %v3738, %v3760
    %v3806 = vadd.f32 %v3739, %v3760
    %v3807 = vadd.f32 %v3740, %v3760
    %v3808 = vadd.f32 %v3741, %v3760
    %v3809 = vadd.f32 %v3742, %v3760
    %v3810 = vadd.f32 %v3743, %v3760
    %v3811 = vadd.f32 %v3744, %v3760
    %v3812 = vadd.f32 %v3745, %v3760
    %v3813 = vadd.f32 %v3746, %v3760
    %v3814 = vadd.f32 %v3747, %v3760
    %v3815 = vadd.f32 %v3748, %v3760
    %v3816 = vadd.f32 %v3749, %v3760
    %v3817 = vadd.f32 %v3750, %v3760
    %v3818 = vadd.f32 %v3751, %v3760
    %v3819 = vadd.f32 %v3752, %v3760
    %v3820 = vadd.f32 %v3753, %v3760
    %v3821 = vadd.f32 %v3754, %v3760
    %v3822 = vadd.f32 %v3755, %v3760
    %v3823 = vadd.f32 %v3756, %v3760
    %v3824 = vadd.f32 %v3757, %v3760
    %v3825 = vadd.f32 %v3758, %v3760
    %v3826 = vmax.f32 %v3762, 0.0
    %v3827 = vmax.f32 %v3763, 0.0
    %v3828 = vmax.f32 %v3764, 0.0
    %v3829 = vmax.f32 %v3765, 0.0
    %v3830 = vmax.f32 %v3766, 0.0
    %v3831 = vmax.f32 %v3767, 0.0
    %v3832 = vmax.f32 %v3768, 0.0
    %v3833 = vmax.f32 %v3769, 0.0
    %v3834 = vmax.f32 %v3770, 0.0
    %v3835 = vmax.f32 %v3771, 0.0
    %v3836 = vmax.f32 %v3772, 0.0
    %v3837 = vmax.f32 %v3773, 0.0
    %v3838 = vmax.f32 %v3774, 0.0
    %v3839 = vmax.f32 %v3775, 0.0
    %v3840 = vmax.f32 %v3776, 0.0
    %v3841 = vmax.f32 %v3777, 0.0
    %v3842 = vmax.f32 %v3778, 0.0
    %v3843 = vmax.f32 %v3779, 0.0
    %v3844 = vmax.f32 %v3780, 0.0
    %v3845 = vmax.f32 %v3781, 0.0
    %v3846 = vmax.f32 %v3782, 0.0
    %v3847 = vmax.f32 %v3783, 0.0
    %v3848 = vmax.f32 %v3784, 0.0
    %v3849 = vmax.f32 %v3785, 0.0
    %v3850 = vmax.f32 %v3786, 0.0
    %v3851 = vmax.f32 %v3787, 0.0
    %v3852 = vmax.f32 %v3788, 0.0
    %v3853 = vmax.f32 %v3789, 0.0
    %v3854 = vmax.f32 %v3790, 0.0
    %v3855 = vmax.f32 %v3791, 0.0
    %v3856 = vmax.f32 %v3792, 0.0
    %v3857 = vmax.f32 %v3793, 0.0
    %v3858 = vmax.f32 %v3794, 0.0
    %v3859 = vmax.f32 %v3795, 0.0
    %v3860 = vmax.f32 %v3796, 0.0
    %v3861 = vmax.f32 %v3797, 0.0
    %v3862 = vmax.f32 %v3798, 0.0
    %v3863 = vmax.f32 %v3799, 0.0
    %v3864 = vmax.f32 %v3800, 0.0
    %v3865 = vmax.f32 %v3801, 0.0
    %v3866 = vmax.f32 %v3802, 0.0
    %v3867 = vmax.f32 %v3803, 0.0
    %v3868 = vmax.f32 %v3804, 0.0
    %v3869 = vmax.f32 %v3805, 0.0
    %v3870 = vmax.f32 %v3806, 0.0
    %v3871 = vmax.f32 %v3807, 0.0
    %v3872 = vmax.f32 %v3808, 0.0
    %v3873 = vmax.f32 %v3809, 0.0
    %v3874 = vmax.f32 %v3810, 0.0
    %v3875 = vmax.f32 %v3811, 0.0
    %v3876 = vmax.f32 %v3812, 0.0
    %v3877 = vmax.f32 %v3813, 0.0
    %v3878 = vmax.f32 %v3814, 0.0
    %v3879 = vmax.f32 %v3815, 0.0
    %v3880 = vmax.f32 %v3816, 0.0
    %v3881 = vmax.f32 %v3817, 0.0
    %v3882 = vmax.f32 %v3818, 0.0
    %v3883 = vmax.f32 %v3819, 0.0
    %v3884 = vmax.f32 %v3820, 0.0
    %v3885 = vmax.f32 %v3821, 0.0
    %v3886 = vmax.f32 %v3822, 0.0
    %v3887 = vmax.f32 %v3823, 0.0
    %v3888 = vmax.f32 %v3824, 0.0
    %v3889 = vmax.f32 %v3825, 0.0
    %v3890 = vsel %vm784, %v3232, %v3430
    %v3891 = vsel %vm784, %v3233, %v3431
    %v3892 = vsel %vm784, %v3234, %v3432
    %v3893 = vsel %vm784, %v3235, %v3433
    %v3894 = vsel %vm784, %v3236, %v3434
    %v3895 = vsel %vm784, %v3237, %v3435
    %v3896 = vsel %vm784, %v3238, %v3436
    %v3897 = vsel %vm784, %v3239, %v3437
    %v3898 = vsel %vm784, %v3240, %v3438
    %v3899 = vsel %vm784, %v3241, %v3439
    %v3900 = vsel %vm784, %v3242, %v3440
    %v3901 = vsel %vm784, %v3243, %v3441
    %v3902 = vsel %vm784, %v3244, %v3442
    %v3903 = vsel %vm784, %v3245, %v3443
    %v3904 = vsel %vm784, %v3246, %v3444
    %v3905 = vsel %vm784, %v3247, %v3445
    %v3906 = vsel %vm784, %v3248, %v3446
    %v3907 = vsel %vm784, %v3249, %v3447
    %v3908 = vsel %vm784, %v3250, %v3448
    %v3909 = vsel %vm784, %v3251, %v3449
    %v3910 = vsel %vm784, %v3252, %v3450
    %v3911 = vsel %vm784, %v3253, %v3451
    %v3912 = vsel %vm784, %v3254, %v3452
    %v3913 = vsel %vm784, %v3255, %v3453
    %v3914 = vsel %vm784, %v3256, %v3454
    %v3915 = vsel %vm784, %v3257, %v3455
    %v3916 = vsel %vm784, %v3258, %v3456
    %v3917 = vsel %vm784, %v3259, %v3457
    %v3918 = vsel %vm784, %v3260, %v3458
    %v3919 = vsel %vm784, %v3261, %v3459
    %v3920 = vsel %vm784, %v3262, %v3460
    %v3921 = vsel %vm784, %v3263, %v3461
    %v3922 = vsel %vm784, %v3264, %v3462
    %v3923 = vsel %vm784, %v3265, %v3463
    %v3924 = vsel %vm784, %v3266, %v3464
    %v3925 = vsel %vm784, %v3267, %v3465
    %v3926 = vsel %vm784, %v3268, %v3466
    %v3927 = vsel %vm784, %v3269, %v3467
    %v3928 = vsel %vm784, %v3270, %v3468
    %v3929 = vsel %vm784, %v3271, %v3469
    %v3930 = vsel %vm784, %v3272, %v3470
    %v3931 = vsel %vm784, %v3273, %v3471
    %v3932 = vsel %vm784, %v3274, %v3472
    %v3933 = vsel %vm784, %v3275, %v3473
    %v3934 = vsel %vm784, %v3276, %v3474
    %v3935 = vsel %vm784, %v3277, %v3475
    %v3936 = vsel %vm784, %v3278, %v3476
    %v3937 = vsel %vm784, %v3279, %v3477
    %v3938 = vsel %vm784, %v3280, %v3478
    %v3939 = vsel %vm784, %v3281, %v3479
    %v3940 = vsel %vm784, %v3282, %v3480
    %v3941 = vsel %vm784, %v3283, %v3481
    %v3942 = vsel %vm784, %v3284, %v3482
    %v3943 = vsel %vm784, %v3285, %v3483
    %v3944 = vsel %vm784, %v3286, %v3484
    %v3945 = vsel %vm784, %v3287, %v3485
    %v3946 = vsel %vm784, %v3288, %v3486
    %v3947 = vsel %vm784, %v3289, %v3487
    %v3948 = vsel %vm784, %v3290, %v3488
    %v3949 = vsel %vm784, %v3291, %v3489
    %v3950 = vsel %vm784, %v3292, %v3490
    %v3951 = vsel %vm784, %v3293, %v3491
    %v3952 = vsel %vm784, %v3294, %v3492
    %v3953 = vsel %vm784, %v3295, %v3493
    %vm3954 = vcmask 523264
    %v3955 = vsel %vm3954, %v3890, %v3628
    %v3956 = vsel %vm3954, %v3891, %v3629
    %v3957 = vsel %vm3954, %v3892, %v3630
    %v3958 = vsel %vm3954, %v3893, %v3631
    %v3959 = vsel %vm3954, %v3894, %v3632
    %v3960 = vsel %vm3954, %v3895, %v3633
    %v3961 = vsel %vm3954, %v3896, %v3634
    %v3962 = vsel %vm3954, %v3897, %v3635
    %v3963 = vsel %vm3954, %v3898, %v3636
    %v3964 = vsel %vm3954, %v3899, %v3637
    %v3965 = vsel %vm3954, %v3900, %v3638
    %v3966 = vsel %vm3954, %v3901, %v3639
    %v3967 = vsel %vm3954, %v3902, %v3640
    %v3968 = vsel %vm3954, %v3903, %v3641
    %v3969 = vsel %vm3954, %v3904, %v3642
    %v3970 = vsel %vm3954, %v3905, %v3643
    %v3971 = vsel %vm3954, %v3906, %v3644
    %v3972 = vsel %vm3954, %v3907, %v3645
    %v3973 = vsel %vm3954, %v3908, %v3646
    %v3974 = vsel %vm3954, %v3909, %v3647
    %v3975 = vsel %vm3954, %v3910, %v3648
    %v3976 = vsel %vm3954, %v3911, %v3649
    %v3977 = vsel %vm3954, %v3912, %v3650
    %v3978 = vsel %vm3954, %v3913, %v3651
    %v3979 = vsel %vm3954, %v3914, %v3652
    %v3980 = vsel %vm3954, %v3915, %v3653
    %v3981 = vsel %vm3954, %v3916, %v3654
    %v3982 = vsel %vm3954, %v3917, %v3655
    %v3983 = vsel %vm3954, %v3918, %v3656
    %v3984 = vsel %vm3954, %v3919, %v3657
    %v3985 = vsel %vm3954, %v3920, %v3658
    %v3986 = vsel %vm3954, %v3921, %v3659
    %v3987 = vsel %vm3954, %v3922, %v3660
    %v3988 = vsel %vm3954, %v3923, %v3661
    %v3989 = vsel %vm3954, %v3924, %v3662
    %v3990 = vsel %vm3954, %v3925, %v3663
    %v3991 = vsel %vm3954, %v3926, %v3664
    %v3992 = vsel %vm3954, %v3927, %v3665
    %v3993 = vsel %vm3954, %v3928, %v3666
    %v3994 = vsel %vm3954, %v3929, %v3667
    %v3995 = vsel %vm3954, %v3930, %v3668
    %v3996 = vsel %vm3954, %v3931, %v3669
    %v3997 = vsel %vm3954, %v3932, %v3670
    %v3998 = vsel %vm3954, %v3933, %v3671
    %v3999 = vsel %vm3954, %v3934, %v3672
    %v4000 = vsel %vm3954, %v3935, %v3673
    %v4001 = vsel %vm3954, %v3936, %v3674
    %v4002 = vsel %vm3954, %v3937, %v3675
    %v4003 = vsel %vm3954, %v3938, %v3676
    %v4004 = vsel %vm3954, %v3939, %v3677
    %v4005 = vsel %vm3954, %v3940, %v3678
    %v4006 = vsel %vm3954, %v3941, %v3679
    %v4007 = vsel %vm3954, %v3942, %v3680
    %v4008 = vsel %vm3954, %v3943, %v3681
    %v4009 = vsel %vm3954, %v3944, %v3682
    %v4010 = vsel %vm3954, %v3945, %v3683
    %v4011 = vsel %vm3954, %v3946, %v3684
    %v4012 = vsel %vm3954, %v3947, %v3685
    %v4013 = vsel %vm3954, %v3948, %v3686
    %v4014 = vsel %vm3954, %v3949, %v3687
    %v4015 = vsel %vm3954, %v3950, %v3688
    %v4016 = vsel %vm3954, %v3951, %v3689
    %v4017 = vsel %vm3954, %v3952, %v3690
    %v4018 = vsel %vm3954, %v3953, %v3691
    %vm4019 = vcmask 785408
    %v4020 = vsel %vm4019, %v3955, %v3826
    %v4021 = vsel %vm4019, %v3956, %v3827
    %v4022 = vsel %vm4019, %v3957, %v3828
    %v4023 = vsel %vm4019, %v3958, %v3829
    %v4024 = vsel %vm4019, %v3959, %v3830
    %v4025 = vsel %vm4019, %v3960, %v3831
    %v4026 = vsel %vm4019, %v3961, %v3832
    %v4027 = vsel %vm4019, %v3962, %v3833
    %v4028 = vsel %vm4019, %v3963, %v3834
    %v4029 = vsel %vm4019, %v3964, %v3835
    %v4030 = vsel %vm4019, %v3965, %v3836
    %v4031 = vsel %vm4019, %v3966, %v3837
    %v4032 = vsel %vm4019, %v3967, %v3838
    %v4033 = vsel %vm4019, %v3968, %v3839
    %v4034 = vsel %vm4019, %v3969, %v3840
    %v4035 = vsel %vm4019, %v3970, %v3841
    %v4036 = vsel %vm4019, %v3971, %v3842
    %v4037 = vsel %vm4019, %v3972, %v3843
    %v4038 = vsel %vm4019, %v3973, %v3844
    %v4039 = vsel %vm4019, %v3974, %v3845
    %v4040 = vsel %vm4019, %v3975, %v3846
    %v4041 = vsel %vm4019, %v3976, %v3847
    %v4042 = vsel %vm4019, %v3977, %v3848
    %v4043 = vsel %vm4019, %v3978, %v3849
    %v4044 = vsel %vm4019, %v3979, %v3850
    %v4045 = vsel %vm4019, %v3980, %v3851
    %v4046 = vsel %vm4019, %v3981, %v3852
    %v4047 = vsel %vm4019, %v3982, %v3853
    %v4048 = vsel %vm4019, %v3983, %v3854
    %v4049 = vsel %vm4019, %v3984, %v3855
    %v4050 = vsel %vm4019, %v3985, %v3856
    %v4051 = vsel %vm4019, %v3986, %v3857
    %v4052 = vsel %vm4019, %v3987, %v3858
    %v4053 = vsel %vm4019, %v3988, %v3859
    %v4054 = vsel %vm4019, %v3989, %v3860
    %v4055 = vsel %vm4019, %v3990, %v3861
    %v4056 = vsel %vm4019, %v3991, %v3862
    %v4057 = vsel %vm4019, %v3992, %v3863
    %v4058 = vsel %vm4019, %v3993, %v3864
    %v4059 = vsel %vm4019, %v3994, %v3865
    %v4060 = vsel %vm4019, %v3995, %v3866
    %v4061 = vsel %vm4019, %v3996, %v3867
    %v4062 = vsel %vm4019, %v3997, %v3868
    %v4063 = vsel %vm4019, %v3998, %v3869
    %v4064 = vsel %vm4019, %v3999, %v3870
    %v4065 = vsel %vm4019, %v4000, %v3871
    %v4066 = vsel %vm4019, %v4001, %v3872
    %v4067 = vsel %vm4019, %v4002, %v3873
    %v4068 = vsel %vm4019, %v4003, %v3874
    %v4069 = vsel %vm4019, %v4004, %v3875
    %v4070 = vsel %vm4019, %v4005, %v3876
    %v4071 = vsel %vm4019, %v4006, %v3877
    %v4072 = vsel %vm4019, %v4007, %v3878
    %v4073 = vsel %vm4019, %v4008, %v3879
    %v4074 = vsel %vm4019, %v4009, %v3880
    %v4075 = vsel %vm4019, %v4010, %v3881
    %v4076 = vsel %vm4019, %v4011, %v3882
    %v4077 = vsel %vm4019, %v4012, %v3883
    %v4078 = vsel %vm4019, %v4013, %v3884
    %v4079 = vsel %vm4019, %v4014, %v3885
    %v4080 = vsel %vm4019, %v4015, %v3886
    %v4081 = vsel %vm4019, %v4016, %v3887
    %v4082 = vsel %vm4019, %v4017, %v3888
    %v4083 = vsel %vm4019, %v4018, %v3889
    %v4084 = vpack.c.bf16 %v4021, %v4020
    %v4085 = vpack.c.bf16 %v4023, %v4022
    %v4086 = vpack.c.bf16 %v4025, %v4024
    %v4087 = vpack.c.bf16 %v4027, %v4026
    %v4088 = vpack.c.bf16 %v4029, %v4028
    %v4089 = vpack.c.bf16 %v4031, %v4030
    %v4090 = vpack.c.bf16 %v4033, %v4032
    %v4091 = vpack.c.bf16 %v4035, %v4034
    %v4092 = vpack.c.bf16 %v4037, %v4036
    %v4093 = vpack.c.bf16 %v4039, %v4038
    %v4094 = vpack.c.bf16 %v4041, %v4040
    %v4095 = vpack.c.bf16 %v4043, %v4042
    %v4096 = vpack.c.bf16 %v4045, %v4044
    %v4097 = vpack.c.bf16 %v4047, %v4046
    %v4098 = vpack.c.bf16 %v4049, %v4048
    %v4099 = vpack.c.bf16 %v4051, %v4050
    %v4100 = vpack.c.bf16 %v4053, %v4052
    %v4101 = vpack.c.bf16 %v4055, %v4054
    %v4102 = vpack.c.bf16 %v4057, %v4056
    %v4103 = vpack.c.bf16 %v4059, %v4058
    %v4104 = vpack.c.bf16 %v4061, %v4060
    %v4105 = vpack.c.bf16 %v4063, %v4062
    %v4106 = vpack.c.bf16 %v4065, %v4064
    %v4107 = vpack.c.bf16 %v4067, %v4066
    %v4108 = vpack.c.bf16 %v4069, %v4068
    %v4109 = vpack.c.bf16 %v4071, %v4070
    %v4110 = vpack.c.bf16 %v4073, %v4072
    %v4111 = vpack.c.bf16 %v4075, %v4074
    %v4112 = vpack.c.bf16 %v4077, %v4076
    %v4113 = vpack.c.bf16 %v4079, %v4078
    %v4114 = vpack.c.bf16 %v4081, %v4080
    %v4115 = vpack.c.bf16 %v4083, %v4082
    %v4148 = vunpack.c.l.b16 %v4084
    %v4149 = vunpack.c.h.b16 %v4084
    %v4150 = vunpack.c.l.b16 %v4085
    %v4151 = vunpack.c.h.b16 %v4085
    %v4152 = vunpack.c.l.b16 %v4086
    %v4153 = vunpack.c.h.b16 %v4086
    %v4154 = vunpack.c.l.b16 %v4087
    %v4155 = vunpack.c.h.b16 %v4087
    %v4156 = vunpack.c.l.b16 %v4088
    %v4157 = vunpack.c.h.b16 %v4088
    %v4158 = vunpack.c.l.b16 %v4089
    %v4159 = vunpack.c.h.b16 %v4089
    %v4160 = vunpack.c.l.b16 %v4090
    %v4161 = vunpack.c.h.b16 %v4090
    %v4162 = vunpack.c.l.b16 %v4091
    %v4163 = vunpack.c.h.b16 %v4091
    %v4164 = vunpack.c.l.b16 %v4092
    %v4165 = vunpack.c.h.b16 %v4092
    %v4166 = vunpack.c.l.b16 %v4093
    %v4167 = vunpack.c.h.b16 %v4093
    %v4168 = vunpack.c.l.b16 %v4094
    %v4169 = vunpack.c.h.b16 %v4094
    %v4170 = vunpack.c.l.b16 %v4095
    %v4171 = vunpack.c.h.b16 %v4095
    %v4172 = vunpack.c.l.b16 %v4096
    %v4173 = vunpack.c.h.b16 %v4096
    %v4174 = vunpack.c.l.b16 %v4097
    %v4175 = vunpack.c.h.b16 %v4097
    %v4176 = vunpack.c.l.b16 %v4098
    %v4177 = vunpack.c.h.b16 %v4098
    %v4178 = vunpack.c.l.b16 %v4099
    %v4179 = vunpack.c.h.b16 %v4099
    %v4180 = vunpack.c.l.b16 %v4100
    %v4181 = vunpack.c.h.b16 %v4100
    %v4182 = vunpack.c.l.b16 %v4101
    %v4183 = vunpack.c.h.b16 %v4101
    %v4184 = vunpack.c.l.b16 %v4102
    %v4185 = vunpack.c.h.b16 %v4102
    %v4186 = vunpack.c.l.b16 %v4103
    %v4187 = vunpack.c.h.b16 %v4103
    %v4188 = vunpack.c.l.b16 %v4104
    %v4189 = vunpack.c.h.b16 %v4104
    %v4190 = vunpack.c.l.b16 %v4105
    %v4191 = vunpack.c.h.b16 %v4105
    %v4192 = vunpack.c.l.b16 %v4106
    %v4193 = vunpack.c.h.b16 %v4106
    %v4194 = vunpack.c.l.b16 %v4107
    %v4195 = vunpack.c.h.b16 %v4107
    %v4196 = vunpack.c.l.b16 %v4108
    %v4197 = vunpack.c.h.b16 %v4108
    %v4198 = vunpack.c.l.b16 %v4109
    %v4199 = vunpack.c.h.b16 %v4109
    %v4200 = vunpack.c.l.b16 %v4110
    %v4201 = vunpack.c.h.b16 %v4110
    %v4202 = vunpack.c.l.b16 %v4111
    %v4203 = vunpack.c.h.b16 %v4111
    %v4204 = vunpack.c.l.b16 %v4112
    %v4205 = vunpack.c.h.b16 %v4112
    %v4206 = vunpack.c.l.b16 %v4113
    %v4207 = vunpack.c.h.b16 %v4113
    %v4208 = vunpack.c.l.b16 %v4114
    %v4209 = vunpack.c.h.b16 %v4114
    %v4210 = vunpack.c.l.b16 %v4115
    %v4211 = vunpack.c.h.b16 %v4115
    %v4212 = vpack.c.b16 %v4148, %v4148
    %v4213 = vpack.c.b16 %v4149, %v4149
    %v4214 = vpack.c.b16 %v4150, %v4150
    %v4215 = vpack.c.b16 %v4151, %v4151
    %v4216 = vpack.c.b16 %v4152, %v4152
    %v4217 = vpack.c.b16 %v4153, %v4153
    %v4218 = vpack.c.b16 %v4154, %v4154
    %v4219 = vpack.c.b16 %v4155, %v4155
    %v4220 = vpack.c.b16 %v4156, %v4156
    %v4221 = vpack.c.b16 %v4157, %v4157
    %v4222 = vpack.c.b16 %v4158, %v4158
    %v4223 = vpack.c.b16 %v4159, %v4159
    %v4224 = vpack.c.b16 %v4160, %v4160
    %v4225 = vpack.c.b16 %v4161, %v4161
    %v4226 = vpack.c.b16 %v4162, %v4162
    %v4227 = vpack.c.b16 %v4163, %v4163
    %v4228 = vpack.c.b16 %v4164, %v4164
    %v4229 = vpack.c.b16 %v4165, %v4165
    %v4230 = vpack.c.b16 %v4166, %v4166
    %v4231 = vpack.c.b16 %v4167, %v4167
    %v4232 = vpack.c.b16 %v4168, %v4168
    %v4233 = vpack.c.b16 %v4169, %v4169
    %v4234 = vpack.c.b16 %v4170, %v4170
    %v4235 = vpack.c.b16 %v4171, %v4171
    %v4236 = vpack.c.b16 %v4172, %v4172
    %v4237 = vpack.c.b16 %v4173, %v4173
    %v4238 = vpack.c.b16 %v4174, %v4174
    %v4239 = vpack.c.b16 %v4175, %v4175
    %v4240 = vpack.c.b16 %v4176, %v4176
    %v4241 = vpack.c.b16 %v4177, %v4177
    %v4242 = vpack.c.b16 %v4178, %v4178
    %v4243 = vpack.c.b16 %v4179, %v4179
    %v4244 = vpack.c.b16 %v4180, %v4180
    %v4245 = vpack.c.b16 %v4181, %v4181
    %v4246 = vpack.c.b16 %v4182, %v4182
    %v4247 = vpack.c.b16 %v4183, %v4183
    %v4248 = vpack.c.b16 %v4184, %v4184
    %v4249 = vpack.c.b16 %v4185, %v4185
    %v4250 = vpack.c.b16 %v4186, %v4186
    %v4251 = vpack.c.b16 %v4187, %v4187
    %v4252 = vpack.c.b16 %v4188, %v4188
    %v4253 = vpack.c.b16 %v4189, %v4189
    %v4254 = vpack.c.b16 %v4190, %v4190
    %v4255 = vpack.c.b16 %v4191, %v4191
    %v4256 = vpack.c.b16 %v4192, %v4192
    %v4257 = vpack.c.b16 %v4193, %v4193
    %v4258 = vpack.c.b16 %v4194, %v4194
    %v4259 = vpack.c.b16 %v4195, %v4195
    %v4260 = vpack.c.b16 %v4196, %v4196
    %v4261 = vpack.c.b16 %v4197, %v4197
    %v4262 = vpack.c.b16 %v4198, %v4198
    %v4263 = vpack.c.b16 %v4199, %v4199
    %v4264 = vpack.c.b16 %v4200, %v4200
    %v4265 = vpack.c.b16 %v4201, %v4201
    %v4266 = vpack.c.b16 %v4202, %v4202
    %v4267 = vpack.c.b16 %v4203, %v4203
    %v4268 = vpack.c.b16 %v4204, %v4204
    %v4269 = vpack.c.b16 %v4205, %v4205
    %v4270 = vpack.c.b16 %v4206, %v4206
    %v4271 = vpack.c.b16 %v4207, %v4207
    %v4272 = vpack.c.b16 %v4208, %v4208
    %v4273 = vpack.c.b16 %v4209, %v4209
    %v4274 = vpack.c.b16 %v4210, %v4210
    %v4275 = vpack.c.b16 %v4211, %v4211
    %4340 = vst [vmem:[%s4] sm:$0xf] %v4212
    %4341 = vst [vmem:[%s4 + $0x4] sm:$0xf] %v4213
    %4342 = vst [vmem:[%s4 + $0x8] sm:$0xf] %v4214
    %4343 = vst [vmem:[%s4 + $0xc] sm:$0xf] %v4215
    %4344 = vst [vmem:[%s4 + $0x10] sm:$0xf] %v4216
    %4345 = vst [vmem:[%s4 + $0x14] sm:$0xf] %v4217
    %4346 = vst [vmem:[%s4 + $0x18] sm:$0xf] %v4218
    %4347 = vst [vmem:[%s4 + $0x1c] sm:$0xf] %v4219
    %4348 = vst [vmem:[%s4 + $0x20] sm:$0xf] %v4220
    %4349 = vst [vmem:[%s4 + $0x24] sm:$0xf] %v4221
    %4350 = vst [vmem:[%s4 + $0x28] sm:$0xf] %v4222
    %4351 = vst [vmem:[%s4 + $0x2c] sm:$0xf] %v4223
    %4352 = vst [vmem:[%s4 + $0x30] sm:$0xf] %v4224
    %4353 = vst [vmem:[%s4 + $0x34] sm:$0xf] %v4225
    %4354 = vst [vmem:[%s4 + $0x38] sm:$0xf] %v4226
    %4355 = vst [vmem:[%s4 + $0x3c] sm:$0xf] %v4227
    %4356 = vst [vmem:[%s4 + $0x40] sm:$0xf] %v4228
    %4357 = vst [vmem:[%s4 + $0x44] sm:$0xf] %v4229
    %4358 = vst [vmem:[%s4 + $0x48] sm:$0xf] %v4230
    %4359 = vst [vmem:[%s4 + $0x4c] sm:$0xf] %v4231
    %4360 = vst [vmem:[%s4 + $0x50] sm:$0xf] %v4232
    %4361 = vst [vmem:[%s4 + $0x54] sm:$0xf] %v4233
    %4362 = vst [vmem:[%s4 + $0x58] sm:$0xf] %v4234
    %4363 = vst [vmem:[%s4 + $0x5c] sm:$0xf] %v4235
    %4364 = vst [vmem:[%s4 + $0x60] sm:$0xf] %v4236
    %4365 = vst [vmem:[%s4 + $0x64] sm:$0xf] %v4237
    %4366 = vst [vmem:[%s4 + $0x68] sm:$0xf] %v4238
    %4367 = vst [vmem:[%s4 + $0x6c] sm:$0xf] %v4239
    %4368 = vst [vmem:[%s4 + $0x70] sm:$0xf] %v4240
    %4369 = vst [vmem:[%s4 + $0x74] sm:$0xf] %v4241
    %4370 = vst [vmem:[%s4 + $0x78] sm:$0xf] %v4242
    %4371 = vst [vmem:[%s4 + $0x7c] sm:$0xf] %v4243
    %4372 = vst [vmem:[%s4 + $0x80] sm:$0xf] %v4244
    %4373 = vst [vmem:[%s4 + $0x84] sm:$0xf] %v4245
    %4374 = vst [vmem:[%s4 + $0x88] sm:$0xf] %v4246
    %4375 = vst [vmem:[%s4 + $0x8c] sm:$0xf] %v4247
    %4376 = vst [vmem:[%s4 + $0x90] sm:$0xf] %v4248
    %4377 = vst [vmem:[%s4 + $0x94] sm:$0xf] %v4249
    %4378 = vst [vmem:[%s4 + $0x98] sm:$0xf] %v4250
    %4379 = vst [vmem:[%s4 + $0x9c] sm:$0xf] %v4251
    %4380 = vst [vmem:[%s4 + $0xa0] sm:$0xf] %v4252
    %4381 = vst [vmem:[%s4 + $0xa4] sm:$0xf] %v4253
    %4382 = vst [vmem:[%s4 + $0xa8] sm:$0xf] %v4254
    %4383 = vst [vmem:[%s4 + $0xac] sm:$0xf] %v4255
    %4384 = vst [vmem:[%s4 + $0xb0] sm:$0xf] %v4256
    %4385 = vst [vmem:[%s4 + $0xb4] sm:$0xf] %v4257
    %4386 = vst [vmem:[%s4 + $0xb8] sm:$0xf] %v4258
    %4387 = vst [vmem:[%s4 + $0xbc] sm:$0xf] %v4259
    %4388 = vst [vmem:[%s4 + $0xc0] sm:$0xf] %v4260
    %4389 = vst [vmem:[%s4 + $0xc4] sm:$0xf] %v4261
    %4390 = vst [vmem:[%s4 + $0xc8] sm:$0xf] %v4262
    %4391 = vst [vmem:[%s4 + $0xcc] sm:$0xf] %v4263
    %4392 = vst [vmem:[%s4 + $0xd0] sm:$0xf] %v4264
    %4393 = vst [vmem:[%s4 + $0xd4] sm:$0xf] %v4265
    %4394 = vst [vmem:[%s4 + $0xd8] sm:$0xf] %v4266
    %4395 = vst [vmem:[%s4 + $0xdc] sm:$0xf] %v4267
    %4396 = vst [vmem:[%s4 + $0xe0] sm:$0xf] %v4268
    %4397 = vst [vmem:[%s4 + $0xe4] sm:$0xf] %v4269
    %4398 = vst [vmem:[%s4 + $0xe8] sm:$0xf] %v4270
    %4399 = vst [vmem:[%s4 + $0xec] sm:$0xf] %v4271
    %4400 = vst [vmem:[%s4 + $0xf0] sm:$0xf] %v4272
    %4401 = vst [vmem:[%s4 + $0xf4] sm:$0xf] %v4273
    %4402 = vst [vmem:[%s4 + $0xf8] sm:$0xf] %v4274
    %4403 = vst [vmem:[%s4 + $0xfc] sm:$0xf] %v4275
    // Predicated region
    $region22: #{generator_forward.8} parent=1 // pred_check
      _
    $region23: #{generator_forward.8} parent=1 // pred_check_branch
      %4405 = sbr.rel (0) target = $region25
    $region24: #{generator_forward.8} parent=1 // pred_region
      _
    $region25: #{generator_forward.8} parent=1 // pred_fallthru
      _
    // Predicated region
    $region26: #{generator_forward.8} parent=1 // pred_check
      _
    $region27: #{generator_forward.8} parent=1 // pred_check_branch
      %4407 = sbr.rel (0) target = $region29
    $region28: #{generator_forward.8} parent=1 // pred_region
      _
    $region29: #{generator_forward.8} parent=1 // pred_fallthru
      _
    %4408 = vsyncpa [#allocation3], 1

// kernel: generator_forward.9
$region0: #{generator_forward.9}
  #allocation0 [shape = 'u32[]', space=smem, size = 0x4, offset = 0x4, fixed_abs, tag = 'smem constant byte address 0x4 - core index']
  #allocation1 [shape = 'u32[144,128]{1,0:T(1,128)}', space=vmem, size = 0x12000, scoped, tag = 'internal scratch']
  %s0 = inlined_call_operand.vmem [shape: bf16[2048,144], index: 0, kind: input, shape index: {}]
  %s1 = inlined_call_operand.vmem [shape: bf16[144,128], index: 1, kind: input, shape index: {}]
  %s2 = inlined_call_operand.vmem [shape: f32[1,128], index: 2, kind: input, shape index: {}]
  %s3 = inlined_call_operand.vmem [shape: f32[2048,128], index: 3, kind: output, shape index: {}]
  %s4 = sld [smem:[#allocation0]]
  $region45: #{generator_forward.9} parent=0
    _
  %s6 = ssub.s32 1, %s4
  %s7 = scalar_select 0, %s6, %s4
  loop: start=0, step=1, limit=10
  $region2: #{generator_forward.9} parent=0 // loop_pre_header
    _
  $region3: #{generator_forward.9} parent=0 // loop_header
    %s9 = sphi 0, %s13
    %p10 = scmp.ge.s32.totalorder %s9, 10
    %s19 = sphi 0, %s21
    %s22 = sphi 0, %s19
    %s23 = sphi 0, %s22
    %s39 = sphi 0, %s23
    %s43 = sphi 0, %s43
    %s45 = sphi 0, %s43
    %s46 = sphi 0, %s45
    %s60 = sphi 0, %s46
    %s64 = sphi 0, %s64
    %s66 = sphi 0, %s64
    %s67 = sphi 0, %s66
    %s81 = sphi 0, %s67
    %s87 = sphi 0, %s89
    %s90 = sphi 0, %s87
    %s91 = sphi 0, %s90
    %s107 = sphi 0, %s91
  $region4: #{generator_forward.9} parent=0 // loop_header_branch
    %12 = sbr.rel (%p10) target = $region8
  $region5: #{generator_forward.9} parent=0 // loop_body
    %s14 = ssub.s32 %s9, 1
    %s15 = ssub.s32 %s9, 2
    %s16 = sadd.s32 %s9, 1
    %s17 = ssub.s32 %s9, %s16
    %p18 = scmp.eq.s32.totalorder %s17, 0
    %s20 = sadd.s32 %s19, 1
    %s21 = scalar_select %p18, %s19, %s20
    %p24 = pneg %p18
    %p25 = scmp.eq.s32.totalorder %s9, 7
    %p26 = por %p24, %p25
    %p27 = scmp.ne.s32.totalorder %s19, %s22
    %p28 = scmp.eq.s32.totalorder %s9, 0
    %p29 = por %p27, %p28
    %p30 = scmp.ne.s32.totalorder %s19, %s22
    %p31 = scmp.eq.s32.totalorder %s14, 7
    %p32 = por %p30, %p31
    %p33 = scmp.ne.s32.totalorder %s22, %s23
    %p34 = scmp.eq.s32.totalorder %s14, 0
    %p35 = por %p33, %p34
    %p36 = scmp.ne.s32.totalorder %s22, %s23
    %p37 = scmp.eq.s32.totalorder %s15, 7
    %p38 = por %p36, %p37
    %p40 = scmp.ne.s32.totalorder %s23, %s39
    %p41 = scmp.eq.s32.totalorder %s15, 0
    %p42 = por %p40, %p41
    %s44 = sadd.s32 %s43, 1
    %p47 = scmp.eq.s32.totalorder %s9, 7
    %p48 = scmp.ne.s32.totalorder %s43, %s45
    %p49 = scmp.eq.s32.totalorder %s9, 0
    %p50 = por %p48, %p49
    %p51 = scmp.ne.s32.totalorder %s43, %s45
    %p52 = scmp.eq.s32.totalorder %s14, 7
    %p53 = por %p51, %p52
    %p54 = scmp.ne.s32.totalorder %s45, %s46
    %p55 = scmp.eq.s32.totalorder %s14, 0
    %p56 = por %p54, %p55
    %p57 = scmp.ne.s32.totalorder %s45, %s46
    %p58 = scmp.eq.s32.totalorder %s15, 7
    %p59 = por %p57, %p58
    %p61 = scmp.ne.s32.totalorder %s46, %s60
    %p62 = scmp.eq.s32.totalorder %s15, 0
    %p63 = por %p61, %p62
    %s65 = sadd.s32 %s64, 1
    %p68 = scmp.eq.s32.totalorder %s9, 7
    %p69 = scmp.ne.s32.totalorder %s64, %s66
    %p70 = scmp.eq.s32.totalorder %s9, 0
    %p71 = por %p69, %p70
    %p72 = scmp.ne.s32.totalorder %s64, %s66
    %p73 = scmp.eq.s32.totalorder %s14, 7
    %p74 = por %p72, %p73
    %p75 = scmp.ne.s32.totalorder %s66, %s67
    %p76 = scmp.eq.s32.totalorder %s14, 0
    %p77 = por %p75, %p76
    %p78 = scmp.ne.s32.totalorder %s66, %s67
    %p79 = scmp.eq.s32.totalorder %s15, 7
    %p80 = por %p78, %p79
    %p82 = scmp.ne.s32.totalorder %s67, %s81
    %p83 = scmp.eq.s32.totalorder %s15, 0
    %p84 = por %p82, %p83
    %s85 = ssub.s32 %s9, %s16
    %p86 = scmp.eq.s32.totalorder %s85, 0
    %s88 = sadd.s32 %s87, 1
    %s89 = scalar_select %p86, %s87, %s88
    %p92 = pneg %p86
    %p93 = scmp.eq.s32.totalorder %s9, 7
    %p94 = por %p92, %p93
    %p95 = scmp.ne.s32.totalorder %s87, %s90
    %p96 = scmp.eq.s32.totalorder %s9, 0
    %p97 = por %p95, %p96
    %p98 = scmp.ne.s32.totalorder %s87, %s90
    %p99 = scmp.eq.s32.totalorder %s14, 7
    %p100 = por %p98, %p99
    %p101 = scmp.ne.s32.totalorder %s90, %s91
    %p102 = scmp.eq.s32.totalorder %s14, 0
    %p103 = por %p101, %p102
    %p104 = scmp.ne.s32.totalorder %s90, %s91
    %p105 = scmp.eq.s32.totalorder %s15, 7
    %p106 = por %p104, %p105
    %p108 = scmp.ne.s32.totalorder %s91, %s107
    %p109 = scmp.eq.s32.totalorder %s15, 0
    %p110 = por %p108, %p109
    %p111 = scmp.le.s32.totalorder 1, %s9
    %p112 = scmp.lt.s32.totalorder %s9, 9
    %p113 = pnand %p111, %p112
    %p114 = pneg %p113
    // Predicated region
    $region9: #{generator_forward.9} parent=5 // pred_check
      _
    $region10: #{generator_forward.9} parent=5 // pred_check_branch
      %116 = sbr.rel (%p113) target = $region12
    $region11: #{generator_forward.9} parent=5 // pred_region
      %s117 = ssub.s32 %s9, 1
      // Predicated region
      $region13: #{generator_forward.9} parent=11 // pred_check
        %p118 = pneg %p56
      $region14: #{generator_forward.9} parent=11 // pred_check_branch
        %120 = sbr.rel (%p118) target = $region16
      $region15: #{generator_forward.9} parent=11 // pred_region
        _
      $region16: #{generator_forward.9} parent=11 // pred_fallthru
        _
      // Predicated region
      $region17: #{generator_forward.9} parent=11 // pred_check
        %p121 = pneg %p77
      $region18: #{generator_forward.9} parent=11 // pred_check_branch
        %123 = sbr.rel (%p121) target = $region20
      $region19: #{generator_forward.9} parent=11 // pred_region
        _
      $region20: #{generator_forward.9} parent=11 // pred_fallthru
        _
    $region12: #{generator_forward.9} parent=5 // pred_fallthru
      _
    %p124 = scmp.lt.s32.totalorder %s9, 8
    // Predicated region
    $region21: #{generator_forward.9} parent=5 // pred_check
      %p125 = pneg %p124
    $region22: #{generator_forward.9} parent=5 // pred_check_branch
      %127 = sbr.rel (%p125) target = $region24
    $region23: #{generator_forward.9} parent=5 // pred_region
      // Predicated region
      $region25: #{generator_forward.9} parent=23 // pred_check
        %p128 = pneg %p29
      $region26: #{generator_forward.9} parent=23 // pred_check_branch
        %130 = sbr.rel (%p128) target = $region28
      $region27: #{generator_forward.9} parent=23 // pred_region
        %s131 = smul.u32 32, %s9
        %p132 = scmp.lt.s32.totalorder %s131, 255
        %s133 = scalar_select %p132, %s131, 255
        %s134 = smul.addr %s133, 2
        %s135 = smul.addr %s134, 4
        %s136 = scalar_lea.vmem %s0, %s135
        %s137 = smul.u32 32, %s9
      $region28: #{generator_forward.9} parent=23 // pred_fallthru
        _
    $region24: #{generator_forward.9} parent=5 // pred_fallthru
      _
    %p138 = scmp.le.s32.totalorder 1, %s9
    %p139 = scmp.lt.s32.totalorder %s9, 9
    %p140 = pnand %p138, %p139
    %p141 = pneg %p140
    // Predicated region
    $region29: #{generator_forward.9} parent=5 // pred_check
      _
    $region30: #{generator_forward.9} parent=5 // pred_check_branch
      %143 = sbr.rel (%p140) target = $region32
    $region31: #{generator_forward.9} parent=5 // pred_region
      %s144 = ssub.s32 %s9, 1
      %s145 = smul.u32 32, %s14
      %p146 = scmp.lt.s32.totalorder %s145, 255
      %s147 = scalar_select %p146, %s145, 255
      %s148 = smul.addr %s147, 2
      %s149 = smul.addr %s148, 4
      %s150 = scalar_lea.vmem %s0, %s149
      %p151 = pneg %p35
      %p152 = pneg %p32
      %p153 = pneg %p56
      %p154 = pneg %p53
      %p155 = pneg %p77
      %p156 = pneg %p74
      %p157 = pneg %p103
      %p158 = pneg %p100
      %s159 = smul.u32 32, %s14
      %p160 = scmp.lt.s32.totalorder %s159, 255
      %s161 = scalar_select %p160, %s159, 255
      %s162 = smul.addr %s161, 8
      %s163 = scalar_lea.vmem %s3, %s162
      %s164 = smul.u32 32, %s14
      %p165 = scmp.lt.s32.totalorder %s164, 255
      %s166 = scalar_select %p165, %s164, 255
      %s167 = smul.addr %s166, 2
      %s168 = smul.addr %s167, 4
      %s169 = scalar_lea.vmem %s0, %s168
      %s170 = smul.u32 32, %s14
      %s171 = smul.u32 32, %s14
      %p172 = scmp.lt.s32.totalorder %s171, 255
      %s173 = scalar_select %p172, %s171, 255
      %s174 = smul.addr %s173, 8
      %s175 = scalar_lea.vmem %s3, %s174
      %s176 = smul.u32 32, %s14
      %v178 = vld [vmem:[%s169] sm:$0xff]
      %v179 = vld [vmem:[%s169 + $0x8] sm:$0xff]
      %v180 = vld [vmem:[%s169 + $0x10] sm:$0xff]
      %v181 = vld [vmem:[%s169 + $0x18] sm:$0xff]
      %v182 = vld [vmem:[%s169 + $0x20] sm:$0xff]
      %v183 = vld [vmem:[%s169 + $0x28] sm:$0xff]
      %v184 = vld [vmem:[%s169 + $0x30] sm:$0xff]
      %v185 = vld [vmem:[%s169 + $0x38] sm:$0xff]
      %v186 = vld [vmem:[%s169 + $0x40] sm:$0xff]
      %v187 = vld [vmem:[%s169 + $0x48] sm:$0xff]
      %v188 = vld [vmem:[%s169 + $0x50] sm:$0xff]
      %v189 = vld [vmem:[%s169 + $0x58] sm:$0xff]
      %v190 = vld [vmem:[%s169 + $0x60] sm:$0xff]
      %v191 = vld [vmem:[%s169 + $0x68] sm:$0xff]
      %v192 = vld [vmem:[%s169 + $0x70] sm:$0xff]
      %v193 = vld [vmem:[%s169 + $0x78] sm:$0xff]
      %v194 = vld [vmem:[%s169 + $0x80] sm:$0xff]
      %v195 = vld [vmem:[%s169 + $0x88] sm:$0xff]
      %v196 = vld [vmem:[%s169 + $0x90] sm:$0xff]
      %v197 = vld [vmem:[%s169 + $0x98] sm:$0xff]
      %v198 = vld [vmem:[%s169 + $0xa0] sm:$0xff]
      %v199 = vld [vmem:[%s169 + $0xa8] sm:$0xff]
      %v200 = vld [vmem:[%s169 + $0xb0] sm:$0xff]
      %v201 = vld [vmem:[%s169 + $0xb8] sm:$0xff]
      %v202 = vld [vmem:[%s169 + $0xc0] sm:$0xff]
      %v203 = vld [vmem:[%s169 + $0xc8] sm:$0xff]
      %v204 = vld [vmem:[%s169 + $0xd0] sm:$0xff]
      %v205 = vld [vmem:[%s169 + $0xd8] sm:$0xff]
      %v206 = vld [vmem:[%s169 + $0xe0] sm:$0xff]
      %v207 = vld [vmem:[%s169 + $0xe8] sm:$0xff]
      %v208 = vld [vmem:[%s169 + $0xf0] sm:$0xff]
      %v209 = vld [vmem:[%s169 + $0xf8] sm:$0xff]
      %v210 = vld [vmem:[%s1] sm:$0xf]
      %v211 = vld [vmem:[%s1 + $0x4] sm:$0xf]
      %v212 = vld [vmem:[%s1 + $0x8] sm:$0xf]
      %v213 = vld [vmem:[%s1 + $0xc] sm:$0xf]
      %v214 = vld [vmem:[%s1 + $0x10] sm:$0xf]
      %v215 = vld [vmem:[%s1 + $0x14] sm:$0xf]
      %v216 = vld [vmem:[%s1 + $0x18] sm:$0xf]
      %v217 = vld [vmem:[%s1 + $0x1c] sm:$0xf]
      %v218 = vld [vmem:[%s1 + $0x20] sm:$0xf]
      %v219 = vld [vmem:[%s1 + $0x24] sm:$0xf]
      %v220 = vld [vmem:[%s1 + $0x28] sm:$0xf]
      %v221 = vld [vmem:[%s1 + $0x2c] sm:$0xf]
      %v222 = vld [vmem:[%s1 + $0x30] sm:$0xf]
      %v223 = vld [vmem:[%s1 + $0x34] sm:$0xf]
      %v224 = vld [vmem:[%s1 + $0x38] sm:$0xf]
      %v225 = vld [vmem:[%s1 + $0x3c] sm:$0xf]
      %v226 = vld [vmem:[%s1 + $0x40] sm:$0xf]
      %v227 = vld [vmem:[%s1 + $0x44] sm:$0xf]
      %v228 = vld [vmem:[%s2] sm:$0x1]
      %v230 = vlaneseq
      %v231 = vshrl.u32 %v230, 7
      %v232 = vsub.s32 0, %v231
      %v233 = vrot.slane %v228, %v232
      %v267 = vunpack.c.l.b16 %v178
      %v268 = vunpack.c.h.b16 %v178
      %v269 = vunpack.c.l.b16 %v179
      %v270 = vunpack.c.h.b16 %v179
      %v271 = vunpack.c.l.b16 %v180
      %v272 = vunpack.c.h.b16 %v180
      %v273 = vunpack.c.l.b16 %v181
      %v274 = vunpack.c.h.b16 %v181
      %v275 = vunpack.c.l.b16 %v182
      %v276 = vunpack.c.h.b16 %v182
      %v277 = vunpack.c.l.b16 %v183
      %v278 = vunpack.c.h.b16 %v183
      %v279 = vunpack.c.l.b16 %v184
      %v280 = vunpack.c.h.b16 %v184
      %v281 = vunpack.c.l.b16 %v185
      %v282 = vunpack.c.h.b16 %v185
      %v283 = vunpack.c.l.b16 %v186
      %v284 = vunpack.c.h.b16 %v186
      %v285 = vunpack.c.l.b16 %v187
      %v286 = vunpack.c.h.b16 %v187
      %v287 = vunpack.c.l.b16 %v188
      %v288 = vunpack.c.h.b16 %v188
      %v289 = vunpack.c.l.b16 %v189
      %v290 = vunpack.c.h.b16 %v189
      %v291 = vunpack.c.l.b16 %v190
      %v292 = vunpack.c.h.b16 %v190
      %v293 = vunpack.c.l.b16 %v191
      %v294 = vunpack.c.h.b16 %v191
      %v295 = vunpack.c.l.b16 %v192
      %v296 = vunpack.c.h.b16 %v192
      %v297 = vunpack.c.l.b16 %v193
      %v298 = vunpack.c.h.b16 %v193
      %v299 = vunpack.c.l.b16 %v194
      %v300 = vunpack.c.h.b16 %v194
      %v301 = vunpack.c.l.b16 %v195
      %v302 = vunpack.c.h.b16 %v195
      %v303 = vunpack.c.l.b16 %v196
      %v304 = vunpack.c.h.b16 %v196
      %v305 = vunpack.c.l.b16 %v197
      %v306 = vunpack.c.h.b16 %v197
      %v307 = vunpack.c.l.b16 %v198
      %v308 = vunpack.c.h.b16 %v198
      %v309 = vunpack.c.l.b16 %v199
      %v310 = vunpack.c.h.b16 %v199
      %v311 = vunpack.c.l.b16 %v200
      %v312 = vunpack.c.h.b16 %v200
      %v313 = vunpack.c.l.b16 %v201
      %v314 = vunpack.c.h.b16 %v201
      %v315 = vunpack.c.l.b16 %v202
      %v316 = vunpack.c.h.b16 %v202
      %v317 = vunpack.c.l.b16 %v203
      %v318 = vunpack.c.h.b16 %v203
      %v319 = vunpack.c.l.b16 %v204
      %v320 = vunpack.c.h.b16 %v204
      %v321 = vunpack.c.l.b16 %v205
      %v322 = vunpack.c.h.b16 %v205
      %v323 = vunpack.c.l.b16 %v206
      %v324 = vunpack.c.h.b16 %v206
      %v325 = vunpack.c.l.b16 %v207
      %v326 = vunpack.c.h.b16 %v207
      %v327 = vunpack.c.l.b16 %v208
      %v328 = vunpack.c.h.b16 %v208
      %v329 = vunpack.c.l.b16 %v209
      %v330 = vunpack.c.h.b16 %v209
      %v331 = vpack.c.b16 %v269, %v267
      %v332 = vpack.c.b16 %v270, %v268
      %v333 = vpack.c.b16 %v273, %v271
      %v334 = vpack.c.b16 %v274, %v272
      %v335 = vpack.c.b16 %v277, %v275
      %v336 = vpack.c.b16 %v278, %v276
      %v337 = vpack.c.b16 %v281, %v279
      %v338 = vpack.c.b16 %v282, %v280
      %v339 = vpack.c.b16 %v285, %v283
      %v340 = vpack.c.b16 %v286, %v284
      %v341 = vpack.c.b16 %v289, %v287
      %v342 = vpack.c.b16 %v290, %v288
      %v343 = vpack.c.b16 %v293, %v291
      %v344 = vpack.c.b16 %v294, %v292
      %v345 = vpack.c.b16 %v297, %v295
      %v346 = vpack.c.b16 %v298, %v296
      %v347 = vpack.c.b16 %v301, %v299
      %v348 = vpack.c.b16 %v302, %v300
      %v349 = vpack.c.b16 %v305, %v303
      %v350 = vpack.c.b16 %v306, %v304
      %v351 = vpack.c.b16 %v309, %v307
      %v352 = vpack.c.b16 %v310, %v308
      %v353 = vpack.c.b16 %v313, %v311
      %v354 = vpack.c.b16 %v314, %v312
      %v355 = vpack.c.b16 %v317, %v315
      %v356 = vpack.c.b16 %v318, %v316
      %v357 = vpack.c.b16 %v321, %v319
      %v358 = vpack.c.b16 %v322, %v320
      %v359 = vpack.c.b16 %v325, %v323
      %v360 = vpack.c.b16 %v326, %v324
      %v361 = vpack.c.b16 %v329, %v327
      %v362 = vpack.c.b16 %v330, %v328
      %v397 = vunpack.c.l.b16 %v210
      %v398 = vunpack.c.l.b16 %v211
      %v399 = vunpack.c.l.b16 %v212
      %v400 = vunpack.c.l.b16 %v213
      %v401 = vunpack.c.l.b16 %v214
      %v402 = vunpack.c.l.b16 %v215
      %v403 = vunpack.c.l.b16 %v216
      %v404 = vunpack.c.l.b16 %v217
      %v405 = vunpack.c.l.b16 %v218
      %v406 = vunpack.c.l.b16 %v219
      %v407 = vunpack.c.l.b16 %v220
      %v408 = vunpack.c.l.b16 %v221
      %v409 = vunpack.c.l.b16 %v222
      %v410 = vunpack.c.l.b16 %v223
      %v411 = vunpack.c.l.b16 %v224
      %v412 = vunpack.c.l.b16 %v225
      %v413 = vunpack.c.l.b16 %v226
      %v414 = vunpack.c.l.b16 %v227
      %v415 = vpack.c.b16 %v398, %v397
      %v416 = vpack.c.b16 %v400, %v399
      %v417 = vpack.c.b16 %v402, %v401
      %v418 = vpack.c.b16 %v404, %v403
      %v419 = vpack.c.b16 %v406, %v405
      %v420 = vpack.c.b16 %v408, %v407
      %v421 = vpack.c.b16 %v410, %v409
      %v422 = vpack.c.b16 %v412, %v411
      %v423 = vpack.c.b16 %v414, %v413
      %vm433 = vcmask 130048
      %v435 = vsel %vm433, %v332, 0
      %v438 = vsel %vm433, %v334, 0
      %v441 = vsel %vm433, %v336, 0
      %v444 = vsel %vm433, %v338, 0
      %v447 = vsel %vm433, %v340, 0
      %v450 = vsel %vm433, %v342, 0
      %v453 = vsel %vm433, %v344, 0
      %v456 = vsel %vm433, %v346, 0
      %v459 = vsel %vm433, %v348, 0
      %v462 = vsel %vm433, %v350, 0
      %v465 = vsel %vm433, %v352, 0
      %v468 = vsel %vm433, %v354, 0
      %v471 = vsel %vm433, %v356, 0
      %v474 = vsel %vm433, %v358, 0
      %v477 = vsel %vm433, %v360, 0
      %v480 = vsel %vm433, %v362, 0
      %482 = vmatprep.subr.bf16.mxu0 0
      %483 = vmatpush1.bf16.msra.mxu0 %v415
      %484 = vmatprep.subr.bf16.mxu0 0
      %485 = vmatpush1.bf16.msra.mxu0 %v416
      %486 = vmatprep.subr.bf16.mxu0 0
      %487 = vmatpush1.bf16.msra.mxu0 %v417
      %488 = vmatprep.subr.bf16.mxu0 0
      %489 = vmatpush1.bf16.msra.mxu0 %v418
      %490 = vmatprep.subr.bf16.mxu0 0
      %491 = vmatpush1.bf16.msra.mxu0 %v419
      %492 = vmatprep.subr.bf16.mxu0 0
      %493 = vmatpush1.bf16.msra.mxu0 %v420
      %494 = vmatprep.subr.bf16.mxu0 0
      %495 = vmatpush1.bf16.msra.mxu0 %v421
      %496 = vmatprep.subr.bf16.mxu0 0
      %497 = vmatpush1.bf16.msra.mxu0 %v422
      %498 = vmatprep.subr.bf16.mxu0 0
      %499 = vmatpush1.bf16.msra.mxu0 %v423
      %500 = vmatprep.subr.bf16.mxu0 0
      %501 = vmatpush1.bf16.msra.mxu0 0
      %502 = vmatprep.subr.bf16.mxu0 0
      %503 = vmatpush1.bf16.msra.mxu0 0
      %504 = vmatprep.subr.bf16.mxu0 0
      %505 = vmatpush1.bf16.msra.mxu0 0
      %506 = vmatprep.subr.bf16.mxu0 0
      %507 = vmatpush1.bf16.msra.mxu0 0
      %508 = vmatprep.subr.bf16.mxu0 0
      %509 = vmatpush1.bf16.msra.mxu0 0
      %510 = vmatprep.subr.bf16.mxu0 0
      %511 = vmatpush1.bf16.msra.mxu0 0
      %512 = vmatprep.subr.bf16.mxu0 0
      %513 = vmatpush1.bf16.msra.mxu0 0
      %514 = vmatprep.mubr.bf16.mxu0 %v435
      %515 = vmatmul.mubr.bf16.gmra.mrb[0].mxu0 %v331
      %v516 = vpop.f32.mrb[0].mxu0
      %v517 = vadd.f32 %v233, %v516
      %v518 = vpop.f32.mrb[0].mxu0
      %v519 = vpop.f32.mrb[0].mxu0
      %v520 = vadd.f32 %v233, %v519
      %v521 = vpop.f32.mrb[0].mxu0
      %522 = vmatprep.mubr.bf16.mxu0 %v438
      %523 = vmatmul.mubr.bf16.gmra.mrb[0].mxu0 %v333
      %v524 = vpop.f32.mrb[0].mxu0
      %v525 = vadd.f32 %v233, %v524
      %v526 = vpop.f32.mrb[0].mxu0
      %v527 = vpop.f32.mrb[0].mxu0
      %v528 = vadd.f32 %v233, %v527
      %v529 = vpop.f32.mrb[0].mxu0
      %530 = vmatprep.mubr.bf16.mxu0 %v441
      %531 = vmatmul.mubr.bf16.gmra.mrb[0].mxu0 %v335
      %v532 = vpop.f32.mrb[0].mxu0
      %v533 = vadd.f32 %v233, %v532
      %v534 = vpop.f32.mrb[0].mxu0
      %v535 = vpop.f32.mrb[0].mxu0
      %v536 = vadd.f32 %v233, %v535
      %v537 = vpop.f32.mrb[0].mxu0
      %538 = vmatprep.mubr.bf16.mxu0 %v444
      %539 = vmatmul.mubr.bf16.gmra.mrb[0].mxu0 %v337
      %v540 = vpop.f32.mrb[0].mxu0
      %v541 = vadd.f32 %v233, %v540
      %v542 = vpop.f32.mrb[0].mxu0
      %v543 = vpop.f32.mrb[0].mxu0
      %v544 = vadd.f32 %v233, %v543
      %v545 = vpop.f32.mrb[0].mxu0
      %546 = vmatprep.mubr.bf16.mxu0 %v447
      %547 = vmatmul.mubr.bf16.gmra.mrb[0].mxu0 %v339
      %v548 = vpop.f32.mrb[0].mxu0
      %v549 = vadd.f32 %v233, %v548
      %v550 = vpop.f32.mrb[0].mxu0
      %v551 = vpop.f32.mrb[0].mxu0
      %v552 = vadd.f32 %v233, %v551
      %v553 = vpop.f32.mrb[0].mxu0
      %554 = vmatprep.mubr.bf16.mxu0 %v450
      %555 = vmatmul.mubr.bf16.gmra.mrb[0].mxu0 %v341
      %v556 = vpop.f32.mrb[0].mxu0
      %v557 = vadd.f32 %v233, %v556
      %v558 = vpop.f32.mrb[0].mxu0
      %v559 = vpop.f32.mrb[0].mxu0
      %v560 = vadd.f32 %v233, %v559
      %v561 = vpop.f32.mrb[0].mxu0
      %562 = vmatprep.mubr.bf16.mxu0 %v453
      %563 = vmatmul.mubr.bf16.gmra.mrb[0].mxu0 %v343
      %v564 = vpop.f32.mrb[0].mxu0
      %v565 = vadd.f32 %v233, %v564
      %v566 = vpop.f32.mrb[0].mxu0
      %v567 = vpop.f32.mrb[0].mxu0
      %v568 = vadd.f32 %v233, %v567
      %v569 = vpop.f32.mrb[0].mxu0
      %570 = vmatprep.mubr.bf16.mxu0 %v456
      %571 = vmatmul.mubr.bf16.gmra.mrb[0].mxu0 %v345
      %v572 = vpop.f32.mrb[0].mxu0
      %v573 = vadd.f32 %v233, %v572
      %v574 = vpop.f32.mrb[0].mxu0
      %v575 = vpop.f32.mrb[0].mxu0
      %v576 = vadd.f32 %v233, %v575
      %v577 = vpop.f32.mrb[0].mxu0
      %578 = vmatprep.mubr.bf16.mxu0 %v459
      %579 = vmatmul.mubr.bf16.gmra.mrb[0].mxu0 %v347
      %v580 = vpop.f32.mrb[0].mxu0
      %v581 = vadd.f32 %v233, %v580
      %v582 = vpop.f32.mrb[0].mxu0
      %v583 = vpop.f32.mrb[0].mxu0
      %v584 = vadd.f32 %v233, %v583
      %v585 = vpop.f32.mrb[0].mxu0
      %586 = vmatprep.mubr.bf16.mxu0 %v462
      %587 = vmatmul.mubr.bf16.gmra.mrb[0].mxu0 %v349
      %v588 = vpop.f32.mrb[0].mxu0
      %v589 = vadd.f32 %v233, %v588
      %v590 = vpop.f32.mrb[0].mxu0
      %v591 = vpop.f32.mrb[0].mxu0
      %v592 = vadd.f32 %v233, %v591
      %v593 = vpop.f32.mrb[0].mxu0
      %594 = vmatprep.mubr.bf16.mxu0 %v465
      %595 = vmatmul.mubr.bf16.gmra.mrb[0].mxu0 %v351
      %v596 = vpop.f32.mrb[0].mxu0
      %v597 = vadd.f32 %v233, %v596
      %v598 = vpop.f32.mrb[0].mxu0
      %v599 = vpop.f32.mrb[0].mxu0
      %v600 = vadd.f32 %v233, %v599
      %v601 = vpop.f32.mrb[0].mxu0
      %602 = vmatprep.mubr.bf16.mxu0 %v468
      %603 = vmatmul.mubr.bf16.gmra.mrb[0].mxu0 %v353
      %v604 = vpop.f32.mrb[0].mxu0
      %v605 = vadd.f32 %v233, %v604
      %v606 = vpop.f32.mrb[0].mxu0
      %v607 = vpop.f32.mrb[0].mxu0
      %v608 = vadd.f32 %v233, %v607
      %v609 = vpop.f32.mrb[0].mxu0
      %610 = vmatprep.mubr.bf16.mxu0 %v471
      %611 = vmatmul.mubr.bf16.gmra.mrb[0].mxu0 %v355
      %v612 = vpop.f32.mrb[0].mxu0
      %v613 = vadd.f32 %v233, %v612
      %v614 = vpop.f32.mrb[0].mxu0
      %v615 = vpop.f32.mrb[0].mxu0
      %v616 = vadd.f32 %v233, %v615
      %v617 = vpop.f32.mrb[0].mxu0
      %618 = vmatprep.mubr.bf16.mxu0 %v474
      %619 = vmatmul.mubr.bf16.gmra.mrb[0].mxu0 %v357
      %v620 = vpop.f32.mrb[0].mxu0
      %v621 = vadd.f32 %v233, %v620
      %v622 = vpop.f32.mrb[0].mxu0
      %v623 = vpop.f32.mrb[0].mxu0
      %v624 = vadd.f32 %v233, %v623
      %v625 = vpop.f32.mrb[0].mxu0
      %626 = vmatprep.mubr.bf16.mxu0 %v477
      %627 = vmatmul.mubr.bf16.gmra.mrb[0].mxu0 %v359
      %v628 = vpop.f32.mrb[0].mxu0
      %v629 = vadd.f32 %v233, %v628
      %v630 = vpop.f32.mrb[0].mxu0
      %v631 = vpop.f32.mrb[0].mxu0
      %v632 = vadd.f32 %v233, %v631
      %v633 = vpop.f32.mrb[0].mxu0
      %634 = vmatprep.mubr.bf16.mxu0 %v480
      %635 = vmatmul.mubr.bf16.gmra.mrb[0].mxu0 %v361
      %v636 = vpop.f32.mrb[0].mxu0
      %v637 = vadd.f32 %v233, %v636
      %v638 = vpop.f32.mrb[0].mxu0
      %v639 = vpop.f32.mrb[0].mxu0
      %v640 = vadd.f32 %v233, %v639
      %v641 = vpop.f32.mrb[0].mxu0
      %642 = vdwg.mxu0
      %v643 = vtanh.pop %v517
      %v644 = vtanh.pop %v520
      %v645 = vtanh.pop %v525
      %v646 = vtanh.pop %v528
      %v647 = vtanh.pop %v533
      %v648 = vtanh.pop %v536
      %v649 = vtanh.pop %v541
      %v650 = vtanh.pop %v544
      %v651 = vtanh.pop %v549
      %v652 = vtanh.pop %v552
      %v653 = vtanh.pop %v557
      %v654 = vtanh.pop %v560
      %v655 = vtanh.pop %v565
      %v656 = vtanh.pop %v568
      %v657 = vtanh.pop %v573
      %v658 = vtanh.pop %v576
      %v659 = vtanh.pop %v581
      %v660 = vtanh.pop %v584
      %v661 = vtanh.pop %v589
      %v662 = vtanh.pop %v592
      %v663 = vtanh.pop %v597
      %v664 = vtanh.pop %v600
      %v665 = vtanh.pop %v605
      %v666 = vtanh.pop %v608
      %v667 = vtanh.pop %v613
      %v668 = vtanh.pop %v616
      %v669 = vtanh.pop %v621
      %v670 = vtanh.pop %v624
      %v671 = vtanh.pop %v629
      %v672 = vtanh.pop %v632
      %v673 = vtanh.pop %v637
      %v674 = vtanh.pop %v640
      %675 = vst [vmem:[%s175] sm:$0xff] %v643
      %676 = vst [vmem:[%s175 + $0x8] sm:$0xff] %v644
      %677 = vst [vmem:[%s175 + $0x10] sm:$0xff] %v645
      %678 = vst [vmem:[%s175 + $0x18] sm:$0xff] %v646
      %679 = vst [vmem:[%s175 + $0x20] sm:$0xff] %v647
      %680 = vst [vmem:[%s175 + $0x28] sm:$0xff] %v648
      %681 = vst [vmem:[%s175 + $0x30] sm:$0xff] %v649
      %682 = vst [vmem:[%s175 + $0x38] sm:$0xff] %v650
      %683 = vst [vmem:[%s175 + $0x40] sm:$0xff] %v651
      %684 = vst [vmem:[%s175 + $0x48] sm:$0xff] %v652
      %685 = vst [vmem:[%s175 + $0x50] sm:$0xff] %v653
      %686 = vst [vmem:[%s175 + $0x58] sm:$0xff] %v654
      %687 = vst [vmem:[%s175 + $0x60] sm:$0xff] %v655
      %688 = vst [vmem:[%s175 + $0x68] sm:$0xff] %v656
      %689 = vst [vmem:[%s175 + $0x70] sm:$0xff] %v657
      %690 = vst [vmem:[%s175 + $0x78] sm:$0xff] %v658
      %691 = vst [vmem:[%s175 + $0x80] sm:$0xff] %v659
      %692 = vst [vmem:[%s175 + $0x88] sm:$0xff] %v660
      %693 = vst [vmem:[%s175 + $0x90] sm:$0xff] %v661
      %694 = vst [vmem:[%s175 + $0x98] sm:$0xff] %v662
      %695 = vst [vmem:[%s175 + $0xa0] sm:$0xff] %v663
      %696 = vst [vmem:[%s175 + $0xa8] sm:$0xff] %v664
      %697 = vst [vmem:[%s175 + $0xb0] sm:$0xff] %v665
      %698 = vst [vmem:[%s175 + $0xb8] sm:$0xff] %v666
      %699 = vst [vmem:[%s175 + $0xc0] sm:$0xff] %v667
      %700 = vst [vmem:[%s175 + $0xc8] sm:$0xff] %v668
      %701 = vst [vmem:[%s175 + $0xd0] sm:$0xff] %v669
      %702 = vst [vmem:[%s175 + $0xd8] sm:$0xff] %v670
      %703 = vst [vmem:[%s175 + $0xe0] sm:$0xff] %v671
      %704 = vst [vmem:[%s175 + $0xe8] sm:$0xff] %v672
      %705 = vst [vmem:[%s175 + $0xf0] sm:$0xff] %v673
      %706 = vst [vmem:[%s175 + $0xf8] sm:$0xff] %v674
      %s707 = smul.u32 32, %s14
      %p708 = scmp.lt.s32.totalorder %s707, 255
      %s709 = scalar_select %p708, %s707, 255
      %s710 = smul.addr %s709, 8
      %s711 = scalar_lea.vmem %s3, %s710
      // Predicated region
      $region33: #{generator_forward.9} parent=31 // pred_check
        %p712 = pneg %p100
      $region34: #{generator_forward.9} parent=31 // pred_check_branch
        %714 = sbr.rel (%p712) target = $region36
      $region35: #{generator_forward.9} parent=31 // pred_region
        %s715 = smul.u32 32, %s14
      $region36: #{generator_forward.9} parent=31 // pred_fallthru
        _
    $region32: #{generator_forward.9} parent=5 // pred_fallthru
      _
    %p716 = scmp.le.s32.totalorder 2, %s9
    // Predicated region
    $region37: #{generator_forward.9} parent=5 // pred_check
      %p717 = pneg %p716
    $region38: #{generator_forward.9} parent=5 // pred_check_branch
      %719 = sbr.rel (%p717) target = $region40
    $region39: #{generator_forward.9} parent=5 // pred_region
      %s720 = ssub.s32 %s9, 2
      // Predicated region
      $region41: #{generator_forward.9} parent=39 // pred_check
        %p721 = pneg %p106
      $region42: #{generator_forward.9} parent=39 // pred_check_branch
        %723 = sbr.rel (%p721) target = $region44
      $region43: #{generator_forward.9} parent=39 // pred_region
        %s724 = smul.u32 32, %s15
        %p725 = scmp.lt.s32.totalorder %s724, 255
        %s726 = scalar_select %p725, %s724, 255
        %s727 = smul.addr %s726, 8
        %s728 = scalar_lea.vmem %s3, %s727
      $region44: #{generator_forward.9} parent=39 // pred_fallthru
        _
    $region40: #{generator_forward.9} parent=5 // pred_fallthru
      _
  $region6: #{generator_forward.9} parent=0 // loop_footer
    %s13 = sadd.s32 1, %s9
  $region7: #{generator_forward.9} parent=0 // loop_footer_branch
    %8 = sbr.rel target = $region3
  $region8: #{generator_forward.9} parent=0 // loop_exit
    _

</llo_original>
